<compile_context>
chip_gen: v6e
topology: v6e:2x2x1
jax: 0.10.0
libtpu: 0.0.40
codegen_flags: <defaults>
</compile_context>

<pallas_src>
import math
from functools import partial

import jax
import jax.numpy as jnp
import numpy as np
from jax import lax
from jax.experimental import pallas as pl
from jax.experimental.pallas import tpu as pltpu

# Keep fp32 so the toy-size kernel matches the fp32 reference tightly; flip to
# jnp.bfloat16 for deployment sizes (2-3x MXU throughput on v6e/v7x).  Norm /
# softmax / elementwise math stays fp32 either way (v5e has no bf16 VPU/EUP).
MATMUL_DTYPE = jnp.float32


# ----------------------------- math helpers -----------------------------
def _mm(a, b):
    return jnp.dot(a.astype(MATMUL_DTYPE), b.astype(MATMUL_DTYPE),
                   preferred_element_type=jnp.float32)


def _bmm(eq, a, b):
    return jnp.einsum(eq, a.astype(MATMUL_DTYPE), b.astype(MATMUL_DTYPE),
                      preferred_element_type=jnp.float32)


def _rmsnorm(x, w, eps=1e-5):
    ms = jnp.mean(x * x, axis=-1, keepdims=True)
    return (x * lax.rsqrt(ms + eps)) * w


def _softmax(x, axis=-1):
    # denominator reciprocal on the EUP (its VLIW slot is otherwise idle here)
    m = jnp.max(x, axis=axis, keepdims=True)
    e = jnp.exp(x - m)
    return e * pl.reciprocal(jnp.sum(e, axis=axis, keepdims=True), approx=True)


def _heads_to_batch(x, nhead):
    # (B, L, d) -> (nhead*B, L, d//nhead).
    # TODO(synk): Mosaic dot_general only lowers single-leading-batch-dim
    # einsums, so 4-D head-batched einsums ('blhd,bmhd->bhlm') are not usable;
    # fold heads into the leading batch axis instead (one relayout per tensor).
    B, L, d = x.shape
    dh = d // nhead
    parts = [x[:, :, i * dh:(i + 1) * dh][None] for i in range(nhead)]
    return jnp.concatenate(parts, axis=0).reshape(nhead * B, L, dh)


def _batch_to_heads(y, nhead):
    # inverse: (nhead*B, L, dh) -> (B, L, nhead*dh)
    HB, L, dh = y.shape
    B = HB // nhead
    y = y.reshape(nhead, B, L, dh)
    return jnp.concatenate([y[i] for i in range(nhead)], axis=-1)


def _mha(q, k, v, nhead, inv_temp):
    # q, k, v: (B, L, d) with the attention batch axis leading.
    qb = _heads_to_batch(q * inv_temp, nhead)     # fold 1/temperature into q
    kb = _heads_to_batch(k, nhead)
    vb = _heads_to_batch(v, nhead)
    # TODO(synk): for the T-attention these are (nhead*N) tiny LxL matmuls;
    # at deployment sizes pack (stock, head) blocks block-diagonally or move
    # them to the VPU to cut MXU push/drain overhead.
    s = _bmm('blc,bmc->blm', qb, kb)              # one batched score matmul
    a = _softmax(s, axis=-1)                      # attn dropout == identity
    o = _bmm('blm,bmc->blc', a, vb)               # one batched apply matmul
    return _batch_to_heads(o, nhead)


def _attn_block(h, qkv_w, n1, n12, n2, n22, f1w, f1b, f2w, f2b,
                nhead, inv_temp, over_batch):
    """TAttention (over_batch=False) / SAttention (over_batch=True)."""
    xn = _rmsnorm(h, n1)                                        # norm1
    if over_batch:
        # single relayout in (and one out at the end) instead of transposing
        # q/k/v and the attention output separately.
        xn = jnp.swapaxes(xn, 0, 1)                             # (T, N, d)
    B, L, d = xn.shape
    qkv = _mm(xn.reshape(B * L, d), qkv_w)                      # fused Q|K|V
    q = qkv[:, 0 * d:1 * d].reshape(B, L, d)
    k = qkv[:, 1 * d:2 * d].reshape(B, L, d)
    v = qkv[:, 2 * d:3 * d].reshape(B, L, d)
    att = _mha(q, k, v, nhead, inv_temp)
    att = _rmsnorm(att, n12)                                    # norm1_2
    xt = _rmsnorm(xn + att, n2)                                 # residual + norm2
    ff = jnp.maximum(_mm(xt.reshape(B * L, d), f1w) + f1b, 0.0)
    ff = (_mm(ff, f2w) + f2b).reshape(B, L, d)
    out = _rmsnorm(xt + ff, n22)                                # norm2_2
    if over_batch:
        out = jnp.swapaxes(out, 0, 1)                           # back to (N, T, d)
    return out


# ------------------------------ Pallas kernels ------------------------------
def _make_getter(params_ref, layout):
    def get(name):
        row, (r, c) = layout[name]
        return params_ref[row:row + r, 0:c]
    return get


def per_stock_kernel(cfg, layout, src_ref, gate_ref, params_ref, h_ref):
    """Gate + embedding + positional encoding + intra-stock (T) attention.
    Gridded over stock blocks; everything here is per-stock independent."""
    get = _make_getter(params_ref, layout)
    d_feat, d_model = cfg['d_feat'], cfg['d_model']
    src = src_ref[...]                                 # (BN, T, d_feat)
    BN, T, _ = src.shape

    # --- feature gate ---
    g = _mm(gate_ref[...], get('gate_w')) + get('gate_b')
    g = float(d_feat) * _softmax(g * (1.0 / cfg['beta']), axis=-1)
    src = src * g[:, None, :]

    # --- feature embedding + positional encoding ---
    h = _mm(src.reshape(BN * T, d_feat), get('emb_w')) + get('emb_b')
    h = h.reshape(BN, T, d_model) + get('pe')[None, :, :]

    # --- intra-stock (temporal) attention block ---
    h = _attn_block(h, get('t_qkv'), get('t_n1'), get('t_n12'), get('t_n2'),
                    get('t_n22'), get('t_f1w'), get('t_f1b'), get('t_f2w'),
                    get('t_f2b'), cfg['t_nhead'], 1.0, over_batch=False)
    h_ref[...] = h


def cross_stock_kernel(cfg, layout, h_ref, params_ref, o_ref):
    """Inter-stock (S) attention + temporal attention pooling."""
    get = _make_getter(params_ref, layout)
    d_model = cfg['d_model']
    h = h_ref[...]                                     # (N, T, d_model)
    N, T, _ = h.shape

    inv_temp = 1.0 / math.sqrt(d_model / cfg['s_nhead'])
    # TODO(synk): at realistic stock counts, flash-tile this over the key-stock
    # axis (online softmax) and grid over query-stock tiles so the
    # (s_nhead*T, N, N) score tensor is never materialized in VMEM (mandatory
    # on v7x's 64 MiB before v5e/v6e's 128 MiB).
    h = _attn_block(h, get('s_qkv'), get('s_n1'), get('s_n12'), get('s_n2'),
                    get('s_n22'), get('s_f1w'), get('s_f1b'), get('s_f2w'),
                    get('s_f2b'), cfg['s_nhead'], inv_temp, over_batch=True)

    # --- temporal attention pooling: two batched matvecs on the MXU ---
    ht = _mm(h.reshape(N * T, d_model), get('temp_w')).reshape(N, T, d_model)
    q3 = ht[:, T - 1:T, :]                                     # (N, 1, d)
    lam = _softmax(_bmm('nqd,ntd->nqt', q3, ht), axis=-1)      # (N, 1, T)
    o_ref[...] = _bmm('nqt,ntd->nqd', lam, h).reshape(N, d_model)


# ------------------------- parameter packing (one-time) -------------------------
def _round8(n):
    return ((n + 7) // 8) * 8


def _build_layout(d_feat, d_gate, d_model, T):
    entries = [
        ('gate_w', (d_gate, d_feat)),
        ('pe', (T, d_model)),
        ('emb_w', (d_feat, d_model)),
        ('t_qkv', (d_model, 3 * d_model)),
        ('t_f1w', (d_model, d_model)),
        ('t_f2w', (d_model, d_model)),
        ('s_qkv', (d_model, 3 * d_model)),
        ('s_f1w', (d_model, d_model)),
        ('s_f2w', (d_model, d_model)),
        ('temp_w', (d_model, d_model)),
        ('gate_b', (1, d_feat)),
        ('emb_b', (1, d_model)),
        ('t_n1', (1, d_model)), ('t_n12', (1, d_model)),
        ('t_n2', (1, d_model)), ('t_n22', (1, d_model)),
        ('t_f1b', (1, d_model)), ('t_f2b', (1, d_model)),
        ('s_n1', (1, d_model)), ('s_n12', (1, d_model)),
        ('s_n2', (1, d_model)), ('s_n22', (1, d_model)),
        ('s_f1b', (1, d_model)), ('s_f2b', (1, d_model)),
    ]
    layout, row = {}, 0
    for name, shape in entries:
        layout[name] = (row, shape)
        row += _round8(shape[0])              # 8-row-align every entry
    rows = row
    lanes = ((max(s[1] for _, s in entries) + 127) // 128) * 128
    return layout, rows, lanes


def prepare_params(p, cfg, T):
    """One-time, jit-compatible packing of all small parameters into a single
    8-row-aligned (rows, 128k) fp32 buffer (3 input DMAs per kernel, not 30+)."""
    d_feat, d_model = cfg['d_feat'], cfg['d_model']
    d_gate = cfg['ge'] - cfg['gs']
    assert d_model % cfg['t_nhead'] == 0 and d_model % cfg['s_nhead'] == 0, (
        "kernel assumes d_model divisible by nhead (the PyTorch reference "
        "gives remainder columns to the last head)")
    packed = dict(p)
    packed['t_qkv'] = jnp.concatenate([p['t_qw'], p['t_kw'], p['t_vw']], axis=1)
    packed['s_qkv'] = jnp.concatenate([p['s_qw'], p['s_kw'], p['s_vw']], axis=1)
    layout, rows, lanes = _build_layout(d_feat, d_gate, d_model, T)
    buf = jnp.zeros((rows, lanes), jnp.float32)
    for name, (row, shape) in layout.items():
        arr = jnp.asarray(packed[name], jnp.float32).reshape(shape)
        buf = buf.at[row:row + shape[0], :shape[1]].set(arr)
    return buf, layout


def _pick_block_n(N, T):
    # target >=256 flattened rows per step (v6e/v7x MXU tiles); never exceed N.
    target = max(8, 256 // max(T, 1))
    if N <= target:
        return N
    for bn in range(min(target, N), 7, -1):
        if N % bn == 0 and bn % 8 == 0:       # keep gate block sublane-aligned
            return bn
    return N


# --------------------------------- forward ---------------------------------
def master_forward(x, pbuf, out_w, out_b, layout, cfg):
    N, T, _ = x.shape
    gs, ge = cfg['gs'], cfg['ge']
    d_feat, d_model = cfg['d_feat'], cfg['d_model']
    d_gate = ge - gs

    # slice the non-lane-aligned feature axis outside the kernel
    src = x[:, :, :gs]                         # (N, T, d_feat)
    gate_in = x[:, -1, gs:ge]                  # (N, d_gate)
    rows, lanes = pbuf.shape
    bn = _pick_block_n(N, T)

    # Stage 1: per-stock stages, parallel grid over stock blocks; the packed
    # parameter buffer stays resident (index_map always (0, 0)).
    h = pl.pallas_call(
        partial(per_stock_kernel, cfg, layout),
        grid=(N // bn,),
        out_shape=jax.ShapeDtypeStruct((N, T, d_model), jnp.float32),
        in_specs=[pl.BlockSpec((bn, T, d_feat), lambda i: (i, 0, 0)),
                  pl.BlockSpec((bn, d_gate), lambda i: (i, 0)),
                  pl.BlockSpec((rows, lanes), lambda i: (0, 0))],
        out_specs=pl.BlockSpec((bn, T, d_model), lambda i: (i, 0, 0)),
        compiler_params=pltpu.CompilerParams(
            dimension_semantics=("parallel",)),
    )(src, gate_in, pbuf)

    # Stage 2: cross-stock attention + pooling (grid-less at toy size).
    vmem = pl.BlockSpec(memory_space=pltpu.MemorySpace.VMEM)
    pooled = pl.pallas_call(
        partial(cross_stock_kernel, cfg, layout),
        out_shape=jax.ShapeDtypeStruct((N, d_model), jnp.float32),
        in_specs=[vmem, vmem],
        out_specs=vmem,
    )(h, pbuf)

    # final d_model -> 1 head in the wrapper keeps the kernel output lane-dense
    out = jnp.dot(pooled, out_w, preferred_element_type=jnp.float32) + out_b
    return out[:, 0]                                            # (N,)


# --------------------- pure-JAX reference (PyTorch-faithful) ---------------------
def _ref_rmsnorm(x, w, eps=1e-5):
    rms = jnp.sqrt(jnp.mean(x * x, axis=-1, keepdims=True) + eps)
    return w * (x / rms)


def _ref_attn(h, p, pre, nhead, temperature, over_batch):
    xn = _ref_rmsnorm(h, p[pre + '_n1'])
    q = xn @ p[pre + '_qw']
    k = xn @ p[pre + '_kw']
    v = xn @ p[pre + '_vw']
    if over_batch:
        q, k, v = (jnp.swapaxes(t, 0, 1) for t in (q, k, v))
    d = h.shape[-1]
    dim = d // nhead
    outs = []
    for i in range(nhead):
        hi = d if i == nhead - 1 else (i + 1) * dim
        qh, kh, vh = q[..., i * dim:hi], k[..., i * dim:hi], v[..., i * dim:hi]
        a = jax.nn.softmax(jnp.einsum('bqd,bkd->bqk', qh, kh) / temperature, axis=-1)
        oh = jnp.einsum('bqk,bkd->bqd', a, vh)
        if over_batch:
            oh = jnp.swapaxes(oh, 0, 1)
        outs.append(oh)
    att = _ref_rmsnorm(jnp.concatenate(outs, axis=-1), p[pre + '_n12'])
    xt = _ref_rmsnorm(xn + att, p[pre + '_n2'])
    ff = jnp.maximum(xt @ p[pre + '_f1w'] + p[pre + '_f1b'], 0.0)
    ff = ff @ p[pre + '_f2w'] + p[pre + '_f2b']
    return _ref_rmsnorm(xt + ff, p[pre + '_n22'])


def master_reference(x, p, cfg):
    gs, ge = cfg['gs'], cfg['ge']
    d_feat, d_model = cfg['d_feat'], cfg['d_model']
    src = x[:, :, :gs]
    gate_in = x[:, -1, gs:ge]
    g = gate_in @ p['gate_w'] + p['gate_b']
    g = d_feat * jax.nn.softmax(g / cfg['beta'], axis=-1)
    src = src * g[:, None, :]
    h = src @ p['emb_w'] + p['emb_b']
    h = h + p['pe']
    h = _ref_attn(h, p, 't', cfg['t_nhead'], 1.0, over_batch=False)
    h = _ref_attn(h, p, 's', cfg['s_nhead'],
                  math.sqrt(d_model / cfg['s_nhead']), over_batch=True)
    ht = h @ p['temp_w']
    query = ht[:, -1, :]
    lam = jax.nn.softmax(jnp.sum(ht * query[:, None, :], axis=-1), axis=-1)
    pooled = jnp.sum(lam[:, :, None] * h, axis=1)
    out = pooled @ p['out_w'] + p['out_b']
    return out[:, 0]


# ---------------------------------- main ----------------------------------
if __name__ == "__main__":
    N, T = 8, 8                       # batch (stocks), sequence length
    d_feat, d_model = 16, 32
    t_nhead, s_nhead = 4, 2
    beta = 5.0
    gs, ge = d_feat, d_feat + 8       # gate_input_start_index / end_index
    F = ge                            # total input feature dim
    d_gate = ge - gs

    cfg = dict(d_feat=d_feat, d_model=d_model, t_nhead=t_nhead,
               s_nhead=s_nhead, beta=beta, gs=gs, ge=ge)

    key = jax.random.PRNGKey(0)
    ks = jax.random.split(key, 32)

    def init(k, shape, scale=0.1):
        return scale * jax.random.normal(k, shape, dtype=jnp.float32)

    def norm_w(k):
        return 1.0 + 0.05 * jax.random.normal(k, (1, d_model), dtype=jnp.float32)

    # PositionalEncoding buffer (first T rows)
    pos = jnp.arange(T, dtype=jnp.float32)[:, None]
    div = jnp.exp(jnp.arange(0, d_model, 2, dtype=jnp.float32)
                  * (-math.log(10000.0) / d_model))
    pe = jnp.zeros((T, d_model), jnp.float32)
    pe = pe.at[:, 0::2].set(jnp.sin(pos * div))
    pe = pe.at[:, 1::2].set(jnp.cos(pos * div))

    p = {
        'gate_w': init(ks[0], (d_gate, d_feat)), 'gate_b': init(ks[1], (1, d_feat)),
        'emb_w': init(ks[2], (d_feat, d_model)), 'emb_b': init(ks[3], (1, d_model)),
        'pe': pe,
        't_n1': norm_w(ks[22]), 't_n12': norm_w(ks[23]),
        't_n2': norm_w(ks[24]), 't_n22': norm_w(ks[25]),
        't_qw': init(ks[4], (d_model, d_model)),
        't_kw': init(ks[5], (d_model, d_model)),
        't_vw': init(ks[6], (d_model, d_model)),
        't_f1w': init(ks[7], (d_model, d_model)), 't_f1b': init(ks[8], (1, d_model)),
        't_f2w': init(ks[9], (d_model, d_model)), 't_f2b': init(ks[10], (1, d_model)),
        's_n1': norm_w(ks[26]), 's_n12': norm_w(ks[27]),
        's_n2': norm_w(ks[28]), 's_n22': norm_w(ks[29]),
        's_qw': init(ks[11], (d_model, d_model)),
        's_kw': init(ks[12], (d_model, d_model)),
        's_vw': init(ks[13], (d_model, d_model)),
        's_f1w': init(ks[14], (d_model, d_model)), 's_f1b': init(ks[15], (1, d_model)),
        's_f2w': init(ks[16], (d_model, d_model)), 's_f2b': init(ks[17], (1, d_model)),
        'temp_w': init(ks[18], (d_model, d_model)),
        'out_w': init(ks[19], (d_model, 1)), 'out_b': init(ks[20], (1, 1)),
    }

    x = jax.random.normal(ks[30], (N, T, F), dtype=jnp.float32)

    # one-time parameter packing (out of the per-call path), jit-able forward
    pbuf, layout = prepare_params(p, cfg, T)
    fwd = jax.jit(lambda xx, pb, ow, ob: master_forward(xx, pb, ow, ob, layout, cfg))

    out = jax.block_until_ready(fwd(x, pbuf, p['out_w'], p['out_b']))
    ref = jax.block_until_ready(master_reference(x, p, cfg))
    # tolerance loosened slightly vs fp32 reference because softmax denominators
    # use the EUP approximate reciprocal (per the performance review)
    np.testing.assert_allclose(np.asarray(out), np.asarray(ref),
                               rtol=2e-3, atol=2e-3)
    print("KERNEL_OK")
</pallas_src>

<mosaic_0001>
module attributes {stable_mosaic.version = 11 : i64} {
  func.func @per_stock_kernel(%arg0: i32, %arg1: memref<8x8x16xf32, #tpu.memory_space<vmem>>, %arg2: memref<8x8xf32, #tpu.memory_space<vmem>>, %arg3: memref<368x128xf32, #tpu.memory_space<vmem>>, %arg4: memref<8x8x32xf32, #tpu.memory_space<vmem>>) attributes {dimension_semantics = [#tpu.dimension_semantics<parallel>], iteration_bounds = array<i64: 1>, scalar_prefetch = 0 : i64, scratch_operands = 0 : i64, tpu.core_type = #tpu.core_type<tc>, window_params = [{transform_indices = @transform_0, window_bounds = array<i64: 8, 8, 16>}, {transform_indices = @transform_1, window_bounds = array<i64: 8, 8>}, {pipeline_mode = #tpu.pipeline_mode<synchronous>, transform_indices = @transform_2, window_bounds = array<i64: 368, 128>}, {transform_indices = @transform_3, window_bounds = array<i64: 8, 8, 32>}]} {
    %c0 = arith.constant 0 : index
    %c0_0 = arith.constant 0 : index
    %c0_1 = arith.constant 0 : index
    %0 = vector.load %arg1[%c0, %c0_0, %c0_1] : memref<8x8x16xf32, #tpu.memory_space<vmem>>, vector<8x8x16xf32>
    %c0_2 = arith.constant 0 : index
    %c0_3 = arith.constant 0 : index
    %1 = vector.load %arg2[%c0_2, %c0_3] : memref<8x8xf32, #tpu.memory_space<vmem>>, vector<8x8xf32>
    %c0_4 = arith.constant 0 : index
    %c0_5 = arith.constant 0 : index
    %2 = vector.load %arg3[%c0_4, %c0_5] : memref<368x128xf32, #tpu.memory_space<vmem>>, vector<8x16xf32>
    %cst = arith.constant dense<0.000000e+00> : vector<8x16xf32>
    %3 = tpu.matmul %1, %2, %cst {dimension_numbers = #tpu.dot_dimension_numbers<[1], [0], [0], [1], [0, 0, 1, 1], [], []>} : vector<8x8xf32>, vector<8x16xf32>, vector<8x16xf32> -> vector<8x16xf32>
    %c256 = arith.constant 256 : index
    %c0_6 = arith.constant 0 : index
    %4 = vector.load %arg3[%c256, %c0_6] : memref<368x128xf32, #tpu.memory_space<vmem>>, vector<1x16xf32>
    %5 = vector.broadcast %4 : vector<1x16xf32> to vector<8x16xf32>
    %6 = arith.addf %3, %5 : vector<8x16xf32>
    %cst_7 = arith.constant 2.000000e-01 : f32
    %7 = vector.broadcast %cst_7 : f32 to vector<8x16xf32>
    %8 = arith.mulf %6, %7 : vector<8x16xf32>
    %cst_8 = arith.constant dense<0xFF800000> : vector<8xf32>
    %9 = vector.multi_reduction <maximumf>, %8, %cst_8 [1] : vector<8x16xf32> to vector<8xf32>
    %10 = vector.shape_cast %9 : vector<8xf32> to vector<8x1xf32>
    %11 = vector.broadcast %10 : vector<8x1xf32> to vector<8x16xf32>
    %12 = arith.subf %8, %11 : vector<8x16xf32>
    %13 = math.exp %12 : vector<8x16xf32>
    %cst_9 = arith.constant dense<0.000000e+00> : vector<8xf32>
    %14 = vector.multi_reduction <add>, %13, %cst_9 [1] : vector<8x16xf32> to vector<8xf32>
    %15 = vector.shape_cast %14 : vector<8xf32> to vector<8x1xf32>
    %16 = tpu.reciprocal %15 {approx = true} : vector<8x1xf32> -> vector<8x1xf32>
    %17 = vector.broadcast %16 : vector<8x1xf32> to vector<8x16xf32>
    %18 = arith.mulf %13, %17 : vector<8x16xf32>
    %cst_10 = arith.constant 1.600000e+01 : f32
    %19 = vector.broadcast %cst_10 : f32 to vector<8x16xf32>
    %20 = arith.mulf %19, %18 : vector<8x16xf32>
    %21 = vector.shape_cast %20 : vector<8x16xf32> to vector<8x1x16xf32>
    %22 = vector.broadcast %21 : vector<8x1x16xf32> to vector<8x8x16xf32>
    %23 = arith.mulf %0, %22 : vector<8x8x16xf32>
    %24 = vector.shape_cast %23 : vector<8x8x16xf32> to vector<64x16xf32>
    %c16 = arith.constant 16 : index
    %c0_11 = arith.constant 0 : index
    %25 = vector.load %arg3[%c16, %c0_11] : memref<368x128xf32, #tpu.memory_space<vmem>>, vector<16x32xf32>
    %cst_12 = arith.constant dense<0.000000e+00> : vector<64x32xf32>
    %26 = tpu.matmul %24, %25, %cst_12 {dimension_numbers = #tpu.dot_dimension_numbers<[1], [0], [0], [1], [0, 0, 1, 1], [], []>} : vector<64x16xf32>, vector<16x32xf32>, vector<64x32xf32> -> vector<64x32xf32>
    %c264 = arith.constant 264 : index
    %c0_13 = arith.constant 0 : index
    %27 = vector.load %arg3[%c264, %c0_13] : memref<368x128xf32, #tpu.memory_space<vmem>>, vector<1x32xf32>
    %28 = vector.broadcast %27 : vector<1x32xf32> to vector<64x32xf32>
    %29 = arith.addf %26, %28 : vector<64x32xf32>
    %30 = vector.shape_cast %29 : vector<64x32xf32> to vector<8x8x32xf32>
    %c8 = arith.constant 8 : index
    %c0_14 = arith.constant 0 : index
    %31 = vector.load %arg3[%c8, %c0_14] : memref<368x128xf32, #tpu.memory_space<vmem>>, vector<8x32xf32>
    %32 = vector.shape_cast %31 : vector<8x32xf32> to vector<1x8x32xf32>
    %33 = vector.broadcast %32 : vector<1x8x32xf32> to vector<8x8x32xf32>
    %34 = arith.addf %30, %33 : vector<8x8x32xf32>
    %c32 = arith.constant 32 : index
    %c0_15 = arith.constant 0 : index
    %35 = vector.load %arg3[%c32, %c0_15] : memref<368x128xf32, #tpu.memory_space<vmem>>, vector<32x96xf32>
    %c272 = arith.constant 272 : index
    %c0_16 = arith.constant 0 : index
    %36 = vector.load %arg3[%c272, %c0_16] : memref<368x128xf32, #tpu.memory_space<vmem>>, vector<1x32xf32>
    %c280 = arith.constant 280 : index
    %c0_17 = arith.constant 0 : index
    %37 = vector.load %arg3[%c280, %c0_17] : memref<368x128xf32, #tpu.memory_space<vmem>>, vector<1x32xf32>
    %c288 = arith.constant 288 : index
    %c0_18 = arith.constant 0 : index
    %38 = vector.load %arg3[%c288, %c0_18] : memref<368x128xf32, #tpu.memory_space<vmem>>, vector<1x32xf32>
    %c296 = arith.constant 296 : index
    %c0_19 = arith.constant 0 : index
    %39 = vector.load %arg3[%c296, %c0_19] : memref<368x128xf32, #tpu.memory_space<vmem>>, vector<1x32xf32>
    %c64 = arith.constant 64 : index
    %c0_20 = arith.constant 0 : index
    %40 = vector.load %arg3[%c64, %c0_20] : memref<368x128xf32, #tpu.memory_space<vmem>>, vector<32x32xf32>
    %c304 = arith.constant 304 : index
    %c0_21 = arith.constant 0 : index
    %41 = vector.load %arg3[%c304, %c0_21] : memref<368x128xf32, #tpu.memory_space<vmem>>, vector<1x32xf32>
    %c96 = arith.constant 96 : index
    %c0_22 = arith.constant 0 : index
    %42 = vector.load %arg3[%c96, %c0_22] : memref<368x128xf32, #tpu.memory_space<vmem>>, vector<32x32xf32>
    %c312 = arith.constant 312 : index
    %c0_23 = arith.constant 0 : index
    %43 = vector.load %arg3[%c312, %c0_23] : memref<368x128xf32, #tpu.memory_space<vmem>>, vector<1x32xf32>
    %44 = arith.mulf %34, %34 : vector<8x8x32xf32>
    %cst_24 = arith.constant dense<0.000000e+00> : vector<8x8xf32>
    %45 = vector.multi_reduction <add>, %44, %cst_24 [2] : vector<8x8x32xf32> to vector<8x8xf32>
    %46 = vector.shape_cast %45 : vector<8x8xf32> to vector<8x8x1xf32>
    %cst_25 = arith.constant 3.200000e+01 : f32
    %47 = vector.broadcast %cst_25 : f32 to vector<8x8x1xf32>
    %48 = arith.divf %46, %47 : vector<8x8x1xf32>
    %cst_26 = arith.constant 9.99999974E-6 : f32
    %49 = vector.broadcast %cst_26 : f32 to vector<8x8x1xf32>
    %50 = arith.addf %48, %49 : vector<8x8x1xf32>
    %51 = math.rsqrt %50 : vector<8x8x1xf32>
    %52 = vector.broadcast %51 : vector<8x8x1xf32> to vector<8x8x32xf32>
    %53 = arith.mulf %34, %52 : vector<8x8x32xf32>
    %54 = vector.shape_cast %36 : vector<1x32xf32> to vector<1x1x32xf32>
    %55 = vector.broadcast %54 : vector<1x1x32xf32> to vector<8x8x32xf32>
    %56 = arith.mulf %53, %55 : vector<8x8x32xf32>
    %57 = vector.shape_cast %56 : vector<8x8x32xf32> to vector<64x32xf32>
    %cst_27 = arith.constant dense<0.000000e+00> : vector<64x96xf32>
    %58 = tpu.matmul %57, %35, %cst_27 {dimension_numbers = #tpu.dot_dimension_numbers<[1], [0], [0], [1], [0, 0, 1, 1], [], []>} : vector<64x32xf32>, vector<32x96xf32>, vector<64x96xf32> -> vector<64x96xf32>
    %59 = vector.extract_strided_slice %58 {offsets = [0, 0], sizes = [64, 32], strides = [1, 1]} : vector<64x96xf32> to vector<64x32xf32>
    %60 = vector.shape_cast %59 : vector<64x32xf32> to vector<8x8x32xf32>
    %61 = vector.extract_strided_slice %58 {offsets = [0, 32], sizes = [64, 32], strides = [1, 1]} : vector<64x96xf32> to vector<64x32xf32>
    %62 = vector.shape_cast %61 : vector<64x32xf32> to vector<8x8x32xf32>
    %63 = vector.extract_strided_slice %58 {offsets = [0, 64], sizes = [64, 32], strides = [1, 1]} : vector<64x96xf32> to vector<64x32xf32>
    %64 = vector.shape_cast %63 : vector<64x32xf32> to vector<8x8x32xf32>
    %cst_28 = arith.constant 1.000000e+00 : f32
    %65 = vector.broadcast %cst_28 : f32 to vector<8x8x32xf32>
    %66 = arith.mulf %60, %65 : vector<8x8x32xf32>
    %67 = vector.extract_strided_slice %66 {offsets = [0, 0, 0], sizes = [8, 8, 8], strides = [1, 1, 1]} : vector<8x8x32xf32> to vector<8x8x8xf32>
    %68 = vector.shape_cast %67 : vector<8x8x8xf32> to vector<1x8x8x8xf32>
    %69 = vector.extract_strided_slice %66 {offsets = [0, 0, 8], sizes = [8, 8, 8], strides = [1, 1, 1]} : vector<8x8x32xf32> to vector<8x8x8xf32>
    %70 = vector.shape_cast %69 : vector<8x8x8xf32> to vector<1x8x8x8xf32>
    %71 = vector.extract_strided_slice %66 {offsets = [0, 0, 16], sizes = [8, 8, 8], strides = [1, 1, 1]} : vector<8x8x32xf32> to vector<8x8x8xf32>
    %72 = vector.shape_cast %71 : vector<8x8x8xf32> to vector<1x8x8x8xf32>
    %73 = vector.extract_strided_slice %66 {offsets = [0, 0, 24], sizes = [8, 8, 8], strides = [1, 1, 1]} : vector<8x8x32xf32> to vector<8x8x8xf32>
    %74 = vector.shape_cast %73 : vector<8x8x8xf32> to vector<1x8x8x8xf32>
    %75 = tpu.concatenate %68, %70, %72, %74 in 0 : vector<1x8x8x8xf32>, vector<1x8x8x8xf32>, vector<1x8x8x8xf32>, vector<1x8x8x8xf32> -> vector<4x8x8x8xf32>
    %76 = vector.shape_cast %75 : vector<4x8x8x8xf32> to vector<32x8x8xf32>
    %77 = vector.extract_strided_slice %62 {offsets = [0, 0, 0], sizes = [8, 8, 8], strides = [1, 1, 1]} : vector<8x8x32xf32> to vector<8x8x8xf32>
    %78 = vector.shape_cast %77 : vector<8x8x8xf32> to vector<1x8x8x8xf32>
    %79 = vector.extract_strided_slice %62 {offsets = [0, 0, 8], sizes = [8, 8, 8], strides = [1, 1, 1]} : vector<8x8x32xf32> to vector<8x8x8xf32>
    %80 = vector.shape_cast %79 : vector<8x8x8xf32> to vector<1x8x8x8xf32>
    %81 = vector.extract_strided_slice %62 {offsets = [0, 0, 16], sizes = [8, 8, 8], strides = [1, 1, 1]} : vector<8x8x32xf32> to vector<8x8x8xf32>
    %82 = vector.shape_cast %81 : vector<8x8x8xf32> to vector<1x8x8x8xf32>
    %83 = vector.extract_strided_slice %62 {offsets = [0, 0, 24], sizes = [8, 8, 8], strides = [1, 1, 1]} : vector<8x8x32xf32> to vector<8x8x8xf32>
    %84 = vector.shape_cast %83 : vector<8x8x8xf32> to vector<1x8x8x8xf32>
    %85 = tpu.concatenate %78, %80, %82, %84 in 0 : vector<1x8x8x8xf32>, vector<1x8x8x8xf32>, vector<1x8x8x8xf32>, vector<1x8x8x8xf32> -> vector<4x8x8x8xf32>
    %86 = vector.shape_cast %85 : vector<4x8x8x8xf32> to vector<32x8x8xf32>
    %87 = vector.extract_strided_slice %64 {offsets = [0, 0, 0], sizes = [8, 8, 8], strides = [1, 1, 1]} : vector<8x8x32xf32> to vector<8x8x8xf32>
    %88 = vector.shape_cast %87 : vector<8x8x8xf32> to vector<1x8x8x8xf32>
    %89 = vector.extract_strided_slice %64 {offsets = [0, 0, 8], sizes = [8, 8, 8], strides = [1, 1, 1]} : vector<8x8x32xf32> to vector<8x8x8xf32>
    %90 = vector.shape_cast %89 : vector<8x8x8xf32> to vector<1x8x8x8xf32>
    %91 = vector.extract_strided_slice %64 {offsets = [0, 0, 16], sizes = [8, 8, 8], strides = [1, 1, 1]} : vector<8x8x32xf32> to vector<8x8x8xf32>
    %92 = vector.shape_cast %91 : vector<8x8x8xf32> to vector<1x8x8x8xf32>
    %93 = vector.extract_strided_slice %64 {offsets = [0, 0, 24], sizes = [8, 8, 8], strides = [1, 1, 1]} : vector<8x8x32xf32> to vector<8x8x8xf32>
    %94 = vector.shape_cast %93 : vector<8x8x8xf32> to vector<1x8x8x8xf32>
    %95 = tpu.concatenate %88, %90, %92, %94 in 0 : vector<1x8x8x8xf32>, vector<1x8x8x8xf32>, vector<1x8x8x8xf32>, vector<1x8x8x8xf32> -> vector<4x8x8x8xf32>
    %96 = vector.shape_cast %95 : vector<4x8x8x8xf32> to vector<32x8x8xf32>
    "tpu.trace_start"() <{level = 10 : i32, message = "blc,bmc->blm"}> : () -> ()
    %cst_29 = arith.constant dense<0.000000e+00> : vector<32x8x8xf32>
    %97 = tpu.matmul %76, %86, %cst_29 {dimension_numbers = #tpu.dot_dimension_numbers<[2], [2], [1], [1], [0, 0, 0, 1, 1, 1], [0], [0]>} : vector<32x8x8xf32>, vector<32x8x8xf32>, vector<32x8x8xf32> -> vector<32x8x8xf32>
    "tpu.trace_stop"() : () -> ()
    %cst_30 = arith.constant dense<0xFF800000> : vector<32x8xf32>
    %98 = vector.multi_reduction <maximumf>, %97, %cst_30 [2] : vector<32x8x8xf32> to vector<32x8xf32>
    %99 = vector.shape_cast %98 : vector<32x8xf32> to vector<32x8x1xf32>
    %100 = vector.broadcast %99 : vector<32x8x1xf32> to vector<32x8x8xf32>
    %101 = arith.subf %97, %100 : vector<32x8x8xf32>
    %102 = math.exp %101 : vector<32x8x8xf32>
    %cst_31 = arith.constant dense<0.000000e+00> : vector<32x8xf32>
    %103 = vector.multi_reduction <add>, %102, %cst_31 [2] : vector<32x8x8xf32> to vector<32x8xf32>
    %104 = vector.shape_cast %103 : vector<32x8xf32> to vector<32x8x1xf32>
    %105 = tpu.reciprocal %104 {approx = true} : vector<32x8x1xf32> -> vector<32x8x1xf32>
    %106 = vector.broadcast %105 : vector<32x8x1xf32> to vector<32x8x8xf32>
    %107 = arith.mulf %102, %106 : vector<32x8x8xf32>
    "tpu.trace_start"() <{level = 10 : i32, message = "blm,bmc->blc"}> : () -> ()
    %cst_32 = arith.constant dense<0.000000e+00> : vector<32x8x8xf32>
    %108 = tpu.matmul %107, %96, %cst_32 {dimension_numbers = #tpu.dot_dimension_numbers<[2], [1], [1], [2], [0, 0, 0, 1, 1, 2], [0], [0]>} : vector<32x8x8xf32>, vector<32x8x8xf32>, vector<32x8x8xf32> -> vector<32x8x8xf32>
    "tpu.trace_stop"() : () -> ()
    %109 = vector.shape_cast %108 : vector<32x8x8xf32> to vector<4x8x8x8xf32>
    %110 = vector.extract_strided_slice %109 {offsets = [0, 0, 0, 0], sizes = [1, 8, 8, 8], strides = [1, 1, 1, 1]} : vector<4x8x8x8xf32> to vector<1x8x8x8xf32>
    %111 = vector.shape_cast %110 : vector<1x8x8x8xf32> to vector<8x8x8xf32>
    %112 = vector.extract_strided_slice %109 {offsets = [1, 0, 0, 0], sizes = [1, 8, 8, 8], strides = [1, 1, 1, 1]} : vector<4x8x8x8xf32> to vector<1x8x8x8xf32>
    %113 = vector.shape_cast %112 : vector<1x8x8x8xf32> to vector<8x8x8xf32>
    %114 = vector.extract_strided_slice %109 {offsets = [2, 0, 0, 0], sizes = [1, 8, 8, 8], strides = [1, 1, 1, 1]} : vector<4x8x8x8xf32> to vector<1x8x8x8xf32>
    %115 = vector.shape_cast %114 : vector<1x8x8x8xf32> to vector<8x8x8xf32>
    %116 = vector.extract_strided_slice %109 {offsets = [3, 0, 0, 0], sizes = [1, 8, 8, 8], strides = [1, 1, 1, 1]} : vector<4x8x8x8xf32> to vector<1x8x8x8xf32>
    %117 = vector.shape_cast %116 : vector<1x8x8x8xf32> to vector<8x8x8xf32>
    %118 = tpu.concatenate %111, %113, %115, %117 in 2 : vector<8x8x8xf32>, vector<8x8x8xf32>, vector<8x8x8xf32>, vector<8x8x8xf32> -> vector<8x8x32xf32>
    %119 = arith.mulf %118, %118 : vector<8x8x32xf32>
    %cst_33 = arith.constant dense<0.000000e+00> : vector<8x8xf32>
    %120 = vector.multi_reduction <add>, %119, %cst_33 [2] : vector<8x8x32xf32> to vector<8x8xf32>
    %121 = vector.shape_cast %120 : vector<8x8xf32> to vector<8x8x1xf32>
    %cst_34 = arith.constant 3.200000e+01 : f32
    %122 = vector.broadcast %cst_34 : f32 to vector<8x8x1xf32>
    %123 = arith.divf %121, %122 : vector<8x8x1xf32>
    %cst_35 = arith.constant 9.99999974E-6 : f32
    %124 = vector.broadcast %cst_35 : f32 to vector<8x8x1xf32>
    %125 = arith.addf %123, %124 : vector<8x8x1xf32>
    %126 = math.rsqrt %125 : vector<8x8x1xf32>
    %127 = vector.broadcast %126 : vector<8x8x1xf32> to vector<8x8x32xf32>
    %128 = arith.mulf %118, %127 : vector<8x8x32xf32>
    %129 = vector.shape_cast %37 : vector<1x32xf32> to vector<1x1x32xf32>
    %130 = vector.broadcast %129 : vector<1x1x32xf32> to vector<8x8x32xf32>
    %131 = arith.mulf %128, %130 : vector<8x8x32xf32>
    %132 = arith.addf %56, %131 : vector<8x8x32xf32>
    %133 = arith.mulf %132, %132 : vector<8x8x32xf32>
    %cst_36 = arith.constant dense<0.000000e+00> : vector<8x8xf32>
    %134 = vector.multi_reduction <add>, %133, %cst_36 [2] : vector<8x8x32xf32> to vector<8x8xf32>
    %135 = vector.shape_cast %134 : vector<8x8xf32> to vector<8x8x1xf32>
    %cst_37 = arith.constant 3.200000e+01 : f32
    %136 = vector.broadcast %cst_37 : f32 to vector<8x8x1xf32>
    %137 = arith.divf %135, %136 : vector<8x8x1xf32>
    %cst_38 = arith.constant 9.99999974E-6 : f32
    %138 = vector.broadcast %cst_38 : f32 to vector<8x8x1xf32>
    %139 = arith.addf %137, %138 : vector<8x8x1xf32>
    %140 = math.rsqrt %139 : vector<8x8x1xf32>
    %141 = vector.broadcast %140 : vector<8x8x1xf32> to vector<8x8x32xf32>
    %142 = arith.mulf %132, %141 : vector<8x8x32xf32>
    %143 = vector.shape_cast %38 : vector<1x32xf32> to vector<1x1x32xf32>
    %144 = vector.broadcast %143 : vector<1x1x32xf32> to vector<8x8x32xf32>
    %145 = arith.mulf %142, %144 : vector<8x8x32xf32>
    %146 = vector.shape_cast %145 : vector<8x8x32xf32> to vector<64x32xf32>
    %cst_39 = arith.constant dense<0.000000e+00> : vector<64x32xf32>
    %147 = tpu.matmul %146, %40, %cst_39 {dimension_numbers = #tpu.dot_dimension_numbers<[1], [0], [0], [1], [0, 0, 1, 1], [], []>} : vector<64x32xf32>, vector<32x32xf32>, vector<64x32xf32> -> vector<64x32xf32>
    %148 = vector.broadcast %41 : vector<1x32xf32> to vector<64x32xf32>
    %149 = arith.addf %147, %148 : vector<64x32xf32>
    %cst_40 = arith.constant 0.000000e+00 : f32
    %150 = vector.broadcast %cst_40 : f32 to vector<64x32xf32>
    %151 = arith.maximumf %149, %150 : vector<64x32xf32>
    %cst_41 = arith.constant dense<0.000000e+00> : vector<64x32xf32>
    %152 = tpu.matmul %151, %42, %cst_41 {dimension_numbers = #tpu.dot_dimension_numbers<[1], [0], [0], [1], [0, 0, 1, 1], [], []>} : vector<64x32xf32>, vector<32x32xf32>, vector<64x32xf32> -> vector<64x32xf32>
    %153 = vector.broadcast %43 : vector<1x32xf32> to vector<64x32xf32>
    %154 = arith.addf %152, %153 : vector<64x32xf32>
    %155 = vector.shape_cast %154 : vector<64x32xf32> to vector<8x8x32xf32>
    %156 = arith.addf %145, %155 : vector<8x8x32xf32>
    %157 = arith.mulf %156, %156 : vector<8x8x32xf32>
    %cst_42 = arith.constant dense<0.000000e+00> : vector<8x8xf32>
    %158 = vector.multi_reduction <add>, %157, %cst_42 [2] : vector<8x8x32xf32> to vector<8x8xf32>
    %159 = vector.shape_cast %158 : vector<8x8xf32> to vector<8x8x1xf32>
    %cst_43 = arith.constant 3.200000e+01 : f32
    %160 = vector.broadcast %cst_43 : f32 to vector<8x8x1xf32>
    %161 = arith.divf %159, %160 : vector<8x8x1xf32>
    %cst_44 = arith.constant 9.99999974E-6 : f32
    %162 = vector.broadcast %cst_44 : f32 to vector<8x8x1xf32>
    %163 = arith.addf %161, %162 : vector<8x8x1xf32>
    %164 = math.rsqrt %163 : vector<8x8x1xf32>
    %165 = vector.broadcast %164 : vector<8x8x1xf32> to vector<8x8x32xf32>
    %166 = arith.mulf %156, %165 : vector<8x8x32xf32>
    %167 = vector.shape_cast %39 : vector<1x32xf32> to vector<1x1x32xf32>
    %168 = vector.broadcast %167 : vector<1x1x32xf32> to vector<8x8x32xf32>
    %169 = arith.mulf %166, %168 : vector<8x8x32xf32>
    %c0_45 = arith.constant 0 : index
    %c0_46 = arith.constant 0 : index
    %c0_47 = arith.constant 0 : index
    %170 = vector.load %arg4[%c0_45, %c0_46, %c0_47] : memref<8x8x32xf32, #tpu.memory_space<vmem>>, vector<8x8x32xf32>
    tpu.vector_store %arg4[%c0_45, %c0_46, %c0_47], %169 {strides = array<i32>} : memref<8x8x32xf32, #tpu.memory_space<vmem>>, vector<8x8x32xf32>,
    return
  }
  func.func @transform_0(%arg0: i32) -> (i32, i32, i32) {
    %c0_i32 = arith.constant 0 : i32
    %c0_i32_0 = arith.constant 0 : i32
    %c0_i32_1 = arith.constant 0 : i32
    return %arg0, %c0_i32, %c0_i32_0 : i32, i32, i32
  }
  func.func @transform_1(%arg0: i32) -> (i32, i32) {
    %c0_i32 = arith.constant 0 : i32
    %c0_i32_0 = arith.constant 0 : i32
    return %arg0, %c0_i32 : i32, i32
  }
  func.func @transform_2(%arg0: i32) -> (i32, i32) {
    %c0_i32 = arith.constant 0 : i32
    %c0_i32_0 = arith.constant 0 : i32
    %c0_i32_1 = arith.constant 0 : i32
    return %c0_i32, %c0_i32_0 : i32, i32
  }
  func.func @transform_3(%arg0: i32) -> (i32, i32, i32) {
    %c0_i32 = arith.constant 0 : i32
    %c0_i32_0 = arith.constant 0 : i32
    %c0_i32_1 = arith.constant 0 : i32
    return %arg0, %c0_i32, %c0_i32_0 : i32, i32, i32
  }
}

module attributes {stable_mosaic.version = 11 : i64} {
  func.func @cross_stock_kernel(%arg0: memref<8x8x32xf32, #tpu.memory_space<vmem>>, %arg1: memref<368x128xf32, #tpu.memory_space<vmem>>, %arg2: memref<8x32xf32, #tpu.memory_space<vmem>>) attributes {dimension_semantics = [], scalar_prefetch = 0 : i64, scratch_operands = 0 : i64, tpu.core_type = #tpu.core_type<tc>} {
    %c0 = arith.constant 0 : index
    %c0_0 = arith.constant 0 : index
    %c0_1 = arith.constant 0 : index
    %0 = vector.load %arg0[%c0, %c0_0, %c0_1] : memref<8x8x32xf32, #tpu.memory_space<vmem>>, vector<8x8x32xf32>
    %c128 = arith.constant 128 : index
    %c0_2 = arith.constant 0 : index
    %1 = vector.load %arg1[%c128, %c0_2] : memref<368x128xf32, #tpu.memory_space<vmem>>, vector<32x96xf32>
    %c320 = arith.constant 320 : index
    %c0_3 = arith.constant 0 : index
    %2 = vector.load %arg1[%c320, %c0_3] : memref<368x128xf32, #tpu.memory_space<vmem>>, vector<1x32xf32>
    %c328 = arith.constant 328 : index
    %c0_4 = arith.constant 0 : index
    %3 = vector.load %arg1[%c328, %c0_4] : memref<368x128xf32, #tpu.memory_space<vmem>>, vector<1x32xf32>
    %c336 = arith.constant 336 : index
    %c0_5 = arith.constant 0 : index
    %4 = vector.load %arg1[%c336, %c0_5] : memref<368x128xf32, #tpu.memory_space<vmem>>, vector<1x32xf32>
    %c344 = arith.constant 344 : index
    %c0_6 = arith.constant 0 : index
    %5 = vector.load %arg1[%c344, %c0_6] : memref<368x128xf32, #tpu.memory_space<vmem>>, vector<1x32xf32>
    %c160 = arith.constant 160 : index
    %c0_7 = arith.constant 0 : index
    %6 = vector.load %arg1[%c160, %c0_7] : memref<368x128xf32, #tpu.memory_space<vmem>>, vector<32x32xf32>
    %c352 = arith.constant 352 : index
    %c0_8 = arith.constant 0 : index
    %7 = vector.load %arg1[%c352, %c0_8] : memref<368x128xf32, #tpu.memory_space<vmem>>, vector<1x32xf32>
    %c192 = arith.constant 192 : index
    %c0_9 = arith.constant 0 : index
    %8 = vector.load %arg1[%c192, %c0_9] : memref<368x128xf32, #tpu.memory_space<vmem>>, vector<32x32xf32>
    %c360 = arith.constant 360 : index
    %c0_10 = arith.constant 0 : index
    %9 = vector.load %arg1[%c360, %c0_10] : memref<368x128xf32, #tpu.memory_space<vmem>>, vector<1x32xf32>
    %10 = arith.mulf %0, %0 : vector<8x8x32xf32>
    %cst = arith.constant dense<0.000000e+00> : vector<8x8xf32>
    %11 = vector.multi_reduction <add>, %10, %cst [2] : vector<8x8x32xf32> to vector<8x8xf32>
    %12 = vector.shape_cast %11 : vector<8x8xf32> to vector<8x8x1xf32>
    %cst_11 = arith.constant 3.200000e+01 : f32
    %13 = vector.broadcast %cst_11 : f32 to vector<8x8x1xf32>
    %14 = arith.divf %12, %13 : vector<8x8x1xf32>
    %cst_12 = arith.constant 9.99999974E-6 : f32
    %15 = vector.broadcast %cst_12 : f32 to vector<8x8x1xf32>
    %16 = arith.addf %14, %15 : vector<8x8x1xf32>
    %17 = math.rsqrt %16 : vector<8x8x1xf32>
    %18 = vector.broadcast %17 : vector<8x8x1xf32> to vector<8x8x32xf32>
    %19 = arith.mulf %0, %18 : vector<8x8x32xf32>
    %20 = vector.shape_cast %2 : vector<1x32xf32> to vector<1x1x32xf32>
    %21 = vector.broadcast %20 : vector<1x1x32xf32> to vector<8x8x32xf32>
    %22 = arith.mulf %19, %21 : vector<8x8x32xf32>
    %23 = tpu.transpose %22, [1, 0, 2] : vector<8x8x32xf32> -> vector<8x8x32xf32>
    %24 = vector.shape_cast %23 : vector<8x8x32xf32> to vector<64x32xf32>
    %cst_13 = arith.constant dense<0.000000e+00> : vector<64x96xf32>
    %25 = tpu.matmul %24, %1, %cst_13 {dimension_numbers = #tpu.dot_dimension_numbers<[1], [0], [0], [1], [0, 0, 1, 1], [], []>} : vector<64x32xf32>, vector<32x96xf32>, vector<64x96xf32> -> vector<64x96xf32>
    %26 = vector.extract_strided_slice %25 {offsets = [0, 0], sizes = [64, 32], strides = [1, 1]} : vector<64x96xf32> to vector<64x32xf32>
    %27 = vector.shape_cast %26 : vector<64x32xf32> to vector<8x8x32xf32>
    %28 = vector.extract_strided_slice %25 {offsets = [0, 32], sizes = [64, 32], strides = [1, 1]} : vector<64x96xf32> to vector<64x32xf32>
    %29 = vector.shape_cast %28 : vector<64x32xf32> to vector<8x8x32xf32>
    %30 = vector.extract_strided_slice %25 {offsets = [0, 64], sizes = [64, 32], strides = [1, 1]} : vector<64x96xf32> to vector<64x32xf32>
    %31 = vector.shape_cast %30 : vector<64x32xf32> to vector<8x8x32xf32>
    %cst_14 = arith.constant 2.500000e-01 : f32
    %32 = vector.broadcast %cst_14 : f32 to vector<8x8x32xf32>
    %33 = arith.mulf %27, %32 : vector<8x8x32xf32>
    %34 = vector.extract_strided_slice %33 {offsets = [0, 0, 0], sizes = [8, 8, 16], strides = [1, 1, 1]} : vector<8x8x32xf32> to vector<8x8x16xf32>
    %35 = vector.shape_cast %34 : vector<8x8x16xf32> to vector<1x8x8x16xf32>
    %36 = vector.extract_strided_slice %33 {offsets = [0, 0, 16], sizes = [8, 8, 16], strides = [1, 1, 1]} : vector<8x8x32xf32> to vector<8x8x16xf32>
    %37 = vector.shape_cast %36 : vector<8x8x16xf32> to vector<1x8x8x16xf32>
    %38 = tpu.concatenate %35, %37 in 0 : vector<1x8x8x16xf32>, vector<1x8x8x16xf32> -> vector<2x8x8x16xf32>
    %39 = vector.shape_cast %38 : vector<2x8x8x16xf32> to vector<16x8x16xf32>
    %40 = vector.extract_strided_slice %29 {offsets = [0, 0, 0], sizes = [8, 8, 16], strides = [1, 1, 1]} : vector<8x8x32xf32> to vector<8x8x16xf32>
    %41 = vector.shape_cast %40 : vector<8x8x16xf32> to vector<1x8x8x16xf32>
    %42 = vector.extract_strided_slice %29 {offsets = [0, 0, 16], sizes = [8, 8, 16], strides = [1, 1, 1]} : vector<8x8x32xf32> to vector<8x8x16xf32>
    %43 = vector.shape_cast %42 : vector<8x8x16xf32> to vector<1x8x8x16xf32>
    %44 = tpu.concatenate %41, %43 in 0 : vector<1x8x8x16xf32>, vector<1x8x8x16xf32> -> vector<2x8x8x16xf32>
    %45 = vector.shape_cast %44 : vector<2x8x8x16xf32> to vector<16x8x16xf32>
    %46 = vector.extract_strided_slice %31 {offsets = [0, 0, 0], sizes = [8, 8, 16], strides = [1, 1, 1]} : vector<8x8x32xf32> to vector<8x8x16xf32>
    %47 = vector.shape_cast %46 : vector<8x8x16xf32> to vector<1x8x8x16xf32>
    %48 = vector.extract_strided_slice %31 {offsets = [0, 0, 16], sizes = [8, 8, 16], strides = [1, 1, 1]} : vector<8x8x32xf32> to vector<8x8x16xf32>
    %49 = vector.shape_cast %48 : vector<8x8x16xf32> to vector<1x8x8x16xf32>
    %50 = tpu.concatenate %47, %49 in 0 : vector<1x8x8x16xf32>, vector<1x8x8x16xf32> -> vector<2x8x8x16xf32>
    %51 = vector.shape_cast %50 : vector<2x8x8x16xf32> to vector<16x8x16xf32>
    "tpu.trace_start"() <{level = 10 : i32, message = "blc,bmc->blm"}> : () -> ()
    %cst_15 = arith.constant dense<0.000000e+00> : vector<16x8x8xf32>
    %52 = tpu.matmul %39, %45, %cst_15 {dimension_numbers = #tpu.dot_dimension_numbers<[2], [2], [1], [1], [0, 0, 0, 1, 1, 1], [0], [0]>} : vector<16x8x16xf32>, vector<16x8x16xf32>, vector<16x8x8xf32> -> vector<16x8x8xf32>
    "tpu.trace_stop"() : () -> ()
    %cst_16 = arith.constant dense<0xFF800000> : vector<16x8xf32>
    %53 = vector.multi_reduction <maximumf>, %52, %cst_16 [2] : vector<16x8x8xf32> to vector<16x8xf32>
    %54 = vector.shape_cast %53 : vector<16x8xf32> to vector<16x8x1xf32>
    %55 = vector.broadcast %54 : vector<16x8x1xf32> to vector<16x8x8xf32>
    %56 = arith.subf %52, %55 : vector<16x8x8xf32>
    %57 = math.exp %56 : vector<16x8x8xf32>
    %cst_17 = arith.constant dense<0.000000e+00> : vector<16x8xf32>
    %58 = vector.multi_reduction <add>, %57, %cst_17 [2] : vector<16x8x8xf32> to vector<16x8xf32>
    %59 = vector.shape_cast %58 : vector<16x8xf32> to vector<16x8x1xf32>
    %60 = tpu.reciprocal %59 {approx = true} : vector<16x8x1xf32> -> vector<16x8x1xf32>
    %61 = vector.broadcast %60 : vector<16x8x1xf32> to vector<16x8x8xf32>
    %62 = arith.mulf %57, %61 : vector<16x8x8xf32>
    "tpu.trace_start"() <{level = 10 : i32, message = "blm,bmc->blc"}> : () -> ()
    %cst_18 = arith.constant dense<0.000000e+00> : vector<16x8x16xf32>
    %63 = tpu.matmul %62, %51, %cst_18 {dimension_numbers = #tpu.dot_dimension_numbers<[2], [1], [1], [2], [0, 0, 0, 1, 1, 2], [0], [0]>} : vector<16x8x8xf32>, vector<16x8x16xf32>, vector<16x8x16xf32> -> vector<16x8x16xf32>
    "tpu.trace_stop"() : () -> ()
    %64 = vector.shape_cast %63 : vector<16x8x16xf32> to vector<2x8x8x16xf32>
    %65 = vector.extract_strided_slice %64 {offsets = [0, 0, 0, 0], sizes = [1, 8, 8, 16], strides = [1, 1, 1, 1]} : vector<2x8x8x16xf32> to vector<1x8x8x16xf32>
    %66 = vector.shape_cast %65 : vector<1x8x8x16xf32> to vector<8x8x16xf32>
    %67 = vector.extract_strided_slice %64 {offsets = [1, 0, 0, 0], sizes = [1, 8, 8, 16], strides = [1, 1, 1, 1]} : vector<2x8x8x16xf32> to vector<1x8x8x16xf32>
    %68 = vector.shape_cast %67 : vector<1x8x8x16xf32> to vector<8x8x16xf32>
    %69 = tpu.concatenate %66, %68 in 2 : vector<8x8x16xf32>, vector<8x8x16xf32> -> vector<8x8x32xf32>
    %70 = arith.mulf %69, %69 : vector<8x8x32xf32>
    %cst_19 = arith.constant dense<0.000000e+00> : vector<8x8xf32>
    %71 = vector.multi_reduction <add>, %70, %cst_19 [2] : vector<8x8x32xf32> to vector<8x8xf32>
    %72 = vector.shape_cast %71 : vector<8x8xf32> to vector<8x8x1xf32>
    %cst_20 = arith.constant 3.200000e+01 : f32
    %73 = vector.broadcast %cst_20 : f32 to vector<8x8x1xf32>
    %74 = arith.divf %72, %73 : vector<8x8x1xf32>
    %cst_21 = arith.constant 9.99999974E-6 : f32
    %75 = vector.broadcast %cst_21 : f32 to vector<8x8x1xf32>
    %76 = arith.addf %74, %75 : vector<8x8x1xf32>
    %77 = math.rsqrt %76 : vector<8x8x1xf32>
    %78 = vector.broadcast %77 : vector<8x8x1xf32> to vector<8x8x32xf32>
    %79 = arith.mulf %69, %78 : vector<8x8x32xf32>
    %80 = vector.shape_cast %3 : vector<1x32xf32> to vector<1x1x32xf32>
    %81 = vector.broadcast %80 : vector<1x1x32xf32> to vector<8x8x32xf32>
    %82 = arith.mulf %79, %81 : vector<8x8x32xf32>
    %83 = arith.addf %23, %82 : vector<8x8x32xf32>
    %84 = arith.mulf %83, %83 : vector<8x8x32xf32>
    %cst_22 = arith.constant dense<0.000000e+00> : vector<8x8xf32>
    %85 = vector.multi_reduction <add>, %84, %cst_22 [2] : vector<8x8x32xf32> to vector<8x8xf32>
    %86 = vector.shape_cast %85 : vector<8x8xf32> to vector<8x8x1xf32>
    %cst_23 = arith.constant 3.200000e+01 : f32
    %87 = vector.broadcast %cst_23 : f32 to vector<8x8x1xf32>
    %88 = arith.divf %86, %87 : vector<8x8x1xf32>
    %cst_24 = arith.constant 9.99999974E-6 : f32
    %89 = vector.broadcast %cst_24 : f32 to vector<8x8x1xf32>
    %90 = arith.addf %88, %89 : vector<8x8x1xf32>
    %91 = math.rsqrt %90 : vector<8x8x1xf32>
    %92 = vector.broadcast %91 : vector<8x8x1xf32> to vector<8x8x32xf32>
    %93 = arith.mulf %83, %92 : vector<8x8x32xf32>
    %94 = vector.shape_cast %4 : vector<1x32xf32> to vector<1x1x32xf32>
    %95 = vector.broadcast %94 : vector<1x1x32xf32> to vector<8x8x32xf32>
    %96 = arith.mulf %93, %95 : vector<8x8x32xf32>
    %97 = vector.shape_cast %96 : vector<8x8x32xf32> to vector<64x32xf32>
    %cst_25 = arith.constant dense<0.000000e+00> : vector<64x32xf32>
    %98 = tpu.matmul %97, %6, %cst_25 {dimension_numbers = #tpu.dot_dimension_numbers<[1], [0], [0], [1], [0, 0, 1, 1], [], []>} : vector<64x32xf32>, vector<32x32xf32>, vector<64x32xf32> -> vector<64x32xf32>
    %99 = vector.broadcast %7 : vector<1x32xf32> to vector<64x32xf32>
    %100 = arith.addf %98, %99 : vector<64x32xf32>
    %cst_26 = arith.constant 0.000000e+00 : f32
    %101 = vector.broadcast %cst_26 : f32 to vector<64x32xf32>
    %102 = arith.maximumf %100, %101 : vector<64x32xf32>
    %cst_27 = arith.constant dense<0.000000e+00> : vector<64x32xf32>
    %103 = tpu.matmul %102, %8, %cst_27 {dimension_numbers = #tpu.dot_dimension_numbers<[1], [0], [0], [1], [0, 0, 1, 1], [], []>} : vector<64x32xf32>, vector<32x32xf32>, vector<64x32xf32> -> vector<64x32xf32>
    %104 = vector.broadcast %9 : vector<1x32xf32> to vector<64x32xf32>
    %105 = arith.addf %103, %104 : vector<64x32xf32>
    %106 = vector.shape_cast %105 : vector<64x32xf32> to vector<8x8x32xf32>
    %107 = arith.addf %96, %106 : vector<8x8x32xf32>
    %108 = arith.mulf %107, %107 : vector<8x8x32xf32>
    %cst_28 = arith.constant dense<0.000000e+00> : vector<8x8xf32>
    %109 = vector.multi_reduction <add>, %108, %cst_28 [2] : vector<8x8x32xf32> to vector<8x8xf32>
    %110 = vector.shape_cast %109 : vector<8x8xf32> to vector<8x8x1xf32>
    %cst_29 = arith.constant 3.200000e+01 : f32
    %111 = vector.broadcast %cst_29 : f32 to vector<8x8x1xf32>
    %112 = arith.divf %110, %111 : vector<8x8x1xf32>
    %cst_30 = arith.constant 9.99999974E-6 : f32
    %113 = vector.broadcast %cst_30 : f32 to vector<8x8x1xf32>
    %114 = arith.addf %112, %113 : vector<8x8x1xf32>
    %115 = math.rsqrt %114 : vector<8x8x1xf32>
    %116 = vector.broadcast %115 : vector<8x8x1xf32> to vector<8x8x32xf32>
    %117 = arith.mulf %107, %116 : vector<8x8x32xf32>
    %118 = vector.shape_cast %5 : vector<1x32xf32> to vector<1x1x32xf32>
    %119 = vector.broadcast %118 : vector<1x1x32xf32> to vector<8x8x32xf32>
    %120 = arith.mulf %117, %119 : vector<8x8x32xf32>
    %121 = tpu.transpose %120, [1, 0, 2] : vector<8x8x32xf32> -> vector<8x8x32xf32>
    %122 = vector.shape_cast %121 : vector<8x8x32xf32> to vector<64x32xf32>
    %c224 = arith.constant 224 : index
    %c0_31 = arith.constant 0 : index
    %123 = vector.load %arg1[%c224, %c0_31] : memref<368x128xf32, #tpu.memory_space<vmem>>, vector<32x32xf32>
    %cst_32 = arith.constant dense<0.000000e+00> : vector<64x32xf32>
    %124 = tpu.matmul %122, %123, %cst_32 {dimension_numbers = #tpu.dot_dimension_numbers<[1], [0], [0], [1], [0, 0, 1, 1], [], []>} : vector<64x32xf32>, vector<32x32xf32>, vector<64x32xf32> -> vector<64x32xf32>
    %125 = vector.shape_cast %124 : vector<64x32xf32> to vector<8x8x32xf32>
    %126 = vector.extract_strided_slice %125 {offsets = [0, 7, 0], sizes = [8, 1, 32], strides = [1, 1, 1]} : vector<8x8x32xf32> to vector<8x1x32xf32>
    "tpu.trace_start"() <{level = 10 : i32, message = "nqd,ntd->nqt"}> : () -> ()
    %cst_33 = arith.constant dense<0.000000e+00> : vector<8x1x8xf32>
    %127 = tpu.matmul %126, %125, %cst_33 {dimension_numbers = #tpu.dot_dimension_numbers<[2], [2], [1], [1], [0, 0, 0, 1, 1, 1], [0], [0]>} : vector<8x1x32xf32>, vector<8x8x32xf32>, vector<8x1x8xf32> -> vector<8x1x8xf32>
    "tpu.trace_stop"() : () -> ()
    %cst_34 = arith.constant dense<0xFF800000> : vector<8x1xf32>
    %128 = vector.multi_reduction <maximumf>, %127, %cst_34 [2] : vector<8x1x8xf32> to vector<8x1xf32>
    %129 = vector.shape_cast %128 : vector<8x1xf32> to vector<8x1x1xf32>
    %130 = vector.broadcast %129 : vector<8x1x1xf32> to vector<8x1x8xf32>
    %131 = arith.subf %127, %130 : vector<8x1x8xf32>
    %132 = math.exp %131 : vector<8x1x8xf32>
    %cst_35 = arith.constant dense<0.000000e+00> : vector<8x1xf32>
    %133 = vector.multi_reduction <add>, %132, %cst_35 [2] : vector<8x1x8xf32> to vector<8x1xf32>
    %134 = vector.shape_cast %133 : vector<8x1xf32> to vector<8x1x1xf32>
    %135 = tpu.reciprocal %134 {approx = true} : vector<8x1x1xf32> -> vector<8x1x1xf32>
    %136 = vector.broadcast %135 : vector<8x1x1xf32> to vector<8x1x8xf32>
    %137 = arith.mulf %132, %136 : vector<8x1x8xf32>
    "tpu.trace_start"() <{level = 10 : i32, message = "nqt,ntd->nqd"}> : () -> ()
    %cst_36 = arith.constant dense<0.000000e+00> : vector<8x1x32xf32>
    %138 = tpu.matmul %137, %121, %cst_36 {dimension_numbers = #tpu.dot_dimension_numbers<[2], [1], [1], [2], [0, 0, 0, 1, 1, 2], [0], [0]>} : vector<8x1x8xf32>, vector<8x8x32xf32>, vector<8x1x32xf32> -> vector<8x1x32xf32>
    "tpu.trace_stop"() : () -> ()
    %139 = vector.shape_cast %138 : vector<8x1x32xf32> to vector<8x32xf32>
    %c0_37 = arith.constant 0 : index
    %c0_38 = arith.constant 0 : index
    %140 = vector.load %arg2[%c0_37, %c0_38] : memref<8x32xf32, #tpu.memory_space<vmem>>, vector<8x32xf32>
    tpu.vector_store %arg2[%c0_37, %c0_38], %139 {strides = array<i32>} : memref<8x32xf32, #tpu.memory_space<vmem>>, vector<8x32xf32>,
    return
  }
}

</mosaic_0001>

<llo_original>
// kernel: _lambda_.3
$region0: #{_lambda_.3}
  #allocation0 [shape = 'u32[]', space=smem, size = 0x4, offset = 0x4, fixed_abs, tag = 'smem constant byte address 0x4 - core index']
  #allocation1 [shape = 'u32[144,128]{1,0:T(1,128)}', space=vmem, size = 0x12000, scoped, tag = 'internal scratch']
  %s0 = inlined_call_operand.vmem [shape: f32[8,8,32], index: 0, kind: input, shape index: {}]
  %s1 = inlined_call_operand.vmem [shape: f32[368,128], index: 1, kind: input, shape index: {}]
  %s2 = inlined_call_operand.vmem [shape: f32[8,32], index: 2, kind: output, shape index: {}]
  %s3 = sld [smem:[#allocation0]]
  $region18: #{_lambda_.3} parent=0
    _
  %s5 = ssub.s32 1, %s3
  %s6 = scalar_select 0, %s5, %s3
  // Predicated region
  $region2: #{_lambda_.3} parent=0 // pred_check
    _
  $region3: #{_lambda_.3} parent=0 // pred_check_branch
    %8 = sbr.rel (0) target = $region5
  $region4: #{_lambda_.3} parent=0 // pred_region
    _
  $region5: #{_lambda_.3} parent=0 // pred_fallthru
    _
  // Predicated region
  $region6: #{_lambda_.3} parent=0 // pred_check
    _
  $region7: #{_lambda_.3} parent=0 // pred_check_branch
    %10 = sbr.rel (0) target = $region9
  $region8: #{_lambda_.3} parent=0 // pred_region
    _
  $region9: #{_lambda_.3} parent=0 // pred_fallthru
    _
  %v11 = vld [vmem:[%s0] sm:$0xff]
  %v12 = vld [vmem:[%s0 + $0x8] sm:$0xff]
  %v13 = vld [vmem:[%s0 + $0x10] sm:$0xff]
  %v14 = vld [vmem:[%s0 + $0x18] sm:$0xff]
  %v15 = vld [vmem:[%s0 + $0x20] sm:$0xff]
  %v16 = vld [vmem:[%s0 + $0x28] sm:$0xff]
  %v17 = vld [vmem:[%s0 + $0x30] sm:$0xff]
  %v18 = vld [vmem:[%s0 + $0x38] sm:$0xff]
  %v19 = vld [vmem:[%s1 + $0x80] sm:$0xff]
  %v20 = vld [vmem:[%s1 + $0x88] sm:$0xff]
  %v21 = vld [vmem:[%s1 + $0x90] sm:$0xff]
  %v22 = vld [vmem:[%s1 + $0x98] sm:$0xff]
  %v23 = vld [vmem:[%s1 + $0x140] sm:$0x1]
  %v24 = vld [vmem:[%s1 + $0x148] sm:$0x1]
  %v25 = vld [vmem:[%s1 + $0x150] sm:$0x1]
  %v26 = vld [vmem:[%s1 + $0x158] sm:$0x1]
  %v27 = vld [vmem:[%s1 + $0xa0] sm:$0xff]
  %v28 = vld [vmem:[%s1 + $0xa8] sm:$0xff]
  %v29 = vld [vmem:[%s1 + $0xb0] sm:$0xff]
  %v30 = vld [vmem:[%s1 + $0xb8] sm:$0xff]
  %v31 = vld [vmem:[%s1 + $0x160] sm:$0x1]
  %v32 = vld [vmem:[%s1 + $0xc0] sm:$0xff]
  %v33 = vld [vmem:[%s1 + $0xc8] sm:$0xff]
  %v34 = vld [vmem:[%s1 + $0xd0] sm:$0xff]
  %v35 = vld [vmem:[%s1 + $0xd8] sm:$0xff]
  %v36 = vld [vmem:[%s1 + $0x168] sm:$0x1]
  %v37 = vmul.f32 %v11, %v11
  %v38 = vmul.f32 %v12, %v12
  %v39 = vmul.f32 %v13, %v13
  %v40 = vmul.f32 %v14, %v14
  %v41 = vmul.f32 %v15, %v15
  %v42 = vmul.f32 %v16, %v16
  %v43 = vmul.f32 %v17, %v17
  %v44 = vmul.f32 %v18, %v18
  %vm45 = vcmask 261120
  %v46 = vsel %vm45, %v37, 0.0
  %47 = vadd.xlane.f32.xlu0 %v46
  %v48 = vpop.xlane.xlu0 %47
  %v49 = vsel %vm45, %v38, 0.0
  %50 = vadd.xlane.f32.xlu0 %v49
  %v51 = vpop.xlane.xlu0 %50
  %v52 = vsel %vm45, %v39, 0.0
  %53 = vadd.xlane.f32.xlu0 %v52
  %v54 = vpop.xlane.xlu0 %53
  %v55 = vsel %vm45, %v40, 0.0
  %56 = vadd.xlane.f32.xlu0 %v55
  %v57 = vpop.xlane.xlu0 %56
  %v58 = vsel %vm45, %v41, 0.0
  %59 = vadd.xlane.f32.xlu0 %v58
  %v60 = vpop.xlane.xlu0 %59
  %v61 = vsel %vm45, %v42, 0.0
  %62 = vadd.xlane.f32.xlu0 %v61
  %v63 = vpop.xlane.xlu0 %62
  %v64 = vsel %vm45, %v43, 0.0
  %65 = vadd.xlane.f32.xlu0 %v64
  %v66 = vpop.xlane.xlu0 %65
  %v67 = vsel %vm45, %v44, 0.0
  %68 = vadd.xlane.f32.xlu0 %v67
  %v69 = vpop.xlane.xlu0 %68
  %v70 = vrcp.pop 32.0
  %v71 = vmul.f32 %v48, %v70
  %v72 = vmul.f32 %v51, %v70
  %v73 = vmul.f32 %v54, %v70
  %v74 = vmul.f32 %v57, %v70
  %v75 = vmul.f32 %v60, %v70
  %v76 = vmul.f32 %v63, %v70
  %v77 = vmul.f32 %v66, %v70
  %v78 = vmul.f32 %v69, %v70
  %v79 = vadd.f32 %v71, 1e-05
  %v80 = vadd.f32 %v72, 1e-05
  %v81 = vadd.f32 %v73, 1e-05
  %v82 = vadd.f32 %v74, 1e-05
  %v83 = vadd.f32 %v75, 1e-05
  %v84 = vadd.f32 %v76, 1e-05
  %v85 = vadd.f32 %v77, 1e-05
  %v86 = vadd.f32 %v78, 1e-05
  %v87 = vrsqrt.pop %v79
  %v88 = vrsqrt.pop %v80
  %v89 = vrsqrt.pop %v81
  %v90 = vrsqrt.pop %v82
  %v91 = vrsqrt.pop %v83
  %v92 = vrsqrt.pop %v84
  %v93 = vrsqrt.pop %v85
  %v94 = vrsqrt.pop %v86
  %v95 = vmul.f32 %v11, %v87
  %v96 = vmul.f32 %v12, %v88
  %v97 = vmul.f32 %v13, %v89
  %v98 = vmul.f32 %v14, %v90
  %v99 = vmul.f32 %v15, %v91
  %v100 = vmul.f32 %v16, %v92
  %v101 = vmul.f32 %v17, %v93
  %v102 = vmul.f32 %v18, %v94
  %v103 = vlaneseq
  %v104 = vshrl.u32 %v103, 7
  %v105 = vsub.s32 0, %v104
  %v106 = vrot.slane %v23, %v105
  %v107 = vmul.f32 %v95, %v106
  %v108 = vmul.f32 %v96, %v106
  %v109 = vmul.f32 %v97, %v106
  %v110 = vmul.f32 %v98, %v106
  %v111 = vmul.f32 %v99, %v106
  %v112 = vmul.f32 %v100, %v106
  %v113 = vmul.f32 %v101, %v106
  %v114 = vmul.f32 %v102, %v106
  %v115 = vcombine.low %v107, %v109
  %v116 = vcombine.high %v107, %v109
  %v118 = vunpack.c.l.s4 1983009808
  %v119 = vunpack.c.0.s8 %v118
  %v120 = vlaneseq
  %v121 = vshrl.u32 %v120, 7
  %v122 = vsub.s32 %v119, %v121
  %v123 = vrot.slane %v115, %v122
  %v125 = vunpack.c.l.s4 1983009808
  %v126 = vunpack.c.0.s8 %v125
  %v127 = vlaneseq
  %v128 = vshrl.u32 %v127, 7
  %v129 = vsub.s32 %v126, %v128
  %v130 = vrot.slane %v116, %v129
  %v131 = vcombine.low %v108, %v110
  %v132 = vcombine.high %v108, %v110
  %v134 = vunpack.c.l.s4 1983009808
  %v135 = vunpack.c.0.s8 %v134
  %v136 = vlaneseq
  %v137 = vshrl.u32 %v136, 7
  %v138 = vsub.s32 %v135, %v137
  %v139 = vrot.slane %v131, %v138
  %v141 = vunpack.c.l.s4 1983009808
  %v142 = vunpack.c.0.s8 %v141
  %v143 = vlaneseq
  %v144 = vshrl.u32 %v143, 7
  %v145 = vsub.s32 %v142, %v144
  %v146 = vrot.slane %v132, %v145
  %v147 = vcombine.low %v111, %v113
  %v148 = vcombine.high %v111, %v113
  %v150 = vunpack.c.l.s4 1983009808
  %v151 = vunpack.c.0.s8 %v150
  %v152 = vlaneseq
  %v153 = vshrl.u32 %v152, 7
  %v154 = vsub.s32 %v151, %v153
  %v155 = vrot.slane %v147, %v154
  %v157 = vunpack.c.l.s4 1983009808
  %v158 = vunpack.c.0.s8 %v157
  %v159 = vlaneseq
  %v160 = vshrl.u32 %v159, 7
  %v161 = vsub.s32 %v158, %v160
  %v162 = vrot.slane %v148, %v161
  %v163 = vcombine.low %v112, %v114
  %v164 = vcombine.high %v112, %v114
  %v166 = vunpack.c.l.s4 1983009808
  %v167 = vunpack.c.0.s8 %v166
  %v168 = vlaneseq
  %v169 = vshrl.u32 %v168, 7
  %v170 = vsub.s32 %v167, %v169
  %v171 = vrot.slane %v163, %v170
  %v173 = vunpack.c.l.s4 1983009808
  %v174 = vunpack.c.0.s8 %v173
  %v175 = vlaneseq
  %v176 = vshrl.u32 %v175, 7
  %v177 = vsub.s32 %v174, %v176
  %v178 = vrot.slane %v164, %v177
  %v179 = vcombine.low %v123, %v139
  %v180 = vcombine.high %v123, %v139
  %v182 = vunpack.c.l.s4 1934713408
  %v183 = vunpack.c.0.s8 %v182
  %v184 = vlaneseq
  %v185 = vshrl.u32 %v184, 7
  %v186 = vsub.s32 %v183, %v185
  %v187 = vrot.slane %v179, %v186
  %v189 = vunpack.c.l.s4 1934713408
  %v190 = vunpack.c.0.s8 %v189
  %v191 = vlaneseq
  %v192 = vshrl.u32 %v191, 7
  %v193 = vsub.s32 %v190, %v192
  %v194 = vrot.slane %v180, %v193
  %v195 = vcombine.low %v130, %v146
  %v196 = vcombine.high %v130, %v146
  %v198 = vunpack.c.l.s4 1934713408
  %v199 = vunpack.c.0.s8 %v198
  %v200 = vlaneseq
  %v201 = vshrl.u32 %v200, 7
  %v202 = vsub.s32 %v199, %v201
  %v203 = vrot.slane %v195, %v202
  %v205 = vunpack.c.l.s4 1934713408
  %v206 = vunpack.c.0.s8 %v205
  %v207 = vlaneseq
  %v208 = vshrl.u32 %v207, 7
  %v209 = vsub.s32 %v206, %v208
  %v210 = vrot.slane %v196, %v209
  %v211 = vcombine.low %v155, %v171
  %v212 = vcombine.high %v155, %v171
  %v214 = vunpack.c.l.s4 1934713408
  %v215 = vunpack.c.0.s8 %v214
  %v216 = vlaneseq
  %v217 = vshrl.u32 %v216, 7
  %v218 = vsub.s32 %v215, %v217
  %v219 = vrot.slane %v211, %v218
  %v221 = vunpack.c.l.s4 1934713408
  %v222 = vunpack.c.0.s8 %v221
  %v223 = vlaneseq
  %v224 = vshrl.u32 %v223, 7
  %v225 = vsub.s32 %v222, %v224
  %v226 = vrot.slane %v212, %v225
  %v227 = vcombine.low %v162, %v178
  %v228 = vcombine.high %v162, %v178
  %v230 = vunpack.c.l.s4 1934713408
  %v231 = vunpack.c.0.s8 %v230
  %v232 = vlaneseq
  %v233 = vshrl.u32 %v232, 7
  %v234 = vsub.s32 %v231, %v233
  %v235 = vrot.slane %v227, %v234
  %v237 = vunpack.c.l.s4 1934713408
  %v238 = vunpack.c.0.s8 %v237
  %v239 = vlaneseq
  %v240 = vshrl.u32 %v239, 7
  %v241 = vsub.s32 %v238, %v240
  %v242 = vrot.slane %v228, %v241
  %v243 = vcombine.low %v187, %v219
  %v244 = vcombine.high %v187, %v219
  %v245 = vcombine.low %v194, %v226
  %v246 = vcombine.high %v194, %v226
  %v247 = vcombine.low %v203, %v235
  %v248 = vcombine.high %v203, %v235
  %v249 = vcombine.low %v210, %v242
  %v250 = vcombine.high %v210, %v242
  %v252 = vsel %vm45, %v243, 0
  %v255 = vsel %vm45, %v244, 0
  %v258 = vsel %vm45, %v245, 0
  %v261 = vsel %vm45, %v246, 0
  %v264 = vsel %vm45, %v247, 0
  %v267 = vsel %vm45, %v248, 0
  %v270 = vsel %vm45, %v249, 0
  %v273 = vsel %vm45, %v250, 0
  %275 = vmatprep.subr.mxu0 0.0
  %276 = vmatpush1.msra.mxu0 0.0
  %277 = vmatprep.subr.mxu0 0.0
  %278 = vmatpush1.msra.mxu0 0.0
  %279 = vmatprep.subr.mxu0 0.0
  %280 = vmatpush1.msra.mxu0 0.0
  %281 = vmatprep.subr.mxu0 0.0
  %282 = vmatpush1.msra.mxu0 0.0
  %283 = vmatprep.subr.mxu0 0.0
  %284 = vmatpush1.msra.mxu0 0.0
  %285 = vmatprep.subr.mxu0 0.0
  %286 = vmatpush1.msra.mxu0 0.0
  %287 = vmatprep.subr.mxu0 0.0
  %288 = vmatpush1.msra.mxu0 0.0
  %289 = vmatprep.subr.mxu0 0.0
  %290 = vmatpush1.msra.mxu0 0.0
  %291 = vmatprep.subr.mxu0 0.0
  %292 = vmatpush1.msra.mxu0 0.0
  %293 = vmatprep.subr.mxu0 0.0
  %294 = vmatpush1.msra.mxu0 0.0
  %295 = vmatprep.subr.mxu0 0.0
  %296 = vmatpush1.msra.mxu0 0.0
  %297 = vmatprep.subr.mxu0 0.0
  %298 = vmatpush1.msra.mxu0 0.0
  %299 = vmatprep.subr.mxu0 0.0
  %300 = vmatpush1.msra.mxu0 %v22
  %301 = vmatprep.subr.mxu0 0.0
  %302 = vmatpush1.msra.mxu0 %v21
  %303 = vmatprep.subr.mxu0 0.0
  %304 = vmatpush1.msra.mxu0 %v20
  %305 = vmatprep.subr.mxu0 0.0
  %306 = vmatpush1.msra.mxu0 %v19
  %307 = vmatprep.subr.mxu0 0.0
  %308 = vmatpush2.msra.mxu0 0.0
  %309 = vmatprep.subr.mxu0 0.0
  %310 = vmatpush2.msra.mxu0 0.0
  %311 = vmatprep.subr.mxu0 0.0
  %312 = vmatpush2.msra.mxu0 0.0
  %313 = vmatprep.subr.mxu0 0.0
  %314 = vmatpush2.msra.mxu0 0.0
  %315 = vmatprep.subr.mxu0 0.0
  %316 = vmatpush2.msra.mxu0 0.0
  %317 = vmatprep.subr.mxu0 0.0
  %318 = vmatpush2.msra.mxu0 0.0
  %319 = vmatprep.subr.mxu0 0.0
  %320 = vmatpush2.msra.mxu0 0.0
  %321 = vmatprep.subr.mxu0 0.0
  %322 = vmatpush2.msra.mxu0 0.0
  %323 = vmatprep.subr.mxu0 0.0
  %324 = vmatpush2.msra.mxu0 0.0
  %325 = vmatprep.subr.mxu0 0.0
  %326 = vmatpush2.msra.mxu0 0.0
  %327 = vmatprep.subr.mxu0 0.0
  %328 = vmatpush2.msra.mxu0 0.0
  %329 = vmatprep.subr.mxu0 0.0
  %330 = vmatpush2.msra.mxu0 0.0
  %331 = vmatprep.subr.mxu0 0.0
  %332 = vmatpush2.msra.mxu0 0.0
  %333 = vmatprep.subr.mxu0 0.0
  %334 = vmatpush2.msra.mxu0 0.0
  %335 = vmatprep.subr.mxu0 0.0
  %336 = vmatpush2.msra.mxu0 0.0
  %337 = vmatprep.subr.mxu0 0.0
  %338 = vmatpush2.msra.mxu0 0.0
  %339 = vmatprep.mubr.f32.mxu0 0.0
  %340 = vmatmul.mubr.f32.gmra.mxu0 %v252
  %v341 = vpop.f32.mrf.mxu0
  %v342 = vadd.f32 0.0, %v341
  %v343 = vpop.f32.mrf.mxu0
  %344 = vmatprep.mubr.f32.mxu0 0.0
  %345 = vmatmul.mubr.f32.gmra.mxu0 %v255
  %v346 = vpop.f32.mrf.mxu0
  %v347 = vadd.f32 0.0, %v346
  %v348 = vpop.f32.mrf.mxu0
  %349 = vmatprep.mubr.f32.mxu0 0.0
  %350 = vmatmul.mubr.f32.gmra.mxu0 %v258
  %v351 = vpop.f32.mrf.mxu0
  %v352 = vadd.f32 0.0, %v351
  %v353 = vpop.f32.mrf.mxu0
  %354 = vmatprep.mubr.f32.mxu0 0.0
  %355 = vmatmul.mubr.f32.gmra.mxu0 %v261
  %v356 = vpop.f32.mrf.mxu0
  %v357 = vadd.f32 0.0, %v356
  %v358 = vpop.f32.mrf.mxu0
  %359 = vmatprep.mubr.f32.mxu0 0.0
  %360 = vmatmul.mubr.f32.gmra.mxu0 %v264
  %v361 = vpop.f32.mrf.mxu0
  %v362 = vadd.f32 0.0, %v361
  %v363 = vpop.f32.mrf.mxu0
  %364 = vmatprep.mubr.f32.mxu0 0.0
  %365 = vmatmul.mubr.f32.gmra.mxu0 %v267
  %v366 = vpop.f32.mrf.mxu0
  %v367 = vadd.f32 0.0, %v366
  %v368 = vpop.f32.mrf.mxu0
  %369 = vmatprep.mubr.f32.mxu0 0.0
  %370 = vmatmul.mubr.f32.gmra.mxu0 %v270
  %v371 = vpop.f32.mrf.mxu0
  %v372 = vadd.f32 0.0, %v371
  %v373 = vpop.f32.mrf.mxu0
  %374 = vmatprep.mubr.f32.mxu0 0.0
  %375 = vmatmul.mubr.f32.gmra.mxu0 %v273
  %v376 = vpop.f32.mrf.mxu0
  %v377 = vadd.f32 0.0, %v376
  %v378 = vpop.f32.mrf.mxu0
  %379 = vdwg.mxu0
  %v380 = vmul.f32 %v342, 0.25
  %v381 = vmul.f32 %v347, 0.25
  %v382 = vmul.f32 %v352, 0.25
  %v383 = vmul.f32 %v357, 0.25
  %v384 = vmul.f32 %v362, 0.25
  %v385 = vmul.f32 %v367, 0.25
  %v386 = vmul.f32 %v372, 0.25
  %v387 = vmul.f32 %v377, 0.25
  %396 = vrot.lane.b32.xlu0 %v380, 112
  %v397 = vpop.permute.xlu0 %396
  %398 = vrot.lane.b32.xlu0 %v381, 112
  %v399 = vpop.permute.xlu0 %398
  %400 = vrot.lane.b32.xlu0 %v382, 112
  %v401 = vpop.permute.xlu0 %400
  %402 = vrot.lane.b32.xlu0 %v383, 112
  %v403 = vpop.permute.xlu0 %402
  %404 = vrot.lane.b32.xlu0 %v384, 112
  %v405 = vpop.permute.xlu0 %404
  %406 = vrot.lane.b32.xlu0 %v385, 112
  %v407 = vpop.permute.xlu0 %406
  %408 = vrot.lane.b32.xlu0 %v386, 112
  %v409 = vpop.permute.xlu0 %408
  %410 = vrot.lane.b32.xlu0 %v387, 112
  %v411 = vpop.permute.xlu0 %410
  %420 = vrot.lane.b32.xlu0 %v342, 112
  %v421 = vpop.permute.xlu0 %420
  %422 = vrot.lane.b32.xlu0 %v347, 112
  %v423 = vpop.permute.xlu0 %422
  %424 = vrot.lane.b32.xlu0 %v352, 112
  %v425 = vpop.permute.xlu0 %424
  %426 = vrot.lane.b32.xlu0 %v357, 112
  %v427 = vpop.permute.xlu0 %426
  %428 = vrot.lane.b32.xlu0 %v362, 112
  %v429 = vpop.permute.xlu0 %428
  %430 = vrot.lane.b32.xlu0 %v367, 112
  %v431 = vpop.permute.xlu0 %430
  %432 = vrot.lane.b32.xlu0 %v372, 112
  %v433 = vpop.permute.xlu0 %432
  %434 = vrot.lane.b32.xlu0 %v377, 112
  %v435 = vpop.permute.xlu0 %434
  %436 = vrot.lane.b32.xlu0 %v342, 96
  %v437 = vpop.permute.xlu0 %436
  %vm438 = vcmask 130048
  %v439 = vsel %vm438, %v380, 0
  %v441 = vsel %vm438, %v437, 0
  %443 = vmatprep.subr.mxu0 0.0
  %444 = vmatpush1.xpose.msra.mxu0 0.0
  %445 = vmatprep.subr.mxu0 0.0
  %446 = vmatpush1.xpose.msra.mxu0 0.0
  %447 = vmatprep.subr.mxu0 0.0
  %448 = vmatpush1.xpose.msra.mxu0 0.0
  %449 = vmatprep.subr.mxu0 0.0
  %450 = vmatpush1.xpose.msra.mxu0 0.0
  %451 = vmatprep.subr.mxu0 0.0
  %452 = vmatpush1.xpose.msra.mxu0 0.0
  %453 = vmatprep.subr.mxu0 0.0
  %454 = vmatpush1.xpose.msra.mxu0 0.0
  %455 = vmatprep.subr.mxu0 0.0
  %456 = vmatpush1.xpose.msra.mxu0 0.0
  %457 = vmatprep.subr.mxu0 0.0
  %458 = vmatpush1.xpose.msra.mxu0 0.0
  %459 = vmatprep.subr.mxu0 0.0
  %460 = vmatpush1.xpose.msra.mxu0 0.0
  %461 = vmatprep.subr.mxu0 0.0
  %462 = vmatpush1.xpose.msra.mxu0 0.0
  %463 = vmatprep.subr.mxu0 0.0
  %464 = vmatpush1.xpose.msra.mxu0 0.0
  %465 = vmatprep.subr.mxu0 0.0
  %466 = vmatpush1.xpose.msra.mxu0 0.0
  %467 = vmatprep.subr.mxu0 0.0
  %468 = vmatpush1.xpose.msra.mxu0 0.0
  %469 = vmatprep.subr.mxu0 0.0
  %470 = vmatpush1.xpose.msra.mxu0 0.0
  %471 = vmatprep.subr.mxu0 0.0
  %472 = vmatpush1.xpose.msra.mxu0 0.0
  %473 = vmatprep.subr.mxu0 0.0
  %474 = vmatpush1.xpose.msra.mxu0 %v441
  %475 = vmatprep.subr.mxu0 0.0
  %476 = vmatpush2.xpose.msra.mxu0 0.0
  %477 = vmatprep.subr.mxu0 0.0
  %478 = vmatpush2.xpose.msra.mxu0 0.0
  %479 = vmatprep.subr.mxu0 0.0
  %480 = vmatpush2.xpose.msra.mxu0 0.0
  %481 = vmatprep.subr.mxu0 0.0
  %482 = vmatpush2.xpose.msra.mxu0 0.0
  %483 = vmatprep.subr.mxu0 0.0
  %484 = vmatpush2.xpose.msra.mxu0 0.0
  %485 = vmatprep.subr.mxu0 0.0
  %486 = vmatpush2.xpose.msra.mxu0 0.0
  %487 = vmatprep.subr.mxu0 0.0
  %488 = vmatpush2.xpose.msra.mxu0 0.0
  %489 = vmatprep.subr.mxu0 0.0
  %490 = vmatpush2.xpose.msra.mxu0 0.0
  %491 = vmatprep.subr.mxu0 0.0
  %492 = vmatpush2.xpose.msra.mxu0 0.0
  %493 = vmatprep.subr.mxu0 0.0
  %494 = vmatpush2.xpose.msra.mxu0 0.0
  %495 = vmatprep.subr.mxu0 0.0
  %496 = vmatpush2.xpose.msra.mxu0 0.0
  %497 = vmatprep.subr.mxu0 0.0
  %498 = vmatpush2.xpose.msra.mxu0 0.0
  %499 = vmatprep.subr.mxu0 0.0
  %500 = vmatpush2.xpose.msra.mxu0 0.0
  %501 = vmatprep.subr.mxu0 0.0
  %502 = vmatpush2.xpose.msra.mxu0 0.0
  %503 = vmatprep.subr.mxu0 0.0
  %504 = vmatpush2.xpose.msra.mxu0 0.0
  %505 = vmatprep.subr.mxu0 0.0
  %506 = vmatpush2.xpose.msra.mxu0 0.0
  %507 = vmatprep.mubr.f32.mxu0 0.0
  %508 = vmatmul.mubr.f32.gmra.mxu0 %v439
  %v509 = vpop.f32.mrf.mxu0
  %v510 = vadd.f32 0.0, %v509
  %v511 = vpop.f32.mrf.mxu0
  %512 = vdwg.mxu0
  %513 = vrot.lane.b32.xlu0 %v347, 96
  %v514 = vpop.permute.xlu0 %513
  %v515 = vsel %vm438, %v381, 0
  %v517 = vsel %vm438, %v514, 0
  %519 = vmatprep.subr.mxu0 0.0
  %520 = vmatpush1.xpose.msra.mxu0 0.0
  %521 = vmatprep.subr.mxu0 0.0
  %522 = vmatpush1.xpose.msra.mxu0 0.0
  %523 = vmatprep.subr.mxu0 0.0
  %524 = vmatpush1.xpose.msra.mxu0 0.0
  %525 = vmatprep.subr.mxu0 0.0
  %526 = vmatpush1.xpose.msra.mxu0 0.0
  %527 = vmatprep.subr.mxu0 0.0
  %528 = vmatpush1.xpose.msra.mxu0 0.0
  %529 = vmatprep.subr.mxu0 0.0
  %530 = vmatpush1.xpose.msra.mxu0 0.0
  %531 = vmatprep.subr.mxu0 0.0
  %532 = vmatpush1.xpose.msra.mxu0 0.0
  %533 = vmatprep.subr.mxu0 0.0
  %534 = vmatpush1.xpose.msra.mxu0 0.0
  %535 = vmatprep.subr.mxu0 0.0
  %536 = vmatpush1.xpose.msra.mxu0 0.0
  %537 = vmatprep.subr.mxu0 0.0
  %538 = vmatpush1.xpose.msra.mxu0 0.0
  %539 = vmatprep.subr.mxu0 0.0
  %540 = vmatpush1.xpose.msra.mxu0 0.0
  %541 = vmatprep.subr.mxu0 0.0
  %542 = vmatpush1.xpose.msra.mxu0 0.0
  %543 = vmatprep.subr.mxu0 0.0
  %544 = vmatpush1.xpose.msra.mxu0 0.0
  %545 = vmatprep.subr.mxu0 0.0
  %546 = vmatpush1.xpose.msra.mxu0 0.0
  %547 = vmatprep.subr.mxu0 0.0
  %548 = vmatpush1.xpose.msra.mxu0 0.0
  %549 = vmatprep.subr.mxu0 0.0
  %550 = vmatpush1.xpose.msra.mxu0 %v517
  %551 = vmatprep.subr.mxu0 0.0
  %552 = vmatpush2.xpose.msra.mxu0 0.0
  %553 = vmatprep.subr.mxu0 0.0
  %554 = vmatpush2.xpose.msra.mxu0 0.0
  %555 = vmatprep.subr.mxu0 0.0
  %556 = vmatpush2.xpose.msra.mxu0 0.0
  %557 = vmatprep.subr.mxu0 0.0
  %558 = vmatpush2.xpose.msra.mxu0 0.0
  %559 = vmatprep.subr.mxu0 0.0
  %560 = vmatpush2.xpose.msra.mxu0 0.0
  %561 = vmatprep.subr.mxu0 0.0
  %562 = vmatpush2.xpose.msra.mxu0 0.0
  %563 = vmatprep.subr.mxu0 0.0
  %564 = vmatpush2.xpose.msra.mxu0 0.0
  %565 = vmatprep.subr.mxu0 0.0
  %566 = vmatpush2.xpose.msra.mxu0 0.0
  %567 = vmatprep.subr.mxu0 0.0
  %568 = vmatpush2.xpose.msra.mxu0 0.0
  %569 = vmatprep.subr.mxu0 0.0
  %570 = vmatpush2.xpose.msra.mxu0 0.0
  %571 = vmatprep.subr.mxu0 0.0
  %572 = vmatpush2.xpose.msra.mxu0 0.0
  %573 = vmatprep.subr.mxu0 0.0
  %574 = vmatpush2.xpose.msra.mxu0 0.0
  %575 = vmatprep.subr.mxu0 0.0
  %576 = vmatpush2.xpose.msra.mxu0 0.0
  %577 = vmatprep.subr.mxu0 0.0
  %578 = vmatpush2.xpose.msra.mxu0 0.0
  %579 = vmatprep.subr.mxu0 0.0
  %580 = vmatpush2.xpose.msra.mxu0 0.0
  %581 = vmatprep.subr.mxu0 0.0
  %582 = vmatpush2.xpose.msra.mxu0 0.0
  %583 = vmatprep.mubr.f32.mxu0 0.0
  %584 = vmatmul.mubr.f32.gmra.mxu0 %v515
  %v585 = vpop.f32.mrf.mxu0
  %v586 = vadd.f32 0.0, %v585
  %v587 = vpop.f32.mrf.mxu0
  %588 = vdwg.mxu0
  %589 = vrot.lane.b32.xlu0 %v352, 96
  %v590 = vpop.permute.xlu0 %589
  %v591 = vsel %vm438, %v382, 0
  %v593 = vsel %vm438, %v590, 0
  %595 = vmatprep.subr.mxu0 0.0
  %596 = vmatpush1.xpose.msra.mxu0 0.0
  %597 = vmatprep.subr.mxu0 0.0
  %598 = vmatpush1.xpose.msra.mxu0 0.0
  %599 = vmatprep.subr.mxu0 0.0
  %600 = vmatpush1.xpose.msra.mxu0 0.0
  %601 = vmatprep.subr.mxu0 0.0
  %602 = vmatpush1.xpose.msra.mxu0 0.0
  %603 = vmatprep.subr.mxu0 0.0
  %604 = vmatpush1.xpose.msra.mxu0 0.0
  %605 = vmatprep.subr.mxu0 0.0
  %606 = vmatpush1.xpose.msra.mxu0 0.0
  %607 = vmatprep.subr.mxu0 0.0
  %608 = vmatpush1.xpose.msra.mxu0 0.0
  %609 = vmatprep.subr.mxu0 0.0
  %610 = vmatpush1.xpose.msra.mxu0 0.0
  %611 = vmatprep.subr.mxu0 0.0
  %612 = vmatpush1.xpose.msra.mxu0 0.0
  %613 = vmatprep.subr.mxu0 0.0
  %614 = vmatpush1.xpose.msra.mxu0 0.0
  %615 = vmatprep.subr.mxu0 0.0
  %616 = vmatpush1.xpose.msra.mxu0 0.0
  %617 = vmatprep.subr.mxu0 0.0
  %618 = vmatpush1.xpose.msra.mxu0 0.0
  %619 = vmatprep.subr.mxu0 0.0
  %620 = vmatpush1.xpose.msra.mxu0 0.0
  %621 = vmatprep.subr.mxu0 0.0
  %622 = vmatpush1.xpose.msra.mxu0 0.0
  %623 = vmatprep.subr.mxu0 0.0
  %624 = vmatpush1.xpose.msra.mxu0 0.0
  %625 = vmatprep.subr.mxu0 0.0
  %626 = vmatpush1.xpose.msra.mxu0 %v593
  %627 = vmatprep.subr.mxu0 0.0
  %628 = vmatpush2.xpose.msra.mxu0 0.0
  %629 = vmatprep.subr.mxu0 0.0
  %630 = vmatpush2.xpose.msra.mxu0 0.0
  %631 = vmatprep.subr.mxu0 0.0
  %632 = vmatpush2.xpose.msra.mxu0 0.0
  %633 = vmatprep.subr.mxu0 0.0
  %634 = vmatpush2.xpose.msra.mxu0 0.0
  %635 = vmatprep.subr.mxu0 0.0
  %636 = vmatpush2.xpose.msra.mxu0 0.0
  %637 = vmatprep.subr.mxu0 0.0
  %638 = vmatpush2.xpose.msra.mxu0 0.0
  %639 = vmatprep.subr.mxu0 0.0
  %640 = vmatpush2.xpose.msra.mxu0 0.0
  %641 = vmatprep.subr.mxu0 0.0
  %642 = vmatpush2.xpose.msra.mxu0 0.0
  %643 = vmatprep.subr.mxu0 0.0
  %644 = vmatpush2.xpose.msra.mxu0 0.0
  %645 = vmatprep.subr.mxu0 0.0
  %646 = vmatpush2.xpose.msra.mxu0 0.0
  %647 = vmatprep.subr.mxu0 0.0
  %648 = vmatpush2.xpose.msra.mxu0 0.0
  %649 = vmatprep.subr.mxu0 0.0
  %650 = vmatpush2.xpose.msra.mxu0 0.0
  %651 = vmatprep.subr.mxu0 0.0
  %652 = vmatpush2.xpose.msra.mxu0 0.0
  %653 = vmatprep.subr.mxu0 0.0
  %654 = vmatpush2.xpose.msra.mxu0 0.0
  %655 = vmatprep.subr.mxu0 0.0
  %656 = vmatpush2.xpose.msra.mxu0 0.0
  %657 = vmatprep.subr.mxu0 0.0
  %658 = vmatpush2.xpose.msra.mxu0 0.0
  %659 = vmatprep.mubr.f32.mxu0 0.0
  %660 = vmatmul.mubr.f32.gmra.mxu0 %v591
  %v661 = vpop.f32.mrf.mxu0
  %v662 = vadd.f32 0.0, %v661
  %v663 = vpop.f32.mrf.mxu0
  %664 = vdwg.mxu0
  %665 = vrot.lane.b32.xlu0 %v357, 96
  %v666 = vpop.permute.xlu0 %665
  %v667 = vsel %vm438, %v383, 0
  %v669 = vsel %vm438, %v666, 0
  %671 = vmatprep.subr.mxu0 0.0
  %672 = vmatpush1.xpose.msra.mxu0 0.0
  %673 = vmatprep.subr.mxu0 0.0
  %674 = vmatpush1.xpose.msra.mxu0 0.0
  %675 = vmatprep.subr.mxu0 0.0
  %676 = vmatpush1.xpose.msra.mxu0 0.0
  %677 = vmatprep.subr.mxu0 0.0
  %678 = vmatpush1.xpose.msra.mxu0 0.0
  %679 = vmatprep.subr.mxu0 0.0
  %680 = vmatpush1.xpose.msra.mxu0 0.0
  %681 = vmatprep.subr.mxu0 0.0
  %682 = vmatpush1.xpose.msra.mxu0 0.0
  %683 = vmatprep.subr.mxu0 0.0
  %684 = vmatpush1.xpose.msra.mxu0 0.0
  %685 = vmatprep.subr.mxu0 0.0
  %686 = vmatpush1.xpose.msra.mxu0 0.0
  %687 = vmatprep.subr.mxu0 0.0
  %688 = vmatpush1.xpose.msra.mxu0 0.0
  %689 = vmatprep.subr.mxu0 0.0
  %690 = vmatpush1.xpose.msra.mxu0 0.0
  %691 = vmatprep.subr.mxu0 0.0
  %692 = vmatpush1.xpose.msra.mxu0 0.0
  %693 = vmatprep.subr.mxu0 0.0
  %694 = vmatpush1.xpose.msra.mxu0 0.0
  %695 = vmatprep.subr.mxu0 0.0
  %696 = vmatpush1.xpose.msra.mxu0 0.0
  %697 = vmatprep.subr.mxu0 0.0
  %698 = vmatpush1.xpose.msra.mxu0 0.0
  %699 = vmatprep.subr.mxu0 0.0
  %700 = vmatpush1.xpose.msra.mxu0 0.0
  %701 = vmatprep.subr.mxu0 0.0
  %702 = vmatpush1.xpose.msra.mxu0 %v669
  %703 = vmatprep.subr.mxu0 0.0
  %704 = vmatpush2.xpose.msra.mxu0 0.0
  %705 = vmatprep.subr.mxu0 0.0
  %706 = vmatpush2.xpose.msra.mxu0 0.0
  %707 = vmatprep.subr.mxu0 0.0
  %708 = vmatpush2.xpose.msra.mxu0 0.0
  %709 = vmatprep.subr.mxu0 0.0
  %710 = vmatpush2.xpose.msra.mxu0 0.0
  %711 = vmatprep.subr.mxu0 0.0
  %712 = vmatpush2.xpose.msra.mxu0 0.0
  %713 = vmatprep.subr.mxu0 0.0
  %714 = vmatpush2.xpose.msra.mxu0 0.0
  %715 = vmatprep.subr.mxu0 0.0
  %716 = vmatpush2.xpose.msra.mxu0 0.0
  %717 = vmatprep.subr.mxu0 0.0
  %718 = vmatpush2.xpose.msra.mxu0 0.0
  %719 = vmatprep.subr.mxu0 0.0
  %720 = vmatpush2.xpose.msra.mxu0 0.0
  %721 = vmatprep.subr.mxu0 0.0
  %722 = vmatpush2.xpose.msra.mxu0 0.0
  %723 = vmatprep.subr.mxu0 0.0
  %724 = vmatpush2.xpose.msra.mxu0 0.0
  %725 = vmatprep.subr.mxu0 0.0
  %726 = vmatpush2.xpose.msra.mxu0 0.0
  %727 = vmatprep.subr.mxu0 0.0
  %728 = vmatpush2.xpose.msra.mxu0 0.0
  %729 = vmatprep.subr.mxu0 0.0
  %730 = vmatpush2.xpose.msra.mxu0 0.0
  %731 = vmatprep.subr.mxu0 0.0
  %732 = vmatpush2.xpose.msra.mxu0 0.0
  %733 = vmatprep.subr.mxu0 0.0
  %734 = vmatpush2.xpose.msra.mxu0 0.0
  %735 = vmatprep.mubr.f32.mxu0 0.0
  %736 = vmatmul.mubr.f32.gmra.mxu0 %v667
  %v737 = vpop.f32.mrf.mxu0
  %v738 = vadd.f32 0.0, %v737
  %v739 = vpop.f32.mrf.mxu0
  %740 = vdwg.mxu0
  %741 = vrot.lane.b32.xlu0 %v362, 96
  %v742 = vpop.permute.xlu0 %741
  %v743 = vsel %vm438, %v384, 0
  %v745 = vsel %vm438, %v742, 0
  %747 = vmatprep.subr.mxu0 0.0
  %748 = vmatpush1.xpose.msra.mxu0 0.0
  %749 = vmatprep.subr.mxu0 0.0
  %750 = vmatpush1.xpose.msra.mxu0 0.0
  %751 = vmatprep.subr.mxu0 0.0
  %752 = vmatpush1.xpose.msra.mxu0 0.0
  %753 = vmatprep.subr.mxu0 0.0
  %754 = vmatpush1.xpose.msra.mxu0 0.0
  %755 = vmatprep.subr.mxu0 0.0
  %756 = vmatpush1.xpose.msra.mxu0 0.0
  %757 = vmatprep.subr.mxu0 0.0
  %758 = vmatpush1.xpose.msra.mxu0 0.0
  %759 = vmatprep.subr.mxu0 0.0
  %760 = vmatpush1.xpose.msra.mxu0 0.0
  %761 = vmatprep.subr.mxu0 0.0
  %762 = vmatpush1.xpose.msra.mxu0 0.0
  %763 = vmatprep.subr.mxu0 0.0
  %764 = vmatpush1.xpose.msra.mxu0 0.0
  %765 = vmatprep.subr.mxu0 0.0
  %766 = vmatpush1.xpose.msra.mxu0 0.0
  %767 = vmatprep.subr.mxu0 0.0
  %768 = vmatpush1.xpose.msra.mxu0 0.0
  %769 = vmatprep.subr.mxu0 0.0
  %770 = vmatpush1.xpose.msra.mxu0 0.0
  %771 = vmatprep.subr.mxu0 0.0
  %772 = vmatpush1.xpose.msra.mxu0 0.0
  %773 = vmatprep.subr.mxu0 0.0
  %774 = vmatpush1.xpose.msra.mxu0 0.0
  %775 = vmatprep.subr.mxu0 0.0
  %776 = vmatpush1.xpose.msra.mxu0 0.0
  %777 = vmatprep.subr.mxu0 0.0
  %778 = vmatpush1.xpose.msra.mxu0 %v745
  %779 = vmatprep.subr.mxu0 0.0
  %780 = vmatpush2.xpose.msra.mxu0 0.0
  %781 = vmatprep.subr.mxu0 0.0
  %782 = vmatpush2.xpose.msra.mxu0 0.0
  %783 = vmatprep.subr.mxu0 0.0
  %784 = vmatpush2.xpose.msra.mxu0 0.0
  %785 = vmatprep.subr.mxu0 0.0
  %786 = vmatpush2.xpose.msra.mxu0 0.0
  %787 = vmatprep.subr.mxu0 0.0
  %788 = vmatpush2.xpose.msra.mxu0 0.0
  %789 = vmatprep.subr.mxu0 0.0
  %790 = vmatpush2.xpose.msra.mxu0 0.0
  %791 = vmatprep.subr.mxu0 0.0
  %792 = vmatpush2.xpose.msra.mxu0 0.0
  %793 = vmatprep.subr.mxu0 0.0
  %794 = vmatpush2.xpose.msra.mxu0 0.0
  %795 = vmatprep.subr.mxu0 0.0
  %796 = vmatpush2.xpose.msra.mxu0 0.0
  %797 = vmatprep.subr.mxu0 0.0
  %798 = vmatpush2.xpose.msra.mxu0 0.0
  %799 = vmatprep.subr.mxu0 0.0
  %800 = vmatpush2.xpose.msra.mxu0 0.0
  %801 = vmatprep.subr.mxu0 0.0
  %802 = vmatpush2.xpose.msra.mxu0 0.0
  %803 = vmatprep.subr.mxu0 0.0
  %804 = vmatpush2.xpose.msra.mxu0 0.0
  %805 = vmatprep.subr.mxu0 0.0
  %806 = vmatpush2.xpose.msra.mxu0 0.0
  %807 = vmatprep.subr.mxu0 0.0
  %808 = vmatpush2.xpose.msra.mxu0 0.0
  %809 = vmatprep.subr.mxu0 0.0
  %810 = vmatpush2.xpose.msra.mxu0 0.0
  %811 = vmatprep.mubr.f32.mxu0 0.0
  %812 = vmatmul.mubr.f32.gmra.mxu0 %v743
  %v813 = vpop.f32.mrf.mxu0
  %v814 = vadd.f32 0.0, %v813
  %v815 = vpop.f32.mrf.mxu0
  %816 = vdwg.mxu0
  %817 = vrot.lane.b32.xlu0 %v367, 96
  %v818 = vpop.permute.xlu0 %817
  %v819 = vsel %vm438, %v385, 0
  %v821 = vsel %vm438, %v818, 0
  %823 = vmatprep.subr.mxu0 0.0
  %824 = vmatpush1.xpose.msra.mxu0 0.0
  %825 = vmatprep.subr.mxu0 0.0
  %826 = vmatpush1.xpose.msra.mxu0 0.0
  %827 = vmatprep.subr.mxu0 0.0
  %828 = vmatpush1.xpose.msra.mxu0 0.0
  %829 = vmatprep.subr.mxu0 0.0
  %830 = vmatpush1.xpose.msra.mxu0 0.0
  %831 = vmatprep.subr.mxu0 0.0
  %832 = vmatpush1.xpose.msra.mxu0 0.0
  %833 = vmatprep.subr.mxu0 0.0
  %834 = vmatpush1.xpose.msra.mxu0 0.0
  %835 = vmatprep.subr.mxu0 0.0
  %836 = vmatpush1.xpose.msra.mxu0 0.0
  %837 = vmatprep.subr.mxu0 0.0
  %838 = vmatpush1.xpose.msra.mxu0 0.0
  %839 = vmatprep.subr.mxu0 0.0
  %840 = vmatpush1.xpose.msra.mxu0 0.0
  %841 = vmatprep.subr.mxu0 0.0
  %842 = vmatpush1.xpose.msra.mxu0 0.0
  %843 = vmatprep.subr.mxu0 0.0
  %844 = vmatpush1.xpose.msra.mxu0 0.0
  %845 = vmatprep.subr.mxu0 0.0
  %846 = vmatpush1.xpose.msra.mxu0 0.0
  %847 = vmatprep.subr.mxu0 0.0
  %848 = vmatpush1.xpose.msra.mxu0 0.0
  %849 = vmatprep.subr.mxu0 0.0
  %850 = vmatpush1.xpose.msra.mxu0 0.0
  %851 = vmatprep.subr.mxu0 0.0
  %852 = vmatpush1.xpose.msra.mxu0 0.0
  %853 = vmatprep.subr.mxu0 0.0
  %854 = vmatpush1.xpose.msra.mxu0 %v821
  %855 = vmatprep.subr.mxu0 0.0
  %856 = vmatpush2.xpose.msra.mxu0 0.0
  %857 = vmatprep.subr.mxu0 0.0
  %858 = vmatpush2.xpose.msra.mxu0 0.0
  %859 = vmatprep.subr.mxu0 0.0
  %860 = vmatpush2.xpose.msra.mxu0 0.0
  %861 = vmatprep.subr.mxu0 0.0
  %862 = vmatpush2.xpose.msra.mxu0 0.0
  %863 = vmatprep.subr.mxu0 0.0
  %864 = vmatpush2.xpose.msra.mxu0 0.0
  %865 = vmatprep.subr.mxu0 0.0
  %866 = vmatpush2.xpose.msra.mxu0 0.0
  %867 = vmatprep.subr.mxu0 0.0
  %868 = vmatpush2.xpose.msra.mxu0 0.0
  %869 = vmatprep.subr.mxu0 0.0
  %870 = vmatpush2.xpose.msra.mxu0 0.0
  %871 = vmatprep.subr.mxu0 0.0
  %872 = vmatpush2.xpose.msra.mxu0 0.0
  %873 = vmatprep.subr.mxu0 0.0
  %874 = vmatpush2.xpose.msra.mxu0 0.0
  %875 = vmatprep.subr.mxu0 0.0
  %876 = vmatpush2.xpose.msra.mxu0 0.0
  %877 = vmatprep.subr.mxu0 0.0
  %878 = vmatpush2.xpose.msra.mxu0 0.0
  %879 = vmatprep.subr.mxu0 0.0
  %880 = vmatpush2.xpose.msra.mxu0 0.0
  %881 = vmatprep.subr.mxu0 0.0
  %882 = vmatpush2.xpose.msra.mxu0 0.0
  %883 = vmatprep.subr.mxu0 0.0
  %884 = vmatpush2.xpose.msra.mxu0 0.0
  %885 = vmatprep.subr.mxu0 0.0
  %886 = vmatpush2.xpose.msra.mxu0 0.0
  %887 = vmatprep.mubr.f32.mxu0 0.0
  %888 = vmatmul.mubr.f32.gmra.mxu0 %v819
  %v889 = vpop.f32.mrf.mxu0
  %v890 = vadd.f32 0.0, %v889
  %v891 = vpop.f32.mrf.mxu0
  %892 = vdwg.mxu0
  %893 = vrot.lane.b32.xlu0 %v372, 96
  %v894 = vpop.permute.xlu0 %893
  %v895 = vsel %vm438, %v386, 0
  %v897 = vsel %vm438, %v894, 0
  %899 = vmatprep.subr.mxu0 0.0
  %900 = vmatpush1.xpose.msra.mxu0 0.0
  %901 = vmatprep.subr.mxu0 0.0
  %902 = vmatpush1.xpose.msra.mxu0 0.0
  %903 = vmatprep.subr.mxu0 0.0
  %904 = vmatpush1.xpose.msra.mxu0 0.0
  %905 = vmatprep.subr.mxu0 0.0
  %906 = vmatpush1.xpose.msra.mxu0 0.0
  %907 = vmatprep.subr.mxu0 0.0
  %908 = vmatpush1.xpose.msra.mxu0 0.0
  %909 = vmatprep.subr.mxu0 0.0
  %910 = vmatpush1.xpose.msra.mxu0 0.0
  %911 = vmatprep.subr.mxu0 0.0
  %912 = vmatpush1.xpose.msra.mxu0 0.0
  %913 = vmatprep.subr.mxu0 0.0
  %914 = vmatpush1.xpose.msra.mxu0 0.0
  %915 = vmatprep.subr.mxu0 0.0
  %916 = vmatpush1.xpose.msra.mxu0 0.0
  %917 = vmatprep.subr.mxu0 0.0
  %918 = vmatpush1.xpose.msra.mxu0 0.0
  %919 = vmatprep.subr.mxu0 0.0
  %920 = vmatpush1.xpose.msra.mxu0 0.0
  %921 = vmatprep.subr.mxu0 0.0
  %922 = vmatpush1.xpose.msra.mxu0 0.0
  %923 = vmatprep.subr.mxu0 0.0
  %924 = vmatpush1.xpose.msra.mxu0 0.0
  %925 = vmatprep.subr.mxu0 0.0
  %926 = vmatpush1.xpose.msra.mxu0 0.0
  %927 = vmatprep.subr.mxu0 0.0
  %928 = vmatpush1.xpose.msra.mxu0 0.0
  %929 = vmatprep.subr.mxu0 0.0
  %930 = vmatpush1.xpose.msra.mxu0 %v897
  %931 = vmatprep.subr.mxu0 0.0
  %932 = vmatpush2.xpose.msra.mxu0 0.0
  %933 = vmatprep.subr.mxu0 0.0
  %934 = vmatpush2.xpose.msra.mxu0 0.0
  %935 = vmatprep.subr.mxu0 0.0
  %936 = vmatpush2.xpose.msra.mxu0 0.0
  %937 = vmatprep.subr.mxu0 0.0
  %938 = vmatpush2.xpose.msra.mxu0 0.0
  %939 = vmatprep.subr.mxu0 0.0
  %940 = vmatpush2.xpose.msra.mxu0 0.0
  %941 = vmatprep.subr.mxu0 0.0
  %942 = vmatpush2.xpose.msra.mxu0 0.0
  %943 = vmatprep.subr.mxu0 0.0
  %944 = vmatpush2.xpose.msra.mxu0 0.0
  %945 = vmatprep.subr.mxu0 0.0
  %946 = vmatpush2.xpose.msra.mxu0 0.0
  %947 = vmatprep.subr.mxu0 0.0
  %948 = vmatpush2.xpose.msra.mxu0 0.0
  %949 = vmatprep.subr.mxu0 0.0
  %950 = vmatpush2.xpose.msra.mxu0 0.0
  %951 = vmatprep.subr.mxu0 0.0
  %952 = vmatpush2.xpose.msra.mxu0 0.0
  %953 = vmatprep.subr.mxu0 0.0
  %954 = vmatpush2.xpose.msra.mxu0 0.0
  %955 = vmatprep.subr.mxu0 0.0
  %956 = vmatpush2.xpose.msra.mxu0 0.0
  %957 = vmatprep.subr.mxu0 0.0
  %958 = vmatpush2.xpose.msra.mxu0 0.0
  %959 = vmatprep.subr.mxu0 0.0
  %960 = vmatpush2.xpose.msra.mxu0 0.0
  %961 = vmatprep.subr.mxu0 0.0
  %962 = vmatpush2.xpose.msra.mxu0 0.0
  %963 = vmatprep.mubr.f32.mxu0 0.0
  %964 = vmatmul.mubr.f32.gmra.mxu0 %v895
  %v965 = vpop.f32.mrf.mxu0
  %v966 = vadd.f32 0.0, %v965
  %v967 = vpop.f32.mrf.mxu0
  %968 = vdwg.mxu0
  %969 = vrot.lane.b32.xlu0 %v377, 96
  %v970 = vpop.permute.xlu0 %969
  %v971 = vsel %vm438, %v387, 0
  %v973 = vsel %vm438, %v970, 0
  %975 = vmatprep.subr.mxu0 0.0
  %976 = vmatpush1.xpose.msra.mxu0 0.0
  %977 = vmatprep.subr.mxu0 0.0
  %978 = vmatpush1.xpose.msra.mxu0 0.0
  %979 = vmatprep.subr.mxu0 0.0
  %980 = vmatpush1.xpose.msra.mxu0 0.0
  %981 = vmatprep.subr.mxu0 0.0
  %982 = vmatpush1.xpose.msra.mxu0 0.0
  %983 = vmatprep.subr.mxu0 0.0
  %984 = vmatpush1.xpose.msra.mxu0 0.0
  %985 = vmatprep.subr.mxu0 0.0
  %986 = vmatpush1.xpose.msra.mxu0 0.0
  %987 = vmatprep.subr.mxu0 0.0
  %988 = vmatpush1.xpose.msra.mxu0 0.0
  %989 = vmatprep.subr.mxu0 0.0
  %990 = vmatpush1.xpose.msra.mxu0 0.0
  %991 = vmatprep.subr.mxu0 0.0
  %992 = vmatpush1.xpose.msra.mxu0 0.0
  %993 = vmatprep.subr.mxu0 0.0
  %994 = vmatpush1.xpose.msra.mxu0 0.0
  %995 = vmatprep.subr.mxu0 0.0
  %996 = vmatpush1.xpose.msra.mxu0 0.0
  %997 = vmatprep.subr.mxu0 0.0
  %998 = vmatpush1.xpose.msra.mxu0 0.0
  %999 = vmatprep.subr.mxu0 0.0
  %1000 = vmatpush1.xpose.msra.mxu0 0.0
  %1001 = vmatprep.subr.mxu0 0.0
  %1002 = vmatpush1.xpose.msra.mxu0 0.0
  %1003 = vmatprep.subr.mxu0 0.0
  %1004 = vmatpush1.xpose.msra.mxu0 0.0
  %1005 = vmatprep.subr.mxu0 0.0
  %1006 = vmatpush1.xpose.msra.mxu0 %v973
  %1007 = vmatprep.subr.mxu0 0.0
  %1008 = vmatpush2.xpose.msra.mxu0 0.0
  %1009 = vmatprep.subr.mxu0 0.0
  %1010 = vmatpush2.xpose.msra.mxu0 0.0
  %1011 = vmatprep.subr.mxu0 0.0
  %1012 = vmatpush2.xpose.msra.mxu0 0.0
  %1013 = vmatprep.subr.mxu0 0.0
  %1014 = vmatpush2.xpose.msra.mxu0 0.0
  %1015 = vmatprep.subr.mxu0 0.0
  %1016 = vmatpush2.xpose.msra.mxu0 0.0
  %1017 = vmatprep.subr.mxu0 0.0
  %1018 = vmatpush2.xpose.msra.mxu0 0.0
  %1019 = vmatprep.subr.mxu0 0.0
  %1020 = vmatpush2.xpose.msra.mxu0 0.0
  %1021 = vmatprep.subr.mxu0 0.0
  %1022 = vmatpush2.xpose.msra.mxu0 0.0
  %1023 = vmatprep.subr.mxu0 0.0
  %1024 = vmatpush2.xpose.msra.mxu0 0.0
  %1025 = vmatprep.subr.mxu0 0.0
  %1026 = vmatpush2.xpose.msra.mxu0 0.0
  %1027 = vmatprep.subr.mxu0 0.0
  %1028 = vmatpush2.xpose.msra.mxu0 0.0
  %1029 = vmatprep.subr.mxu0 0.0
  %1030 = vmatpush2.xpose.msra.mxu0 0.0
  %1031 = vmatprep.subr.mxu0 0.0
  %1032 = vmatpush2.xpose.msra.mxu0 0.0
  %1033 = vmatprep.subr.mxu0 0.0
  %1034 = vmatpush2.xpose.msra.mxu0 0.0
  %1035 = vmatprep.subr.mxu0 0.0
  %1036 = vmatpush2.xpose.msra.mxu0 0.0
  %1037 = vmatprep.subr.mxu0 0.0
  %1038 = vmatpush2.xpose.msra.mxu0 0.0
  %1039 = vmatprep.mubr.f32.mxu0 0.0
  %1040 = vmatmul.mubr.f32.gmra.mxu0 %v971
  %v1041 = vpop.f32.mrf.mxu0
  %v1042 = vadd.f32 0.0, %v1041
  %v1043 = vpop.f32.mrf.mxu0
  %1044 = vdwg.mxu0
  %1045 = vrot.lane.b32.xlu0 %v421, 96
  %v1046 = vpop.permute.xlu0 %1045
  %v1047 = vsel %vm438, %v397, 0
  %v1049 = vsel %vm438, %v1046, 0
  %1051 = vmatprep.subr.mxu0 0.0
  %1052 = vmatpush1.xpose.msra.mxu0 0.0
  %1053 = vmatprep.subr.mxu0 0.0
  %1054 = vmatpush1.xpose.msra.mxu0 0.0
  %1055 = vmatprep.subr.mxu0 0.0
  %1056 = vmatpush1.xpose.msra.mxu0 0.0
  %1057 = vmatprep.subr.mxu0 0.0
  %1058 = vmatpush1.xpose.msra.mxu0 0.0
  %1059 = vmatprep.subr.mxu0 0.0
  %1060 = vmatpush1.xpose.msra.mxu0 0.0
  %1061 = vmatprep.subr.mxu0 0.0
  %1062 = vmatpush1.xpose.msra.mxu0 0.0
  %1063 = vmatprep.subr.mxu0 0.0
  %1064 = vmatpush1.xpose.msra.mxu0 0.0
  %1065 = vmatprep.subr.mxu0 0.0
  %1066 = vmatpush1.xpose.msra.mxu0 0.0
  %1067 = vmatprep.subr.mxu0 0.0
  %1068 = vmatpush1.xpose.msra.mxu0 0.0
  %1069 = vmatprep.subr.mxu0 0.0
  %1070 = vmatpush1.xpose.msra.mxu0 0.0
  %1071 = vmatprep.subr.mxu0 0.0
  %1072 = vmatpush1.xpose.msra.mxu0 0.0
  %1073 = vmatprep.subr.mxu0 0.0
  %1074 = vmatpush1.xpose.msra.mxu0 0.0
  %1075 = vmatprep.subr.mxu0 0.0
  %1076 = vmatpush1.xpose.msra.mxu0 0.0
  %1077 = vmatprep.subr.mxu0 0.0
  %1078 = vmatpush1.xpose.msra.mxu0 0.0
  %1079 = vmatprep.subr.mxu0 0.0
  %1080 = vmatpush1.xpose.msra.mxu0 0.0
  %1081 = vmatprep.subr.mxu0 0.0
  %1082 = vmatpush1.xpose.msra.mxu0 %v1049
  %1083 = vmatprep.subr.mxu0 0.0
  %1084 = vmatpush2.xpose.msra.mxu0 0.0
  %1085 = vmatprep.subr.mxu0 0.0
  %1086 = vmatpush2.xpose.msra.mxu0 0.0
  %1087 = vmatprep.subr.mxu0 0.0
  %1088 = vmatpush2.xpose.msra.mxu0 0.0
  %1089 = vmatprep.subr.mxu0 0.0
  %1090 = vmatpush2.xpose.msra.mxu0 0.0
  %1091 = vmatprep.subr.mxu0 0.0
  %1092 = vmatpush2.xpose.msra.mxu0 0.0
  %1093 = vmatprep.subr.mxu0 0.0
  %1094 = vmatpush2.xpose.msra.mxu0 0.0
  %1095 = vmatprep.subr.mxu0 0.0
  %1096 = vmatpush2.xpose.msra.mxu0 0.0
  %1097 = vmatprep.subr.mxu0 0.0
  %1098 = vmatpush2.xpose.msra.mxu0 0.0
  %1099 = vmatprep.subr.mxu0 0.0
  %1100 = vmatpush2.xpose.msra.mxu0 0.0
  %1101 = vmatprep.subr.mxu0 0.0
  %1102 = vmatpush2.xpose.msra.mxu0 0.0
  %1103 = vmatprep.subr.mxu0 0.0
  %1104 = vmatpush2.xpose.msra.mxu0 0.0
  %1105 = vmatprep.subr.mxu0 0.0
  %1106 = vmatpush2.xpose.msra.mxu0 0.0
  %1107 = vmatprep.subr.mxu0 0.0
  %1108 = vmatpush2.xpose.msra.mxu0 0.0
  %1109 = vmatprep.subr.mxu0 0.0
  %1110 = vmatpush2.xpose.msra.mxu0 0.0
  %1111 = vmatprep.subr.mxu0 0.0
  %1112 = vmatpush2.xpose.msra.mxu0 0.0
  %1113 = vmatprep.subr.mxu0 0.0
  %1114 = vmatpush2.xpose.msra.mxu0 0.0
  %1115 = vmatprep.mubr.f32.mxu0 0.0
  %1116 = vmatmul.mubr.f32.gmra.mxu0 %v1047
  %v1117 = vpop.f32.mrf.mxu0
  %v1118 = vadd.f32 0.0, %v1117
  %v1119 = vpop.f32.mrf.mxu0
  %1120 = vdwg.mxu0
  %1121 = vrot.lane.b32.xlu0 %v423, 96
  %v1122 = vpop.permute.xlu0 %1121
  %v1123 = vsel %vm438, %v399, 0
  %v1125 = vsel %vm438, %v1122, 0
  %1127 = vmatprep.subr.mxu0 0.0
  %1128 = vmatpush1.xpose.msra.mxu0 0.0
  %1129 = vmatprep.subr.mxu0 0.0
  %1130 = vmatpush1.xpose.msra.mxu0 0.0
  %1131 = vmatprep.subr.mxu0 0.0
  %1132 = vmatpush1.xpose.msra.mxu0 0.0
  %1133 = vmatprep.subr.mxu0 0.0
  %1134 = vmatpush1.xpose.msra.mxu0 0.0
  %1135 = vmatprep.subr.mxu0 0.0
  %1136 = vmatpush1.xpose.msra.mxu0 0.0
  %1137 = vmatprep.subr.mxu0 0.0
  %1138 = vmatpush1.xpose.msra.mxu0 0.0
  %1139 = vmatprep.subr.mxu0 0.0
  %1140 = vmatpush1.xpose.msra.mxu0 0.0
  %1141 = vmatprep.subr.mxu0 0.0
  %1142 = vmatpush1.xpose.msra.mxu0 0.0
  %1143 = vmatprep.subr.mxu0 0.0
  %1144 = vmatpush1.xpose.msra.mxu0 0.0
  %1145 = vmatprep.subr.mxu0 0.0
  %1146 = vmatpush1.xpose.msra.mxu0 0.0
  %1147 = vmatprep.subr.mxu0 0.0
  %1148 = vmatpush1.xpose.msra.mxu0 0.0
  %1149 = vmatprep.subr.mxu0 0.0
  %1150 = vmatpush1.xpose.msra.mxu0 0.0
  %1151 = vmatprep.subr.mxu0 0.0
  %1152 = vmatpush1.xpose.msra.mxu0 0.0
  %1153 = vmatprep.subr.mxu0 0.0
  %1154 = vmatpush1.xpose.msra.mxu0 0.0
  %1155 = vmatprep.subr.mxu0 0.0
  %1156 = vmatpush1.xpose.msra.mxu0 0.0
  %1157 = vmatprep.subr.mxu0 0.0
  %1158 = vmatpush1.xpose.msra.mxu0 %v1125
  %1159 = vmatprep.subr.mxu0 0.0
  %1160 = vmatpush2.xpose.msra.mxu0 0.0
  %1161 = vmatprep.subr.mxu0 0.0
  %1162 = vmatpush2.xpose.msra.mxu0 0.0
  %1163 = vmatprep.subr.mxu0 0.0
  %1164 = vmatpush2.xpose.msra.mxu0 0.0
  %1165 = vmatprep.subr.mxu0 0.0
  %1166 = vmatpush2.xpose.msra.mxu0 0.0
  %1167 = vmatprep.subr.mxu0 0.0
  %1168 = vmatpush2.xpose.msra.mxu0 0.0
  %1169 = vmatprep.subr.mxu0 0.0
  %1170 = vmatpush2.xpose.msra.mxu0 0.0
  %1171 = vmatprep.subr.mxu0 0.0
  %1172 = vmatpush2.xpose.msra.mxu0 0.0
  %1173 = vmatprep.subr.mxu0 0.0
  %1174 = vmatpush2.xpose.msra.mxu0 0.0
  %1175 = vmatprep.subr.mxu0 0.0
  %1176 = vmatpush2.xpose.msra.mxu0 0.0
  %1177 = vmatprep.subr.mxu0 0.0
  %1178 = vmatpush2.xpose.msra.mxu0 0.0
  %1179 = vmatprep.subr.mxu0 0.0
  %1180 = vmatpush2.xpose.msra.mxu0 0.0
  %1181 = vmatprep.subr.mxu0 0.0
  %1182 = vmatpush2.xpose.msra.mxu0 0.0
  %1183 = vmatprep.subr.mxu0 0.0
  %1184 = vmatpush2.xpose.msra.mxu0 0.0
  %1185 = vmatprep.subr.mxu0 0.0
  %1186 = vmatpush2.xpose.msra.mxu0 0.0
  %1187 = vmatprep.subr.mxu0 0.0
  %1188 = vmatpush2.xpose.msra.mxu0 0.0
  %1189 = vmatprep.subr.mxu0 0.0
  %1190 = vmatpush2.xpose.msra.mxu0 0.0
  %1191 = vmatprep.mubr.f32.mxu0 0.0
  %1192 = vmatmul.mubr.f32.gmra.mxu0 %v1123
  %v1193 = vpop.f32.mrf.mxu0
  %v1194 = vadd.f32 0.0, %v1193
  %v1195 = vpop.f32.mrf.mxu0
  %1196 = vdwg.mxu0
  %1197 = vrot.lane.b32.xlu0 %v425, 96
  %v1198 = vpop.permute.xlu0 %1197
  %v1199 = vsel %vm438, %v401, 0
  %v1201 = vsel %vm438, %v1198, 0
  %1203 = vmatprep.subr.mxu0 0.0
  %1204 = vmatpush1.xpose.msra.mxu0 0.0
  %1205 = vmatprep.subr.mxu0 0.0
  %1206 = vmatpush1.xpose.msra.mxu0 0.0
  %1207 = vmatprep.subr.mxu0 0.0
  %1208 = vmatpush1.xpose.msra.mxu0 0.0
  %1209 = vmatprep.subr.mxu0 0.0
  %1210 = vmatpush1.xpose.msra.mxu0 0.0
  %1211 = vmatprep.subr.mxu0 0.0
  %1212 = vmatpush1.xpose.msra.mxu0 0.0
  %1213 = vmatprep.subr.mxu0 0.0
  %1214 = vmatpush1.xpose.msra.mxu0 0.0
  %1215 = vmatprep.subr.mxu0 0.0
  %1216 = vmatpush1.xpose.msra.mxu0 0.0
  %1217 = vmatprep.subr.mxu0 0.0
  %1218 = vmatpush1.xpose.msra.mxu0 0.0
  %1219 = vmatprep.subr.mxu0 0.0
  %1220 = vmatpush1.xpose.msra.mxu0 0.0
  %1221 = vmatprep.subr.mxu0 0.0
  %1222 = vmatpush1.xpose.msra.mxu0 0.0
  %1223 = vmatprep.subr.mxu0 0.0
  %1224 = vmatpush1.xpose.msra.mxu0 0.0
  %1225 = vmatprep.subr.mxu0 0.0
  %1226 = vmatpush1.xpose.msra.mxu0 0.0
  %1227 = vmatprep.subr.mxu0 0.0
  %1228 = vmatpush1.xpose.msra.mxu0 0.0
  %1229 = vmatprep.subr.mxu0 0.0
  %1230 = vmatpush1.xpose.msra.mxu0 0.0
  %1231 = vmatprep.subr.mxu0 0.0
  %1232 = vmatpush1.xpose.msra.mxu0 0.0
  %1233 = vmatprep.subr.mxu0 0.0
  %1234 = vmatpush1.xpose.msra.mxu0 %v1201
  %1235 = vmatprep.subr.mxu0 0.0
  %1236 = vmatpush2.xpose.msra.mxu0 0.0
  %1237 = vmatprep.subr.mxu0 0.0
  %1238 = vmatpush2.xpose.msra.mxu0 0.0
  %1239 = vmatprep.subr.mxu0 0.0
  %1240 = vmatpush2.xpose.msra.mxu0 0.0
  %1241 = vmatprep.subr.mxu0 0.0
  %1242 = vmatpush2.xpose.msra.mxu0 0.0
  %1243 = vmatprep.subr.mxu0 0.0
  %1244 = vmatpush2.xpose.msra.mxu0 0.0
  %1245 = vmatprep.subr.mxu0 0.0
  %1246 = vmatpush2.xpose.msra.mxu0 0.0
  %1247 = vmatprep.subr.mxu0 0.0
  %1248 = vmatpush2.xpose.msra.mxu0 0.0
  %1249 = vmatprep.subr.mxu0 0.0
  %1250 = vmatpush2.xpose.msra.mxu0 0.0
  %1251 = vmatprep.subr.mxu0 0.0
  %1252 = vmatpush2.xpose.msra.mxu0 0.0
  %1253 = vmatprep.subr.mxu0 0.0
  %1254 = vmatpush2.xpose.msra.mxu0 0.0
  %1255 = vmatprep.subr.mxu0 0.0
  %1256 = vmatpush2.xpose.msra.mxu0 0.0
  %1257 = vmatprep.subr.mxu0 0.0
  %1258 = vmatpush2.xpose.msra.mxu0 0.0
  %1259 = vmatprep.subr.mxu0 0.0
  %1260 = vmatpush2.xpose.msra.mxu0 0.0
  %1261 = vmatprep.subr.mxu0 0.0
  %1262 = vmatpush2.xpose.msra.mxu0 0.0
  %1263 = vmatprep.subr.mxu0 0.0
  %1264 = vmatpush2.xpose.msra.mxu0 0.0
  %1265 = vmatprep.subr.mxu0 0.0
  %1266 = vmatpush2.xpose.msra.mxu0 0.0
  %1267 = vmatprep.mubr.f32.mxu0 0.0
  %1268 = vmatmul.mubr.f32.gmra.mxu0 %v1199
  %v1269 = vpop.f32.mrf.mxu0
  %v1270 = vadd.f32 0.0, %v1269
  %v1271 = vpop.f32.mrf.mxu0
  %1272 = vdwg.mxu0
  %1273 = vrot.lane.b32.xlu0 %v427, 96
  %v1274 = vpop.permute.xlu0 %1273
  %v1275 = vsel %vm438, %v403, 0
  %v1277 = vsel %vm438, %v1274, 0
  %1279 = vmatprep.subr.mxu0 0.0
  %1280 = vmatpush1.xpose.msra.mxu0 0.0
  %1281 = vmatprep.subr.mxu0 0.0
  %1282 = vmatpush1.xpose.msra.mxu0 0.0
  %1283 = vmatprep.subr.mxu0 0.0
  %1284 = vmatpush1.xpose.msra.mxu0 0.0
  %1285 = vmatprep.subr.mxu0 0.0
  %1286 = vmatpush1.xpose.msra.mxu0 0.0
  %1287 = vmatprep.subr.mxu0 0.0
  %1288 = vmatpush1.xpose.msra.mxu0 0.0
  %1289 = vmatprep.subr.mxu0 0.0
  %1290 = vmatpush1.xpose.msra.mxu0 0.0
  %1291 = vmatprep.subr.mxu0 0.0
  %1292 = vmatpush1.xpose.msra.mxu0 0.0
  %1293 = vmatprep.subr.mxu0 0.0
  %1294 = vmatpush1.xpose.msra.mxu0 0.0
  %1295 = vmatprep.subr.mxu0 0.0
  %1296 = vmatpush1.xpose.msra.mxu0 0.0
  %1297 = vmatprep.subr.mxu0 0.0
  %1298 = vmatpush1.xpose.msra.mxu0 0.0
  %1299 = vmatprep.subr.mxu0 0.0
  %1300 = vmatpush1.xpose.msra.mxu0 0.0
  %1301 = vmatprep.subr.mxu0 0.0
  %1302 = vmatpush1.xpose.msra.mxu0 0.0
  %1303 = vmatprep.subr.mxu0 0.0
  %1304 = vmatpush1.xpose.msra.mxu0 0.0
  %1305 = vmatprep.subr.mxu0 0.0
  %1306 = vmatpush1.xpose.msra.mxu0 0.0
  %1307 = vmatprep.subr.mxu0 0.0
  %1308 = vmatpush1.xpose.msra.mxu0 0.0
  %1309 = vmatprep.subr.mxu0 0.0
  %1310 = vmatpush1.xpose.msra.mxu0 %v1277
  %1311 = vmatprep.subr.mxu0 0.0
  %1312 = vmatpush2.xpose.msra.mxu0 0.0
  %1313 = vmatprep.subr.mxu0 0.0
  %1314 = vmatpush2.xpose.msra.mxu0 0.0
  %1315 = vmatprep.subr.mxu0 0.0
  %1316 = vmatpush2.xpose.msra.mxu0 0.0
  %1317 = vmatprep.subr.mxu0 0.0
  %1318 = vmatpush2.xpose.msra.mxu0 0.0
  %1319 = vmatprep.subr.mxu0 0.0
  %1320 = vmatpush2.xpose.msra.mxu0 0.0
  %1321 = vmatprep.subr.mxu0 0.0
  %1322 = vmatpush2.xpose.msra.mxu0 0.0
  %1323 = vmatprep.subr.mxu0 0.0
  %1324 = vmatpush2.xpose.msra.mxu0 0.0
  %1325 = vmatprep.subr.mxu0 0.0
  %1326 = vmatpush2.xpose.msra.mxu0 0.0
  %1327 = vmatprep.subr.mxu0 0.0
  %1328 = vmatpush2.xpose.msra.mxu0 0.0
  %1329 = vmatprep.subr.mxu0 0.0
  %1330 = vmatpush2.xpose.msra.mxu0 0.0
  %1331 = vmatprep.subr.mxu0 0.0
  %1332 = vmatpush2.xpose.msra.mxu0 0.0
  %1333 = vmatprep.subr.mxu0 0.0
  %1334 = vmatpush2.xpose.msra.mxu0 0.0
  %1335 = vmatprep.subr.mxu0 0.0
  %1336 = vmatpush2.xpose.msra.mxu0 0.0
  %1337 = vmatprep.subr.mxu0 0.0
  %1338 = vmatpush2.xpose.msra.mxu0 0.0
  %1339 = vmatprep.subr.mxu0 0.0
  %1340 = vmatpush2.xpose.msra.mxu0 0.0
  %1341 = vmatprep.subr.mxu0 0.0
  %1342 = vmatpush2.xpose.msra.mxu0 0.0
  %1343 = vmatprep.mubr.f32.mxu0 0.0
  %1344 = vmatmul.mubr.f32.gmra.mxu0 %v1275
  %v1345 = vpop.f32.mrf.mxu0
  %v1346 = vadd.f32 0.0, %v1345
  %v1347 = vpop.f32.mrf.mxu0
  %1348 = vdwg.mxu0
  %1349 = vrot.lane.b32.xlu0 %v429, 96
  %v1350 = vpop.permute.xlu0 %1349
  %v1351 = vsel %vm438, %v405, 0
  %v1353 = vsel %vm438, %v1350, 0
  %1355 = vmatprep.subr.mxu0 0.0
  %1356 = vmatpush1.xpose.msra.mxu0 0.0
  %1357 = vmatprep.subr.mxu0 0.0
  %1358 = vmatpush1.xpose.msra.mxu0 0.0
  %1359 = vmatprep.subr.mxu0 0.0
  %1360 = vmatpush1.xpose.msra.mxu0 0.0
  %1361 = vmatprep.subr.mxu0 0.0
  %1362 = vmatpush1.xpose.msra.mxu0 0.0
  %1363 = vmatprep.subr.mxu0 0.0
  %1364 = vmatpush1.xpose.msra.mxu0 0.0
  %1365 = vmatprep.subr.mxu0 0.0
  %1366 = vmatpush1.xpose.msra.mxu0 0.0
  %1367 = vmatprep.subr.mxu0 0.0
  %1368 = vmatpush1.xpose.msra.mxu0 0.0
  %1369 = vmatprep.subr.mxu0 0.0
  %1370 = vmatpush1.xpose.msra.mxu0 0.0
  %1371 = vmatprep.subr.mxu0 0.0
  %1372 = vmatpush1.xpose.msra.mxu0 0.0
  %1373 = vmatprep.subr.mxu0 0.0
  %1374 = vmatpush1.xpose.msra.mxu0 0.0
  %1375 = vmatprep.subr.mxu0 0.0
  %1376 = vmatpush1.xpose.msra.mxu0 0.0
  %1377 = vmatprep.subr.mxu0 0.0
  %1378 = vmatpush1.xpose.msra.mxu0 0.0
  %1379 = vmatprep.subr.mxu0 0.0
  %1380 = vmatpush1.xpose.msra.mxu0 0.0
  %1381 = vmatprep.subr.mxu0 0.0
  %1382 = vmatpush1.xpose.msra.mxu0 0.0
  %1383 = vmatprep.subr.mxu0 0.0
  %1384 = vmatpush1.xpose.msra.mxu0 0.0
  %1385 = vmatprep.subr.mxu0 0.0
  %1386 = vmatpush1.xpose.msra.mxu0 %v1353
  %1387 = vmatprep.subr.mxu0 0.0
  %1388 = vmatpush2.xpose.msra.mxu0 0.0
  %1389 = vmatprep.subr.mxu0 0.0
  %1390 = vmatpush2.xpose.msra.mxu0 0.0
  %1391 = vmatprep.subr.mxu0 0.0
  %1392 = vmatpush2.xpose.msra.mxu0 0.0
  %1393 = vmatprep.subr.mxu0 0.0
  %1394 = vmatpush2.xpose.msra.mxu0 0.0
  %1395 = vmatprep.subr.mxu0 0.0
  %1396 = vmatpush2.xpose.msra.mxu0 0.0
  %1397 = vmatprep.subr.mxu0 0.0
  %1398 = vmatpush2.xpose.msra.mxu0 0.0
  %1399 = vmatprep.subr.mxu0 0.0
  %1400 = vmatpush2.xpose.msra.mxu0 0.0
  %1401 = vmatprep.subr.mxu0 0.0
  %1402 = vmatpush2.xpose.msra.mxu0 0.0
  %1403 = vmatprep.subr.mxu0 0.0
  %1404 = vmatpush2.xpose.msra.mxu0 0.0
  %1405 = vmatprep.subr.mxu0 0.0
  %1406 = vmatpush2.xpose.msra.mxu0 0.0
  %1407 = vmatprep.subr.mxu0 0.0
  %1408 = vmatpush2.xpose.msra.mxu0 0.0
  %1409 = vmatprep.subr.mxu0 0.0
  %1410 = vmatpush2.xpose.msra.mxu0 0.0
  %1411 = vmatprep.subr.mxu0 0.0
  %1412 = vmatpush2.xpose.msra.mxu0 0.0
  %1413 = vmatprep.subr.mxu0 0.0
  %1414 = vmatpush2.xpose.msra.mxu0 0.0
  %1415 = vmatprep.subr.mxu0 0.0
  %1416 = vmatpush2.xpose.msra.mxu0 0.0
  %1417 = vmatprep.subr.mxu0 0.0
  %1418 = vmatpush2.xpose.msra.mxu0 0.0
  %1419 = vmatprep.mubr.f32.mxu0 0.0
  %1420 = vmatmul.mubr.f32.gmra.mxu0 %v1351
  %v1421 = vpop.f32.mrf.mxu0
  %v1422 = vadd.f32 0.0, %v1421
  %v1423 = vpop.f32.mrf.mxu0
  %1424 = vdwg.mxu0
  %1425 = vrot.lane.b32.xlu0 %v431, 96
  %v1426 = vpop.permute.xlu0 %1425
  %v1427 = vsel %vm438, %v407, 0
  %v1429 = vsel %vm438, %v1426, 0
  %1431 = vmatprep.subr.mxu0 0.0
  %1432 = vmatpush1.xpose.msra.mxu0 0.0
  %1433 = vmatprep.subr.mxu0 0.0
  %1434 = vmatpush1.xpose.msra.mxu0 0.0
  %1435 = vmatprep.subr.mxu0 0.0
  %1436 = vmatpush1.xpose.msra.mxu0 0.0
  %1437 = vmatprep.subr.mxu0 0.0
  %1438 = vmatpush1.xpose.msra.mxu0 0.0
  %1439 = vmatprep.subr.mxu0 0.0
  %1440 = vmatpush1.xpose.msra.mxu0 0.0
  %1441 = vmatprep.subr.mxu0 0.0
  %1442 = vmatpush1.xpose.msra.mxu0 0.0
  %1443 = vmatprep.subr.mxu0 0.0
  %1444 = vmatpush1.xpose.msra.mxu0 0.0
  %1445 = vmatprep.subr.mxu0 0.0
  %1446 = vmatpush1.xpose.msra.mxu0 0.0
  %1447 = vmatprep.subr.mxu0 0.0
  %1448 = vmatpush1.xpose.msra.mxu0 0.0
  %1449 = vmatprep.subr.mxu0 0.0
  %1450 = vmatpush1.xpose.msra.mxu0 0.0
  %1451 = vmatprep.subr.mxu0 0.0
  %1452 = vmatpush1.xpose.msra.mxu0 0.0
  %1453 = vmatprep.subr.mxu0 0.0
  %1454 = vmatpush1.xpose.msra.mxu0 0.0
  %1455 = vmatprep.subr.mxu0 0.0
  %1456 = vmatpush1.xpose.msra.mxu0 0.0
  %1457 = vmatprep.subr.mxu0 0.0
  %1458 = vmatpush1.xpose.msra.mxu0 0.0
  %1459 = vmatprep.subr.mxu0 0.0
  %1460 = vmatpush1.xpose.msra.mxu0 0.0
  %1461 = vmatprep.subr.mxu0 0.0
  %1462 = vmatpush1.xpose.msra.mxu0 %v1429
  %1463 = vmatprep.subr.mxu0 0.0
  %1464 = vmatpush2.xpose.msra.mxu0 0.0
  %1465 = vmatprep.subr.mxu0 0.0
  %1466 = vmatpush2.xpose.msra.mxu0 0.0
  %1467 = vmatprep.subr.mxu0 0.0
  %1468 = vmatpush2.xpose.msra.mxu0 0.0
  %1469 = vmatprep.subr.mxu0 0.0
  %1470 = vmatpush2.xpose.msra.mxu0 0.0
  %1471 = vmatprep.subr.mxu0 0.0
  %1472 = vmatpush2.xpose.msra.mxu0 0.0
  %1473 = vmatprep.subr.mxu0 0.0
  %1474 = vmatpush2.xpose.msra.mxu0 0.0
  %1475 = vmatprep.subr.mxu0 0.0
  %1476 = vmatpush2.xpose.msra.mxu0 0.0
  %1477 = vmatprep.subr.mxu0 0.0
  %1478 = vmatpush2.xpose.msra.mxu0 0.0
  %1479 = vmatprep.subr.mxu0 0.0
  %1480 = vmatpush2.xpose.msra.mxu0 0.0
  %1481 = vmatprep.subr.mxu0 0.0
  %1482 = vmatpush2.xpose.msra.mxu0 0.0
  %1483 = vmatprep.subr.mxu0 0.0
  %1484 = vmatpush2.xpose.msra.mxu0 0.0
  %1485 = vmatprep.subr.mxu0 0.0
  %1486 = vmatpush2.xpose.msra.mxu0 0.0
  %1487 = vmatprep.subr.mxu0 0.0
  %1488 = vmatpush2.xpose.msra.mxu0 0.0
  %1489 = vmatprep.subr.mxu0 0.0
  %1490 = vmatpush2.xpose.msra.mxu0 0.0
  %1491 = vmatprep.subr.mxu0 0.0
  %1492 = vmatpush2.xpose.msra.mxu0 0.0
  %1493 = vmatprep.subr.mxu0 0.0
  %1494 = vmatpush2.xpose.msra.mxu0 0.0
  %1495 = vmatprep.mubr.f32.mxu0 0.0
  %1496 = vmatmul.mubr.f32.gmra.mxu0 %v1427
  %v1497 = vpop.f32.mrf.mxu0
  %v1498 = vadd.f32 0.0, %v1497
  %v1499 = vpop.f32.mrf.mxu0
  %1500 = vdwg.mxu0
  %1501 = vrot.lane.b32.xlu0 %v433, 96
  %v1502 = vpop.permute.xlu0 %1501
  %v1503 = vsel %vm438, %v409, 0
  %v1505 = vsel %vm438, %v1502, 0
  %1507 = vmatprep.subr.mxu0 0.0
  %1508 = vmatpush1.xpose.msra.mxu0 0.0
  %1509 = vmatprep.subr.mxu0 0.0
  %1510 = vmatpush1.xpose.msra.mxu0 0.0
  %1511 = vmatprep.subr.mxu0 0.0
  %1512 = vmatpush1.xpose.msra.mxu0 0.0
  %1513 = vmatprep.subr.mxu0 0.0
  %1514 = vmatpush1.xpose.msra.mxu0 0.0
  %1515 = vmatprep.subr.mxu0 0.0
  %1516 = vmatpush1.xpose.msra.mxu0 0.0
  %1517 = vmatprep.subr.mxu0 0.0
  %1518 = vmatpush1.xpose.msra.mxu0 0.0
  %1519 = vmatprep.subr.mxu0 0.0
  %1520 = vmatpush1.xpose.msra.mxu0 0.0
  %1521 = vmatprep.subr.mxu0 0.0
  %1522 = vmatpush1.xpose.msra.mxu0 0.0
  %1523 = vmatprep.subr.mxu0 0.0
  %1524 = vmatpush1.xpose.msra.mxu0 0.0
  %1525 = vmatprep.subr.mxu0 0.0
  %1526 = vmatpush1.xpose.msra.mxu0 0.0
  %1527 = vmatprep.subr.mxu0 0.0
  %1528 = vmatpush1.xpose.msra.mxu0 0.0
  %1529 = vmatprep.subr.mxu0 0.0
  %1530 = vmatpush1.xpose.msra.mxu0 0.0
  %1531 = vmatprep.subr.mxu0 0.0
  %1532 = vmatpush1.xpose.msra.mxu0 0.0
  %1533 = vmatprep.subr.mxu0 0.0
  %1534 = vmatpush1.xpose.msra.mxu0 0.0
  %1535 = vmatprep.subr.mxu0 0.0
  %1536 = vmatpush1.xpose.msra.mxu0 0.0
  %1537 = vmatprep.subr.mxu0 0.0
  %1538 = vmatpush1.xpose.msra.mxu0 %v1505
  %1539 = vmatprep.subr.mxu0 0.0
  %1540 = vmatpush2.xpose.msra.mxu0 0.0
  %1541 = vmatprep.subr.mxu0 0.0
  %1542 = vmatpush2.xpose.msra.mxu0 0.0
  %1543 = vmatprep.subr.mxu0 0.0
  %1544 = vmatpush2.xpose.msra.mxu0 0.0
  %1545 = vmatprep.subr.mxu0 0.0
  %1546 = vmatpush2.xpose.msra.mxu0 0.0
  %1547 = vmatprep.subr.mxu0 0.0
  %1548 = vmatpush2.xpose.msra.mxu0 0.0
  %1549 = vmatprep.subr.mxu0 0.0
  %1550 = vmatpush2.xpose.msra.mxu0 0.0
  %1551 = vmatprep.subr.mxu0 0.0
  %1552 = vmatpush2.xpose.msra.mxu0 0.0
  %1553 = vmatprep.subr.mxu0 0.0
  %1554 = vmatpush2.xpose.msra.mxu0 0.0
  %1555 = vmatprep.subr.mxu0 0.0
  %1556 = vmatpush2.xpose.msra.mxu0 0.0
  %1557 = vmatprep.subr.mxu0 0.0
  %1558 = vmatpush2.xpose.msra.mxu0 0.0
  %1559 = vmatprep.subr.mxu0 0.0
  %1560 = vmatpush2.xpose.msra.mxu0 0.0
  %1561 = vmatprep.subr.mxu0 0.0
  %1562 = vmatpush2.xpose.msra.mxu0 0.0
  %1563 = vmatprep.subr.mxu0 0.0
  %1564 = vmatpush2.xpose.msra.mxu0 0.0
  %1565 = vmatprep.subr.mxu0 0.0
  %1566 = vmatpush2.xpose.msra.mxu0 0.0
  %1567 = vmatprep.subr.mxu0 0.0
  %1568 = vmatpush2.xpose.msra.mxu0 0.0
  %1569 = vmatprep.subr.mxu0 0.0
  %1570 = vmatpush2.xpose.msra.mxu0 0.0
  %1571 = vmatprep.mubr.f32.mxu0 0.0
  %1572 = vmatmul.mubr.f32.gmra.mxu0 %v1503
  %v1573 = vpop.f32.mrf.mxu0
  %v1574 = vadd.f32 0.0, %v1573
  %v1575 = vpop.f32.mrf.mxu0
  %1576 = vdwg.mxu0
  %1577 = vrot.lane.b32.xlu0 %v435, 96
  %v1578 = vpop.permute.xlu0 %1577
  %v1579 = vsel %vm438, %v411, 0
  %v1581 = vsel %vm438, %v1578, 0
  %1583 = vmatprep.subr.mxu0 0.0
  %1584 = vmatpush1.xpose.msra.mxu0 0.0
  %1585 = vmatprep.subr.mxu0 0.0
  %1586 = vmatpush1.xpose.msra.mxu0 0.0
  %1587 = vmatprep.subr.mxu0 0.0
  %1588 = vmatpush1.xpose.msra.mxu0 0.0
  %1589 = vmatprep.subr.mxu0 0.0
  %1590 = vmatpush1.xpose.msra.mxu0 0.0
  %1591 = vmatprep.subr.mxu0 0.0
  %1592 = vmatpush1.xpose.msra.mxu0 0.0
  %1593 = vmatprep.subr.mxu0 0.0
  %1594 = vmatpush1.xpose.msra.mxu0 0.0
  %1595 = vmatprep.subr.mxu0 0.0
  %1596 = vmatpush1.xpose.msra.mxu0 0.0
  %1597 = vmatprep.subr.mxu0 0.0
  %1598 = vmatpush1.xpose.msra.mxu0 0.0
  %1599 = vmatprep.subr.mxu0 0.0
  %1600 = vmatpush1.xpose.msra.mxu0 0.0
  %1601 = vmatprep.subr.mxu0 0.0
  %1602 = vmatpush1.xpose.msra.mxu0 0.0
  %1603 = vmatprep.subr.mxu0 0.0
  %1604 = vmatpush1.xpose.msra.mxu0 0.0
  %1605 = vmatprep.subr.mxu0 0.0
  %1606 = vmatpush1.xpose.msra.mxu0 0.0
  %1607 = vmatprep.subr.mxu0 0.0
  %1608 = vmatpush1.xpose.msra.mxu0 0.0
  %1609 = vmatprep.subr.mxu0 0.0
  %1610 = vmatpush1.xpose.msra.mxu0 0.0
  %1611 = vmatprep.subr.mxu0 0.0
  %1612 = vmatpush1.xpose.msra.mxu0 0.0
  %1613 = vmatprep.subr.mxu0 0.0
  %1614 = vmatpush1.xpose.msra.mxu0 %v1581
  %1615 = vmatprep.subr.mxu0 0.0
  %1616 = vmatpush2.xpose.msra.mxu0 0.0
  %1617 = vmatprep.subr.mxu0 0.0
  %1618 = vmatpush2.xpose.msra.mxu0 0.0
  %1619 = vmatprep.subr.mxu0 0.0
  %1620 = vmatpush2.xpose.msra.mxu0 0.0
  %1621 = vmatprep.subr.mxu0 0.0
  %1622 = vmatpush2.xpose.msra.mxu0 0.0
  %1623 = vmatprep.subr.mxu0 0.0
  %1624 = vmatpush2.xpose.msra.mxu0 0.0
  %1625 = vmatprep.subr.mxu0 0.0
  %1626 = vmatpush2.xpose.msra.mxu0 0.0
  %1627 = vmatprep.subr.mxu0 0.0
  %1628 = vmatpush2.xpose.msra.mxu0 0.0
  %1629 = vmatprep.subr.mxu0 0.0
  %1630 = vmatpush2.xpose.msra.mxu0 0.0
  %1631 = vmatprep.subr.mxu0 0.0
  %1632 = vmatpush2.xpose.msra.mxu0 0.0
  %1633 = vmatprep.subr.mxu0 0.0
  %1634 = vmatpush2.xpose.msra.mxu0 0.0
  %1635 = vmatprep.subr.mxu0 0.0
  %1636 = vmatpush2.xpose.msra.mxu0 0.0
  %1637 = vmatprep.subr.mxu0 0.0
  %1638 = vmatpush2.xpose.msra.mxu0 0.0
  %1639 = vmatprep.subr.mxu0 0.0
  %1640 = vmatpush2.xpose.msra.mxu0 0.0
  %1641 = vmatprep.subr.mxu0 0.0
  %1642 = vmatpush2.xpose.msra.mxu0 0.0
  %1643 = vmatprep.subr.mxu0 0.0
  %1644 = vmatpush2.xpose.msra.mxu0 0.0
  %1645 = vmatprep.subr.mxu0 0.0
  %1646 = vmatpush2.xpose.msra.mxu0 0.0
  %1647 = vmatprep.mubr.f32.mxu0 0.0
  %1648 = vmatmul.mubr.f32.gmra.mxu0 %v1579
  %v1649 = vpop.f32.mrf.mxu0
  %v1650 = vadd.f32 0.0, %v1649
  %v1651 = vpop.f32.mrf.mxu0
  %1652 = vdwg.mxu0
  %vm1653 = vcmask 64512
  %v1654 = vsel %vm1653, %v510, -inf
  %1655 = vmax.xlane.f32.xlu0 %v1654
  %v1656 = vpop.xlane.xlu0 %1655
  %v1657 = vsel %vm1653, %v586, -inf
  %1658 = vmax.xlane.f32.xlu0 %v1657
  %v1659 = vpop.xlane.xlu0 %1658
  %v1660 = vsel %vm1653, %v662, -inf
  %1661 = vmax.xlane.f32.xlu0 %v1660
  %v1662 = vpop.xlane.xlu0 %1661
  %v1663 = vsel %vm1653, %v738, -inf
  %1664 = vmax.xlane.f32.xlu0 %v1663
  %v1665 = vpop.xlane.xlu0 %1664
  %v1666 = vsel %vm1653, %v814, -inf
  %1667 = vmax.xlane.f32.xlu0 %v1666
  %v1668 = vpop.xlane.xlu0 %1667
  %v1669 = vsel %vm1653, %v890, -inf
  %1670 = vmax.xlane.f32.xlu0 %v1669
  %v1671 = vpop.xlane.xlu0 %1670
  %v1672 = vsel %vm1653, %v966, -inf
  %1673 = vmax.xlane.f32.xlu0 %v1672
  %v1674 = vpop.xlane.xlu0 %1673
  %v1675 = vsel %vm1653, %v1042, -inf
  %1676 = vmax.xlane.f32.xlu0 %v1675
  %v1677 = vpop.xlane.xlu0 %1676
  %v1678 = vsel %vm1653, %v1118, -inf
  %1679 = vmax.xlane.f32.xlu0 %v1678
  %v1680 = vpop.xlane.xlu0 %1679
  %v1681 = vsel %vm1653, %v1194, -inf
  %1682 = vmax.xlane.f32.xlu0 %v1681
  %v1683 = vpop.xlane.xlu0 %1682
  %v1684 = vsel %vm1653, %v1270, -inf
  %1685 = vmax.xlane.f32.xlu0 %v1684
  %v1686 = vpop.xlane.xlu0 %1685
  %v1687 = vsel %vm1653, %v1346, -inf
  %1688 = vmax.xlane.f32.xlu0 %v1687
  %v1689 = vpop.xlane.xlu0 %1688
  %v1690 = vsel %vm1653, %v1422, -inf
  %1691 = vmax.xlane.f32.xlu0 %v1690
  %v1692 = vpop.xlane.xlu0 %1691
  %v1693 = vsel %vm1653, %v1498, -inf
  %1694 = vmax.xlane.f32.xlu0 %v1693
  %v1695 = vpop.xlane.xlu0 %1694
  %v1696 = vsel %vm1653, %v1574, -inf
  %1697 = vmax.xlane.f32.xlu0 %v1696
  %v1698 = vpop.xlane.xlu0 %1697
  %v1699 = vsel %vm1653, %v1650, -inf
  %1700 = vmax.xlane.f32.xlu0 %v1699
  %v1701 = vpop.xlane.xlu0 %1700
  %v1702 = vsub.f32 %v510, %v1656
  %v1703 = vsub.f32 %v586, %v1659
  %v1704 = vsub.f32 %v662, %v1662
  %v1705 = vsub.f32 %v738, %v1665
  %v1706 = vsub.f32 %v814, %v1668
  %v1707 = vsub.f32 %v890, %v1671
  %v1708 = vsub.f32 %v966, %v1674
  %v1709 = vsub.f32 %v1042, %v1677
  %v1710 = vsub.f32 %v1118, %v1680
  %v1711 = vsub.f32 %v1194, %v1683
  %v1712 = vsub.f32 %v1270, %v1686
  %v1713 = vsub.f32 %v1346, %v1689
  %v1714 = vsub.f32 %v1422, %v1692
  %v1715 = vsub.f32 %v1498, %v1695
  %v1716 = vsub.f32 %v1574, %v1698
  %v1717 = vsub.f32 %v1650, %v1701
  %v1718 = vmul.f32 %v1702, 1.442695
  %v1719 = vpow.pop %v1718
  %v1720 = vmul.f32 %v1703, 1.442695
  %v1721 = vpow.pop %v1720
  %v1722 = vmul.f32 %v1704, 1.442695
  %v1723 = vpow.pop %v1722
  %v1724 = vmul.f32 %v1705, 1.442695
  %v1725 = vpow.pop %v1724
  %v1726 = vmul.f32 %v1706, 1.442695
  %v1727 = vpow.pop %v1726
  %v1728 = vmul.f32 %v1707, 1.442695
  %v1729 = vpow.pop %v1728
  %v1730 = vmul.f32 %v1708, 1.442695
  %v1731 = vpow.pop %v1730
  %v1732 = vmul.f32 %v1709, 1.442695
  %v1733 = vpow.pop %v1732
  %v1734 = vmul.f32 %v1710, 1.442695
  %v1735 = vpow.pop %v1734
  %v1736 = vmul.f32 %v1711, 1.442695
  %v1737 = vpow.pop %v1736
  %v1738 = vmul.f32 %v1712, 1.442695
  %v1739 = vpow.pop %v1738
  %v1740 = vmul.f32 %v1713, 1.442695
  %v1741 = vpow.pop %v1740
  %v1742 = vmul.f32 %v1714, 1.442695
  %v1743 = vpow.pop %v1742
  %v1744 = vmul.f32 %v1715, 1.442695
  %v1745 = vpow.pop %v1744
  %v1746 = vmul.f32 %v1716, 1.442695
  %v1747 = vpow.pop %v1746
  %v1748 = vmul.f32 %v1717, 1.442695
  %v1749 = vpow.pop %v1748
  %v1750 = vsel %vm1653, %v1719, 0.0
  %1751 = vadd.xlane.f32.xlu0 %v1750
  %v1752 = vpop.xlane.xlu0 %1751
  %v1753 = vsel %vm1653, %v1721, 0.0
  %1754 = vadd.xlane.f32.xlu0 %v1753
  %v1755 = vpop.xlane.xlu0 %1754
  %v1756 = vsel %vm1653, %v1723, 0.0
  %1757 = vadd.xlane.f32.xlu0 %v1756
  %v1758 = vpop.xlane.xlu0 %1757
  %v1759 = vsel %vm1653, %v1725, 0.0
  %1760 = vadd.xlane.f32.xlu0 %v1759
  %v1761 = vpop.xlane.xlu0 %1760
  %v1762 = vsel %vm1653, %v1727, 0.0
  %1763 = vadd.xlane.f32.xlu0 %v1762
  %v1764 = vpop.xlane.xlu0 %1763
  %v1765 = vsel %vm1653, %v1729, 0.0
  %1766 = vadd.xlane.f32.xlu0 %v1765
  %v1767 = vpop.xlane.xlu0 %1766
  %v1768 = vsel %vm1653, %v1731, 0.0
  %1769 = vadd.xlane.f32.xlu0 %v1768
  %v1770 = vpop.xlane.xlu0 %1769
  %v1771 = vsel %vm1653, %v1733, 0.0
  %1772 = vadd.xlane.f32.xlu0 %v1771
  %v1773 = vpop.xlane.xlu0 %1772
  %v1774 = vsel %vm1653, %v1735, 0.0
  %1775 = vadd.xlane.f32.xlu0 %v1774
  %v1776 = vpop.xlane.xlu0 %1775
  %v1777 = vsel %vm1653, %v1737, 0.0
  %1778 = vadd.xlane.f32.xlu0 %v1777
  %v1779 = vpop.xlane.xlu0 %1778
  %v1780 = vsel %vm1653, %v1739, 0.0
  %1781 = vadd.xlane.f32.xlu0 %v1780
  %v1782 = vpop.xlane.xlu0 %1781
  %v1783 = vsel %vm1653, %v1741, 0.0
  %1784 = vadd.xlane.f32.xlu0 %v1783
  %v1785 = vpop.xlane.xlu0 %1784
  %v1786 = vsel %vm1653, %v1743, 0.0
  %1787 = vadd.xlane.f32.xlu0 %v1786
  %v1788 = vpop.xlane.xlu0 %1787
  %v1789 = vsel %vm1653, %v1745, 0.0
  %1790 = vadd.xlane.f32.xlu0 %v1789
  %v1791 = vpop.xlane.xlu0 %1790
  %v1792 = vsel %vm1653, %v1747, 0.0
  %1793 = vadd.xlane.f32.xlu0 %v1792
  %v1794 = vpop.xlane.xlu0 %1793
  %v1795 = vsel %vm1653, %v1749, 0.0
  %1796 = vadd.xlane.f32.xlu0 %v1795
  %v1797 = vpop.xlane.xlu0 %1796
  %v1798 = vrcp.pop %v1752
  %v1799 = vrcp.pop %v1755
  %v1800 = vrcp.pop %v1758
  %v1801 = vrcp.pop %v1761
  %v1802 = vrcp.pop %v1764
  %v1803 = vrcp.pop %v1767
  %v1804 = vrcp.pop %v1770
  %v1805 = vrcp.pop %v1773
  %v1806 = vrcp.pop %v1776
  %v1807 = vrcp.pop %v1779
  %v1808 = vrcp.pop %v1782
  %v1809 = vrcp.pop %v1785
  %v1810 = vrcp.pop %v1788
  %v1811 = vrcp.pop %v1791
  %v1812 = vrcp.pop %v1794
  %v1813 = vrcp.pop %v1797
  %v1814 = vmul.f32 %v1719, %v1798
  %v1815 = vmul.f32 %v1721, %v1799
  %v1816 = vmul.f32 %v1723, %v1800
  %v1817 = vmul.f32 %v1725, %v1801
  %v1818 = vmul.f32 %v1727, %v1802
  %v1819 = vmul.f32 %v1729, %v1803
  %v1820 = vmul.f32 %v1731, %v1804
  %v1821 = vmul.f32 %v1733, %v1805
  %v1822 = vmul.f32 %v1735, %v1806
  %v1823 = vmul.f32 %v1737, %v1807
  %v1824 = vmul.f32 %v1739, %v1808
  %v1825 = vmul.f32 %v1741, %v1809
  %v1826 = vmul.f32 %v1743, %v1810
  %v1827 = vmul.f32 %v1745, %v1811
  %v1828 = vmul.f32 %v1747, %v1812
  %v1829 = vmul.f32 %v1749, %v1813
  %1830 = vrot.lane.b32.xlu0 %v342, 64
  %v1831 = vpop.permute.xlu0 %1830
  %v1834 = vsel %vm1653, %v1814, 0
  %1836 = vmatprep.subr.mxu0 0.0
  %1837 = vmatpush1.msra.mxu0 0.0
  %1838 = vmatprep.subr.mxu0 0.0
  %1839 = vmatpush1.msra.mxu0 0.0
  %1840 = vmatprep.subr.mxu0 0.0
  %1841 = vmatpush1.msra.mxu0 0.0
  %1842 = vmatprep.subr.mxu0 0.0
  %1843 = vmatpush1.msra.mxu0 0.0
  %1844 = vmatprep.subr.mxu0 0.0
  %1845 = vmatpush1.msra.mxu0 0.0
  %1846 = vmatprep.subr.mxu0 0.0
  %1847 = vmatpush1.msra.mxu0 0.0
  %1848 = vmatprep.subr.mxu0 0.0
  %1849 = vmatpush1.msra.mxu0 0.0
  %1850 = vmatprep.subr.mxu0 0.0
  %1851 = vmatpush1.msra.mxu0 0.0
  %1852 = vmatprep.subr.mxu0 0.0
  %1853 = vmatpush1.msra.mxu0 0.0
  %1854 = vmatprep.subr.mxu0 0.0
  %1855 = vmatpush1.msra.mxu0 0.0
  %1856 = vmatprep.subr.mxu0 0.0
  %1857 = vmatpush1.msra.mxu0 0.0
  %1858 = vmatprep.subr.mxu0 0.0
  %1859 = vmatpush1.msra.mxu0 0.0
  %1860 = vmatprep.subr.mxu0 0.0
  %1861 = vmatpush1.msra.mxu0 0.0
  %1862 = vmatprep.subr.mxu0 0.0
  %1863 = vmatpush1.msra.mxu0 0.0
  %1864 = vmatprep.subr.mxu0 0.0
  %1865 = vmatpush1.msra.mxu0 0.0
  %1866 = vmatprep.subr.mxu0 0.0
  %1867 = vmatpush1.msra.mxu0 %v1831
  %1868 = vmatprep.subr.mxu0 0.0
  %1869 = vmatpush2.msra.mxu0 0.0
  %1870 = vmatprep.subr.mxu0 0.0
  %1871 = vmatpush2.msra.mxu0 0.0
  %1872 = vmatprep.subr.mxu0 0.0
  %1873 = vmatpush2.msra.mxu0 0.0
  %1874 = vmatprep.subr.mxu0 0.0
  %1875 = vmatpush2.msra.mxu0 0.0
  %1876 = vmatprep.subr.mxu0 0.0
  %1877 = vmatpush2.msra.mxu0 0.0
  %1878 = vmatprep.subr.mxu0 0.0
  %1879 = vmatpush2.msra.mxu0 0.0
  %1880 = vmatprep.subr.mxu0 0.0
  %1881 = vmatpush2.msra.mxu0 0.0
  %1882 = vmatprep.subr.mxu0 0.0
  %1883 = vmatpush2.msra.mxu0 0.0
  %1884 = vmatprep.subr.mxu0 0.0
  %1885 = vmatpush2.msra.mxu0 0.0
  %1886 = vmatprep.subr.mxu0 0.0
  %1887 = vmatpush2.msra.mxu0 0.0
  %1888 = vmatprep.subr.mxu0 0.0
  %1889 = vmatpush2.msra.mxu0 0.0
  %1890 = vmatprep.subr.mxu0 0.0
  %1891 = vmatpush2.msra.mxu0 0.0
  %1892 = vmatprep.subr.mxu0 0.0
  %1893 = vmatpush2.msra.mxu0 0.0
  %1894 = vmatprep.subr.mxu0 0.0
  %1895 = vmatpush2.msra.mxu0 0.0
  %1896 = vmatprep.subr.mxu0 0.0
  %1897 = vmatpush2.msra.mxu0 0.0
  %1898 = vmatprep.subr.mxu0 0.0
  %1899 = vmatpush2.msra.mxu0 0.0
  %1900 = vmatprep.mubr.f32.mxu0 0.0
  %1901 = vmatmul.mubr.f32.gmra.mxu0 %v1834
  %v1902 = vpop.f32.mrf.mxu0
  %v1903 = vadd.f32 0.0, %v1902
  %v1904 = vpop.f32.mrf.mxu0
  %1905 = vdwg.mxu0
  %1906 = vrot.lane.b32.xlu0 %v347, 64
  %v1907 = vpop.permute.xlu0 %1906
  %v1910 = vsel %vm1653, %v1815, 0
  %1912 = vmatprep.subr.mxu0 0.0
  %1913 = vmatpush1.msra.mxu0 0.0
  %1914 = vmatprep.subr.mxu0 0.0
  %1915 = vmatpush1.msra.mxu0 0.0
  %1916 = vmatprep.subr.mxu0 0.0
  %1917 = vmatpush1.msra.mxu0 0.0
  %1918 = vmatprep.subr.mxu0 0.0
  %1919 = vmatpush1.msra.mxu0 0.0
  %1920 = vmatprep.subr.mxu0 0.0
  %1921 = vmatpush1.msra.mxu0 0.0
  %1922 = vmatprep.subr.mxu0 0.0
  %1923 = vmatpush1.msra.mxu0 0.0
  %1924 = vmatprep.subr.mxu0 0.0
  %1925 = vmatpush1.msra.mxu0 0.0
  %1926 = vmatprep.subr.mxu0 0.0
  %1927 = vmatpush1.msra.mxu0 0.0
  %1928 = vmatprep.subr.mxu0 0.0
  %1929 = vmatpush1.msra.mxu0 0.0
  %1930 = vmatprep.subr.mxu0 0.0
  %1931 = vmatpush1.msra.mxu0 0.0
  %1932 = vmatprep.subr.mxu0 0.0
  %1933 = vmatpush1.msra.mxu0 0.0
  %1934 = vmatprep.subr.mxu0 0.0
  %1935 = vmatpush1.msra.mxu0 0.0
  %1936 = vmatprep.subr.mxu0 0.0
  %1937 = vmatpush1.msra.mxu0 0.0
  %1938 = vmatprep.subr.mxu0 0.0
  %1939 = vmatpush1.msra.mxu0 0.0
  %1940 = vmatprep.subr.mxu0 0.0
  %1941 = vmatpush1.msra.mxu0 0.0
  %1942 = vmatprep.subr.mxu0 0.0
  %1943 = vmatpush1.msra.mxu0 %v1907
  %1944 = vmatprep.subr.mxu0 0.0
  %1945 = vmatpush2.msra.mxu0 0.0
  %1946 = vmatprep.subr.mxu0 0.0
  %1947 = vmatpush2.msra.mxu0 0.0
  %1948 = vmatprep.subr.mxu0 0.0
  %1949 = vmatpush2.msra.mxu0 0.0
  %1950 = vmatprep.subr.mxu0 0.0
  %1951 = vmatpush2.msra.mxu0 0.0
  %1952 = vmatprep.subr.mxu0 0.0
  %1953 = vmatpush2.msra.mxu0 0.0
  %1954 = vmatprep.subr.mxu0 0.0
  %1955 = vmatpush2.msra.mxu0 0.0
  %1956 = vmatprep.subr.mxu0 0.0
  %1957 = vmatpush2.msra.mxu0 0.0
  %1958 = vmatprep.subr.mxu0 0.0
  %1959 = vmatpush2.msra.mxu0 0.0
  %1960 = vmatprep.subr.mxu0 0.0
  %1961 = vmatpush2.msra.mxu0 0.0
  %1962 = vmatprep.subr.mxu0 0.0
  %1963 = vmatpush2.msra.mxu0 0.0
  %1964 = vmatprep.subr.mxu0 0.0
  %1965 = vmatpush2.msra.mxu0 0.0
  %1966 = vmatprep.subr.mxu0 0.0
  %1967 = vmatpush2.msra.mxu0 0.0
  %1968 = vmatprep.subr.mxu0 0.0
  %1969 = vmatpush2.msra.mxu0 0.0
  %1970 = vmatprep.subr.mxu0 0.0
  %1971 = vmatpush2.msra.mxu0 0.0
  %1972 = vmatprep.subr.mxu0 0.0
  %1973 = vmatpush2.msra.mxu0 0.0
  %1974 = vmatprep.subr.mxu0 0.0
  %1975 = vmatpush2.msra.mxu0 0.0
  %1976 = vmatprep.mubr.f32.mxu0 0.0
  %1977 = vmatmul.mubr.f32.gmra.mxu0 %v1910
  %v1978 = vpop.f32.mrf.mxu0
  %v1979 = vadd.f32 0.0, %v1978
  %v1980 = vpop.f32.mrf.mxu0
  %1981 = vdwg.mxu0
  %1982 = vrot.lane.b32.xlu0 %v352, 64
  %v1983 = vpop.permute.xlu0 %1982
  %v1986 = vsel %vm1653, %v1816, 0
  %1988 = vmatprep.subr.mxu0 0.0
  %1989 = vmatpush1.msra.mxu0 0.0
  %1990 = vmatprep.subr.mxu0 0.0
  %1991 = vmatpush1.msra.mxu0 0.0
  %1992 = vmatprep.subr.mxu0 0.0
  %1993 = vmatpush1.msra.mxu0 0.0
  %1994 = vmatprep.subr.mxu0 0.0
  %1995 = vmatpush1.msra.mxu0 0.0
  %1996 = vmatprep.subr.mxu0 0.0
  %1997 = vmatpush1.msra.mxu0 0.0
  %1998 = vmatprep.subr.mxu0 0.0
  %1999 = vmatpush1.msra.mxu0 0.0
  %2000 = vmatprep.subr.mxu0 0.0
  %2001 = vmatpush1.msra.mxu0 0.0
  %2002 = vmatprep.subr.mxu0 0.0
  %2003 = vmatpush1.msra.mxu0 0.0
  %2004 = vmatprep.subr.mxu0 0.0
  %2005 = vmatpush1.msra.mxu0 0.0
  %2006 = vmatprep.subr.mxu0 0.0
  %2007 = vmatpush1.msra.mxu0 0.0
  %2008 = vmatprep.subr.mxu0 0.0
  %2009 = vmatpush1.msra.mxu0 0.0
  %2010 = vmatprep.subr.mxu0 0.0
  %2011 = vmatpush1.msra.mxu0 0.0
  %2012 = vmatprep.subr.mxu0 0.0
  %2013 = vmatpush1.msra.mxu0 0.0
  %2014 = vmatprep.subr.mxu0 0.0
  %2015 = vmatpush1.msra.mxu0 0.0
  %2016 = vmatprep.subr.mxu0 0.0
  %2017 = vmatpush1.msra.mxu0 0.0
  %2018 = vmatprep.subr.mxu0 0.0
  %2019 = vmatpush1.msra.mxu0 %v1983
  %2020 = vmatprep.subr.mxu0 0.0
  %2021 = vmatpush2.msra.mxu0 0.0
  %2022 = vmatprep.subr.mxu0 0.0
  %2023 = vmatpush2.msra.mxu0 0.0
  %2024 = vmatprep.subr.mxu0 0.0
  %2025 = vmatpush2.msra.mxu0 0.0
  %2026 = vmatprep.subr.mxu0 0.0
  %2027 = vmatpush2.msra.mxu0 0.0
  %2028 = vmatprep.subr.mxu0 0.0
  %2029 = vmatpush2.msra.mxu0 0.0
  %2030 = vmatprep.subr.mxu0 0.0
  %2031 = vmatpush2.msra.mxu0 0.0
  %2032 = vmatprep.subr.mxu0 0.0
  %2033 = vmatpush2.msra.mxu0 0.0
  %2034 = vmatprep.subr.mxu0 0.0
  %2035 = vmatpush2.msra.mxu0 0.0
  %2036 = vmatprep.subr.mxu0 0.0
  %2037 = vmatpush2.msra.mxu0 0.0
  %2038 = vmatprep.subr.mxu0 0.0
  %2039 = vmatpush2.msra.mxu0 0.0
  %2040 = vmatprep.subr.mxu0 0.0
  %2041 = vmatpush2.msra.mxu0 0.0
  %2042 = vmatprep.subr.mxu0 0.0
  %2043 = vmatpush2.msra.mxu0 0.0
  %2044 = vmatprep.subr.mxu0 0.0
  %2045 = vmatpush2.msra.mxu0 0.0
  %2046 = vmatprep.subr.mxu0 0.0
  %2047 = vmatpush2.msra.mxu0 0.0
  %2048 = vmatprep.subr.mxu0 0.0
  %2049 = vmatpush2.msra.mxu0 0.0
  %2050 = vmatprep.subr.mxu0 0.0
  %2051 = vmatpush2.msra.mxu0 0.0
  %2052 = vmatprep.mubr.f32.mxu0 0.0
  %2053 = vmatmul.mubr.f32.gmra.mxu0 %v1986
  %v2054 = vpop.f32.mrf.mxu0
  %v2055 = vadd.f32 0.0, %v2054
  %v2056 = vpop.f32.mrf.mxu0
  %2057 = vdwg.mxu0
  %2058 = vrot.lane.b32.xlu0 %v357, 64
  %v2059 = vpop.permute.xlu0 %2058
  %v2062 = vsel %vm1653, %v1817, 0
  %2064 = vmatprep.subr.mxu0 0.0
  %2065 = vmatpush1.msra.mxu0 0.0
  %2066 = vmatprep.subr.mxu0 0.0
  %2067 = vmatpush1.msra.mxu0 0.0
  %2068 = vmatprep.subr.mxu0 0.0
  %2069 = vmatpush1.msra.mxu0 0.0
  %2070 = vmatprep.subr.mxu0 0.0
  %2071 = vmatpush1.msra.mxu0 0.0
  %2072 = vmatprep.subr.mxu0 0.0
  %2073 = vmatpush1.msra.mxu0 0.0
  %2074 = vmatprep.subr.mxu0 0.0
  %2075 = vmatpush1.msra.mxu0 0.0
  %2076 = vmatprep.subr.mxu0 0.0
  %2077 = vmatpush1.msra.mxu0 0.0
  %2078 = vmatprep.subr.mxu0 0.0
  %2079 = vmatpush1.msra.mxu0 0.0
  %2080 = vmatprep.subr.mxu0 0.0
  %2081 = vmatpush1.msra.mxu0 0.0
  %2082 = vmatprep.subr.mxu0 0.0
  %2083 = vmatpush1.msra.mxu0 0.0
  %2084 = vmatprep.subr.mxu0 0.0
  %2085 = vmatpush1.msra.mxu0 0.0
  %2086 = vmatprep.subr.mxu0 0.0
  %2087 = vmatpush1.msra.mxu0 0.0
  %2088 = vmatprep.subr.mxu0 0.0
  %2089 = vmatpush1.msra.mxu0 0.0
  %2090 = vmatprep.subr.mxu0 0.0
  %2091 = vmatpush1.msra.mxu0 0.0
  %2092 = vmatprep.subr.mxu0 0.0
  %2093 = vmatpush1.msra.mxu0 0.0
  %2094 = vmatprep.subr.mxu0 0.0
  %2095 = vmatpush1.msra.mxu0 %v2059
  %2096 = vmatprep.subr.mxu0 0.0
  %2097 = vmatpush2.msra.mxu0 0.0
  %2098 = vmatprep.subr.mxu0 0.0
  %2099 = vmatpush2.msra.mxu0 0.0
  %2100 = vmatprep.subr.mxu0 0.0
  %2101 = vmatpush2.msra.mxu0 0.0
  %2102 = vmatprep.subr.mxu0 0.0
  %2103 = vmatpush2.msra.mxu0 0.0
  %2104 = vmatprep.subr.mxu0 0.0
  %2105 = vmatpush2.msra.mxu0 0.0
  %2106 = vmatprep.subr.mxu0 0.0
  %2107 = vmatpush2.msra.mxu0 0.0
  %2108 = vmatprep.subr.mxu0 0.0
  %2109 = vmatpush2.msra.mxu0 0.0
  %2110 = vmatprep.subr.mxu0 0.0
  %2111 = vmatpush2.msra.mxu0 0.0
  %2112 = vmatprep.subr.mxu0 0.0
  %2113 = vmatpush2.msra.mxu0 0.0
  %2114 = vmatprep.subr.mxu0 0.0
  %2115 = vmatpush2.msra.mxu0 0.0
  %2116 = vmatprep.subr.mxu0 0.0
  %2117 = vmatpush2.msra.mxu0 0.0
  %2118 = vmatprep.subr.mxu0 0.0
  %2119 = vmatpush2.msra.mxu0 0.0
  %2120 = vmatprep.subr.mxu0 0.0
  %2121 = vmatpush2.msra.mxu0 0.0
  %2122 = vmatprep.subr.mxu0 0.0
  %2123 = vmatpush2.msra.mxu0 0.0
  %2124 = vmatprep.subr.mxu0 0.0
  %2125 = vmatpush2.msra.mxu0 0.0
  %2126 = vmatprep.subr.mxu0 0.0
  %2127 = vmatpush2.msra.mxu0 0.0
  %2128 = vmatprep.mubr.f32.mxu0 0.0
  %2129 = vmatmul.mubr.f32.gmra.mxu0 %v2062
  %v2130 = vpop.f32.mrf.mxu0
  %v2131 = vadd.f32 0.0, %v2130
  %v2132 = vpop.f32.mrf.mxu0
  %2133 = vdwg.mxu0
  %2134 = vrot.lane.b32.xlu0 %v362, 64
  %v2135 = vpop.permute.xlu0 %2134
  %v2138 = vsel %vm1653, %v1818, 0
  %2140 = vmatprep.subr.mxu0 0.0
  %2141 = vmatpush1.msra.mxu0 0.0
  %2142 = vmatprep.subr.mxu0 0.0
  %2143 = vmatpush1.msra.mxu0 0.0
  %2144 = vmatprep.subr.mxu0 0.0
  %2145 = vmatpush1.msra.mxu0 0.0
  %2146 = vmatprep.subr.mxu0 0.0
  %2147 = vmatpush1.msra.mxu0 0.0
  %2148 = vmatprep.subr.mxu0 0.0
  %2149 = vmatpush1.msra.mxu0 0.0
  %2150 = vmatprep.subr.mxu0 0.0
  %2151 = vmatpush1.msra.mxu0 0.0
  %2152 = vmatprep.subr.mxu0 0.0
  %2153 = vmatpush1.msra.mxu0 0.0
  %2154 = vmatprep.subr.mxu0 0.0
  %2155 = vmatpush1.msra.mxu0 0.0
  %2156 = vmatprep.subr.mxu0 0.0
  %2157 = vmatpush1.msra.mxu0 0.0
  %2158 = vmatprep.subr.mxu0 0.0
  %2159 = vmatpush1.msra.mxu0 0.0
  %2160 = vmatprep.subr.mxu0 0.0
  %2161 = vmatpush1.msra.mxu0 0.0
  %2162 = vmatprep.subr.mxu0 0.0
  %2163 = vmatpush1.msra.mxu0 0.0
  %2164 = vmatprep.subr.mxu0 0.0
  %2165 = vmatpush1.msra.mxu0 0.0
  %2166 = vmatprep.subr.mxu0 0.0
  %2167 = vmatpush1.msra.mxu0 0.0
  %2168 = vmatprep.subr.mxu0 0.0
  %2169 = vmatpush1.msra.mxu0 0.0
  %2170 = vmatprep.subr.mxu0 0.0
  %2171 = vmatpush1.msra.mxu0 %v2135
  %2172 = vmatprep.subr.mxu0 0.0
  %2173 = vmatpush2.msra.mxu0 0.0
  %2174 = vmatprep.subr.mxu0 0.0
  %2175 = vmatpush2.msra.mxu0 0.0
  %2176 = vmatprep.subr.mxu0 0.0
  %2177 = vmatpush2.msra.mxu0 0.0
  %2178 = vmatprep.subr.mxu0 0.0
  %2179 = vmatpush2.msra.mxu0 0.0
  %2180 = vmatprep.subr.mxu0 0.0
  %2181 = vmatpush2.msra.mxu0 0.0
  %2182 = vmatprep.subr.mxu0 0.0
  %2183 = vmatpush2.msra.mxu0 0.0
  %2184 = vmatprep.subr.mxu0 0.0
  %2185 = vmatpush2.msra.mxu0 0.0
  %2186 = vmatprep.subr.mxu0 0.0
  %2187 = vmatpush2.msra.mxu0 0.0
  %2188 = vmatprep.subr.mxu0 0.0
  %2189 = vmatpush2.msra.mxu0 0.0
  %2190 = vmatprep.subr.mxu0 0.0
  %2191 = vmatpush2.msra.mxu0 0.0
  %2192 = vmatprep.subr.mxu0 0.0
  %2193 = vmatpush2.msra.mxu0 0.0
  %2194 = vmatprep.subr.mxu0 0.0
  %2195 = vmatpush2.msra.mxu0 0.0
  %2196 = vmatprep.subr.mxu0 0.0
  %2197 = vmatpush2.msra.mxu0 0.0
  %2198 = vmatprep.subr.mxu0 0.0
  %2199 = vmatpush2.msra.mxu0 0.0
  %2200 = vmatprep.subr.mxu0 0.0
  %2201 = vmatpush2.msra.mxu0 0.0
  %2202 = vmatprep.subr.mxu0 0.0
  %2203 = vmatpush2.msra.mxu0 0.0
  %2204 = vmatprep.mubr.f32.mxu0 0.0
  %2205 = vmatmul.mubr.f32.gmra.mxu0 %v2138
  %v2206 = vpop.f32.mrf.mxu0
  %v2207 = vadd.f32 0.0, %v2206
  %v2208 = vpop.f32.mrf.mxu0
  %2209 = vdwg.mxu0
  %2210 = vrot.lane.b32.xlu0 %v367, 64
  %v2211 = vpop.permute.xlu0 %2210
  %v2214 = vsel %vm1653, %v1819, 0
  %2216 = vmatprep.subr.mxu0 0.0
  %2217 = vmatpush1.msra.mxu0 0.0
  %2218 = vmatprep.subr.mxu0 0.0
  %2219 = vmatpush1.msra.mxu0 0.0
  %2220 = vmatprep.subr.mxu0 0.0
  %2221 = vmatpush1.msra.mxu0 0.0
  %2222 = vmatprep.subr.mxu0 0.0
  %2223 = vmatpush1.msra.mxu0 0.0
  %2224 = vmatprep.subr.mxu0 0.0
  %2225 = vmatpush1.msra.mxu0 0.0
  %2226 = vmatprep.subr.mxu0 0.0
  %2227 = vmatpush1.msra.mxu0 0.0
  %2228 = vmatprep.subr.mxu0 0.0
  %2229 = vmatpush1.msra.mxu0 0.0
  %2230 = vmatprep.subr.mxu0 0.0
  %2231 = vmatpush1.msra.mxu0 0.0
  %2232 = vmatprep.subr.mxu0 0.0
  %2233 = vmatpush1.msra.mxu0 0.0
  %2234 = vmatprep.subr.mxu0 0.0
  %2235 = vmatpush1.msra.mxu0 0.0
  %2236 = vmatprep.subr.mxu0 0.0
  %2237 = vmatpush1.msra.mxu0 0.0
  %2238 = vmatprep.subr.mxu0 0.0
  %2239 = vmatpush1.msra.mxu0 0.0
  %2240 = vmatprep.subr.mxu0 0.0
  %2241 = vmatpush1.msra.mxu0 0.0
  %2242 = vmatprep.subr.mxu0 0.0
  %2243 = vmatpush1.msra.mxu0 0.0
  %2244 = vmatprep.subr.mxu0 0.0
  %2245 = vmatpush1.msra.mxu0 0.0
  %2246 = vmatprep.subr.mxu0 0.0
  %2247 = vmatpush1.msra.mxu0 %v2211
  %2248 = vmatprep.subr.mxu0 0.0
  %2249 = vmatpush2.msra.mxu0 0.0
  %2250 = vmatprep.subr.mxu0 0.0
  %2251 = vmatpush2.msra.mxu0 0.0
  %2252 = vmatprep.subr.mxu0 0.0
  %2253 = vmatpush2.msra.mxu0 0.0
  %2254 = vmatprep.subr.mxu0 0.0
  %2255 = vmatpush2.msra.mxu0 0.0
  %2256 = vmatprep.subr.mxu0 0.0
  %2257 = vmatpush2.msra.mxu0 0.0
  %2258 = vmatprep.subr.mxu0 0.0
  %2259 = vmatpush2.msra.mxu0 0.0
  %2260 = vmatprep.subr.mxu0 0.0
  %2261 = vmatpush2.msra.mxu0 0.0
  %2262 = vmatprep.subr.mxu0 0.0
  %2263 = vmatpush2.msra.mxu0 0.0
  %2264 = vmatprep.subr.mxu0 0.0
  %2265 = vmatpush2.msra.mxu0 0.0
  %2266 = vmatprep.subr.mxu0 0.0
  %2267 = vmatpush2.msra.mxu0 0.0
  %2268 = vmatprep.subr.mxu0 0.0
  %2269 = vmatpush2.msra.mxu0 0.0
  %2270 = vmatprep.subr.mxu0 0.0
  %2271 = vmatpush2.msra.mxu0 0.0
  %2272 = vmatprep.subr.mxu0 0.0
  %2273 = vmatpush2.msra.mxu0 0.0
  %2274 = vmatprep.subr.mxu0 0.0
  %2275 = vmatpush2.msra.mxu0 0.0
  %2276 = vmatprep.subr.mxu0 0.0
  %2277 = vmatpush2.msra.mxu0 0.0
  %2278 = vmatprep.subr.mxu0 0.0
  %2279 = vmatpush2.msra.mxu0 0.0
  %2280 = vmatprep.mubr.f32.mxu0 0.0
  %2281 = vmatmul.mubr.f32.gmra.mxu0 %v2214
  %v2282 = vpop.f32.mrf.mxu0
  %v2283 = vadd.f32 0.0, %v2282
  %v2284 = vpop.f32.mrf.mxu0
  %2285 = vdwg.mxu0
  %2286 = vrot.lane.b32.xlu0 %v372, 64
  %v2287 = vpop.permute.xlu0 %2286
  %v2290 = vsel %vm1653, %v1820, 0
  %2292 = vmatprep.subr.mxu0 0.0
  %2293 = vmatpush1.msra.mxu0 0.0
  %2294 = vmatprep.subr.mxu0 0.0
  %2295 = vmatpush1.msra.mxu0 0.0
  %2296 = vmatprep.subr.mxu0 0.0
  %2297 = vmatpush1.msra.mxu0 0.0
  %2298 = vmatprep.subr.mxu0 0.0
  %2299 = vmatpush1.msra.mxu0 0.0
  %2300 = vmatprep.subr.mxu0 0.0
  %2301 = vmatpush1.msra.mxu0 0.0
  %2302 = vmatprep.subr.mxu0 0.0
  %2303 = vmatpush1.msra.mxu0 0.0
  %2304 = vmatprep.subr.mxu0 0.0
  %2305 = vmatpush1.msra.mxu0 0.0
  %2306 = vmatprep.subr.mxu0 0.0
  %2307 = vmatpush1.msra.mxu0 0.0
  %2308 = vmatprep.subr.mxu0 0.0
  %2309 = vmatpush1.msra.mxu0 0.0
  %2310 = vmatprep.subr.mxu0 0.0
  %2311 = vmatpush1.msra.mxu0 0.0
  %2312 = vmatprep.subr.mxu0 0.0
  %2313 = vmatpush1.msra.mxu0 0.0
  %2314 = vmatprep.subr.mxu0 0.0
  %2315 = vmatpush1.msra.mxu0 0.0
  %2316 = vmatprep.subr.mxu0 0.0
  %2317 = vmatpush1.msra.mxu0 0.0
  %2318 = vmatprep.subr.mxu0 0.0
  %2319 = vmatpush1.msra.mxu0 0.0
  %2320 = vmatprep.subr.mxu0 0.0
  %2321 = vmatpush1.msra.mxu0 0.0
  %2322 = vmatprep.subr.mxu0 0.0
  %2323 = vmatpush1.msra.mxu0 %v2287
  %2324 = vmatprep.subr.mxu0 0.0
  %2325 = vmatpush2.msra.mxu0 0.0
  %2326 = vmatprep.subr.mxu0 0.0
  %2327 = vmatpush2.msra.mxu0 0.0
  %2328 = vmatprep.subr.mxu0 0.0
  %2329 = vmatpush2.msra.mxu0 0.0
  %2330 = vmatprep.subr.mxu0 0.0
  %2331 = vmatpush2.msra.mxu0 0.0
  %2332 = vmatprep.subr.mxu0 0.0
  %2333 = vmatpush2.msra.mxu0 0.0
  %2334 = vmatprep.subr.mxu0 0.0
  %2335 = vmatpush2.msra.mxu0 0.0
  %2336 = vmatprep.subr.mxu0 0.0
  %2337 = vmatpush2.msra.mxu0 0.0
  %2338 = vmatprep.subr.mxu0 0.0
  %2339 = vmatpush2.msra.mxu0 0.0
  %2340 = vmatprep.subr.mxu0 0.0
  %2341 = vmatpush2.msra.mxu0 0.0
  %2342 = vmatprep.subr.mxu0 0.0
  %2343 = vmatpush2.msra.mxu0 0.0
  %2344 = vmatprep.subr.mxu0 0.0
  %2345 = vmatpush2.msra.mxu0 0.0
  %2346 = vmatprep.subr.mxu0 0.0
  %2347 = vmatpush2.msra.mxu0 0.0
  %2348 = vmatprep.subr.mxu0 0.0
  %2349 = vmatpush2.msra.mxu0 0.0
  %2350 = vmatprep.subr.mxu0 0.0
  %2351 = vmatpush2.msra.mxu0 0.0
  %2352 = vmatprep.subr.mxu0 0.0
  %2353 = vmatpush2.msra.mxu0 0.0
  %2354 = vmatprep.subr.mxu0 0.0
  %2355 = vmatpush2.msra.mxu0 0.0
  %2356 = vmatprep.mubr.f32.mxu0 0.0
  %2357 = vmatmul.mubr.f32.gmra.mxu0 %v2290
  %v2358 = vpop.f32.mrf.mxu0
  %v2359 = vadd.f32 0.0, %v2358
  %v2360 = vpop.f32.mrf.mxu0
  %2361 = vdwg.mxu0
  %2362 = vrot.lane.b32.xlu0 %v377, 64
  %v2363 = vpop.permute.xlu0 %2362
  %v2366 = vsel %vm1653, %v1821, 0
  %2368 = vmatprep.subr.mxu0 0.0
  %2369 = vmatpush1.msra.mxu0 0.0
  %2370 = vmatprep.subr.mxu0 0.0
  %2371 = vmatpush1.msra.mxu0 0.0
  %2372 = vmatprep.subr.mxu0 0.0
  %2373 = vmatpush1.msra.mxu0 0.0
  %2374 = vmatprep.subr.mxu0 0.0
  %2375 = vmatpush1.msra.mxu0 0.0
  %2376 = vmatprep.subr.mxu0 0.0
  %2377 = vmatpush1.msra.mxu0 0.0
  %2378 = vmatprep.subr.mxu0 0.0
  %2379 = vmatpush1.msra.mxu0 0.0
  %2380 = vmatprep.subr.mxu0 0.0
  %2381 = vmatpush1.msra.mxu0 0.0
  %2382 = vmatprep.subr.mxu0 0.0
  %2383 = vmatpush1.msra.mxu0 0.0
  %2384 = vmatprep.subr.mxu0 0.0
  %2385 = vmatpush1.msra.mxu0 0.0
  %2386 = vmatprep.subr.mxu0 0.0
  %2387 = vmatpush1.msra.mxu0 0.0
  %2388 = vmatprep.subr.mxu0 0.0
  %2389 = vmatpush1.msra.mxu0 0.0
  %2390 = vmatprep.subr.mxu0 0.0
  %2391 = vmatpush1.msra.mxu0 0.0
  %2392 = vmatprep.subr.mxu0 0.0
  %2393 = vmatpush1.msra.mxu0 0.0
  %2394 = vmatprep.subr.mxu0 0.0
  %2395 = vmatpush1.msra.mxu0 0.0
  %2396 = vmatprep.subr.mxu0 0.0
  %2397 = vmatpush1.msra.mxu0 0.0
  %2398 = vmatprep.subr.mxu0 0.0
  %2399 = vmatpush1.msra.mxu0 %v2363
  %2400 = vmatprep.subr.mxu0 0.0
  %2401 = vmatpush2.msra.mxu0 0.0
  %2402 = vmatprep.subr.mxu0 0.0
  %2403 = vmatpush2.msra.mxu0 0.0
  %2404 = vmatprep.subr.mxu0 0.0
  %2405 = vmatpush2.msra.mxu0 0.0
  %2406 = vmatprep.subr.mxu0 0.0
  %2407 = vmatpush2.msra.mxu0 0.0
  %2408 = vmatprep.subr.mxu0 0.0
  %2409 = vmatpush2.msra.mxu0 0.0
  %2410 = vmatprep.subr.mxu0 0.0
  %2411 = vmatpush2.msra.mxu0 0.0
  %2412 = vmatprep.subr.mxu0 0.0
  %2413 = vmatpush2.msra.mxu0 0.0
  %2414 = vmatprep.subr.mxu0 0.0
  %2415 = vmatpush2.msra.mxu0 0.0
  %2416 = vmatprep.subr.mxu0 0.0
  %2417 = vmatpush2.msra.mxu0 0.0
  %2418 = vmatprep.subr.mxu0 0.0
  %2419 = vmatpush2.msra.mxu0 0.0
  %2420 = vmatprep.subr.mxu0 0.0
  %2421 = vmatpush2.msra.mxu0 0.0
  %2422 = vmatprep.subr.mxu0 0.0
  %2423 = vmatpush2.msra.mxu0 0.0
  %2424 = vmatprep.subr.mxu0 0.0
  %2425 = vmatpush2.msra.mxu0 0.0
  %2426 = vmatprep.subr.mxu0 0.0
  %2427 = vmatpush2.msra.mxu0 0.0
  %2428 = vmatprep.subr.mxu0 0.0
  %2429 = vmatpush2.msra.mxu0 0.0
  %2430 = vmatprep.subr.mxu0 0.0
  %2431 = vmatpush2.msra.mxu0 0.0
  %2432 = vmatprep.mubr.f32.mxu0 0.0
  %2433 = vmatmul.mubr.f32.gmra.mxu0 %v2366
  %v2434 = vpop.f32.mrf.mxu0
  %v2435 = vadd.f32 0.0, %v2434
  %v2436 = vpop.f32.mrf.mxu0
  %2437 = vdwg.mxu0
  %2438 = vrot.lane.b32.xlu0 %v421, 64
  %v2439 = vpop.permute.xlu0 %2438
  %v2442 = vsel %vm1653, %v1822, 0
  %2444 = vmatprep.subr.mxu0 0.0
  %2445 = vmatpush1.msra.mxu0 0.0
  %2446 = vmatprep.subr.mxu0 0.0
  %2447 = vmatpush1.msra.mxu0 0.0
  %2448 = vmatprep.subr.mxu0 0.0
  %2449 = vmatpush1.msra.mxu0 0.0
  %2450 = vmatprep.subr.mxu0 0.0
  %2451 = vmatpush1.msra.mxu0 0.0
  %2452 = vmatprep.subr.mxu0 0.0
  %2453 = vmatpush1.msra.mxu0 0.0
  %2454 = vmatprep.subr.mxu0 0.0
  %2455 = vmatpush1.msra.mxu0 0.0
  %2456 = vmatprep.subr.mxu0 0.0
  %2457 = vmatpush1.msra.mxu0 0.0
  %2458 = vmatprep.subr.mxu0 0.0
  %2459 = vmatpush1.msra.mxu0 0.0
  %2460 = vmatprep.subr.mxu0 0.0
  %2461 = vmatpush1.msra.mxu0 0.0
  %2462 = vmatprep.subr.mxu0 0.0
  %2463 = vmatpush1.msra.mxu0 0.0
  %2464 = vmatprep.subr.mxu0 0.0
  %2465 = vmatpush1.msra.mxu0 0.0
  %2466 = vmatprep.subr.mxu0 0.0
  %2467 = vmatpush1.msra.mxu0 0.0
  %2468 = vmatprep.subr.mxu0 0.0
  %2469 = vmatpush1.msra.mxu0 0.0
  %2470 = vmatprep.subr.mxu0 0.0
  %2471 = vmatpush1.msra.mxu0 0.0
  %2472 = vmatprep.subr.mxu0 0.0
  %2473 = vmatpush1.msra.mxu0 0.0
  %2474 = vmatprep.subr.mxu0 0.0
  %2475 = vmatpush1.msra.mxu0 %v2439
  %2476 = vmatprep.subr.mxu0 0.0
  %2477 = vmatpush2.msra.mxu0 0.0
  %2478 = vmatprep.subr.mxu0 0.0
  %2479 = vmatpush2.msra.mxu0 0.0
  %2480 = vmatprep.subr.mxu0 0.0
  %2481 = vmatpush2.msra.mxu0 0.0
  %2482 = vmatprep.subr.mxu0 0.0
  %2483 = vmatpush2.msra.mxu0 0.0
  %2484 = vmatprep.subr.mxu0 0.0
  %2485 = vmatpush2.msra.mxu0 0.0
  %2486 = vmatprep.subr.mxu0 0.0
  %2487 = vmatpush2.msra.mxu0 0.0
  %2488 = vmatprep.subr.mxu0 0.0
  %2489 = vmatpush2.msra.mxu0 0.0
  %2490 = vmatprep.subr.mxu0 0.0
  %2491 = vmatpush2.msra.mxu0 0.0
  %2492 = vmatprep.subr.mxu0 0.0
  %2493 = vmatpush2.msra.mxu0 0.0
  %2494 = vmatprep.subr.mxu0 0.0
  %2495 = vmatpush2.msra.mxu0 0.0
  %2496 = vmatprep.subr.mxu0 0.0
  %2497 = vmatpush2.msra.mxu0 0.0
  %2498 = vmatprep.subr.mxu0 0.0
  %2499 = vmatpush2.msra.mxu0 0.0
  %2500 = vmatprep.subr.mxu0 0.0
  %2501 = vmatpush2.msra.mxu0 0.0
  %2502 = vmatprep.subr.mxu0 0.0
  %2503 = vmatpush2.msra.mxu0 0.0
  %2504 = vmatprep.subr.mxu0 0.0
  %2505 = vmatpush2.msra.mxu0 0.0
  %2506 = vmatprep.subr.mxu0 0.0
  %2507 = vmatpush2.msra.mxu0 0.0
  %2508 = vmatprep.mubr.f32.mxu0 0.0
  %2509 = vmatmul.mubr.f32.gmra.mxu0 %v2442
  %v2510 = vpop.f32.mrf.mxu0
  %v2511 = vadd.f32 0.0, %v2510
  %v2512 = vpop.f32.mrf.mxu0
  %2513 = vdwg.mxu0
  %2514 = vrot.lane.b32.xlu0 %v423, 64
  %v2515 = vpop.permute.xlu0 %2514
  %v2518 = vsel %vm1653, %v1823, 0
  %2520 = vmatprep.subr.mxu0 0.0
  %2521 = vmatpush1.msra.mxu0 0.0
  %2522 = vmatprep.subr.mxu0 0.0
  %2523 = vmatpush1.msra.mxu0 0.0
  %2524 = vmatprep.subr.mxu0 0.0
  %2525 = vmatpush1.msra.mxu0 0.0
  %2526 = vmatprep.subr.mxu0 0.0
  %2527 = vmatpush1.msra.mxu0 0.0
  %2528 = vmatprep.subr.mxu0 0.0
  %2529 = vmatpush1.msra.mxu0 0.0
  %2530 = vmatprep.subr.mxu0 0.0
  %2531 = vmatpush1.msra.mxu0 0.0
  %2532 = vmatprep.subr.mxu0 0.0
  %2533 = vmatpush1.msra.mxu0 0.0
  %2534 = vmatprep.subr.mxu0 0.0
  %2535 = vmatpush1.msra.mxu0 0.0
  %2536 = vmatprep.subr.mxu0 0.0
  %2537 = vmatpush1.msra.mxu0 0.0
  %2538 = vmatprep.subr.mxu0 0.0
  %2539 = vmatpush1.msra.mxu0 0.0
  %2540 = vmatprep.subr.mxu0 0.0
  %2541 = vmatpush1.msra.mxu0 0.0
  %2542 = vmatprep.subr.mxu0 0.0
  %2543 = vmatpush1.msra.mxu0 0.0
  %2544 = vmatprep.subr.mxu0 0.0
  %2545 = vmatpush1.msra.mxu0 0.0
  %2546 = vmatprep.subr.mxu0 0.0
  %2547 = vmatpush1.msra.mxu0 0.0
  %2548 = vmatprep.subr.mxu0 0.0
  %2549 = vmatpush1.msra.mxu0 0.0
  %2550 = vmatprep.subr.mxu0 0.0
  %2551 = vmatpush1.msra.mxu0 %v2515
  %2552 = vmatprep.subr.mxu0 0.0
  %2553 = vmatpush2.msra.mxu0 0.0
  %2554 = vmatprep.subr.mxu0 0.0
  %2555 = vmatpush2.msra.mxu0 0.0
  %2556 = vmatprep.subr.mxu0 0.0
  %2557 = vmatpush2.msra.mxu0 0.0
  %2558 = vmatprep.subr.mxu0 0.0
  %2559 = vmatpush2.msra.mxu0 0.0
  %2560 = vmatprep.subr.mxu0 0.0
  %2561 = vmatpush2.msra.mxu0 0.0
  %2562 = vmatprep.subr.mxu0 0.0
  %2563 = vmatpush2.msra.mxu0 0.0
  %2564 = vmatprep.subr.mxu0 0.0
  %2565 = vmatpush2.msra.mxu0 0.0
  %2566 = vmatprep.subr.mxu0 0.0
  %2567 = vmatpush2.msra.mxu0 0.0
  %2568 = vmatprep.subr.mxu0 0.0
  %2569 = vmatpush2.msra.mxu0 0.0
  %2570 = vmatprep.subr.mxu0 0.0
  %2571 = vmatpush2.msra.mxu0 0.0
  %2572 = vmatprep.subr.mxu0 0.0
  %2573 = vmatpush2.msra.mxu0 0.0
  %2574 = vmatprep.subr.mxu0 0.0
  %2575 = vmatpush2.msra.mxu0 0.0
  %2576 = vmatprep.subr.mxu0 0.0
  %2577 = vmatpush2.msra.mxu0 0.0
  %2578 = vmatprep.subr.mxu0 0.0
  %2579 = vmatpush2.msra.mxu0 0.0
  %2580 = vmatprep.subr.mxu0 0.0
  %2581 = vmatpush2.msra.mxu0 0.0
  %2582 = vmatprep.subr.mxu0 0.0
  %2583 = vmatpush2.msra.mxu0 0.0
  %2584 = vmatprep.mubr.f32.mxu0 0.0
  %2585 = vmatmul.mubr.f32.gmra.mxu0 %v2518
  %v2586 = vpop.f32.mrf.mxu0
  %v2587 = vadd.f32 0.0, %v2586
  %v2588 = vpop.f32.mrf.mxu0
  %2589 = vdwg.mxu0
  %2590 = vrot.lane.b32.xlu0 %v425, 64
  %v2591 = vpop.permute.xlu0 %2590
  %v2594 = vsel %vm1653, %v1824, 0
  %2596 = vmatprep.subr.mxu0 0.0
  %2597 = vmatpush1.msra.mxu0 0.0
  %2598 = vmatprep.subr.mxu0 0.0
  %2599 = vmatpush1.msra.mxu0 0.0
  %2600 = vmatprep.subr.mxu0 0.0
  %2601 = vmatpush1.msra.mxu0 0.0
  %2602 = vmatprep.subr.mxu0 0.0
  %2603 = vmatpush1.msra.mxu0 0.0
  %2604 = vmatprep.subr.mxu0 0.0
  %2605 = vmatpush1.msra.mxu0 0.0
  %2606 = vmatprep.subr.mxu0 0.0
  %2607 = vmatpush1.msra.mxu0 0.0
  %2608 = vmatprep.subr.mxu0 0.0
  %2609 = vmatpush1.msra.mxu0 0.0
  %2610 = vmatprep.subr.mxu0 0.0
  %2611 = vmatpush1.msra.mxu0 0.0
  %2612 = vmatprep.subr.mxu0 0.0
  %2613 = vmatpush1.msra.mxu0 0.0
  %2614 = vmatprep.subr.mxu0 0.0
  %2615 = vmatpush1.msra.mxu0 0.0
  %2616 = vmatprep.subr.mxu0 0.0
  %2617 = vmatpush1.msra.mxu0 0.0
  %2618 = vmatprep.subr.mxu0 0.0
  %2619 = vmatpush1.msra.mxu0 0.0
  %2620 = vmatprep.subr.mxu0 0.0
  %2621 = vmatpush1.msra.mxu0 0.0
  %2622 = vmatprep.subr.mxu0 0.0
  %2623 = vmatpush1.msra.mxu0 0.0
  %2624 = vmatprep.subr.mxu0 0.0
  %2625 = vmatpush1.msra.mxu0 0.0
  %2626 = vmatprep.subr.mxu0 0.0
  %2627 = vmatpush1.msra.mxu0 %v2591
  %2628 = vmatprep.subr.mxu0 0.0
  %2629 = vmatpush2.msra.mxu0 0.0
  %2630 = vmatprep.subr.mxu0 0.0
  %2631 = vmatpush2.msra.mxu0 0.0
  %2632 = vmatprep.subr.mxu0 0.0
  %2633 = vmatpush2.msra.mxu0 0.0
  %2634 = vmatprep.subr.mxu0 0.0
  %2635 = vmatpush2.msra.mxu0 0.0
  %2636 = vmatprep.subr.mxu0 0.0
  %2637 = vmatpush2.msra.mxu0 0.0
  %2638 = vmatprep.subr.mxu0 0.0
  %2639 = vmatpush2.msra.mxu0 0.0
  %2640 = vmatprep.subr.mxu0 0.0
  %2641 = vmatpush2.msra.mxu0 0.0
  %2642 = vmatprep.subr.mxu0 0.0
  %2643 = vmatpush2.msra.mxu0 0.0
  %2644 = vmatprep.subr.mxu0 0.0
  %2645 = vmatpush2.msra.mxu0 0.0
  %2646 = vmatprep.subr.mxu0 0.0
  %2647 = vmatpush2.msra.mxu0 0.0
  %2648 = vmatprep.subr.mxu0 0.0
  %2649 = vmatpush2.msra.mxu0 0.0
  %2650 = vmatprep.subr.mxu0 0.0
  %2651 = vmatpush2.msra.mxu0 0.0
  %2652 = vmatprep.subr.mxu0 0.0
  %2653 = vmatpush2.msra.mxu0 0.0
  %2654 = vmatprep.subr.mxu0 0.0
  %2655 = vmatpush2.msra.mxu0 0.0
  %2656 = vmatprep.subr.mxu0 0.0
  %2657 = vmatpush2.msra.mxu0 0.0
  %2658 = vmatprep.subr.mxu0 0.0
  %2659 = vmatpush2.msra.mxu0 0.0
  %2660 = vmatprep.mubr.f32.mxu0 0.0
  %2661 = vmatmul.mubr.f32.gmra.mxu0 %v2594
  %v2662 = vpop.f32.mrf.mxu0
  %v2663 = vadd.f32 0.0, %v2662
  %v2664 = vpop.f32.mrf.mxu0
  %2665 = vdwg.mxu0
  %2666 = vrot.lane.b32.xlu0 %v427, 64
  %v2667 = vpop.permute.xlu0 %2666
  %v2670 = vsel %vm1653, %v1825, 0
  %2672 = vmatprep.subr.mxu0 0.0
  %2673 = vmatpush1.msra.mxu0 0.0
  %2674 = vmatprep.subr.mxu0 0.0
  %2675 = vmatpush1.msra.mxu0 0.0
  %2676 = vmatprep.subr.mxu0 0.0
  %2677 = vmatpush1.msra.mxu0 0.0
  %2678 = vmatprep.subr.mxu0 0.0
  %2679 = vmatpush1.msra.mxu0 0.0
  %2680 = vmatprep.subr.mxu0 0.0
  %2681 = vmatpush1.msra.mxu0 0.0
  %2682 = vmatprep.subr.mxu0 0.0
  %2683 = vmatpush1.msra.mxu0 0.0
  %2684 = vmatprep.subr.mxu0 0.0
  %2685 = vmatpush1.msra.mxu0 0.0
  %2686 = vmatprep.subr.mxu0 0.0
  %2687 = vmatpush1.msra.mxu0 0.0
  %2688 = vmatprep.subr.mxu0 0.0
  %2689 = vmatpush1.msra.mxu0 0.0
  %2690 = vmatprep.subr.mxu0 0.0
  %2691 = vmatpush1.msra.mxu0 0.0
  %2692 = vmatprep.subr.mxu0 0.0
  %2693 = vmatpush1.msra.mxu0 0.0
  %2694 = vmatprep.subr.mxu0 0.0
  %2695 = vmatpush1.msra.mxu0 0.0
  %2696 = vmatprep.subr.mxu0 0.0
  %2697 = vmatpush1.msra.mxu0 0.0
  %2698 = vmatprep.subr.mxu0 0.0
  %2699 = vmatpush1.msra.mxu0 0.0
  %2700 = vmatprep.subr.mxu0 0.0
  %2701 = vmatpush1.msra.mxu0 0.0
  %2702 = vmatprep.subr.mxu0 0.0
  %2703 = vmatpush1.msra.mxu0 %v2667
  %2704 = vmatprep.subr.mxu0 0.0
  %2705 = vmatpush2.msra.mxu0 0.0
  %2706 = vmatprep.subr.mxu0 0.0
  %2707 = vmatpush2.msra.mxu0 0.0
  %2708 = vmatprep.subr.mxu0 0.0
  %2709 = vmatpush2.msra.mxu0 0.0
  %2710 = vmatprep.subr.mxu0 0.0
  %2711 = vmatpush2.msra.mxu0 0.0
  %2712 = vmatprep.subr.mxu0 0.0
  %2713 = vmatpush2.msra.mxu0 0.0
  %2714 = vmatprep.subr.mxu0 0.0
  %2715 = vmatpush2.msra.mxu0 0.0
  %2716 = vmatprep.subr.mxu0 0.0
  %2717 = vmatpush2.msra.mxu0 0.0
  %2718 = vmatprep.subr.mxu0 0.0
  %2719 = vmatpush2.msra.mxu0 0.0
  %2720 = vmatprep.subr.mxu0 0.0
  %2721 = vmatpush2.msra.mxu0 0.0
  %2722 = vmatprep.subr.mxu0 0.0
  %2723 = vmatpush2.msra.mxu0 0.0
  %2724 = vmatprep.subr.mxu0 0.0
  %2725 = vmatpush2.msra.mxu0 0.0
  %2726 = vmatprep.subr.mxu0 0.0
  %2727 = vmatpush2.msra.mxu0 0.0
  %2728 = vmatprep.subr.mxu0 0.0
  %2729 = vmatpush2.msra.mxu0 0.0
  %2730 = vmatprep.subr.mxu0 0.0
  %2731 = vmatpush2.msra.mxu0 0.0
  %2732 = vmatprep.subr.mxu0 0.0
  %2733 = vmatpush2.msra.mxu0 0.0
  %2734 = vmatprep.subr.mxu0 0.0
  %2735 = vmatpush2.msra.mxu0 0.0
  %2736 = vmatprep.mubr.f32.mxu0 0.0
  %2737 = vmatmul.mubr.f32.gmra.mxu0 %v2670
  %v2738 = vpop.f32.mrf.mxu0
  %v2739 = vadd.f32 0.0, %v2738
  %v2740 = vpop.f32.mrf.mxu0
  %2741 = vdwg.mxu0
  %2742 = vrot.lane.b32.xlu0 %v429, 64
  %v2743 = vpop.permute.xlu0 %2742
  %v2746 = vsel %vm1653, %v1826, 0
  %2748 = vmatprep.subr.mxu0 0.0
  %2749 = vmatpush1.msra.mxu0 0.0
  %2750 = vmatprep.subr.mxu0 0.0
  %2751 = vmatpush1.msra.mxu0 0.0
  %2752 = vmatprep.subr.mxu0 0.0
  %2753 = vmatpush1.msra.mxu0 0.0
  %2754 = vmatprep.subr.mxu0 0.0
  %2755 = vmatpush1.msra.mxu0 0.0
  %2756 = vmatprep.subr.mxu0 0.0
  %2757 = vmatpush1.msra.mxu0 0.0
  %2758 = vmatprep.subr.mxu0 0.0
  %2759 = vmatpush1.msra.mxu0 0.0
  %2760 = vmatprep.subr.mxu0 0.0
  %2761 = vmatpush1.msra.mxu0 0.0
  %2762 = vmatprep.subr.mxu0 0.0
  %2763 = vmatpush1.msra.mxu0 0.0
  %2764 = vmatprep.subr.mxu0 0.0
  %2765 = vmatpush1.msra.mxu0 0.0
  %2766 = vmatprep.subr.mxu0 0.0
  %2767 = vmatpush1.msra.mxu0 0.0
  %2768 = vmatprep.subr.mxu0 0.0
  %2769 = vmatpush1.msra.mxu0 0.0
  %2770 = vmatprep.subr.mxu0 0.0
  %2771 = vmatpush1.msra.mxu0 0.0
  %2772 = vmatprep.subr.mxu0 0.0
  %2773 = vmatpush1.msra.mxu0 0.0
  %2774 = vmatprep.subr.mxu0 0.0
  %2775 = vmatpush1.msra.mxu0 0.0
  %2776 = vmatprep.subr.mxu0 0.0
  %2777 = vmatpush1.msra.mxu0 0.0
  %2778 = vmatprep.subr.mxu0 0.0
  %2779 = vmatpush1.msra.mxu0 %v2743
  %2780 = vmatprep.subr.mxu0 0.0
  %2781 = vmatpush2.msra.mxu0 0.0
  %2782 = vmatprep.subr.mxu0 0.0
  %2783 = vmatpush2.msra.mxu0 0.0
  %2784 = vmatprep.subr.mxu0 0.0
  %2785 = vmatpush2.msra.mxu0 0.0
  %2786 = vmatprep.subr.mxu0 0.0
  %2787 = vmatpush2.msra.mxu0 0.0
  %2788 = vmatprep.subr.mxu0 0.0
  %2789 = vmatpush2.msra.mxu0 0.0
  %2790 = vmatprep.subr.mxu0 0.0
  %2791 = vmatpush2.msra.mxu0 0.0
  %2792 = vmatprep.subr.mxu0 0.0
  %2793 = vmatpush2.msra.mxu0 0.0
  %2794 = vmatprep.subr.mxu0 0.0
  %2795 = vmatpush2.msra.mxu0 0.0
  %2796 = vmatprep.subr.mxu0 0.0
  %2797 = vmatpush2.msra.mxu0 0.0
  %2798 = vmatprep.subr.mxu0 0.0
  %2799 = vmatpush2.msra.mxu0 0.0
  %2800 = vmatprep.subr.mxu0 0.0
  %2801 = vmatpush2.msra.mxu0 0.0
  %2802 = vmatprep.subr.mxu0 0.0
  %2803 = vmatpush2.msra.mxu0 0.0
  %2804 = vmatprep.subr.mxu0 0.0
  %2805 = vmatpush2.msra.mxu0 0.0
  %2806 = vmatprep.subr.mxu0 0.0
  %2807 = vmatpush2.msra.mxu0 0.0
  %2808 = vmatprep.subr.mxu0 0.0
  %2809 = vmatpush2.msra.mxu0 0.0
  %2810 = vmatprep.subr.mxu0 0.0
  %2811 = vmatpush2.msra.mxu0 0.0
  %2812 = vmatprep.mubr.f32.mxu0 0.0
  %2813 = vmatmul.mubr.f32.gmra.mxu0 %v2746
  %v2814 = vpop.f32.mrf.mxu0
  %v2815 = vadd.f32 0.0, %v2814
  %v2816 = vpop.f32.mrf.mxu0
  %2817 = vdwg.mxu0
  %2818 = vrot.lane.b32.xlu0 %v431, 64
  %v2819 = vpop.permute.xlu0 %2818
  %v2822 = vsel %vm1653, %v1827, 0
  %2824 = vmatprep.subr.mxu0 0.0
  %2825 = vmatpush1.msra.mxu0 0.0
  %2826 = vmatprep.subr.mxu0 0.0
  %2827 = vmatpush1.msra.mxu0 0.0
  %2828 = vmatprep.subr.mxu0 0.0
  %2829 = vmatpush1.msra.mxu0 0.0
  %2830 = vmatprep.subr.mxu0 0.0
  %2831 = vmatpush1.msra.mxu0 0.0
  %2832 = vmatprep.subr.mxu0 0.0
  %2833 = vmatpush1.msra.mxu0 0.0
  %2834 = vmatprep.subr.mxu0 0.0
  %2835 = vmatpush1.msra.mxu0 0.0
  %2836 = vmatprep.subr.mxu0 0.0
  %2837 = vmatpush1.msra.mxu0 0.0
  %2838 = vmatprep.subr.mxu0 0.0
  %2839 = vmatpush1.msra.mxu0 0.0
  %2840 = vmatprep.subr.mxu0 0.0
  %2841 = vmatpush1.msra.mxu0 0.0
  %2842 = vmatprep.subr.mxu0 0.0
  %2843 = vmatpush1.msra.mxu0 0.0
  %2844 = vmatprep.subr.mxu0 0.0
  %2845 = vmatpush1.msra.mxu0 0.0
  %2846 = vmatprep.subr.mxu0 0.0
  %2847 = vmatpush1.msra.mxu0 0.0
  %2848 = vmatprep.subr.mxu0 0.0
  %2849 = vmatpush1.msra.mxu0 0.0
  %2850 = vmatprep.subr.mxu0 0.0
  %2851 = vmatpush1.msra.mxu0 0.0
  %2852 = vmatprep.subr.mxu0 0.0
  %2853 = vmatpush1.msra.mxu0 0.0
  %2854 = vmatprep.subr.mxu0 0.0
  %2855 = vmatpush1.msra.mxu0 %v2819
  %2856 = vmatprep.subr.mxu0 0.0
  %2857 = vmatpush2.msra.mxu0 0.0
  %2858 = vmatprep.subr.mxu0 0.0
  %2859 = vmatpush2.msra.mxu0 0.0
  %2860 = vmatprep.subr.mxu0 0.0
  %2861 = vmatpush2.msra.mxu0 0.0
  %2862 = vmatprep.subr.mxu0 0.0
  %2863 = vmatpush2.msra.mxu0 0.0
  %2864 = vmatprep.subr.mxu0 0.0
  %2865 = vmatpush2.msra.mxu0 0.0
  %2866 = vmatprep.subr.mxu0 0.0
  %2867 = vmatpush2.msra.mxu0 0.0
  %2868 = vmatprep.subr.mxu0 0.0
  %2869 = vmatpush2.msra.mxu0 0.0
  %2870 = vmatprep.subr.mxu0 0.0
  %2871 = vmatpush2.msra.mxu0 0.0
  %2872 = vmatprep.subr.mxu0 0.0
  %2873 = vmatpush2.msra.mxu0 0.0
  %2874 = vmatprep.subr.mxu0 0.0
  %2875 = vmatpush2.msra.mxu0 0.0
  %2876 = vmatprep.subr.mxu0 0.0
  %2877 = vmatpush2.msra.mxu0 0.0
  %2878 = vmatprep.subr.mxu0 0.0
  %2879 = vmatpush2.msra.mxu0 0.0
  %2880 = vmatprep.subr.mxu0 0.0
  %2881 = vmatpush2.msra.mxu0 0.0
  %2882 = vmatprep.subr.mxu0 0.0
  %2883 = vmatpush2.msra.mxu0 0.0
  %2884 = vmatprep.subr.mxu0 0.0
  %2885 = vmatpush2.msra.mxu0 0.0
  %2886 = vmatprep.subr.mxu0 0.0
  %2887 = vmatpush2.msra.mxu0 0.0
  %2888 = vmatprep.mubr.f32.mxu0 0.0
  %2889 = vmatmul.mubr.f32.gmra.mxu0 %v2822
  %v2890 = vpop.f32.mrf.mxu0
  %v2891 = vadd.f32 0.0, %v2890
  %v2892 = vpop.f32.mrf.mxu0
  %2893 = vdwg.mxu0
  %2894 = vrot.lane.b32.xlu0 %v433, 64
  %v2895 = vpop.permute.xlu0 %2894
  %v2898 = vsel %vm1653, %v1828, 0
  %2900 = vmatprep.subr.mxu0 0.0
  %2901 = vmatpush1.msra.mxu0 0.0
  %2902 = vmatprep.subr.mxu0 0.0
  %2903 = vmatpush1.msra.mxu0 0.0
  %2904 = vmatprep.subr.mxu0 0.0
  %2905 = vmatpush1.msra.mxu0 0.0
  %2906 = vmatprep.subr.mxu0 0.0
  %2907 = vmatpush1.msra.mxu0 0.0
  %2908 = vmatprep.subr.mxu0 0.0
  %2909 = vmatpush1.msra.mxu0 0.0
  %2910 = vmatprep.subr.mxu0 0.0
  %2911 = vmatpush1.msra.mxu0 0.0
  %2912 = vmatprep.subr.mxu0 0.0
  %2913 = vmatpush1.msra.mxu0 0.0
  %2914 = vmatprep.subr.mxu0 0.0
  %2915 = vmatpush1.msra.mxu0 0.0
  %2916 = vmatprep.subr.mxu0 0.0
  %2917 = vmatpush1.msra.mxu0 0.0
  %2918 = vmatprep.subr.mxu0 0.0
  %2919 = vmatpush1.msra.mxu0 0.0
  %2920 = vmatprep.subr.mxu0 0.0
  %2921 = vmatpush1.msra.mxu0 0.0
  %2922 = vmatprep.subr.mxu0 0.0
  %2923 = vmatpush1.msra.mxu0 0.0
  %2924 = vmatprep.subr.mxu0 0.0
  %2925 = vmatpush1.msra.mxu0 0.0
  %2926 = vmatprep.subr.mxu0 0.0
  %2927 = vmatpush1.msra.mxu0 0.0
  %2928 = vmatprep.subr.mxu0 0.0
  %2929 = vmatpush1.msra.mxu0 0.0
  %2930 = vmatprep.subr.mxu0 0.0
  %2931 = vmatpush1.msra.mxu0 %v2895
  %2932 = vmatprep.subr.mxu0 0.0
  %2933 = vmatpush2.msra.mxu0 0.0
  %2934 = vmatprep.subr.mxu0 0.0
  %2935 = vmatpush2.msra.mxu0 0.0
  %2936 = vmatprep.subr.mxu0 0.0
  %2937 = vmatpush2.msra.mxu0 0.0
  %2938 = vmatprep.subr.mxu0 0.0
  %2939 = vmatpush2.msra.mxu0 0.0
  %2940 = vmatprep.subr.mxu0 0.0
  %2941 = vmatpush2.msra.mxu0 0.0
  %2942 = vmatprep.subr.mxu0 0.0
  %2943 = vmatpush2.msra.mxu0 0.0
  %2944 = vmatprep.subr.mxu0 0.0
  %2945 = vmatpush2.msra.mxu0 0.0
  %2946 = vmatprep.subr.mxu0 0.0
  %2947 = vmatpush2.msra.mxu0 0.0
  %2948 = vmatprep.subr.mxu0 0.0
  %2949 = vmatpush2.msra.mxu0 0.0
  %2950 = vmatprep.subr.mxu0 0.0
  %2951 = vmatpush2.msra.mxu0 0.0
  %2952 = vmatprep.subr.mxu0 0.0
  %2953 = vmatpush2.msra.mxu0 0.0
  %2954 = vmatprep.subr.mxu0 0.0
  %2955 = vmatpush2.msra.mxu0 0.0
  %2956 = vmatprep.subr.mxu0 0.0
  %2957 = vmatpush2.msra.mxu0 0.0
  %2958 = vmatprep.subr.mxu0 0.0
  %2959 = vmatpush2.msra.mxu0 0.0
  %2960 = vmatprep.subr.mxu0 0.0
  %2961 = vmatpush2.msra.mxu0 0.0
  %2962 = vmatprep.subr.mxu0 0.0
  %2963 = vmatpush2.msra.mxu0 0.0
  %2964 = vmatprep.mubr.f32.mxu0 0.0
  %2965 = vmatmul.mubr.f32.gmra.mxu0 %v2898
  %v2966 = vpop.f32.mrf.mxu0
  %v2967 = vadd.f32 0.0, %v2966
  %v2968 = vpop.f32.mrf.mxu0
  %2969 = vdwg.mxu0
  %2970 = vrot.lane.b32.xlu0 %v435, 64
  %v2971 = vpop.permute.xlu0 %2970
  %v2974 = vsel %vm1653, %v1829, 0
  %2976 = vmatprep.subr.mxu0 0.0
  %2977 = vmatpush1.msra.mxu0 0.0
  %2978 = vmatprep.subr.mxu0 0.0
  %2979 = vmatpush1.msra.mxu0 0.0
  %2980 = vmatprep.subr.mxu0 0.0
  %2981 = vmatpush1.msra.mxu0 0.0
  %2982 = vmatprep.subr.mxu0 0.0
  %2983 = vmatpush1.msra.mxu0 0.0
  %2984 = vmatprep.subr.mxu0 0.0
  %2985 = vmatpush1.msra.mxu0 0.0
  %2986 = vmatprep.subr.mxu0 0.0
  %2987 = vmatpush1.msra.mxu0 0.0
  %2988 = vmatprep.subr.mxu0 0.0
  %2989 = vmatpush1.msra.mxu0 0.0
  %2990 = vmatprep.subr.mxu0 0.0
  %2991 = vmatpush1.msra.mxu0 0.0
  %2992 = vmatprep.subr.mxu0 0.0
  %2993 = vmatpush1.msra.mxu0 0.0
  %2994 = vmatprep.subr.mxu0 0.0
  %2995 = vmatpush1.msra.mxu0 0.0
  %2996 = vmatprep.subr.mxu0 0.0
  %2997 = vmatpush1.msra.mxu0 0.0
  %2998 = vmatprep.subr.mxu0 0.0
  %2999 = vmatpush1.msra.mxu0 0.0
  %3000 = vmatprep.subr.mxu0 0.0
  %3001 = vmatpush1.msra.mxu0 0.0
  %3002 = vmatprep.subr.mxu0 0.0
  %3003 = vmatpush1.msra.mxu0 0.0
  %3004 = vmatprep.subr.mxu0 0.0
  %3005 = vmatpush1.msra.mxu0 0.0
  %3006 = vmatprep.subr.mxu0 0.0
  %3007 = vmatpush1.msra.mxu0 %v2971
  %3008 = vmatprep.subr.mxu0 0.0
  %3009 = vmatpush2.msra.mxu0 0.0
  %3010 = vmatprep.subr.mxu0 0.0
  %3011 = vmatpush2.msra.mxu0 0.0
  %3012 = vmatprep.subr.mxu0 0.0
  %3013 = vmatpush2.msra.mxu0 0.0
  %3014 = vmatprep.subr.mxu0 0.0
  %3015 = vmatpush2.msra.mxu0 0.0
  %3016 = vmatprep.subr.mxu0 0.0
  %3017 = vmatpush2.msra.mxu0 0.0
  %3018 = vmatprep.subr.mxu0 0.0
  %3019 = vmatpush2.msra.mxu0 0.0
  %3020 = vmatprep.subr.mxu0 0.0
  %3021 = vmatpush2.msra.mxu0 0.0
  %3022 = vmatprep.subr.mxu0 0.0
  %3023 = vmatpush2.msra.mxu0 0.0
  %3024 = vmatprep.subr.mxu0 0.0
  %3025 = vmatpush2.msra.mxu0 0.0
  %3026 = vmatprep.subr.mxu0 0.0
  %3027 = vmatpush2.msra.mxu0 0.0
  %3028 = vmatprep.subr.mxu0 0.0
  %3029 = vmatpush2.msra.mxu0 0.0
  %3030 = vmatprep.subr.mxu0 0.0
  %3031 = vmatpush2.msra.mxu0 0.0
  %3032 = vmatprep.subr.mxu0 0.0
  %3033 = vmatpush2.msra.mxu0 0.0
  %3034 = vmatprep.subr.mxu0 0.0
  %3035 = vmatpush2.msra.mxu0 0.0
  %3036 = vmatprep.subr.mxu0 0.0
  %3037 = vmatpush2.msra.mxu0 0.0
  %3038 = vmatprep.subr.mxu0 0.0
  %3039 = vmatpush2.msra.mxu0 0.0
  %3040 = vmatprep.mubr.f32.mxu0 0.0
  %3041 = vmatmul.mubr.f32.gmra.mxu0 %v2974
  %v3042 = vpop.f32.mrf.mxu0
  %v3043 = vadd.f32 0.0, %v3042
  %v3044 = vpop.f32.mrf.mxu0
  %3045 = vdwg.mxu0
  %3054 = vrot.lane.b32.xlu0 %v2511, 16
  %v3055 = vpop.permute.xlu0 %3054
  %3056 = vrot.lane.b32.xlu0 %v2587, 16
  %v3057 = vpop.permute.xlu0 %3056
  %3058 = vrot.lane.b32.xlu0 %v2663, 16
  %v3059 = vpop.permute.xlu0 %3058
  %3060 = vrot.lane.b32.xlu0 %v2739, 16
  %v3061 = vpop.permute.xlu0 %3060
  %3062 = vrot.lane.b32.xlu0 %v2815, 16
  %v3063 = vpop.permute.xlu0 %3062
  %3064 = vrot.lane.b32.xlu0 %v2891, 16
  %v3065 = vpop.permute.xlu0 %3064
  %3066 = vrot.lane.b32.xlu0 %v2967, 16
  %v3067 = vpop.permute.xlu0 %3066
  %3068 = vrot.lane.b32.xlu0 %v3043, 16
  %v3069 = vpop.permute.xlu0 %3068
  %v3078 = vsel %vm438, %v1903, %v3055
  %v3079 = vsel %vm438, %v1979, %v3057
  %v3080 = vsel %vm438, %v2055, %v3059
  %v3081 = vsel %vm438, %v2131, %v3061
  %v3082 = vsel %vm438, %v2207, %v3063
  %v3083 = vsel %vm438, %v2283, %v3065
  %v3084 = vsel %vm438, %v2359, %v3067
  %v3085 = vsel %vm438, %v2435, %v3069
  %v3086 = vmul.f32 %v3078, %v3078
  %v3087 = vmul.f32 %v3079, %v3079
  %v3088 = vmul.f32 %v3080, %v3080
  %v3089 = vmul.f32 %v3081, %v3081
  %v3090 = vmul.f32 %v3082, %v3082
  %v3091 = vmul.f32 %v3083, %v3083
  %v3092 = vmul.f32 %v3084, %v3084
  %v3093 = vmul.f32 %v3085, %v3085
  %v3094 = vsel %vm45, %v3086, 0.0
  %3095 = vadd.xlane.f32.xlu0 %v3094
  %v3096 = vpop.xlane.xlu0 %3095
  %v3097 = vsel %vm45, %v3087, 0.0
  %3098 = vadd.xlane.f32.xlu0 %v3097
  %v3099 = vpop.xlane.xlu0 %3098
  %v3100 = vsel %vm45, %v3088, 0.0
  %3101 = vadd.xlane.f32.xlu0 %v3100
  %v3102 = vpop.xlane.xlu0 %3101
  %v3103 = vsel %vm45, %v3089, 0.0
  %3104 = vadd.xlane.f32.xlu0 %v3103
  %v3105 = vpop.xlane.xlu0 %3104
  %v3106 = vsel %vm45, %v3090, 0.0
  %3107 = vadd.xlane.f32.xlu0 %v3106
  %v3108 = vpop.xlane.xlu0 %3107
  %v3109 = vsel %vm45, %v3091, 0.0
  %3110 = vadd.xlane.f32.xlu0 %v3109
  %v3111 = vpop.xlane.xlu0 %3110
  %v3112 = vsel %vm45, %v3092, 0.0
  %3113 = vadd.xlane.f32.xlu0 %v3112
  %v3114 = vpop.xlane.xlu0 %3113
  %v3115 = vsel %vm45, %v3093, 0.0
  %3116 = vadd.xlane.f32.xlu0 %v3115
  %v3117 = vpop.xlane.xlu0 %3116
  %v3118 = vmul.f32 %v3096, %v70
  %v3119 = vmul.f32 %v3099, %v70
  %v3120 = vmul.f32 %v3102, %v70
  %v3121 = vmul.f32 %v3105, %v70
  %v3122 = vmul.f32 %v3108, %v70
  %v3123 = vmul.f32 %v3111, %v70
  %v3124 = vmul.f32 %v3114, %v70
  %v3125 = vmul.f32 %v3117, %v70
  %v3126 = vadd.f32 %v3118, 1e-05
  %v3127 = vadd.f32 %v3119, 1e-05
  %v3128 = vadd.f32 %v3120, 1e-05
  %v3129 = vadd.f32 %v3121, 1e-05
  %v3130 = vadd.f32 %v3122, 1e-05
  %v3131 = vadd.f32 %v3123, 1e-05
  %v3132 = vadd.f32 %v3124, 1e-05
  %v3133 = vadd.f32 %v3125, 1e-05
  %v3134 = vrsqrt.pop %v3126
  %v3135 = vrsqrt.pop %v3127
  %v3136 = vrsqrt.pop %v3128
  %v3137 = vrsqrt.pop %v3129
  %v3138 = vrsqrt.pop %v3130
  %v3139 = vrsqrt.pop %v3131
  %v3140 = vrsqrt.pop %v3132
  %v3141 = vrsqrt.pop %v3133
  %v3142 = vmul.f32 %v3078, %v3134
  %v3143 = vmul.f32 %v3079, %v3135
  %v3144 = vmul.f32 %v3080, %v3136
  %v3145 = vmul.f32 %v3081, %v3137
  %v3146 = vmul.f32 %v3082, %v3138
  %v3147 = vmul.f32 %v3083, %v3139
  %v3148 = vmul.f32 %v3084, %v3140
  %v3149 = vmul.f32 %v3085, %v3141
  %v3150 = vlaneseq
  %v3151 = vshrl.u32 %v3150, 7
  %v3152 = vsub.s32 0, %v3151
  %v3153 = vrot.slane %v24, %v3152
  %v3154 = vmul.f32 %v3142, %v3153
  %v3155 = vmul.f32 %v3143, %v3153
  %v3156 = vmul.f32 %v3144, %v3153
  %v3157 = vmul.f32 %v3145, %v3153
  %v3158 = vmul.f32 %v3146, %v3153
  %v3159 = vmul.f32 %v3147, %v3153
  %v3160 = vmul.f32 %v3148, %v3153
  %v3161 = vmul.f32 %v3149, %v3153
  %v3162 = vadd.f32 %v243, %v3154
  %v3163 = vadd.f32 %v244, %v3155
  %v3164 = vadd.f32 %v245, %v3156
  %v3165 = vadd.f32 %v246, %v3157
  %v3166 = vadd.f32 %v247, %v3158
  %v3167 = vadd.f32 %v248, %v3159
  %v3168 = vadd.f32 %v249, %v3160
  %v3169 = vadd.f32 %v250, %v3161
  %v3170 = vmul.f32 %v3162, %v3162
  %v3171 = vmul.f32 %v3163, %v3163
  %v3172 = vmul.f32 %v3164, %v3164
  %v3173 = vmul.f32 %v3165, %v3165
  %v3174 = vmul.f32 %v3166, %v3166
  %v3175 = vmul.f32 %v3167, %v3167
  %v3176 = vmul.f32 %v3168, %v3168
  %v3177 = vmul.f32 %v3169, %v3169
  %v3178 = vsel %vm45, %v3170, 0.0
  %3179 = vadd.xlane.f32.xlu0 %v3178
  %v3180 = vpop.xlane.xlu0 %3179
  %v3181 = vsel %vm45, %v3171, 0.0
  %3182 = vadd.xlane.f32.xlu0 %v3181
  %v3183 = vpop.xlane.xlu0 %3182
  %v3184 = vsel %vm45, %v3172, 0.0
  %3185 = vadd.xlane.f32.xlu0 %v3184
  %v3186 = vpop.xlane.xlu0 %3185
  %v3187 = vsel %vm45, %v3173, 0.0
  %3188 = vadd.xlane.f32.xlu0 %v3187
  %v3189 = vpop.xlane.xlu0 %3188
  %v3190 = vsel %vm45, %v3174, 0.0
  %3191 = vadd.xlane.f32.xlu0 %v3190
  %v3192 = vpop.xlane.xlu0 %3191
  %v3193 = vsel %vm45, %v3175, 0.0
  %3194 = vadd.xlane.f32.xlu0 %v3193
  %v3195 = vpop.xlane.xlu0 %3194
  %v3196 = vsel %vm45, %v3176, 0.0
  %3197 = vadd.xlane.f32.xlu0 %v3196
  %v3198 = vpop.xlane.xlu0 %3197
  %v3199 = vsel %vm45, %v3177, 0.0
  %3200 = vadd.xlane.f32.xlu0 %v3199
  %v3201 = vpop.xlane.xlu0 %3200
  %v3202 = vmul.f32 %v3180, %v70
  %v3203 = vmul.f32 %v3183, %v70
  %v3204 = vmul.f32 %v3186, %v70
  %v3205 = vmul.f32 %v3189, %v70
  %v3206 = vmul.f32 %v3192, %v70
  %v3207 = vmul.f32 %v3195, %v70
  %v3208 = vmul.f32 %v3198, %v70
  %v3209 = vmul.f32 %v3201, %v70
  %v3210 = vadd.f32 %v3202, 1e-05
  %v3211 = vadd.f32 %v3203, 1e-05
  %v3212 = vadd.f32 %v3204, 1e-05
  %v3213 = vadd.f32 %v3205, 1e-05
  %v3214 = vadd.f32 %v3206, 1e-05
  %v3215 = vadd.f32 %v3207, 1e-05
  %v3216 = vadd.f32 %v3208, 1e-05
  %v3217 = vadd.f32 %v3209, 1e-05
  %v3218 = vrsqrt.pop %v3210
  %v3219 = vrsqrt.pop %v3211
  %v3220 = vrsqrt.pop %v3212
  %v3221 = vrsqrt.pop %v3213
  %v3222 = vrsqrt.pop %v3214
  %v3223 = vrsqrt.pop %v3215
  %v3224 = vrsqrt.pop %v3216
  %v3225 = vrsqrt.pop %v3217
  %v3226 = vmul.f32 %v3162, %v3218
  %v3227 = vmul.f32 %v3163, %v3219
  %v3228 = vmul.f32 %v3164, %v3220
  %v3229 = vmul.f32 %v3165, %v3221
  %v3230 = vmul.f32 %v3166, %v3222
  %v3231 = vmul.f32 %v3167, %v3223
  %v3232 = vmul.f32 %v3168, %v3224
  %v3233 = vmul.f32 %v3169, %v3225
  %v3234 = vlaneseq
  %v3235 = vshrl.u32 %v3234, 7
  %v3236 = vsub.s32 0, %v3235
  %v3237 = vrot.slane %v25, %v3236
  %v3238 = vmul.f32 %v3226, %v3237
  %v3239 = vmul.f32 %v3227, %v3237
  %v3240 = vmul.f32 %v3228, %v3237
  %v3241 = vmul.f32 %v3229, %v3237
  %v3242 = vmul.f32 %v3230, %v3237
  %v3243 = vmul.f32 %v3231, %v3237
  %v3244 = vmul.f32 %v3232, %v3237
  %v3245 = vmul.f32 %v3233, %v3237
  %v3246 = vlaneseq
  %v3247 = vshrl.u32 %v3246, 7
  %v3248 = vsub.s32 0, %v3247
  %v3249 = vrot.slane %v31, %v3248
  %v3251 = vsel %vm45, %v3238, 0
  %v3254 = vsel %vm45, %v3239, 0
  %v3257 = vsel %vm45, %v3240, 0
  %v3260 = vsel %vm45, %v3241, 0
  %v3263 = vsel %vm45, %v3242, 0
  %v3266 = vsel %vm45, %v3243, 0
  %v3269 = vsel %vm45, %v3244, 0
  %v3272 = vsel %vm45, %v3245, 0
  %3274 = vmatprep.subr.mxu0 0.0
  %3275 = vmatpush1.msra.mxu0 0.0
  %3276 = vmatprep.subr.mxu0 0.0
  %3277 = vmatpush1.msra.mxu0 0.0
  %3278 = vmatprep.subr.mxu0 0.0
  %3279 = vmatpush1.msra.mxu0 0.0
  %3280 = vmatprep.subr.mxu0 0.0
  %3281 = vmatpush1.msra.mxu0 0.0
  %3282 = vmatprep.subr.mxu0 0.0
  %3283 = vmatpush1.msra.mxu0 0.0
  %3284 = vmatprep.subr.mxu0 0.0
  %3285 = vmatpush1.msra.mxu0 0.0
  %3286 = vmatprep.subr.mxu0 0.0
  %3287 = vmatpush1.msra.mxu0 0.0
  %3288 = vmatprep.subr.mxu0 0.0
  %3289 = vmatpush1.msra.mxu0 0.0
  %3290 = vmatprep.subr.mxu0 0.0
  %3291 = vmatpush1.msra.mxu0 0.0
  %3292 = vmatprep.subr.mxu0 0.0
  %3293 = vmatpush1.msra.mxu0 0.0
  %3294 = vmatprep.subr.mxu0 0.0
  %3295 = vmatpush1.msra.mxu0 0.0
  %3296 = vmatprep.subr.mxu0 0.0
  %3297 = vmatpush1.msra.mxu0 0.0
  %3298 = vmatprep.subr.mxu0 0.0
  %3299 = vmatpush1.msra.mxu0 %v30
  %3300 = vmatprep.subr.mxu0 0.0
  %3301 = vmatpush1.msra.mxu0 %v29
  %3302 = vmatprep.subr.mxu0 0.0
  %3303 = vmatpush1.msra.mxu0 %v28
  %3304 = vmatprep.subr.mxu0 0.0
  %3305 = vmatpush1.msra.mxu0 %v27
  %3306 = vmatprep.subr.mxu0 0.0
  %3307 = vmatpush2.msra.mxu0 0.0
  %3308 = vmatprep.subr.mxu0 0.0
  %3309 = vmatpush2.msra.mxu0 0.0
  %3310 = vmatprep.subr.mxu0 0.0
  %3311 = vmatpush2.msra.mxu0 0.0
  %3312 = vmatprep.subr.mxu0 0.0
  %3313 = vmatpush2.msra.mxu0 0.0
  %3314 = vmatprep.subr.mxu0 0.0
  %3315 = vmatpush2.msra.mxu0 0.0
  %3316 = vmatprep.subr.mxu0 0.0
  %3317 = vmatpush2.msra.mxu0 0.0
  %3318 = vmatprep.subr.mxu0 0.0
  %3319 = vmatpush2.msra.mxu0 0.0
  %3320 = vmatprep.subr.mxu0 0.0
  %3321 = vmatpush2.msra.mxu0 0.0
  %3322 = vmatprep.subr.mxu0 0.0
  %3323 = vmatpush2.msra.mxu0 0.0
  %3324 = vmatprep.subr.mxu0 0.0
  %3325 = vmatpush2.msra.mxu0 0.0
  %3326 = vmatprep.subr.mxu0 0.0
  %3327 = vmatpush2.msra.mxu0 0.0
  %3328 = vmatprep.subr.mxu0 0.0
  %3329 = vmatpush2.msra.mxu0 0.0
  %3330 = vmatprep.subr.mxu0 0.0
  %3331 = vmatpush2.msra.mxu0 0.0
  %3332 = vmatprep.subr.mxu0 0.0
  %3333 = vmatpush2.msra.mxu0 0.0
  %3334 = vmatprep.subr.mxu0 0.0
  %3335 = vmatpush2.msra.mxu0 0.0
  %3336 = vmatprep.subr.mxu0 0.0
  %3337 = vmatpush2.msra.mxu0 0.0
  %3338 = vmatprep.mubr.f32.mxu0 0.0
  %3339 = vmatmul.mubr.f32.gmra.mxu0 %v3251
  %v3340 = vpop.f32.mrf.mxu0
  %v3341 = vadd.f32 %v3249, %v3340
  %v3342 = vpop.f32.mrf.mxu0
  %3343 = vmatprep.mubr.f32.mxu0 0.0
  %3344 = vmatmul.mubr.f32.gmra.mxu0 %v3254
  %v3345 = vpop.f32.mrf.mxu0
  %v3346 = vadd.f32 %v3249, %v3345
  %v3347 = vpop.f32.mrf.mxu0
  %3348 = vmatprep.mubr.f32.mxu0 0.0
  %3349 = vmatmul.mubr.f32.gmra.mxu0 %v3257
  %v3350 = vpop.f32.mrf.mxu0
  %v3351 = vadd.f32 %v3249, %v3350
  %v3352 = vpop.f32.mrf.mxu0
  %3353 = vmatprep.mubr.f32.mxu0 0.0
  %3354 = vmatmul.mubr.f32.gmra.mxu0 %v3260
  %v3355 = vpop.f32.mrf.mxu0
  %v3356 = vadd.f32 %v3249, %v3355
  %v3357 = vpop.f32.mrf.mxu0
  %3358 = vmatprep.mubr.f32.mxu0 0.0
  %3359 = vmatmul.mubr.f32.gmra.mxu0 %v3263
  %v3360 = vpop.f32.mrf.mxu0
  %v3361 = vadd.f32 %v3249, %v3360
  %v3362 = vpop.f32.mrf.mxu0
  %3363 = vmatprep.mubr.f32.mxu0 0.0
  %3364 = vmatmul.mubr.f32.gmra.mxu0 %v3266
  %v3365 = vpop.f32.mrf.mxu0
  %v3366 = vadd.f32 %v3249, %v3365
  %v3367 = vpop.f32.mrf.mxu0
  %3368 = vmatprep.mubr.f32.mxu0 0.0
  %3369 = vmatmul.mubr.f32.gmra.mxu0 %v3269
  %v3370 = vpop.f32.mrf.mxu0
  %v3371 = vadd.f32 %v3249, %v3370
  %v3372 = vpop.f32.mrf.mxu0
  %3373 = vmatprep.mubr.f32.mxu0 0.0
  %3374 = vmatmul.mubr.f32.gmra.mxu0 %v3272
  %v3375 = vpop.f32.mrf.mxu0
  %v3376 = vadd.f32 %v3249, %v3375
  %v3377 = vpop.f32.mrf.mxu0
  %3378 = vdwg.mxu0
  %v3379 = vmax.f32 %v3341, 0.0
  %v3380 = vmax.f32 %v3346, 0.0
  %v3381 = vmax.f32 %v3351, 0.0
  %v3382 = vmax.f32 %v3356, 0.0
  %v3383 = vmax.f32 %v3361, 0.0
  %v3384 = vmax.f32 %v3366, 0.0
  %v3385 = vmax.f32 %v3371, 0.0
  %v3386 = vmax.f32 %v3376, 0.0
  %v3387 = vlaneseq
  %v3388 = vshrl.u32 %v3387, 7
  %v3389 = vsub.s32 0, %v3388
  %v3390 = vrot.slane %v36, %v3389
  %v3392 = vsel %vm45, %v3379, 0
  %v3395 = vsel %vm45, %v3380, 0
  %v3398 = vsel %vm45, %v3381, 0
  %v3401 = vsel %vm45, %v3382, 0
  %v3404 = vsel %vm45, %v3383, 0
  %v3407 = vsel %vm45, %v3384, 0
  %v3410 = vsel %vm45, %v3385, 0
  %v3413 = vsel %vm45, %v3386, 0
  %3415 = vmatprep.subr.mxu0 0.0
  %3416 = vmatpush1.msra.mxu0 0.0
  %3417 = vmatprep.subr.mxu0 0.0
  %3418 = vmatpush1.msra.mxu0 0.0
  %3419 = vmatprep.subr.mxu0 0.0
  %3420 = vmatpush1.msra.mxu0 0.0
  %3421 = vmatprep.subr.mxu0 0.0
  %3422 = vmatpush1.msra.mxu0 0.0
  %3423 = vmatprep.subr.mxu0 0.0
  %3424 = vmatpush1.msra.mxu0 0.0
  %3425 = vmatprep.subr.mxu0 0.0
  %3426 = vmatpush1.msra.mxu0 0.0
  %3427 = vmatprep.subr.mxu0 0.0
  %3428 = vmatpush1.msra.mxu0 0.0
  %3429 = vmatprep.subr.mxu0 0.0
  %3430 = vmatpush1.msra.mxu0 0.0
  %3431 = vmatprep.subr.mxu0 0.0
  %3432 = vmatpush1.msra.mxu0 0.0
  %3433 = vmatprep.subr.mxu0 0.0
  %3434 = vmatpush1.msra.mxu0 0.0
  %3435 = vmatprep.subr.mxu0 0.0
  %3436 = vmatpush1.msra.mxu0 0.0
  %3437 = vmatprep.subr.mxu0 0.0
  %3438 = vmatpush1.msra.mxu0 0.0
  %3439 = vmatprep.subr.mxu0 0.0
  %3440 = vmatpush1.msra.mxu0 %v35
  %3441 = vmatprep.subr.mxu0 0.0
  %3442 = vmatpush1.msra.mxu0 %v34
  %3443 = vmatprep.subr.mxu0 0.0
  %3444 = vmatpush1.msra.mxu0 %v33
  %3445 = vmatprep.subr.mxu0 0.0
  %3446 = vmatpush1.msra.mxu0 %v32
  %3447 = vmatprep.subr.mxu0 0.0
  %3448 = vmatpush2.msra.mxu0 0.0
  %3449 = vmatprep.subr.mxu0 0.0
  %3450 = vmatpush2.msra.mxu0 0.0
  %3451 = vmatprep.subr.mxu0 0.0
  %3452 = vmatpush2.msra.mxu0 0.0
  %3453 = vmatprep.subr.mxu0 0.0
  %3454 = vmatpush2.msra.mxu0 0.0
  %3455 = vmatprep.subr.mxu0 0.0
  %3456 = vmatpush2.msra.mxu0 0.0
  %3457 = vmatprep.subr.mxu0 0.0
  %3458 = vmatpush2.msra.mxu0 0.0
  %3459 = vmatprep.subr.mxu0 0.0
  %3460 = vmatpush2.msra.mxu0 0.0
  %3461 = vmatprep.subr.mxu0 0.0
  %3462 = vmatpush2.msra.mxu0 0.0
  %3463 = vmatprep.subr.mxu0 0.0
  %3464 = vmatpush2.msra.mxu0 0.0
  %3465 = vmatprep.subr.mxu0 0.0
  %3466 = vmatpush2.msra.mxu0 0.0
  %3467 = vmatprep.subr.mxu0 0.0
  %3468 = vmatpush2.msra.mxu0 0.0
  %3469 = vmatprep.subr.mxu0 0.0
  %3470 = vmatpush2.msra.mxu0 0.0
  %3471 = vmatprep.subr.mxu0 0.0
  %3472 = vmatpush2.msra.mxu0 0.0
  %3473 = vmatprep.subr.mxu0 0.0
  %3474 = vmatpush2.msra.mxu0 0.0
  %3475 = vmatprep.subr.mxu0 0.0
  %3476 = vmatpush2.msra.mxu0 0.0
  %3477 = vmatprep.subr.mxu0 0.0
  %3478 = vmatpush2.msra.mxu0 0.0
  %3479 = vmatprep.mubr.f32.mxu0 0.0
  %3480 = vmatmul.mubr.f32.gmra.mxu0 %v3392
  %v3481 = vpop.f32.mrf.mxu0
  %v3482 = vadd.f32 %v3390, %v3481
  %v3483 = vpop.f32.mrf.mxu0
  %3484 = vmatprep.mubr.f32.mxu0 0.0
  %3485 = vmatmul.mubr.f32.gmra.mxu0 %v3395
  %v3486 = vpop.f32.mrf.mxu0
  %v3487 = vadd.f32 %v3390, %v3486
  %v3488 = vpop.f32.mrf.mxu0
  %3489 = vmatprep.mubr.f32.mxu0 0.0
  %3490 = vmatmul.mubr.f32.gmra.mxu0 %v3398
  %v3491 = vpop.f32.mrf.mxu0
  %v3492 = vadd.f32 %v3390, %v3491
  %v3493 = vpop.f32.mrf.mxu0
  %3494 = vmatprep.mubr.f32.mxu0 0.0
  %3495 = vmatmul.mubr.f32.gmra.mxu0 %v3401
  %v3496 = vpop.f32.mrf.mxu0
  %v3497 = vadd.f32 %v3390, %v3496
  %v3498 = vpop.f32.mrf.mxu0
  %3499 = vmatprep.mubr.f32.mxu0 0.0
  %3500 = vmatmul.mubr.f32.gmra.mxu0 %v3404
  %v3501 = vpop.f32.mrf.mxu0
  %v3502 = vadd.f32 %v3390, %v3501
  %v3503 = vpop.f32.mrf.mxu0
  %3504 = vmatprep.mubr.f32.mxu0 0.0
  %3505 = vmatmul.mubr.f32.gmra.mxu0 %v3407
  %v3506 = vpop.f32.mrf.mxu0
  %v3507 = vadd.f32 %v3390, %v3506
  %v3508 = vpop.f32.mrf.mxu0
  %3509 = vmatprep.mubr.f32.mxu0 0.0
  %3510 = vmatmul.mubr.f32.gmra.mxu0 %v3410
  %v3511 = vpop.f32.mrf.mxu0
  %v3512 = vadd.f32 %v3390, %v3511
  %v3513 = vpop.f32.mrf.mxu0
  %3514 = vmatprep.mubr.f32.mxu0 0.0
  %3515 = vmatmul.mubr.f32.gmra.mxu0 %v3413
  %v3516 = vpop.f32.mrf.mxu0
  %v3517 = vadd.f32 %v3390, %v3516
  %v3518 = vpop.f32.mrf.mxu0
  %3519 = vdwg.mxu0
  %v3520 = vadd.f32 %v3238, %v3482
  %v3521 = vadd.f32 %v3239, %v3487
  %v3522 = vadd.f32 %v3240, %v3492
  %v3523 = vadd.f32 %v3241, %v3497
  %v3524 = vadd.f32 %v3242, %v3502
  %v3525 = vadd.f32 %v3243, %v3507
  %v3526 = vadd.f32 %v3244, %v3512
  %v3527 = vadd.f32 %v3245, %v3517
  %v3528 = vmul.f32 %v3520, %v3520
  %v3529 = vmul.f32 %v3521, %v3521
  %v3530 = vmul.f32 %v3522, %v3522
  %v3531 = vmul.f32 %v3523, %v3523
  %v3532 = vmul.f32 %v3524, %v3524
  %v3533 = vmul.f32 %v3525, %v3525
  %v3534 = vmul.f32 %v3526, %v3526
  %v3535 = vmul.f32 %v3527, %v3527
  %v3536 = vsel %vm45, %v3528, 0.0
  %3537 = vadd.xlane.f32.xlu0 %v3536
  %v3538 = vpop.xlane.xlu0 %3537
  %v3539 = vsel %vm45, %v3529, 0.0
  %3540 = vadd.xlane.f32.xlu0 %v3539
  %v3541 = vpop.xlane.xlu0 %3540
  %v3542 = vsel %vm45, %v3530, 0.0
  %3543 = vadd.xlane.f32.xlu0 %v3542
  %v3544 = vpop.xlane.xlu0 %3543
  %v3545 = vsel %vm45, %v3531, 0.0
  %3546 = vadd.xlane.f32.xlu0 %v3545
  %v3547 = vpop.xlane.xlu0 %3546
  %v3548 = vsel %vm45, %v3532, 0.0
  %3549 = vadd.xlane.f32.xlu0 %v3548
  %v3550 = vpop.xlane.xlu0 %3549
  %v3551 = vsel %vm45, %v3533, 0.0
  %3552 = vadd.xlane.f32.xlu0 %v3551
  %v3553 = vpop.xlane.xlu0 %3552
  %v3554 = vsel %vm45, %v3534, 0.0
  %3555 = vadd.xlane.f32.xlu0 %v3554
  %v3556 = vpop.xlane.xlu0 %3555
  %v3557 = vsel %vm45, %v3535, 0.0
  %3558 = vadd.xlane.f32.xlu0 %v3557
  %v3559 = vpop.xlane.xlu0 %3558
  %v3560 = vmul.f32 %v3538, %v70
  %v3561 = vmul.f32 %v3541, %v70
  %v3562 = vmul.f32 %v3544, %v70
  %v3563 = vmul.f32 %v3547, %v70
  %v3564 = vmul.f32 %v3550, %v70
  %v3565 = vmul.f32 %v3553, %v70
  %v3566 = vmul.f32 %v3556, %v70
  %v3567 = vmul.f32 %v3559, %v70
  %v3568 = vadd.f32 %v3560, 1e-05
  %v3569 = vadd.f32 %v3561, 1e-05
  %v3570 = vadd.f32 %v3562, 1e-05
  %v3571 = vadd.f32 %v3563, 1e-05
  %v3572 = vadd.f32 %v3564, 1e-05
  %v3573 = vadd.f32 %v3565, 1e-05
  %v3574 = vadd.f32 %v3566, 1e-05
  %v3575 = vadd.f32 %v3567, 1e-05
  %v3576 = vrsqrt.pop %v3568
  %v3577 = vrsqrt.pop %v3569
  %v3578 = vrsqrt.pop %v3570
  %v3579 = vrsqrt.pop %v3571
  %v3580 = vrsqrt.pop %v3572
  %v3581 = vrsqrt.pop %v3573
  %v3582 = vrsqrt.pop %v3574
  %v3583 = vrsqrt.pop %v3575
  %v3584 = vmul.f32 %v3520, %v3576
  %v3585 = vmul.f32 %v3521, %v3577
  %v3586 = vmul.f32 %v3522, %v3578
  %v3587 = vmul.f32 %v3523, %v3579
  %v3588 = vmul.f32 %v3524, %v3580
  %v3589 = vmul.f32 %v3525, %v3581
  %v3590 = vmul.f32 %v3526, %v3582
  %v3591 = vmul.f32 %v3527, %v3583
  %v3592 = vlaneseq
  %v3593 = vshrl.u32 %v3592, 7
  %v3594 = vsub.s32 0, %v3593
  %v3595 = vrot.slane %v26, %v3594
  %v3596 = vmul.f32 %v3584, %v3595
  %v3597 = vmul.f32 %v3585, %v3595
  %v3598 = vmul.f32 %v3586, %v3595
  %v3599 = vmul.f32 %v3587, %v3595
  %v3600 = vmul.f32 %v3588, %v3595
  %v3601 = vmul.f32 %v3589, %v3595
  %v3602 = vmul.f32 %v3590, %v3595
  %v3603 = vmul.f32 %v3591, %v3595
  %v3604 = vcombine.low %v3596, %v3598
  %v3605 = vcombine.high %v3596, %v3598
  %v3607 = vunpack.c.l.s4 1983009808
  %v3608 = vunpack.c.0.s8 %v3607
  %v3609 = vlaneseq
  %v3610 = vshrl.u32 %v3609, 7
  %v3611 = vsub.s32 %v3608, %v3610
  %v3612 = vrot.slane %v3604, %v3611
  %v3614 = vunpack.c.l.s4 1983009808
  %v3615 = vunpack.c.0.s8 %v3614
  %v3616 = vlaneseq
  %v3617 = vshrl.u32 %v3616, 7
  %v3618 = vsub.s32 %v3615, %v3617
  %v3619 = vrot.slane %v3605, %v3618
  %v3620 = vcombine.low %v3597, %v3599
  %v3621 = vcombine.high %v3597, %v3599
  %v3623 = vunpack.c.l.s4 1983009808
  %v3624 = vunpack.c.0.s8 %v3623
  %v3625 = vlaneseq
  %v3626 = vshrl.u32 %v3625, 7
  %v3627 = vsub.s32 %v3624, %v3626
  %v3628 = vrot.slane %v3620, %v3627
  %v3630 = vunpack.c.l.s4 1983009808
  %v3631 = vunpack.c.0.s8 %v3630
  %v3632 = vlaneseq
  %v3633 = vshrl.u32 %v3632, 7
  %v3634 = vsub.s32 %v3631, %v3633
  %v3635 = vrot.slane %v3621, %v3634
  %v3636 = vcombine.low %v3600, %v3602
  %v3637 = vcombine.high %v3600, %v3602
  %v3639 = vunpack.c.l.s4 1983009808
  %v3640 = vunpack.c.0.s8 %v3639
  %v3641 = vlaneseq
  %v3642 = vshrl.u32 %v3641, 7
  %v3643 = vsub.s32 %v3640, %v3642
  %v3644 = vrot.slane %v3636, %v3643
  %v3646 = vunpack.c.l.s4 1983009808
  %v3647 = vunpack.c.0.s8 %v3646
  %v3648 = vlaneseq
  %v3649 = vshrl.u32 %v3648, 7
  %v3650 = vsub.s32 %v3647, %v3649
  %v3651 = vrot.slane %v3637, %v3650
  %v3652 = vcombine.low %v3601, %v3603
  %v3653 = vcombine.high %v3601, %v3603
  %v3655 = vunpack.c.l.s4 1983009808
  %v3656 = vunpack.c.0.s8 %v3655
  %v3657 = vlaneseq
  %v3658 = vshrl.u32 %v3657, 7
  %v3659 = vsub.s32 %v3656, %v3658
  %v3660 = vrot.slane %v3652, %v3659
  %v3662 = vunpack.c.l.s4 1983009808
  %v3663 = vunpack.c.0.s8 %v3662
  %v3664 = vlaneseq
  %v3665 = vshrl.u32 %v3664, 7
  %v3666 = vsub.s32 %v3663, %v3665
  %v3667 = vrot.slane %v3653, %v3666
  %v3668 = vcombine.low %v3612, %v3628
  %v3669 = vcombine.high %v3612, %v3628
  %v3671 = vunpack.c.l.s4 1934713408
  %v3672 = vunpack.c.0.s8 %v3671
  %v3673 = vlaneseq
  %v3674 = vshrl.u32 %v3673, 7
  %v3675 = vsub.s32 %v3672, %v3674
  %v3676 = vrot.slane %v3668, %v3675
  %v3678 = vunpack.c.l.s4 1934713408
  %v3679 = vunpack.c.0.s8 %v3678
  %v3680 = vlaneseq
  %v3681 = vshrl.u32 %v3680, 7
  %v3682 = vsub.s32 %v3679, %v3681
  %v3683 = vrot.slane %v3669, %v3682
  %v3684 = vcombine.low %v3619, %v3635
  %v3685 = vcombine.high %v3619, %v3635
  %v3687 = vunpack.c.l.s4 1934713408
  %v3688 = vunpack.c.0.s8 %v3687
  %v3689 = vlaneseq
  %v3690 = vshrl.u32 %v3689, 7
  %v3691 = vsub.s32 %v3688, %v3690
  %v3692 = vrot.slane %v3684, %v3691
  %v3694 = vunpack.c.l.s4 1934713408
  %v3695 = vunpack.c.0.s8 %v3694
  %v3696 = vlaneseq
  %v3697 = vshrl.u32 %v3696, 7
  %v3698 = vsub.s32 %v3695, %v3697
  %v3699 = vrot.slane %v3685, %v3698
  %v3700 = vcombine.low %v3644, %v3660
  %v3701 = vcombine.high %v3644, %v3660
  %v3703 = vunpack.c.l.s4 1934713408
  %v3704 = vunpack.c.0.s8 %v3703
  %v3705 = vlaneseq
  %v3706 = vshrl.u32 %v3705, 7
  %v3707 = vsub.s32 %v3704, %v3706
  %v3708 = vrot.slane %v3700, %v3707
  %v3710 = vunpack.c.l.s4 1934713408
  %v3711 = vunpack.c.0.s8 %v3710
  %v3712 = vlaneseq
  %v3713 = vshrl.u32 %v3712, 7
  %v3714 = vsub.s32 %v3711, %v3713
  %v3715 = vrot.slane %v3701, %v3714
  %v3716 = vcombine.low %v3651, %v3667
  %v3717 = vcombine.high %v3651, %v3667
  %v3719 = vunpack.c.l.s4 1934713408
  %v3720 = vunpack.c.0.s8 %v3719
  %v3721 = vlaneseq
  %v3722 = vshrl.u32 %v3721, 7
  %v3723 = vsub.s32 %v3720, %v3722
  %v3724 = vrot.slane %v3716, %v3723
  %v3726 = vunpack.c.l.s4 1934713408
  %v3727 = vunpack.c.0.s8 %v3726
  %v3728 = vlaneseq
  %v3729 = vshrl.u32 %v3728, 7
  %v3730 = vsub.s32 %v3727, %v3729
  %v3731 = vrot.slane %v3717, %v3730
  %v3732 = vcombine.low %v3676, %v3708
  %v3733 = vcombine.high %v3676, %v3708
  %v3734 = vcombine.low %v3683, %v3715
  %v3735 = vcombine.high %v3683, %v3715
  %v3736 = vcombine.low %v3692, %v3724
  %v3737 = vcombine.high %v3692, %v3724
  %v3738 = vcombine.low %v3699, %v3731
  %v3739 = vcombine.high %v3699, %v3731
  %v3740 = vld [vmem:[%s1 + $0xe0] sm:$0xff]
  %v3741 = vld [vmem:[%s1 + $0xe8] sm:$0xff]
  %v3742 = vld [vmem:[%s1 + $0xf0] sm:$0xff]
  %v3743 = vld [vmem:[%s1 + $0xf8] sm:$0xff]
  %v3745 = vsel %vm45, %v3732, 0
  %v3748 = vsel %vm45, %v3733, 0
  %v3751 = vsel %vm45, %v3734, 0
  %v3754 = vsel %vm45, %v3735, 0
  %v3757 = vsel %vm45, %v3736, 0
  %v3760 = vsel %vm45, %v3737, 0
  %v3763 = vsel %vm45, %v3738, 0
  %v3766 = vsel %vm45, %v3739, 0
  %3768 = vmatprep.subr.mxu0 0.0
  %3769 = vmatpush1.msra.mxu0 0.0
  %3770 = vmatprep.subr.mxu0 0.0
  %3771 = vmatpush1.msra.mxu0 0.0
  %3772 = vmatprep.subr.mxu0 0.0
  %3773 = vmatpush1.msra.mxu0 0.0
  %3774 = vmatprep.subr.mxu0 0.0
  %3775 = vmatpush1.msra.mxu0 0.0
  %3776 = vmatprep.subr.mxu0 0.0
  %3777 = vmatpush1.msra.mxu0 0.0
  %3778 = vmatprep.subr.mxu0 0.0
  %3779 = vmatpush1.msra.mxu0 0.0
  %3780 = vmatprep.subr.mxu0 0.0
  %3781 = vmatpush1.msra.mxu0 0.0
  %3782 = vmatprep.subr.mxu0 0.0
  %3783 = vmatpush1.msra.mxu0 0.0
  %3784 = vmatprep.subr.mxu0 0.0
  %3785 = vmatpush1.msra.mxu0 0.0
  %3786 = vmatprep.subr.mxu0 0.0
  %3787 = vmatpush1.msra.mxu0 0.0
  %3788 = vmatprep.subr.mxu0 0.0
  %3789 = vmatpush1.msra.mxu0 0.0
  %3790 = vmatprep.subr.mxu0 0.0
  %3791 = vmatpush1.msra.mxu0 0.0
  %3792 = vmatprep.subr.mxu0 0.0
  %3793 = vmatpush1.msra.mxu0 %v3743
  %3794 = vmatprep.subr.mxu0 0.0
  %3795 = vmatpush1.msra.mxu0 %v3742
  %3796 = vmatprep.subr.mxu0 0.0
  %3797 = vmatpush1.msra.mxu0 %v3741
  %3798 = vmatprep.subr.mxu0 0.0
  %3799 = vmatpush1.msra.mxu0 %v3740
  %3800 = vmatprep.subr.mxu0 0.0
  %3801 = vmatpush2.msra.mxu0 0.0
  %3802 = vmatprep.subr.mxu0 0.0
  %3803 = vmatpush2.msra.mxu0 0.0
  %3804 = vmatprep.subr.mxu0 0.0
  %3805 = vmatpush2.msra.mxu0 0.0
  %3806 = vmatprep.subr.mxu0 0.0
  %3807 = vmatpush2.msra.mxu0 0.0
  %3808 = vmatprep.subr.mxu0 0.0
  %3809 = vmatpush2.msra.mxu0 0.0
  %3810 = vmatprep.subr.mxu0 0.0
  %3811 = vmatpush2.msra.mxu0 0.0
  %3812 = vmatprep.subr.mxu0 0.0
  %3813 = vmatpush2.msra.mxu0 0.0
  %3814 = vmatprep.subr.mxu0 0.0
  %3815 = vmatpush2.msra.mxu0 0.0
  %3816 = vmatprep.subr.mxu0 0.0
  %3817 = vmatpush2.msra.mxu0 0.0
  %3818 = vmatprep.subr.mxu0 0.0
  %3819 = vmatpush2.msra.mxu0 0.0
  %3820 = vmatprep.subr.mxu0 0.0
  %3821 = vmatpush2.msra.mxu0 0.0
  %3822 = vmatprep.subr.mxu0 0.0
  %3823 = vmatpush2.msra.mxu0 0.0
  %3824 = vmatprep.subr.mxu0 0.0
  %3825 = vmatpush2.msra.mxu0 0.0
  %3826 = vmatprep.subr.mxu0 0.0
  %3827 = vmatpush2.msra.mxu0 0.0
  %3828 = vmatprep.subr.mxu0 0.0
  %3829 = vmatpush2.msra.mxu0 0.0
  %3830 = vmatprep.subr.mxu0 0.0
  %3831 = vmatpush2.msra.mxu0 0.0
  %3832 = vmatprep.mubr.f32.mxu0 0.0
  %3833 = vmatmul.mubr.f32.gmra.mxu0 %v3745
  %v3834 = vpop.f32.mrf.mxu0
  %v3835 = vadd.f32 0.0, %v3834
  %v3836 = vpop.f32.mrf.mxu0
  %3837 = vmatprep.mubr.f32.mxu0 0.0
  %3838 = vmatmul.mubr.f32.gmra.mxu0 %v3748
  %v3839 = vpop.f32.mrf.mxu0
  %v3840 = vadd.f32 0.0, %v3839
  %v3841 = vpop.f32.mrf.mxu0
  %3842 = vmatprep.mubr.f32.mxu0 0.0
  %3843 = vmatmul.mubr.f32.gmra.mxu0 %v3751
  %v3844 = vpop.f32.mrf.mxu0
  %v3845 = vadd.f32 0.0, %v3844
  %v3846 = vpop.f32.mrf.mxu0
  %3847 = vmatprep.mubr.f32.mxu0 0.0
  %3848 = vmatmul.mubr.f32.gmra.mxu0 %v3754
  %v3849 = vpop.f32.mrf.mxu0
  %v3850 = vadd.f32 0.0, %v3849
  %v3851 = vpop.f32.mrf.mxu0
  %3852 = vmatprep.mubr.f32.mxu0 0.0
  %3853 = vmatmul.mubr.f32.gmra.mxu0 %v3757
  %v3854 = vpop.f32.mrf.mxu0
  %v3855 = vadd.f32 0.0, %v3854
  %v3856 = vpop.f32.mrf.mxu0
  %3857 = vmatprep.mubr.f32.mxu0 0.0
  %3858 = vmatmul.mubr.f32.gmra.mxu0 %v3760
  %v3859 = vpop.f32.mrf.mxu0
  %v3860 = vadd.f32 0.0, %v3859
  %v3861 = vpop.f32.mrf.mxu0
  %3862 = vmatprep.mubr.f32.mxu0 0.0
  %3863 = vmatmul.mubr.f32.gmra.mxu0 %v3763
  %v3864 = vpop.f32.mrf.mxu0
  %v3865 = vadd.f32 0.0, %v3864
  %v3866 = vpop.f32.mrf.mxu0
  %3867 = vmatprep.mubr.f32.mxu0 0.0
  %3868 = vmatmul.mubr.f32.gmra.mxu0 %v3766
  %v3869 = vpop.f32.mrf.mxu0
  %v3870 = vadd.f32 0.0, %v3869
  %v3871 = vpop.f32.mrf.mxu0
  %3872 = vdwg.mxu0
  %v3874 = vrot.slane %v3835, 7
  %v3875 = vsel %vm45, %v3874, 0
  %v3877 = vsel %vm45, %v3835, 0
  %3879 = vmatprep.subr.mxu0 0.0
  %3880 = vmatpush1.xpose.msra.mxu0 0.0
  %3881 = vmatprep.subr.mxu0 0.0
  %3882 = vmatpush1.xpose.msra.mxu0 0.0
  %3883 = vmatprep.subr.mxu0 0.0
  %3884 = vmatpush1.xpose.msra.mxu0 0.0
  %3885 = vmatprep.subr.mxu0 0.0
  %3886 = vmatpush1.xpose.msra.mxu0 0.0
  %3887 = vmatprep.subr.mxu0 0.0
  %3888 = vmatpush1.xpose.msra.mxu0 0.0
  %3889 = vmatprep.subr.mxu0 0.0
  %3890 = vmatpush1.xpose.msra.mxu0 0.0
  %3891 = vmatprep.subr.mxu0 0.0
  %3892 = vmatpush1.xpose.msra.mxu0 0.0
  %3893 = vmatprep.subr.mxu0 0.0
  %3894 = vmatpush1.xpose.msra.mxu0 0.0
  %3895 = vmatprep.subr.mxu0 0.0
  %3896 = vmatpush1.xpose.msra.mxu0 0.0
  %3897 = vmatprep.subr.mxu0 0.0
  %3898 = vmatpush1.xpose.msra.mxu0 0.0
  %3899 = vmatprep.subr.mxu0 0.0
  %3900 = vmatpush1.xpose.msra.mxu0 0.0
  %3901 = vmatprep.subr.mxu0 0.0
  %3902 = vmatpush1.xpose.msra.mxu0 0.0
  %3903 = vmatprep.subr.mxu0 0.0
  %3904 = vmatpush1.xpose.msra.mxu0 0.0
  %3905 = vmatprep.subr.mxu0 0.0
  %3906 = vmatpush1.xpose.msra.mxu0 0.0
  %3907 = vmatprep.subr.mxu0 0.0
  %3908 = vmatpush1.xpose.msra.mxu0 0.0
  %3909 = vmatprep.subr.mxu0 0.0
  %3910 = vmatpush1.xpose.msra.mxu0 %v3877
  %3911 = vmatprep.subr.mxu0 0.0
  %3912 = vmatpush2.xpose.msra.mxu0 0.0
  %3913 = vmatprep.subr.mxu0 0.0
  %3914 = vmatpush2.xpose.msra.mxu0 0.0
  %3915 = vmatprep.subr.mxu0 0.0
  %3916 = vmatpush2.xpose.msra.mxu0 0.0
  %3917 = vmatprep.subr.mxu0 0.0
  %3918 = vmatpush2.xpose.msra.mxu0 0.0
  %3919 = vmatprep.subr.mxu0 0.0
  %3920 = vmatpush2.xpose.msra.mxu0 0.0
  %3921 = vmatprep.subr.mxu0 0.0
  %3922 = vmatpush2.xpose.msra.mxu0 0.0
  %3923 = vmatprep.subr.mxu0 0.0
  %3924 = vmatpush2.xpose.msra.mxu0 0.0
  %3925 = vmatprep.subr.mxu0 0.0
  %3926 = vmatpush2.xpose.msra.mxu0 0.0
  %3927 = vmatprep.subr.mxu0 0.0
  %3928 = vmatpush2.xpose.msra.mxu0 0.0
  %3929 = vmatprep.subr.mxu0 0.0
  %3930 = vmatpush2.xpose.msra.mxu0 0.0
  %3931 = vmatprep.subr.mxu0 0.0
  %3932 = vmatpush2.xpose.msra.mxu0 0.0
  %3933 = vmatprep.subr.mxu0 0.0
  %3934 = vmatpush2.xpose.msra.mxu0 0.0
  %3935 = vmatprep.subr.mxu0 0.0
  %3936 = vmatpush2.xpose.msra.mxu0 0.0
  %3937 = vmatprep.subr.mxu0 0.0
  %3938 = vmatpush2.xpose.msra.mxu0 0.0
  %3939 = vmatprep.subr.mxu0 0.0
  %3940 = vmatpush2.xpose.msra.mxu0 0.0
  %3941 = vmatprep.subr.mxu0 0.0
  %3942 = vmatpush2.xpose.msra.mxu0 0.0
  %3943 = vmatprep.mubr.f32.mxu0 0.0
  %3944 = vmatmul.mubr.f32.gmra.mxu0 %v3875
  %v3945 = vpop.f32.mrf.mxu0
  %v3946 = vadd.f32 0.0, %v3945
  %v3947 = vpop.f32.mrf.mxu0
  %3948 = vdwg.mxu0
  %v3950 = vrot.slane %v3840, 7
  %v3951 = vsel %vm45, %v3950, 0
  %v3953 = vsel %vm45, %v3840, 0
  %3955 = vmatprep.subr.mxu0 0.0
  %3956 = vmatpush1.xpose.msra.mxu0 0.0
  %3957 = vmatprep.subr.mxu0 0.0
  %3958 = vmatpush1.xpose.msra.mxu0 0.0
  %3959 = vmatprep.subr.mxu0 0.0
  %3960 = vmatpush1.xpose.msra.mxu0 0.0
  %3961 = vmatprep.subr.mxu0 0.0
  %3962 = vmatpush1.xpose.msra.mxu0 0.0
  %3963 = vmatprep.subr.mxu0 0.0
  %3964 = vmatpush1.xpose.msra.mxu0 0.0
  %3965 = vmatprep.subr.mxu0 0.0
  %3966 = vmatpush1.xpose.msra.mxu0 0.0
  %3967 = vmatprep.subr.mxu0 0.0
  %3968 = vmatpush1.xpose.msra.mxu0 0.0
  %3969 = vmatprep.subr.mxu0 0.0
  %3970 = vmatpush1.xpose.msra.mxu0 0.0
  %3971 = vmatprep.subr.mxu0 0.0
  %3972 = vmatpush1.xpose.msra.mxu0 0.0
  %3973 = vmatprep.subr.mxu0 0.0
  %3974 = vmatpush1.xpose.msra.mxu0 0.0
  %3975 = vmatprep.subr.mxu0 0.0
  %3976 = vmatpush1.xpose.msra.mxu0 0.0
  %3977 = vmatprep.subr.mxu0 0.0
  %3978 = vmatpush1.xpose.msra.mxu0 0.0
  %3979 = vmatprep.subr.mxu0 0.0
  %3980 = vmatpush1.xpose.msra.mxu0 0.0
  %3981 = vmatprep.subr.mxu0 0.0
  %3982 = vmatpush1.xpose.msra.mxu0 0.0
  %3983 = vmatprep.subr.mxu0 0.0
  %3984 = vmatpush1.xpose.msra.mxu0 0.0
  %3985 = vmatprep.subr.mxu0 0.0
  %3986 = vmatpush1.xpose.msra.mxu0 %v3953
  %3987 = vmatprep.subr.mxu0 0.0
  %3988 = vmatpush2.xpose.msra.mxu0 0.0
  %3989 = vmatprep.subr.mxu0 0.0
  %3990 = vmatpush2.xpose.msra.mxu0 0.0
  %3991 = vmatprep.subr.mxu0 0.0
  %3992 = vmatpush2.xpose.msra.mxu0 0.0
  %3993 = vmatprep.subr.mxu0 0.0
  %3994 = vmatpush2.xpose.msra.mxu0 0.0
  %3995 = vmatprep.subr.mxu0 0.0
  %3996 = vmatpush2.xpose.msra.mxu0 0.0
  %3997 = vmatprep.subr.mxu0 0.0
  %3998 = vmatpush2.xpose.msra.mxu0 0.0
  %3999 = vmatprep.subr.mxu0 0.0
  %4000 = vmatpush2.xpose.msra.mxu0 0.0
  %4001 = vmatprep.subr.mxu0 0.0
  %4002 = vmatpush2.xpose.msra.mxu0 0.0
  %4003 = vmatprep.subr.mxu0 0.0
  %4004 = vmatpush2.xpose.msra.mxu0 0.0
  %4005 = vmatprep.subr.mxu0 0.0
  %4006 = vmatpush2.xpose.msra.mxu0 0.0
  %4007 = vmatprep.subr.mxu0 0.0
  %4008 = vmatpush2.xpose.msra.mxu0 0.0
  %4009 = vmatprep.subr.mxu0 0.0
  %4010 = vmatpush2.xpose.msra.mxu0 0.0
  %4011 = vmatprep.subr.mxu0 0.0
  %4012 = vmatpush2.xpose.msra.mxu0 0.0
  %4013 = vmatprep.subr.mxu0 0.0
  %4014 = vmatpush2.xpose.msra.mxu0 0.0
  %4015 = vmatprep.subr.mxu0 0.0
  %4016 = vmatpush2.xpose.msra.mxu0 0.0
  %4017 = vmatprep.subr.mxu0 0.0
  %4018 = vmatpush2.xpose.msra.mxu0 0.0
  %4019 = vmatprep.mubr.f32.mxu0 0.0
  %4020 = vmatmul.mubr.f32.gmra.mxu0 %v3951
  %v4021 = vpop.f32.mrf.mxu0
  %v4022 = vadd.f32 0.0, %v4021
  %v4023 = vpop.f32.mrf.mxu0
  %4024 = vdwg.mxu0
  %v4026 = vrot.slane %v3845, 7
  %v4027 = vsel %vm45, %v4026, 0
  %v4029 = vsel %vm45, %v3845, 0
  %4031 = vmatprep.subr.mxu0 0.0
  %4032 = vmatpush1.xpose.msra.mxu0 0.0
  %4033 = vmatprep.subr.mxu0 0.0
  %4034 = vmatpush1.xpose.msra.mxu0 0.0
  %4035 = vmatprep.subr.mxu0 0.0
  %4036 = vmatpush1.xpose.msra.mxu0 0.0
  %4037 = vmatprep.subr.mxu0 0.0
  %4038 = vmatpush1.xpose.msra.mxu0 0.0
  %4039 = vmatprep.subr.mxu0 0.0
  %4040 = vmatpush1.xpose.msra.mxu0 0.0
  %4041 = vmatprep.subr.mxu0 0.0
  %4042 = vmatpush1.xpose.msra.mxu0 0.0
  %4043 = vmatprep.subr.mxu0 0.0
  %4044 = vmatpush1.xpose.msra.mxu0 0.0
  %4045 = vmatprep.subr.mxu0 0.0
  %4046 = vmatpush1.xpose.msra.mxu0 0.0
  %4047 = vmatprep.subr.mxu0 0.0
  %4048 = vmatpush1.xpose.msra.mxu0 0.0
  %4049 = vmatprep.subr.mxu0 0.0
  %4050 = vmatpush1.xpose.msra.mxu0 0.0
  %4051 = vmatprep.subr.mxu0 0.0
  %4052 = vmatpush1.xpose.msra.mxu0 0.0
  %4053 = vmatprep.subr.mxu0 0.0
  %4054 = vmatpush1.xpose.msra.mxu0 0.0
  %4055 = vmatprep.subr.mxu0 0.0
  %4056 = vmatpush1.xpose.msra.mxu0 0.0
  %4057 = vmatprep.subr.mxu0 0.0
  %4058 = vmatpush1.xpose.msra.mxu0 0.0
  %4059 = vmatprep.subr.mxu0 0.0
  %4060 = vmatpush1.xpose.msra.mxu0 0.0
  %4061 = vmatprep.subr.mxu0 0.0
  %4062 = vmatpush1.xpose.msra.mxu0 %v4029
  %4063 = vmatprep.subr.mxu0 0.0
  %4064 = vmatpush2.xpose.msra.mxu0 0.0
  %4065 = vmatprep.subr.mxu0 0.0
  %4066 = vmatpush2.xpose.msra.mxu0 0.0
  %4067 = vmatprep.subr.mxu0 0.0
  %4068 = vmatpush2.xpose.msra.mxu0 0.0
  %4069 = vmatprep.subr.mxu0 0.0
  %4070 = vmatpush2.xpose.msra.mxu0 0.0
  %4071 = vmatprep.subr.mxu0 0.0
  %4072 = vmatpush2.xpose.msra.mxu0 0.0
  %4073 = vmatprep.subr.mxu0 0.0
  %4074 = vmatpush2.xpose.msra.mxu0 0.0
  %4075 = vmatprep.subr.mxu0 0.0
  %4076 = vmatpush2.xpose.msra.mxu0 0.0
  %4077 = vmatprep.subr.mxu0 0.0
  %4078 = vmatpush2.xpose.msra.mxu0 0.0
  %4079 = vmatprep.subr.mxu0 0.0
  %4080 = vmatpush2.xpose.msra.mxu0 0.0
  %4081 = vmatprep.subr.mxu0 0.0
  %4082 = vmatpush2.xpose.msra.mxu0 0.0
  %4083 = vmatprep.subr.mxu0 0.0
  %4084 = vmatpush2.xpose.msra.mxu0 0.0
  %4085 = vmatprep.subr.mxu0 0.0
  %4086 = vmatpush2.xpose.msra.mxu0 0.0
  %4087 = vmatprep.subr.mxu0 0.0
  %4088 = vmatpush2.xpose.msra.mxu0 0.0
  %4089 = vmatprep.subr.mxu0 0.0
  %4090 = vmatpush2.xpose.msra.mxu0 0.0
  %4091 = vmatprep.subr.mxu0 0.0
  %4092 = vmatpush2.xpose.msra.mxu0 0.0
  %4093 = vmatprep.subr.mxu0 0.0
  %4094 = vmatpush2.xpose.msra.mxu0 0.0
  %4095 = vmatprep.mubr.f32.mxu0 0.0
  %4096 = vmatmul.mubr.f32.gmra.mxu0 %v4027
  %v4097 = vpop.f32.mrf.mxu0
  %v4098 = vadd.f32 0.0, %v4097
  %v4099 = vpop.f32.mrf.mxu0
  %4100 = vdwg.mxu0
  %v4102 = vrot.slane %v3850, 7
  %v4103 = vsel %vm45, %v4102, 0
  %v4105 = vsel %vm45, %v3850, 0
  %4107 = vmatprep.subr.mxu0 0.0
  %4108 = vmatpush1.xpose.msra.mxu0 0.0
  %4109 = vmatprep.subr.mxu0 0.0
  %4110 = vmatpush1.xpose.msra.mxu0 0.0
  %4111 = vmatprep.subr.mxu0 0.0
  %4112 = vmatpush1.xpose.msra.mxu0 0.0
  %4113 = vmatprep.subr.mxu0 0.0
  %4114 = vmatpush1.xpose.msra.mxu0 0.0
  %4115 = vmatprep.subr.mxu0 0.0
  %4116 = vmatpush1.xpose.msra.mxu0 0.0
  %4117 = vmatprep.subr.mxu0 0.0
  %4118 = vmatpush1.xpose.msra.mxu0 0.0
  %4119 = vmatprep.subr.mxu0 0.0
  %4120 = vmatpush1.xpose.msra.mxu0 0.0
  %4121 = vmatprep.subr.mxu0 0.0
  %4122 = vmatpush1.xpose.msra.mxu0 0.0
  %4123 = vmatprep.subr.mxu0 0.0
  %4124 = vmatpush1.xpose.msra.mxu0 0.0
  %4125 = vmatprep.subr.mxu0 0.0
  %4126 = vmatpush1.xpose.msra.mxu0 0.0
  %4127 = vmatprep.subr.mxu0 0.0
  %4128 = vmatpush1.xpose.msra.mxu0 0.0
  %4129 = vmatprep.subr.mxu0 0.0
  %4130 = vmatpush1.xpose.msra.mxu0 0.0
  %4131 = vmatprep.subr.mxu0 0.0
  %4132 = vmatpush1.xpose.msra.mxu0 0.0
  %4133 = vmatprep.subr.mxu0 0.0
  %4134 = vmatpush1.xpose.msra.mxu0 0.0
  %4135 = vmatprep.subr.mxu0 0.0
  %4136 = vmatpush1.xpose.msra.mxu0 0.0
  %4137 = vmatprep.subr.mxu0 0.0
  %4138 = vmatpush1.xpose.msra.mxu0 %v4105
  %4139 = vmatprep.subr.mxu0 0.0
  %4140 = vmatpush2.xpose.msra.mxu0 0.0
  %4141 = vmatprep.subr.mxu0 0.0
  %4142 = vmatpush2.xpose.msra.mxu0 0.0
  %4143 = vmatprep.subr.mxu0 0.0
  %4144 = vmatpush2.xpose.msra.mxu0 0.0
  %4145 = vmatprep.subr.mxu0 0.0
  %4146 = vmatpush2.xpose.msra.mxu0 0.0
  %4147 = vmatprep.subr.mxu0 0.0
  %4148 = vmatpush2.xpose.msra.mxu0 0.0
  %4149 = vmatprep.subr.mxu0 0.0
  %4150 = vmatpush2.xpose.msra.mxu0 0.0
  %4151 = vmatprep.subr.mxu0 0.0
  %4152 = vmatpush2.xpose.msra.mxu0 0.0
  %4153 = vmatprep.subr.mxu0 0.0
  %4154 = vmatpush2.xpose.msra.mxu0 0.0
  %4155 = vmatprep.subr.mxu0 0.0
  %4156 = vmatpush2.xpose.msra.mxu0 0.0
  %4157 = vmatprep.subr.mxu0 0.0
  %4158 = vmatpush2.xpose.msra.mxu0 0.0
  %4159 = vmatprep.subr.mxu0 0.0
  %4160 = vmatpush2.xpose.msra.mxu0 0.0
  %4161 = vmatprep.subr.mxu0 0.0
  %4162 = vmatpush2.xpose.msra.mxu0 0.0
  %4163 = vmatprep.subr.mxu0 0.0
  %4164 = vmatpush2.xpose.msra.mxu0 0.0
  %4165 = vmatprep.subr.mxu0 0.0
  %4166 = vmatpush2.xpose.msra.mxu0 0.0
  %4167 = vmatprep.subr.mxu0 0.0
  %4168 = vmatpush2.xpose.msra.mxu0 0.0
  %4169 = vmatprep.subr.mxu0 0.0
  %4170 = vmatpush2.xpose.msra.mxu0 0.0
  %4171 = vmatprep.mubr.f32.mxu0 0.0
  %4172 = vmatmul.mubr.f32.gmra.mxu0 %v4103
  %v4173 = vpop.f32.mrf.mxu0
  %v4174 = vadd.f32 0.0, %v4173
  %v4175 = vpop.f32.mrf.mxu0
  %4176 = vdwg.mxu0
  %v4178 = vrot.slane %v3855, 7
  %v4179 = vsel %vm45, %v4178, 0
  %v4181 = vsel %vm45, %v3855, 0
  %4183 = vmatprep.subr.mxu0 0.0
  %4184 = vmatpush1.xpose.msra.mxu0 0.0
  %4185 = vmatprep.subr.mxu0 0.0
  %4186 = vmatpush1.xpose.msra.mxu0 0.0
  %4187 = vmatprep.subr.mxu0 0.0
  %4188 = vmatpush1.xpose.msra.mxu0 0.0
  %4189 = vmatprep.subr.mxu0 0.0
  %4190 = vmatpush1.xpose.msra.mxu0 0.0
  %4191 = vmatprep.subr.mxu0 0.0
  %4192 = vmatpush1.xpose.msra.mxu0 0.0
  %4193 = vmatprep.subr.mxu0 0.0
  %4194 = vmatpush1.xpose.msra.mxu0 0.0
  %4195 = vmatprep.subr.mxu0 0.0
  %4196 = vmatpush1.xpose.msra.mxu0 0.0
  %4197 = vmatprep.subr.mxu0 0.0
  %4198 = vmatpush1.xpose.msra.mxu0 0.0
  %4199 = vmatprep.subr.mxu0 0.0
  %4200 = vmatpush1.xpose.msra.mxu0 0.0
  %4201 = vmatprep.subr.mxu0 0.0
  %4202 = vmatpush1.xpose.msra.mxu0 0.0
  %4203 = vmatprep.subr.mxu0 0.0
  %4204 = vmatpush1.xpose.msra.mxu0 0.0
  %4205 = vmatprep.subr.mxu0 0.0
  %4206 = vmatpush1.xpose.msra.mxu0 0.0
  %4207 = vmatprep.subr.mxu0 0.0
  %4208 = vmatpush1.xpose.msra.mxu0 0.0
  %4209 = vmatprep.subr.mxu0 0.0
  %4210 = vmatpush1.xpose.msra.mxu0 0.0
  %4211 = vmatprep.subr.mxu0 0.0
  %4212 = vmatpush1.xpose.msra.mxu0 0.0
  %4213 = vmatprep.subr.mxu0 0.0
  %4214 = vmatpush1.xpose.msra.mxu0 %v4181
  %4215 = vmatprep.subr.mxu0 0.0
  %4216 = vmatpush2.xpose.msra.mxu0 0.0
  %4217 = vmatprep.subr.mxu0 0.0
  %4218 = vmatpush2.xpose.msra.mxu0 0.0
  %4219 = vmatprep.subr.mxu0 0.0
  %4220 = vmatpush2.xpose.msra.mxu0 0.0
  %4221 = vmatprep.subr.mxu0 0.0
  %4222 = vmatpush2.xpose.msra.mxu0 0.0
  %4223 = vmatprep.subr.mxu0 0.0
  %4224 = vmatpush2.xpose.msra.mxu0 0.0
  %4225 = vmatprep.subr.mxu0 0.0
  %4226 = vmatpush2.xpose.msra.mxu0 0.0
  %4227 = vmatprep.subr.mxu0 0.0
  %4228 = vmatpush2.xpose.msra.mxu0 0.0
  %4229 = vmatprep.subr.mxu0 0.0
  %4230 = vmatpush2.xpose.msra.mxu0 0.0
  %4231 = vmatprep.subr.mxu0 0.0
  %4232 = vmatpush2.xpose.msra.mxu0 0.0
  %4233 = vmatprep.subr.mxu0 0.0
  %4234 = vmatpush2.xpose.msra.mxu0 0.0
  %4235 = vmatprep.subr.mxu0 0.0
  %4236 = vmatpush2.xpose.msra.mxu0 0.0
  %4237 = vmatprep.subr.mxu0 0.0
  %4238 = vmatpush2.xpose.msra.mxu0 0.0
  %4239 = vmatprep.subr.mxu0 0.0
  %4240 = vmatpush2.xpose.msra.mxu0 0.0
  %4241 = vmatprep.subr.mxu0 0.0
  %4242 = vmatpush2.xpose.msra.mxu0 0.0
  %4243 = vmatprep.subr.mxu0 0.0
  %4244 = vmatpush2.xpose.msra.mxu0 0.0
  %4245 = vmatprep.subr.mxu0 0.0
  %4246 = vmatpush2.xpose.msra.mxu0 0.0
  %4247 = vmatprep.mubr.f32.mxu0 0.0
  %4248 = vmatmul.mubr.f32.gmra.mxu0 %v4179
  %v4249 = vpop.f32.mrf.mxu0
  %v4250 = vadd.f32 0.0, %v4249
  %v4251 = vpop.f32.mrf.mxu0
  %4252 = vdwg.mxu0
  %v4254 = vrot.slane %v3860, 7
  %v4255 = vsel %vm45, %v4254, 0
  %v4257 = vsel %vm45, %v3860, 0
  %4259 = vmatprep.subr.mxu0 0.0
  %4260 = vmatpush1.xpose.msra.mxu0 0.0
  %4261 = vmatprep.subr.mxu0 0.0
  %4262 = vmatpush1.xpose.msra.mxu0 0.0
  %4263 = vmatprep.subr.mxu0 0.0
  %4264 = vmatpush1.xpose.msra.mxu0 0.0
  %4265 = vmatprep.subr.mxu0 0.0
  %4266 = vmatpush1.xpose.msra.mxu0 0.0
  %4267 = vmatprep.subr.mxu0 0.0
  %4268 = vmatpush1.xpose.msra.mxu0 0.0
  %4269 = vmatprep.subr.mxu0 0.0
  %4270 = vmatpush1.xpose.msra.mxu0 0.0
  %4271 = vmatprep.subr.mxu0 0.0
  %4272 = vmatpush1.xpose.msra.mxu0 0.0
  %4273 = vmatprep.subr.mxu0 0.0
  %4274 = vmatpush1.xpose.msra.mxu0 0.0
  %4275 = vmatprep.subr.mxu0 0.0
  %4276 = vmatpush1.xpose.msra.mxu0 0.0
  %4277 = vmatprep.subr.mxu0 0.0
  %4278 = vmatpush1.xpose.msra.mxu0 0.0
  %4279 = vmatprep.subr.mxu0 0.0
  %4280 = vmatpush1.xpose.msra.mxu0 0.0
  %4281 = vmatprep.subr.mxu0 0.0
  %4282 = vmatpush1.xpose.msra.mxu0 0.0
  %4283 = vmatprep.subr.mxu0 0.0
  %4284 = vmatpush1.xpose.msra.mxu0 0.0
  %4285 = vmatprep.subr.mxu0 0.0
  %4286 = vmatpush1.xpose.msra.mxu0 0.0
  %4287 = vmatprep.subr.mxu0 0.0
  %4288 = vmatpush1.xpose.msra.mxu0 0.0
  %4289 = vmatprep.subr.mxu0 0.0
  %4290 = vmatpush1.xpose.msra.mxu0 %v4257
  %4291 = vmatprep.subr.mxu0 0.0
  %4292 = vmatpush2.xpose.msra.mxu0 0.0
  %4293 = vmatprep.subr.mxu0 0.0
  %4294 = vmatpush2.xpose.msra.mxu0 0.0
  %4295 = vmatprep.subr.mxu0 0.0
  %4296 = vmatpush2.xpose.msra.mxu0 0.0
  %4297 = vmatprep.subr.mxu0 0.0
  %4298 = vmatpush2.xpose.msra.mxu0 0.0
  %4299 = vmatprep.subr.mxu0 0.0
  %4300 = vmatpush2.xpose.msra.mxu0 0.0
  %4301 = vmatprep.subr.mxu0 0.0
  %4302 = vmatpush2.xpose.msra.mxu0 0.0
  %4303 = vmatprep.subr.mxu0 0.0
  %4304 = vmatpush2.xpose.msra.mxu0 0.0
  %4305 = vmatprep.subr.mxu0 0.0
  %4306 = vmatpush2.xpose.msra.mxu0 0.0
  %4307 = vmatprep.subr.mxu0 0.0
  %4308 = vmatpush2.xpose.msra.mxu0 0.0
  %4309 = vmatprep.subr.mxu0 0.0
  %4310 = vmatpush2.xpose.msra.mxu0 0.0
  %4311 = vmatprep.subr.mxu0 0.0
  %4312 = vmatpush2.xpose.msra.mxu0 0.0
  %4313 = vmatprep.subr.mxu0 0.0
  %4314 = vmatpush2.xpose.msra.mxu0 0.0
  %4315 = vmatprep.subr.mxu0 0.0
  %4316 = vmatpush2.xpose.msra.mxu0 0.0
  %4317 = vmatprep.subr.mxu0 0.0
  %4318 = vmatpush2.xpose.msra.mxu0 0.0
  %4319 = vmatprep.subr.mxu0 0.0
  %4320 = vmatpush2.xpose.msra.mxu0 0.0
  %4321 = vmatprep.subr.mxu0 0.0
  %4322 = vmatpush2.xpose.msra.mxu0 0.0
  %4323 = vmatprep.mubr.f32.mxu0 0.0
  %4324 = vmatmul.mubr.f32.gmra.mxu0 %v4255
  %v4325 = vpop.f32.mrf.mxu0
  %v4326 = vadd.f32 0.0, %v4325
  %v4327 = vpop.f32.mrf.mxu0
  %4328 = vdwg.mxu0
  %v4330 = vrot.slane %v3865, 7
  %v4331 = vsel %vm45, %v4330, 0
  %v4333 = vsel %vm45, %v3865, 0
  %4335 = vmatprep.subr.mxu0 0.0
  %4336 = vmatpush1.xpose.msra.mxu0 0.0
  %4337 = vmatprep.subr.mxu0 0.0
  %4338 = vmatpush1.xpose.msra.mxu0 0.0
  %4339 = vmatprep.subr.mxu0 0.0
  %4340 = vmatpush1.xpose.msra.mxu0 0.0
  %4341 = vmatprep.subr.mxu0 0.0
  %4342 = vmatpush1.xpose.msra.mxu0 0.0
  %4343 = vmatprep.subr.mxu0 0.0
  %4344 = vmatpush1.xpose.msra.mxu0 0.0
  %4345 = vmatprep.subr.mxu0 0.0
  %4346 = vmatpush1.xpose.msra.mxu0 0.0
  %4347 = vmatprep.subr.mxu0 0.0
  %4348 = vmatpush1.xpose.msra.mxu0 0.0
  %4349 = vmatprep.subr.mxu0 0.0
  %4350 = vmatpush1.xpose.msra.mxu0 0.0
  %4351 = vmatprep.subr.mxu0 0.0
  %4352 = vmatpush1.xpose.msra.mxu0 0.0
  %4353 = vmatprep.subr.mxu0 0.0
  %4354 = vmatpush1.xpose.msra.mxu0 0.0
  %4355 = vmatprep.subr.mxu0 0.0
  %4356 = vmatpush1.xpose.msra.mxu0 0.0
  %4357 = vmatprep.subr.mxu0 0.0
  %4358 = vmatpush1.xpose.msra.mxu0 0.0
  %4359 = vmatprep.subr.mxu0 0.0
  %4360 = vmatpush1.xpose.msra.mxu0 0.0
  %4361 = vmatprep.subr.mxu0 0.0
  %4362 = vmatpush1.xpose.msra.mxu0 0.0
  %4363 = vmatprep.subr.mxu0 0.0
  %4364 = vmatpush1.xpose.msra.mxu0 0.0
  %4365 = vmatprep.subr.mxu0 0.0
  %4366 = vmatpush1.xpose.msra.mxu0 %v4333
  %4367 = vmatprep.subr.mxu0 0.0
  %4368 = vmatpush2.xpose.msra.mxu0 0.0
  %4369 = vmatprep.subr.mxu0 0.0
  %4370 = vmatpush2.xpose.msra.mxu0 0.0
  %4371 = vmatprep.subr.mxu0 0.0
  %4372 = vmatpush2.xpose.msra.mxu0 0.0
  %4373 = vmatprep.subr.mxu0 0.0
  %4374 = vmatpush2.xpose.msra.mxu0 0.0
  %4375 = vmatprep.subr.mxu0 0.0
  %4376 = vmatpush2.xpose.msra.mxu0 0.0
  %4377 = vmatprep.subr.mxu0 0.0
  %4378 = vmatpush2.xpose.msra.mxu0 0.0
  %4379 = vmatprep.subr.mxu0 0.0
  %4380 = vmatpush2.xpose.msra.mxu0 0.0
  %4381 = vmatprep.subr.mxu0 0.0
  %4382 = vmatpush2.xpose.msra.mxu0 0.0
  %4383 = vmatprep.subr.mxu0 0.0
  %4384 = vmatpush2.xpose.msra.mxu0 0.0
  %4385 = vmatprep.subr.mxu0 0.0
  %4386 = vmatpush2.xpose.msra.mxu0 0.0
  %4387 = vmatprep.subr.mxu0 0.0
  %4388 = vmatpush2.xpose.msra.mxu0 0.0
  %4389 = vmatprep.subr.mxu0 0.0
  %4390 = vmatpush2.xpose.msra.mxu0 0.0
  %4391 = vmatprep.subr.mxu0 0.0
  %4392 = vmatpush2.xpose.msra.mxu0 0.0
  %4393 = vmatprep.subr.mxu0 0.0
  %4394 = vmatpush2.xpose.msra.mxu0 0.0
  %4395 = vmatprep.subr.mxu0 0.0
  %4396 = vmatpush2.xpose.msra.mxu0 0.0
  %4397 = vmatprep.subr.mxu0 0.0
  %4398 = vmatpush2.xpose.msra.mxu0 0.0
  %4399 = vmatprep.mubr.f32.mxu0 0.0
  %4400 = vmatmul.mubr.f32.gmra.mxu0 %v4331
  %v4401 = vpop.f32.mrf.mxu0
  %v4402 = vadd.f32 0.0, %v4401
  %v4403 = vpop.f32.mrf.mxu0
  %4404 = vdwg.mxu0
  %v4406 = vrot.slane %v3870, 7
  %v4407 = vsel %vm45, %v4406, 0
  %v4409 = vsel %vm45, %v3870, 0
  %4411 = vmatprep.subr.mxu0 0.0
  %4412 = vmatpush1.xpose.msra.mxu0 0.0
  %4413 = vmatprep.subr.mxu0 0.0
  %4414 = vmatpush1.xpose.msra.mxu0 0.0
  %4415 = vmatprep.subr.mxu0 0.0
  %4416 = vmatpush1.xpose.msra.mxu0 0.0
  %4417 = vmatprep.subr.mxu0 0.0
  %4418 = vmatpush1.xpose.msra.mxu0 0.0
  %4419 = vmatprep.subr.mxu0 0.0
  %4420 = vmatpush1.xpose.msra.mxu0 0.0
  %4421 = vmatprep.subr.mxu0 0.0
  %4422 = vmatpush1.xpose.msra.mxu0 0.0
  %4423 = vmatprep.subr.mxu0 0.0
  %4424 = vmatpush1.xpose.msra.mxu0 0.0
  %4425 = vmatprep.subr.mxu0 0.0
  %4426 = vmatpush1.xpose.msra.mxu0 0.0
  %4427 = vmatprep.subr.mxu0 0.0
  %4428 = vmatpush1.xpose.msra.mxu0 0.0
  %4429 = vmatprep.subr.mxu0 0.0
  %4430 = vmatpush1.xpose.msra.mxu0 0.0
  %4431 = vmatprep.subr.mxu0 0.0
  %4432 = vmatpush1.xpose.msra.mxu0 0.0
  %4433 = vmatprep.subr.mxu0 0.0
  %4434 = vmatpush1.xpose.msra.mxu0 0.0
  %4435 = vmatprep.subr.mxu0 0.0
  %4436 = vmatpush1.xpose.msra.mxu0 0.0
  %4437 = vmatprep.subr.mxu0 0.0
  %4438 = vmatpush1.xpose.msra.mxu0 0.0
  %4439 = vmatprep.subr.mxu0 0.0
  %4440 = vmatpush1.xpose.msra.mxu0 0.0
  %4441 = vmatprep.subr.mxu0 0.0
  %4442 = vmatpush1.xpose.msra.mxu0 %v4409
  %4443 = vmatprep.subr.mxu0 0.0
  %4444 = vmatpush2.xpose.msra.mxu0 0.0
  %4445 = vmatprep.subr.mxu0 0.0
  %4446 = vmatpush2.xpose.msra.mxu0 0.0
  %4447 = vmatprep.subr.mxu0 0.0
  %4448 = vmatpush2.xpose.msra.mxu0 0.0
  %4449 = vmatprep.subr.mxu0 0.0
  %4450 = vmatpush2.xpose.msra.mxu0 0.0
  %4451 = vmatprep.subr.mxu0 0.0
  %4452 = vmatpush2.xpose.msra.mxu0 0.0
  %4453 = vmatprep.subr.mxu0 0.0
  %4454 = vmatpush2.xpose.msra.mxu0 0.0
  %4455 = vmatprep.subr.mxu0 0.0
  %4456 = vmatpush2.xpose.msra.mxu0 0.0
  %4457 = vmatprep.subr.mxu0 0.0
  %4458 = vmatpush2.xpose.msra.mxu0 0.0
  %4459 = vmatprep.subr.mxu0 0.0
  %4460 = vmatpush2.xpose.msra.mxu0 0.0
  %4461 = vmatprep.subr.mxu0 0.0
  %4462 = vmatpush2.xpose.msra.mxu0 0.0
  %4463 = vmatprep.subr.mxu0 0.0
  %4464 = vmatpush2.xpose.msra.mxu0 0.0
  %4465 = vmatprep.subr.mxu0 0.0
  %4466 = vmatpush2.xpose.msra.mxu0 0.0
  %4467 = vmatprep.subr.mxu0 0.0
  %4468 = vmatpush2.xpose.msra.mxu0 0.0
  %4469 = vmatprep.subr.mxu0 0.0
  %4470 = vmatpush2.xpose.msra.mxu0 0.0
  %4471 = vmatprep.subr.mxu0 0.0
  %4472 = vmatpush2.xpose.msra.mxu0 0.0
  %4473 = vmatprep.subr.mxu0 0.0
  %4474 = vmatpush2.xpose.msra.mxu0 0.0
  %4475 = vmatprep.mubr.f32.mxu0 0.0
  %4476 = vmatmul.mubr.f32.gmra.mxu0 %v4407
  %v4477 = vpop.f32.mrf.mxu0
  %v4478 = vadd.f32 0.0, %v4477
  %v4479 = vpop.f32.mrf.mxu0
  %4480 = vdwg.mxu0
  %vm4481 = vcmask 57344
  %v4482 = vsel %vm4481, %v3946, -inf
  %4483 = vmax.xlane.f32.xlu0 %v4482
  %v4484 = vpop.xlane.xlu0 %4483
  %v4485 = vsel %vm4481, %v4022, -inf
  %4486 = vmax.xlane.f32.xlu0 %v4485
  %v4487 = vpop.xlane.xlu0 %4486
  %v4488 = vsel %vm4481, %v4098, -inf
  %4489 = vmax.xlane.f32.xlu0 %v4488
  %v4490 = vpop.xlane.xlu0 %4489
  %v4491 = vsel %vm4481, %v4174, -inf
  %4492 = vmax.xlane.f32.xlu0 %v4491
  %v4493 = vpop.xlane.xlu0 %4492
  %v4494 = vsel %vm4481, %v4250, -inf
  %4495 = vmax.xlane.f32.xlu0 %v4494
  %v4496 = vpop.xlane.xlu0 %4495
  %v4497 = vsel %vm4481, %v4326, -inf
  %4498 = vmax.xlane.f32.xlu0 %v4497
  %v4499 = vpop.xlane.xlu0 %4498
  %v4500 = vsel %vm4481, %v4402, -inf
  %4501 = vmax.xlane.f32.xlu0 %v4500
  %v4502 = vpop.xlane.xlu0 %4501
  %v4503 = vsel %vm4481, %v4478, -inf
  %4504 = vmax.xlane.f32.xlu0 %v4503
  %v4505 = vpop.xlane.xlu0 %4504
  %v4506 = vsub.f32 %v3946, %v4484
  %v4507 = vsub.f32 %v4022, %v4487
  %v4508 = vsub.f32 %v4098, %v4490
  %v4509 = vsub.f32 %v4174, %v4493
  %v4510 = vsub.f32 %v4250, %v4496
  %v4511 = vsub.f32 %v4326, %v4499
  %v4512 = vsub.f32 %v4402, %v4502
  %v4513 = vsub.f32 %v4478, %v4505
  %v4514 = vmul.f32 %v4506, 1.442695
  %v4515 = vpow.pop %v4514
  %v4516 = vmul.f32 %v4507, 1.442695
  %v4517 = vpow.pop %v4516
  %v4518 = vmul.f32 %v4508, 1.442695
  %v4519 = vpow.pop %v4518
  %v4520 = vmul.f32 %v4509, 1.442695
  %v4521 = vpow.pop %v4520
  %v4522 = vmul.f32 %v4510, 1.442695
  %v4523 = vpow.pop %v4522
  %v4524 = vmul.f32 %v4511, 1.442695
  %v4525 = vpow.pop %v4524
  %v4526 = vmul.f32 %v4512, 1.442695
  %v4527 = vpow.pop %v4526
  %v4528 = vmul.f32 %v4513, 1.442695
  %v4529 = vpow.pop %v4528
  %v4530 = vsel %vm4481, %v4515, 0.0
  %4531 = vadd.xlane.f32.xlu0 %v4530
  %v4532 = vpop.xlane.xlu0 %4531
  %v4533 = vsel %vm4481, %v4517, 0.0
  %4534 = vadd.xlane.f32.xlu0 %v4533
  %v4535 = vpop.xlane.xlu0 %4534
  %v4536 = vsel %vm4481, %v4519, 0.0
  %4537 = vadd.xlane.f32.xlu0 %v4536
  %v4538 = vpop.xlane.xlu0 %4537
  %v4539 = vsel %vm4481, %v4521, 0.0
  %4540 = vadd.xlane.f32.xlu0 %v4539
  %v4541 = vpop.xlane.xlu0 %4540
  %v4542 = vsel %vm4481, %v4523, 0.0
  %4543 = vadd.xlane.f32.xlu0 %v4542
  %v4544 = vpop.xlane.xlu0 %4543
  %v4545 = vsel %vm4481, %v4525, 0.0
  %4546 = vadd.xlane.f32.xlu0 %v4545
  %v4547 = vpop.xlane.xlu0 %4546
  %v4548 = vsel %vm4481, %v4527, 0.0
  %4549 = vadd.xlane.f32.xlu0 %v4548
  %v4550 = vpop.xlane.xlu0 %4549
  %v4551 = vsel %vm4481, %v4529, 0.0
  %4552 = vadd.xlane.f32.xlu0 %v4551
  %v4553 = vpop.xlane.xlu0 %4552
  %v4554 = vrcp.pop %v4532
  %v4555 = vrcp.pop %v4535
  %v4556 = vrcp.pop %v4538
  %v4557 = vrcp.pop %v4541
  %v4558 = vrcp.pop %v4544
  %v4559 = vrcp.pop %v4547
  %v4560 = vrcp.pop %v4550
  %v4561 = vrcp.pop %v4553
  %v4562 = vmul.f32 %v4515, %v4554
  %v4563 = vmul.f32 %v4517, %v4555
  %v4564 = vmul.f32 %v4519, %v4556
  %v4565 = vmul.f32 %v4521, %v4557
  %v4566 = vmul.f32 %v4523, %v4558
  %v4567 = vmul.f32 %v4525, %v4559
  %v4568 = vmul.f32 %v4527, %v4560
  %v4569 = vmul.f32 %v4529, %v4561
  %v4571 = vsel %vm1653, %v4562, 0
  %4573 = vmatprep.subr.mxu0 0.0
  %4574 = vmatpush1.msra.mxu0 0.0
  %4575 = vmatprep.subr.mxu0 0.0
  %4576 = vmatpush1.msra.mxu0 0.0
  %4577 = vmatprep.subr.mxu0 0.0
  %4578 = vmatpush1.msra.mxu0 0.0
  %4579 = vmatprep.subr.mxu0 0.0
  %4580 = vmatpush1.msra.mxu0 0.0
  %4581 = vmatprep.subr.mxu0 0.0
  %4582 = vmatpush1.msra.mxu0 0.0
  %4583 = vmatprep.subr.mxu0 0.0
  %4584 = vmatpush1.msra.mxu0 0.0
  %4585 = vmatprep.subr.mxu0 0.0
  %4586 = vmatpush1.msra.mxu0 0.0
  %4587 = vmatprep.subr.mxu0 0.0
  %4588 = vmatpush1.msra.mxu0 0.0
  %4589 = vmatprep.subr.mxu0 0.0
  %4590 = vmatpush1.msra.mxu0 0.0
  %4591 = vmatprep.subr.mxu0 0.0
  %4592 = vmatpush1.msra.mxu0 0.0
  %4593 = vmatprep.subr.mxu0 0.0
  %4594 = vmatpush1.msra.mxu0 0.0
  %4595 = vmatprep.subr.mxu0 0.0
  %4596 = vmatpush1.msra.mxu0 0.0
  %4597 = vmatprep.subr.mxu0 0.0
  %4598 = vmatpush1.msra.mxu0 0.0
  %4599 = vmatprep.subr.mxu0 0.0
  %4600 = vmatpush1.msra.mxu0 0.0
  %4601 = vmatprep.subr.mxu0 0.0
  %4602 = vmatpush1.msra.mxu0 0.0
  %4603 = vmatprep.subr.mxu0 0.0
  %4604 = vmatpush1.msra.mxu0 %v3732
  %4605 = vmatprep.subr.mxu0 0.0
  %4606 = vmatpush2.msra.mxu0 0.0
  %4607 = vmatprep.subr.mxu0 0.0
  %4608 = vmatpush2.msra.mxu0 0.0
  %4609 = vmatprep.subr.mxu0 0.0
  %4610 = vmatpush2.msra.mxu0 0.0
  %4611 = vmatprep.subr.mxu0 0.0
  %4612 = vmatpush2.msra.mxu0 0.0
  %4613 = vmatprep.subr.mxu0 0.0
  %4614 = vmatpush2.msra.mxu0 0.0
  %4615 = vmatprep.subr.mxu0 0.0
  %4616 = vmatpush2.msra.mxu0 0.0
  %4617 = vmatprep.subr.mxu0 0.0
  %4618 = vmatpush2.msra.mxu0 0.0
  %4619 = vmatprep.subr.mxu0 0.0
  %4620 = vmatpush2.msra.mxu0 0.0
  %4621 = vmatprep.subr.mxu0 0.0
  %4622 = vmatpush2.msra.mxu0 0.0
  %4623 = vmatprep.subr.mxu0 0.0
  %4624 = vmatpush2.msra.mxu0 0.0
  %4625 = vmatprep.subr.mxu0 0.0
  %4626 = vmatpush2.msra.mxu0 0.0
  %4627 = vmatprep.subr.mxu0 0.0
  %4628 = vmatpush2.msra.mxu0 0.0
  %4629 = vmatprep.subr.mxu0 0.0
  %4630 = vmatpush2.msra.mxu0 0.0
  %4631 = vmatprep.subr.mxu0 0.0
  %4632 = vmatpush2.msra.mxu0 0.0
  %4633 = vmatprep.subr.mxu0 0.0
  %4634 = vmatpush2.msra.mxu0 0.0
  %4635 = vmatprep.subr.mxu0 0.0
  %4636 = vmatpush2.msra.mxu0 0.0
  %4637 = vmatprep.mubr.f32.mxu0 0.0
  %4638 = vmatmul.mubr.f32.gmra.mxu0 %v4571
  %v4639 = vpop.f32.mrf.mxu0
  %v4640 = vadd.f32 0.0, %v4639
  %v4641 = vpop.f32.mrf.mxu0
  %4642 = vdwg.mxu0
  %v4644 = vsel %vm1653, %v4563, 0
  %4646 = vmatprep.subr.mxu0 0.0
  %4647 = vmatpush1.msra.mxu0 0.0
  %4648 = vmatprep.subr.mxu0 0.0
  %4649 = vmatpush1.msra.mxu0 0.0
  %4650 = vmatprep.subr.mxu0 0.0
  %4651 = vmatpush1.msra.mxu0 0.0
  %4652 = vmatprep.subr.mxu0 0.0
  %4653 = vmatpush1.msra.mxu0 0.0
  %4654 = vmatprep.subr.mxu0 0.0
  %4655 = vmatpush1.msra.mxu0 0.0
  %4656 = vmatprep.subr.mxu0 0.0
  %4657 = vmatpush1.msra.mxu0 0.0
  %4658 = vmatprep.subr.mxu0 0.0
  %4659 = vmatpush1.msra.mxu0 0.0
  %4660 = vmatprep.subr.mxu0 0.0
  %4661 = vmatpush1.msra.mxu0 0.0
  %4662 = vmatprep.subr.mxu0 0.0
  %4663 = vmatpush1.msra.mxu0 0.0
  %4664 = vmatprep.subr.mxu0 0.0
  %4665 = vmatpush1.msra.mxu0 0.0
  %4666 = vmatprep.subr.mxu0 0.0
  %4667 = vmatpush1.msra.mxu0 0.0
  %4668 = vmatprep.subr.mxu0 0.0
  %4669 = vmatpush1.msra.mxu0 0.0
  %4670 = vmatprep.subr.mxu0 0.0
  %4671 = vmatpush1.msra.mxu0 0.0
  %4672 = vmatprep.subr.mxu0 0.0
  %4673 = vmatpush1.msra.mxu0 0.0
  %4674 = vmatprep.subr.mxu0 0.0
  %4675 = vmatpush1.msra.mxu0 0.0
  %4676 = vmatprep.subr.mxu0 0.0
  %4677 = vmatpush1.msra.mxu0 %v3733
  %4678 = vmatprep.subr.mxu0 0.0
  %4679 = vmatpush2.msra.mxu0 0.0
  %4680 = vmatprep.subr.mxu0 0.0
  %4681 = vmatpush2.msra.mxu0 0.0
  %4682 = vmatprep.subr.mxu0 0.0
  %4683 = vmatpush2.msra.mxu0 0.0
  %4684 = vmatprep.subr.mxu0 0.0
  %4685 = vmatpush2.msra.mxu0 0.0
  %4686 = vmatprep.subr.mxu0 0.0
  %4687 = vmatpush2.msra.mxu0 0.0
  %4688 = vmatprep.subr.mxu0 0.0
  %4689 = vmatpush2.msra.mxu0 0.0
  %4690 = vmatprep.subr.mxu0 0.0
  %4691 = vmatpush2.msra.mxu0 0.0
  %4692 = vmatprep.subr.mxu0 0.0
  %4693 = vmatpush2.msra.mxu0 0.0
  %4694 = vmatprep.subr.mxu0 0.0
  %4695 = vmatpush2.msra.mxu0 0.0
  %4696 = vmatprep.subr.mxu0 0.0
  %4697 = vmatpush2.msra.mxu0 0.0
  %4698 = vmatprep.subr.mxu0 0.0
  %4699 = vmatpush2.msra.mxu0 0.0
  %4700 = vmatprep.subr.mxu0 0.0
  %4701 = vmatpush2.msra.mxu0 0.0
  %4702 = vmatprep.subr.mxu0 0.0
  %4703 = vmatpush2.msra.mxu0 0.0
  %4704 = vmatprep.subr.mxu0 0.0
  %4705 = vmatpush2.msra.mxu0 0.0
  %4706 = vmatprep.subr.mxu0 0.0
  %4707 = vmatpush2.msra.mxu0 0.0
  %4708 = vmatprep.subr.mxu0 0.0
  %4709 = vmatpush2.msra.mxu0 0.0
  %4710 = vmatprep.mubr.f32.mxu0 0.0
  %4711 = vmatmul.mubr.f32.gmra.mxu0 %v4644
  %v4712 = vpop.f32.mrf.mxu0
  %v4713 = vadd.f32 0.0, %v4712
  %v4714 = vpop.f32.mrf.mxu0
  %4715 = vdwg.mxu0
  %v4717 = vsel %vm1653, %v4564, 0
  %4719 = vmatprep.subr.mxu0 0.0
  %4720 = vmatpush1.msra.mxu0 0.0
  %4721 = vmatprep.subr.mxu0 0.0
  %4722 = vmatpush1.msra.mxu0 0.0
  %4723 = vmatprep.subr.mxu0 0.0
  %4724 = vmatpush1.msra.mxu0 0.0
  %4725 = vmatprep.subr.mxu0 0.0
  %4726 = vmatpush1.msra.mxu0 0.0
  %4727 = vmatprep.subr.mxu0 0.0
  %4728 = vmatpush1.msra.mxu0 0.0
  %4729 = vmatprep.subr.mxu0 0.0
  %4730 = vmatpush1.msra.mxu0 0.0
  %4731 = vmatprep.subr.mxu0 0.0
  %4732 = vmatpush1.msra.mxu0 0.0
  %4733 = vmatprep.subr.mxu0 0.0
  %4734 = vmatpush1.msra.mxu0 0.0
  %4735 = vmatprep.subr.mxu0 0.0
  %4736 = vmatpush1.msra.mxu0 0.0
  %4737 = vmatprep.subr.mxu0 0.0
  %4738 = vmatpush1.msra.mxu0 0.0
  %4739 = vmatprep.subr.mxu0 0.0
  %4740 = vmatpush1.msra.mxu0 0.0
  %4741 = vmatprep.subr.mxu0 0.0
  %4742 = vmatpush1.msra.mxu0 0.0
  %4743 = vmatprep.subr.mxu0 0.0
  %4744 = vmatpush1.msra.mxu0 0.0
  %4745 = vmatprep.subr.mxu0 0.0
  %4746 = vmatpush1.msra.mxu0 0.0
  %4747 = vmatprep.subr.mxu0 0.0
  %4748 = vmatpush1.msra.mxu0 0.0
  %4749 = vmatprep.subr.mxu0 0.0
  %4750 = vmatpush1.msra.mxu0 %v3734
  %4751 = vmatprep.subr.mxu0 0.0
  %4752 = vmatpush2.msra.mxu0 0.0
  %4753 = vmatprep.subr.mxu0 0.0
  %4754 = vmatpush2.msra.mxu0 0.0
  %4755 = vmatprep.subr.mxu0 0.0
  %4756 = vmatpush2.msra.mxu0 0.0
  %4757 = vmatprep.subr.mxu0 0.0
  %4758 = vmatpush2.msra.mxu0 0.0
  %4759 = vmatprep.subr.mxu0 0.0
  %4760 = vmatpush2.msra.mxu0 0.0
  %4761 = vmatprep.subr.mxu0 0.0
  %4762 = vmatpush2.msra.mxu0 0.0
  %4763 = vmatprep.subr.mxu0 0.0
  %4764 = vmatpush2.msra.mxu0 0.0
  %4765 = vmatprep.subr.mxu0 0.0
  %4766 = vmatpush2.msra.mxu0 0.0
  %4767 = vmatprep.subr.mxu0 0.0
  %4768 = vmatpush2.msra.mxu0 0.0
  %4769 = vmatprep.subr.mxu0 0.0
  %4770 = vmatpush2.msra.mxu0 0.0
  %4771 = vmatprep.subr.mxu0 0.0
  %4772 = vmatpush2.msra.mxu0 0.0
  %4773 = vmatprep.subr.mxu0 0.0
  %4774 = vmatpush2.msra.mxu0 0.0
  %4775 = vmatprep.subr.mxu0 0.0
  %4776 = vmatpush2.msra.mxu0 0.0
  %4777 = vmatprep.subr.mxu0 0.0
  %4778 = vmatpush2.msra.mxu0 0.0
  %4779 = vmatprep.subr.mxu0 0.0
  %4780 = vmatpush2.msra.mxu0 0.0
  %4781 = vmatprep.subr.mxu0 0.0
  %4782 = vmatpush2.msra.mxu0 0.0
  %4783 = vmatprep.mubr.f32.mxu0 0.0
  %4784 = vmatmul.mubr.f32.gmra.mxu0 %v4717
  %v4785 = vpop.f32.mrf.mxu0
  %v4786 = vadd.f32 0.0, %v4785
  %v4787 = vpop.f32.mrf.mxu0
  %4788 = vdwg.mxu0
  %v4790 = vsel %vm1653, %v4565, 0
  %4792 = vmatprep.subr.mxu0 0.0
  %4793 = vmatpush1.msra.mxu0 0.0
  %4794 = vmatprep.subr.mxu0 0.0
  %4795 = vmatpush1.msra.mxu0 0.0
  %4796 = vmatprep.subr.mxu0 0.0
  %4797 = vmatpush1.msra.mxu0 0.0
  %4798 = vmatprep.subr.mxu0 0.0
  %4799 = vmatpush1.msra.mxu0 0.0
  %4800 = vmatprep.subr.mxu0 0.0
  %4801 = vmatpush1.msra.mxu0 0.0
  %4802 = vmatprep.subr.mxu0 0.0
  %4803 = vmatpush1.msra.mxu0 0.0
  %4804 = vmatprep.subr.mxu0 0.0
  %4805 = vmatpush1.msra.mxu0 0.0
  %4806 = vmatprep.subr.mxu0 0.0
  %4807 = vmatpush1.msra.mxu0 0.0
  %4808 = vmatprep.subr.mxu0 0.0
  %4809 = vmatpush1.msra.mxu0 0.0
  %4810 = vmatprep.subr.mxu0 0.0
  %4811 = vmatpush1.msra.mxu0 0.0
  %4812 = vmatprep.subr.mxu0 0.0
  %4813 = vmatpush1.msra.mxu0 0.0
  %4814 = vmatprep.subr.mxu0 0.0
  %4815 = vmatpush1.msra.mxu0 0.0
  %4816 = vmatprep.subr.mxu0 0.0
  %4817 = vmatpush1.msra.mxu0 0.0
  %4818 = vmatprep.subr.mxu0 0.0
  %4819 = vmatpush1.msra.mxu0 0.0
  %4820 = vmatprep.subr.mxu0 0.0
  %4821 = vmatpush1.msra.mxu0 0.0
  %4822 = vmatprep.subr.mxu0 0.0
  %4823 = vmatpush1.msra.mxu0 %v3735
  %4824 = vmatprep.subr.mxu0 0.0
  %4825 = vmatpush2.msra.mxu0 0.0
  %4826 = vmatprep.subr.mxu0 0.0
  %4827 = vmatpush2.msra.mxu0 0.0
  %4828 = vmatprep.subr.mxu0 0.0
  %4829 = vmatpush2.msra.mxu0 0.0
  %4830 = vmatprep.subr.mxu0 0.0
  %4831 = vmatpush2.msra.mxu0 0.0
  %4832 = vmatprep.subr.mxu0 0.0
  %4833 = vmatpush2.msra.mxu0 0.0
  %4834 = vmatprep.subr.mxu0 0.0
  %4835 = vmatpush2.msra.mxu0 0.0
  %4836 = vmatprep.subr.mxu0 0.0
  %4837 = vmatpush2.msra.mxu0 0.0
  %4838 = vmatprep.subr.mxu0 0.0
  %4839 = vmatpush2.msra.mxu0 0.0
  %4840 = vmatprep.subr.mxu0 0.0
  %4841 = vmatpush2.msra.mxu0 0.0
  %4842 = vmatprep.subr.mxu0 0.0
  %4843 = vmatpush2.msra.mxu0 0.0
  %4844 = vmatprep.subr.mxu0 0.0
  %4845 = vmatpush2.msra.mxu0 0.0
  %4846 = vmatprep.subr.mxu0 0.0
  %4847 = vmatpush2.msra.mxu0 0.0
  %4848 = vmatprep.subr.mxu0 0.0
  %4849 = vmatpush2.msra.mxu0 0.0
  %4850 = vmatprep.subr.mxu0 0.0
  %4851 = vmatpush2.msra.mxu0 0.0
  %4852 = vmatprep.subr.mxu0 0.0
  %4853 = vmatpush2.msra.mxu0 0.0
  %4854 = vmatprep.subr.mxu0 0.0
  %4855 = vmatpush2.msra.mxu0 0.0
  %4856 = vmatprep.mubr.f32.mxu0 0.0
  %4857 = vmatmul.mubr.f32.gmra.mxu0 %v4790
  %v4858 = vpop.f32.mrf.mxu0
  %v4859 = vadd.f32 0.0, %v4858
  %v4860 = vpop.f32.mrf.mxu0
  %4861 = vdwg.mxu0
  %v4863 = vsel %vm1653, %v4566, 0
  %4865 = vmatprep.subr.mxu0 0.0
  %4866 = vmatpush1.msra.mxu0 0.0
  %4867 = vmatprep.subr.mxu0 0.0
  %4868 = vmatpush1.msra.mxu0 0.0
  %4869 = vmatprep.subr.mxu0 0.0
  %4870 = vmatpush1.msra.mxu0 0.0
  %4871 = vmatprep.subr.mxu0 0.0
  %4872 = vmatpush1.msra.mxu0 0.0
  %4873 = vmatprep.subr.mxu0 0.0
  %4874 = vmatpush1.msra.mxu0 0.0
  %4875 = vmatprep.subr.mxu0 0.0
  %4876 = vmatpush1.msra.mxu0 0.0
  %4877 = vmatprep.subr.mxu0 0.0
  %4878 = vmatpush1.msra.mxu0 0.0
  %4879 = vmatprep.subr.mxu0 0.0
  %4880 = vmatpush1.msra.mxu0 0.0
  %4881 = vmatprep.subr.mxu0 0.0
  %4882 = vmatpush1.msra.mxu0 0.0
  %4883 = vmatprep.subr.mxu0 0.0
  %4884 = vmatpush1.msra.mxu0 0.0
  %4885 = vmatprep.subr.mxu0 0.0
  %4886 = vmatpush1.msra.mxu0 0.0
  %4887 = vmatprep.subr.mxu0 0.0
  %4888 = vmatpush1.msra.mxu0 0.0
  %4889 = vmatprep.subr.mxu0 0.0
  %4890 = vmatpush1.msra.mxu0 0.0
  %4891 = vmatprep.subr.mxu0 0.0
  %4892 = vmatpush1.msra.mxu0 0.0
  %4893 = vmatprep.subr.mxu0 0.0
  %4894 = vmatpush1.msra.mxu0 0.0
  %4895 = vmatprep.subr.mxu0 0.0
  %4896 = vmatpush1.msra.mxu0 %v3736
  %4897 = vmatprep.subr.mxu0 0.0
  %4898 = vmatpush2.msra.mxu0 0.0
  %4899 = vmatprep.subr.mxu0 0.0
  %4900 = vmatpush2.msra.mxu0 0.0
  %4901 = vmatprep.subr.mxu0 0.0
  %4902 = vmatpush2.msra.mxu0 0.0
  %4903 = vmatprep.subr.mxu0 0.0
  %4904 = vmatpush2.msra.mxu0 0.0
  %4905 = vmatprep.subr.mxu0 0.0
  %4906 = vmatpush2.msra.mxu0 0.0
  %4907 = vmatprep.subr.mxu0 0.0
  %4908 = vmatpush2.msra.mxu0 0.0
  %4909 = vmatprep.subr.mxu0 0.0
  %4910 = vmatpush2.msra.mxu0 0.0
  %4911 = vmatprep.subr.mxu0 0.0
  %4912 = vmatpush2.msra.mxu0 0.0
  %4913 = vmatprep.subr.mxu0 0.0
  %4914 = vmatpush2.msra.mxu0 0.0
  %4915 = vmatprep.subr.mxu0 0.0
  %4916 = vmatpush2.msra.mxu0 0.0
  %4917 = vmatprep.subr.mxu0 0.0
  %4918 = vmatpush2.msra.mxu0 0.0
  %4919 = vmatprep.subr.mxu0 0.0
  %4920 = vmatpush2.msra.mxu0 0.0
  %4921 = vmatprep.subr.mxu0 0.0
  %4922 = vmatpush2.msra.mxu0 0.0
  %4923 = vmatprep.subr.mxu0 0.0
  %4924 = vmatpush2.msra.mxu0 0.0
  %4925 = vmatprep.subr.mxu0 0.0
  %4926 = vmatpush2.msra.mxu0 0.0
  %4927 = vmatprep.subr.mxu0 0.0
  %4928 = vmatpush2.msra.mxu0 0.0
  %4929 = vmatprep.mubr.f32.mxu0 0.0
  %4930 = vmatmul.mubr.f32.gmra.mxu0 %v4863
  %v4931 = vpop.f32.mrf.mxu0
  %v4932 = vadd.f32 0.0, %v4931
  %v4933 = vpop.f32.mrf.mxu0
  %4934 = vdwg.mxu0
  %v4936 = vsel %vm1653, %v4567, 0
  %4938 = vmatprep.subr.mxu0 0.0
  %4939 = vmatpush1.msra.mxu0 0.0
  %4940 = vmatprep.subr.mxu0 0.0
  %4941 = vmatpush1.msra.mxu0 0.0
  %4942 = vmatprep.subr.mxu0 0.0
  %4943 = vmatpush1.msra.mxu0 0.0
  %4944 = vmatprep.subr.mxu0 0.0
  %4945 = vmatpush1.msra.mxu0 0.0
  %4946 = vmatprep.subr.mxu0 0.0
  %4947 = vmatpush1.msra.mxu0 0.0
  %4948 = vmatprep.subr.mxu0 0.0
  %4949 = vmatpush1.msra.mxu0 0.0
  %4950 = vmatprep.subr.mxu0 0.0
  %4951 = vmatpush1.msra.mxu0 0.0
  %4952 = vmatprep.subr.mxu0 0.0
  %4953 = vmatpush1.msra.mxu0 0.0
  %4954 = vmatprep.subr.mxu0 0.0
  %4955 = vmatpush1.msra.mxu0 0.0
  %4956 = vmatprep.subr.mxu0 0.0
  %4957 = vmatpush1.msra.mxu0 0.0
  %4958 = vmatprep.subr.mxu0 0.0
  %4959 = vmatpush1.msra.mxu0 0.0
  %4960 = vmatprep.subr.mxu0 0.0
  %4961 = vmatpush1.msra.mxu0 0.0
  %4962 = vmatprep.subr.mxu0 0.0
  %4963 = vmatpush1.msra.mxu0 0.0
  %4964 = vmatprep.subr.mxu0 0.0
  %4965 = vmatpush1.msra.mxu0 0.0
  %4966 = vmatprep.subr.mxu0 0.0
  %4967 = vmatpush1.msra.mxu0 0.0
  %4968 = vmatprep.subr.mxu0 0.0
  %4969 = vmatpush1.msra.mxu0 %v3737
  %4970 = vmatprep.subr.mxu0 0.0
  %4971 = vmatpush2.msra.mxu0 0.0
  %4972 = vmatprep.subr.mxu0 0.0
  %4973 = vmatpush2.msra.mxu0 0.0
  %4974 = vmatprep.subr.mxu0 0.0
  %4975 = vmatpush2.msra.mxu0 0.0
  %4976 = vmatprep.subr.mxu0 0.0
  %4977 = vmatpush2.msra.mxu0 0.0
  %4978 = vmatprep.subr.mxu0 0.0
  %4979 = vmatpush2.msra.mxu0 0.0
  %4980 = vmatprep.subr.mxu0 0.0
  %4981 = vmatpush2.msra.mxu0 0.0
  %4982 = vmatprep.subr.mxu0 0.0
  %4983 = vmatpush2.msra.mxu0 0.0
  %4984 = vmatprep.subr.mxu0 0.0
  %4985 = vmatpush2.msra.mxu0 0.0
  %4986 = vmatprep.subr.mxu0 0.0
  %4987 = vmatpush2.msra.mxu0 0.0
  %4988 = vmatprep.subr.mxu0 0.0
  %4989 = vmatpush2.msra.mxu0 0.0
  %4990 = vmatprep.subr.mxu0 0.0
  %4991 = vmatpush2.msra.mxu0 0.0
  %4992 = vmatprep.subr.mxu0 0.0
  %4993 = vmatpush2.msra.mxu0 0.0
  %4994 = vmatprep.subr.mxu0 0.0
  %4995 = vmatpush2.msra.mxu0 0.0
  %4996 = vmatprep.subr.mxu0 0.0
  %4997 = vmatpush2.msra.mxu0 0.0
  %4998 = vmatprep.subr.mxu0 0.0
  %4999 = vmatpush2.msra.mxu0 0.0
  %5000 = vmatprep.subr.mxu0 0.0
  %5001 = vmatpush2.msra.mxu0 0.0
  %5002 = vmatprep.mubr.f32.mxu0 0.0
  %5003 = vmatmul.mubr.f32.gmra.mxu0 %v4936
  %v5004 = vpop.f32.mrf.mxu0
  %v5005 = vadd.f32 0.0, %v5004
  %v5006 = vpop.f32.mrf.mxu0
  %5007 = vdwg.mxu0
  %v5009 = vsel %vm1653, %v4568, 0
  %5011 = vmatprep.subr.mxu0 0.0
  %5012 = vmatpush1.msra.mxu0 0.0
  %5013 = vmatprep.subr.mxu0 0.0
  %5014 = vmatpush1.msra.mxu0 0.0
  %5015 = vmatprep.subr.mxu0 0.0
  %5016 = vmatpush1.msra.mxu0 0.0
  %5017 = vmatprep.subr.mxu0 0.0
  %5018 = vmatpush1.msra.mxu0 0.0
  %5019 = vmatprep.subr.mxu0 0.0
  %5020 = vmatpush1.msra.mxu0 0.0
  %5021 = vmatprep.subr.mxu0 0.0
  %5022 = vmatpush1.msra.mxu0 0.0
  %5023 = vmatprep.subr.mxu0 0.0
  %5024 = vmatpush1.msra.mxu0 0.0
  %5025 = vmatprep.subr.mxu0 0.0
  %5026 = vmatpush1.msra.mxu0 0.0
  %5027 = vmatprep.subr.mxu0 0.0
  %5028 = vmatpush1.msra.mxu0 0.0
  %5029 = vmatprep.subr.mxu0 0.0
  %5030 = vmatpush1.msra.mxu0 0.0
  %5031 = vmatprep.subr.mxu0 0.0
  %5032 = vmatpush1.msra.mxu0 0.0
  %5033 = vmatprep.subr.mxu0 0.0
  %5034 = vmatpush1.msra.mxu0 0.0
  %5035 = vmatprep.subr.mxu0 0.0
  %5036 = vmatpush1.msra.mxu0 0.0
  %5037 = vmatprep.subr.mxu0 0.0
  %5038 = vmatpush1.msra.mxu0 0.0
  %5039 = vmatprep.subr.mxu0 0.0
  %5040 = vmatpush1.msra.mxu0 0.0
  %5041 = vmatprep.subr.mxu0 0.0
  %5042 = vmatpush1.msra.mxu0 %v3738
  %5043 = vmatprep.subr.mxu0 0.0
  %5044 = vmatpush2.msra.mxu0 0.0
  %5045 = vmatprep.subr.mxu0 0.0
  %5046 = vmatpush2.msra.mxu0 0.0
  %5047 = vmatprep.subr.mxu0 0.0
  %5048 = vmatpush2.msra.mxu0 0.0
  %5049 = vmatprep.subr.mxu0 0.0
  %5050 = vmatpush2.msra.mxu0 0.0
  %5051 = vmatprep.subr.mxu0 0.0
  %5052 = vmatpush2.msra.mxu0 0.0
  %5053 = vmatprep.subr.mxu0 0.0
  %5054 = vmatpush2.msra.mxu0 0.0
  %5055 = vmatprep.subr.mxu0 0.0
  %5056 = vmatpush2.msra.mxu0 0.0
  %5057 = vmatprep.subr.mxu0 0.0
  %5058 = vmatpush2.msra.mxu0 0.0
  %5059 = vmatprep.subr.mxu0 0.0
  %5060 = vmatpush2.msra.mxu0 0.0
  %5061 = vmatprep.subr.mxu0 0.0
  %5062 = vmatpush2.msra.mxu0 0.0
  %5063 = vmatprep.subr.mxu0 0.0
  %5064 = vmatpush2.msra.mxu0 0.0
  %5065 = vmatprep.subr.mxu0 0.0
  %5066 = vmatpush2.msra.mxu0 0.0
  %5067 = vmatprep.subr.mxu0 0.0
  %5068 = vmatpush2.msra.mxu0 0.0
  %5069 = vmatprep.subr.mxu0 0.0
  %5070 = vmatpush2.msra.mxu0 0.0
  %5071 = vmatprep.subr.mxu0 0.0
  %5072 = vmatpush2.msra.mxu0 0.0
  %5073 = vmatprep.subr.mxu0 0.0
  %5074 = vmatpush2.msra.mxu0 0.0
  %5075 = vmatprep.mubr.f32.mxu0 0.0
  %5076 = vmatmul.mubr.f32.gmra.mxu0 %v5009
  %v5077 = vpop.f32.mrf.mxu0
  %v5078 = vadd.f32 0.0, %v5077
  %v5079 = vpop.f32.mrf.mxu0
  %5080 = vdwg.mxu0
  %v5082 = vsel %vm1653, %v4569, 0
  %5084 = vmatprep.subr.mxu0 0.0
  %5085 = vmatpush1.msra.mxu0 0.0
  %5086 = vmatprep.subr.mxu0 0.0
  %5087 = vmatpush1.msra.mxu0 0.0
  %5088 = vmatprep.subr.mxu0 0.0
  %5089 = vmatpush1.msra.mxu0 0.0
  %5090 = vmatprep.subr.mxu0 0.0
  %5091 = vmatpush1.msra.mxu0 0.0
  %5092 = vmatprep.subr.mxu0 0.0
  %5093 = vmatpush1.msra.mxu0 0.0
  %5094 = vmatprep.subr.mxu0 0.0
  %5095 = vmatpush1.msra.mxu0 0.0
  %5096 = vmatprep.subr.mxu0 0.0
  %5097 = vmatpush1.msra.mxu0 0.0
  %5098 = vmatprep.subr.mxu0 0.0
  %5099 = vmatpush1.msra.mxu0 0.0
  %5100 = vmatprep.subr.mxu0 0.0
  %5101 = vmatpush1.msra.mxu0 0.0
  %5102 = vmatprep.subr.mxu0 0.0
  %5103 = vmatpush1.msra.mxu0 0.0
  %5104 = vmatprep.subr.mxu0 0.0
  %5105 = vmatpush1.msra.mxu0 0.0
  %5106 = vmatprep.subr.mxu0 0.0
  %5107 = vmatpush1.msra.mxu0 0.0
  %5108 = vmatprep.subr.mxu0 0.0
  %5109 = vmatpush1.msra.mxu0 0.0
  %5110 = vmatprep.subr.mxu0 0.0
  %5111 = vmatpush1.msra.mxu0 0.0
  %5112 = vmatprep.subr.mxu0 0.0
  %5113 = vmatpush1.msra.mxu0 0.0
  %5114 = vmatprep.subr.mxu0 0.0
  %5115 = vmatpush1.msra.mxu0 %v3739
  %5116 = vmatprep.subr.mxu0 0.0
  %5117 = vmatpush2.msra.mxu0 0.0
  %5118 = vmatprep.subr.mxu0 0.0
  %5119 = vmatpush2.msra.mxu0 0.0
  %5120 = vmatprep.subr.mxu0 0.0
  %5121 = vmatpush2.msra.mxu0 0.0
  %5122 = vmatprep.subr.mxu0 0.0
  %5123 = vmatpush2.msra.mxu0 0.0
  %5124 = vmatprep.subr.mxu0 0.0
  %5125 = vmatpush2.msra.mxu0 0.0
  %5126 = vmatprep.subr.mxu0 0.0
  %5127 = vmatpush2.msra.mxu0 0.0
  %5128 = vmatprep.subr.mxu0 0.0
  %5129 = vmatpush2.msra.mxu0 0.0
  %5130 = vmatprep.subr.mxu0 0.0
  %5131 = vmatpush2.msra.mxu0 0.0
  %5132 = vmatprep.subr.mxu0 0.0
  %5133 = vmatpush2.msra.mxu0 0.0
  %5134 = vmatprep.subr.mxu0 0.0
  %5135 = vmatpush2.msra.mxu0 0.0
  %5136 = vmatprep.subr.mxu0 0.0
  %5137 = vmatpush2.msra.mxu0 0.0
  %5138 = vmatprep.subr.mxu0 0.0
  %5139 = vmatpush2.msra.mxu0 0.0
  %5140 = vmatprep.subr.mxu0 0.0
  %5141 = vmatpush2.msra.mxu0 0.0
  %5142 = vmatprep.subr.mxu0 0.0
  %5143 = vmatpush2.msra.mxu0 0.0
  %5144 = vmatprep.subr.mxu0 0.0
  %5145 = vmatpush2.msra.mxu0 0.0
  %5146 = vmatprep.subr.mxu0 0.0
  %5147 = vmatpush2.msra.mxu0 0.0
  %5148 = vmatprep.mubr.f32.mxu0 0.0
  %5149 = vmatmul.mubr.f32.gmra.mxu0 %v5082
  %v5150 = vpop.f32.mrf.mxu0
  %v5151 = vadd.f32 0.0, %v5150
  %v5152 = vpop.f32.mrf.mxu0
  %5153 = vdwg.mxu0
  %v5162 = vrot.slane %v4713, 7
  %vm5163 = vcmask 1041409
  %v5164 = vsel %vm5163, %v5162, %v4640
  %v5165 = vrot.slane %v4786, 6
  %vm5166 = vcmask 1042434
  %v5167 = vsel %vm5166, %v5165, %v5164
  %v5168 = vrot.slane %v4859, 5
  %vm5169 = vcmask 1043459
  %v5170 = vsel %vm5169, %v5168, %v5167
  %v5171 = vrot.slane %v4932, 4
  %vm5172 = vcmask 1044484
  %v5173 = vsel %vm5172, %v5171, %v5170
  %v5174 = vrot.slane %v5005, 3
  %vm5175 = vcmask 1045509
  %v5176 = vsel %vm5175, %v5174, %v5173
  %v5177 = vrot.slane %v5078, 2
  %vm5178 = vcmask 1046534
  %v5179 = vsel %vm5178, %v5177, %v5176
  %v5180 = vrot.slane %v5151, 1
  %vm5181 = vcmask 1047559
  %v5182 = vsel %vm5181, %v5180, %v5179
  %5184 = vst.msk [vmem:[%s2] sm:$0xff] %vm45, %v5182
  // Predicated region
  $region10: #{_lambda_.3} parent=0 // pred_check
    _
  $region11: #{_lambda_.3} parent=0 // pred_check_branch
    %5186 = sbr.rel (0) target = $region13
  $region12: #{_lambda_.3} parent=0 // pred_region
    _
  $region13: #{_lambda_.3} parent=0 // pred_fallthru
    _
  // Predicated region
  $region14: #{_lambda_.3} parent=0 // pred_check
    _
  $region15: #{_lambda_.3} parent=0 // pred_check_branch
    %5188 = sbr.rel (0) target = $region17
  $region16: #{_lambda_.3} parent=0 // pred_region
    _
  $region17: #{_lambda_.3} parent=0 // pred_fallthru
    _

// kernel: _lambda_.2
$region0: #{_lambda_.2}
  #allocation0 [shape = 'u32[]', space=smem, size = 0x4, offset = 0x4, fixed_abs, tag = 'smem constant byte address 0x4 - core index']
  #allocation1 [shape = 'u32[144,128]{1,0:T(1,128)}', space=vmem, size = 0x12000, scoped, tag = 'internal scratch']
  %s0 = inlined_call_operand.hbm [shape: f32[8,8,16], index: 0, kind: input, shape index: {}]
  %s1 = inlined_call_operand.vmem [shape: f32[8,8], index: 1, kind: input, shape index: {}]
  %s2 = inlined_call_operand.hbm [shape: f32[368,128], index: 2, kind: input, shape index: {}]
  %s3 = inlined_call_operand.vmem [shape: f32[8,8,32], index: 3, kind: output, shape index: {}]
  %s4 = sld [smem:[#allocation0]]
  $region30: #{_lambda_.2} parent=0
    _
  %s6 = ssub.s32 1, %s4
  %s7 = scalar_select 0, %s6, %s4
  $region1: #{_lambda_.2} parent=0
    #allocation2 [shape = 'u8[32768]{0}', space=vmem, size = 0x8000, scoped, tag = 'input window, operand 0, single buffered']
    #allocation3 [shape = 's32[1]{0}', space=sflag, size = 0x4, scoped, tag = 'scoped memory for _lambda_.2']
    #allocation4 [shape = 'u8[188416]{0}', space=vmem, size = 0x2e000, scoped, tag = 'input window, operand 2, single buffered']
    #allocation5 [shape = 's32[1]{0}', space=sflag, size = 0x4, scoped, tag = 'scoped memory for _lambda_.2']
    %8 = vsyncpa [#allocation3], 0
    %9 = vsyncpa [#allocation5], 0
    // Predicated region
    $region2: #{_lambda_.2} parent=1 // pred_check
      _
    $region3: #{_lambda_.2} parent=1 // pred_check_branch
      %11 = sbr.rel (0) target = $region5
    $region4: #{_lambda_.2} parent=1 // pred_region
      %s13 = ssub.s32 1024, 1024
      %14 = vsyncadd [#allocation3], %s13
      %s15 = sshll.u32 [#allocation2], 4
      %s16 = int_to_ptr.vmem [resolvable:$true] %s15
      %21 = dma.hbm_to_vmem [thread:$0]  %s0, 1024, %s16, [#allocation3], 128, 128, 8
    $region5: #{_lambda_.2} parent=1 // pred_fallthru
      _
    // Predicated region
    $region6: #{_lambda_.2} parent=1 // pred_check
      _
    $region7: #{_lambda_.2} parent=1 // pred_check_branch
      %23 = sbr.rel (0) target = $region9
    $region8: #{_lambda_.2} parent=1 // pred_region
      _
    $region9: #{_lambda_.2} parent=1 // pred_fallthru
      _
    // Predicated region
    $region10: #{_lambda_.2} parent=1 // pred_check
      _
    $region11: #{_lambda_.2} parent=1 // pred_check_branch
      %25 = sbr.rel (0) target = $region13
    $region12: #{_lambda_.2} parent=1 // pred_region
      %s27 = ssub.s32 5888, 5888
      %28 = vsyncadd [#allocation5], %s27
      %s29 = sshll.u32 [#allocation4], 4
      %s30 = int_to_ptr.vmem [resolvable:$true] %s29
      %35 = dma.hbm_to_vmem [thread:$0]  %s2, 5888, %s30, [#allocation5], 128, 128, 8
    $region13: #{_lambda_.2} parent=1 // pred_fallthru
      _
    // Predicated region
    $region14: #{_lambda_.2} parent=1 // pred_check
      _
    $region15: #{_lambda_.2} parent=1 // pred_check_branch
      %37 = sbr.rel (0) target = $region17
    $region16: #{_lambda_.2} parent=1 // pred_region
      %38 = dma.done [#allocation3], 1024
    $region17: #{_lambda_.2} parent=1 // pred_fallthru
      _
    // Predicated region
    $region18: #{_lambda_.2} parent=1 // pred_check
      _
    $region19: #{_lambda_.2} parent=1 // pred_check_branch
      %40 = sbr.rel (0) target = $region21
    $region20: #{_lambda_.2} parent=1 // pred_region
      %41 = dma.done [#allocation5], 5888
    $region21: #{_lambda_.2} parent=1 // pred_fallthru
      _
    %v42 = vld [vmem:[#allocation2] sm:$0xff]
    %v43 = vld [vmem:[#allocation2 + $0x8] sm:$0xff]
    %v44 = vld [vmem:[#allocation2 + $0x10] sm:$0xff]
    %v45 = vld [vmem:[#allocation2 + $0x18] sm:$0xff]
    %v46 = vld [vmem:[#allocation2 + $0x20] sm:$0xff]
    %v47 = vld [vmem:[#allocation2 + $0x28] sm:$0xff]
    %v48 = vld [vmem:[#allocation2 + $0x30] sm:$0xff]
    %v49 = vld [vmem:[#allocation2 + $0x38] sm:$0xff]
    %v50 = vld [vmem:[%s1] sm:$0xff]
    %v51 = vld [vmem:[#allocation4] sm:$0xff]
    %v52 = vld [vmem:[#allocation4 + $0x100] sm:$0x1]
    %v53 = vlaneseq
    %v54 = vshrl.u32 %v53, 7
    %v55 = vsub.s32 0, %v54
    %v56 = vrot.slane %v52, %v55
    %vm57 = vcmask 64512
    %v59 = vsel %vm57, %v50, 0
    %61 = vmatprep.subr.mxu0 0.0
    %62 = vmatpush1.msra.mxu0 0.0
    %63 = vmatprep.subr.mxu0 0.0
    %64 = vmatpush1.msra.mxu0 0.0
    %65 = vmatprep.subr.mxu0 0.0
    %66 = vmatpush1.msra.mxu0 0.0
    %67 = vmatprep.subr.mxu0 0.0
    %68 = vmatpush1.msra.mxu0 0.0
    %69 = vmatprep.subr.mxu0 0.0
    %70 = vmatpush1.msra.mxu0 0.0
    %71 = vmatprep.subr.mxu0 0.0
    %72 = vmatpush1.msra.mxu0 0.0
    %73 = vmatprep.subr.mxu0 0.0
    %74 = vmatpush1.msra.mxu0 0.0
    %75 = vmatprep.subr.mxu0 0.0
    %76 = vmatpush1.msra.mxu0 0.0
    %77 = vmatprep.subr.mxu0 0.0
    %78 = vmatpush1.msra.mxu0 0.0
    %79 = vmatprep.subr.mxu0 0.0
    %80 = vmatpush1.msra.mxu0 0.0
    %81 = vmatprep.subr.mxu0 0.0
    %82 = vmatpush1.msra.mxu0 0.0
    %83 = vmatprep.subr.mxu0 0.0
    %84 = vmatpush1.msra.mxu0 0.0
    %85 = vmatprep.subr.mxu0 0.0
    %86 = vmatpush1.msra.mxu0 0.0
    %87 = vmatprep.subr.mxu0 0.0
    %88 = vmatpush1.msra.mxu0 0.0
    %89 = vmatprep.subr.mxu0 0.0
    %90 = vmatpush1.msra.mxu0 0.0
    %91 = vmatprep.subr.mxu0 0.0
    %92 = vmatpush1.msra.mxu0 %v51
    %93 = vmatprep.subr.mxu0 0.0
    %94 = vmatpush2.msra.mxu0 0.0
    %95 = vmatprep.subr.mxu0 0.0
    %96 = vmatpush2.msra.mxu0 0.0
    %97 = vmatprep.subr.mxu0 0.0
    %98 = vmatpush2.msra.mxu0 0.0
    %99 = vmatprep.subr.mxu0 0.0
    %100 = vmatpush2.msra.mxu0 0.0
    %101 = vmatprep.subr.mxu0 0.0
    %102 = vmatpush2.msra.mxu0 0.0
    %103 = vmatprep.subr.mxu0 0.0
    %104 = vmatpush2.msra.mxu0 0.0
    %105 = vmatprep.subr.mxu0 0.0
    %106 = vmatpush2.msra.mxu0 0.0
    %107 = vmatprep.subr.mxu0 0.0
    %108 = vmatpush2.msra.mxu0 0.0
    %109 = vmatprep.subr.mxu0 0.0
    %110 = vmatpush2.msra.mxu0 0.0
    %111 = vmatprep.subr.mxu0 0.0
    %112 = vmatpush2.msra.mxu0 0.0
    %113 = vmatprep.subr.mxu0 0.0
    %114 = vmatpush2.msra.mxu0 0.0
    %115 = vmatprep.subr.mxu0 0.0
    %116 = vmatpush2.msra.mxu0 0.0
    %117 = vmatprep.subr.mxu0 0.0
    %118 = vmatpush2.msra.mxu0 0.0
    %119 = vmatprep.subr.mxu0 0.0
    %120 = vmatpush2.msra.mxu0 0.0
    %121 = vmatprep.subr.mxu0 0.0
    %122 = vmatpush2.msra.mxu0 0.0
    %123 = vmatprep.subr.mxu0 0.0
    %124 = vmatpush2.msra.mxu0 0.0
    %125 = vmatprep.mubr.f32.mxu0 0.0
    %126 = vmatmul.mubr.f32.gmra.mxu0 %v59
    %v127 = vpop.f32.mrf.mxu0
    %v128 = vadd.f32 %v56, %v127
    %v129 = vpop.f32.mrf.mxu0
    %130 = vdwg.mxu0
    %v131 = vmul.f32 %v128, 0.2
    %vm132 = vcmask 130048
    %v133 = vsel %vm132, %v131, -inf
    %134 = vmax.xlane.f32.xlu0 %v133
    %v135 = vpop.xlane.xlu0 %134
    %v136 = vsub.f32 %v131, %v135
    %v137 = vmul.f32 %v136, 1.442695
    %v138 = vpow.pop %v137
    %v139 = vsel %vm132, %v138, 0.0
    %140 = vadd.xlane.f32.xlu0 %v139
    %v141 = vpop.xlane.xlu0 %140
    %v142 = vrcp.pop %v141
    %v143 = vmul.f32 %v138, %v142
    %v144 = vmul.f32 %v143, 16.0
    %v146 = vcombine.high %v144, %v144
    %v148 = vunpack.c.l.s4 1966171168
    %v149 = vunpack.c.0.s8 %v148
    %v150 = vlaneseq
    %v151 = vshrl.u32 %v150, 7
    %v152 = vsub.s32 %v149, %v151
    %v153 = vrot.slane %v144, %v152
    %v155 = vunpack.c.l.s4 1966171168
    %v156 = vunpack.c.0.s8 %v155
    %v157 = vlaneseq
    %v158 = vshrl.u32 %v157, 7
    %v159 = vsub.s32 %v156, %v158
    %v160 = vrot.slane %v146, %v159
    %v161 = vcombine.high %v153, %v153
    %v162 = vcombine.high %v160, %v160
    %v164 = vunpack.c.l.s4 1966171168
    %v165 = vunpack.c.0.s8 %v164
    %v166 = vlaneseq
    %v167 = vshrl.u32 %v166, 7
    %v168 = vsub.s32 %v165, %v167
    %v169 = vrot.slane %v153, %v168
    %v171 = vunpack.c.l.s4 1966171168
    %v172 = vunpack.c.0.s8 %v171
    %v173 = vlaneseq
    %v174 = vshrl.u32 %v173, 7
    %v175 = vsub.s32 %v172, %v174
    %v176 = vrot.slane %v160, %v175
    %v178 = vunpack.c.l.s4 1966171168
    %v179 = vunpack.c.0.s8 %v178
    %v180 = vlaneseq
    %v181 = vshrl.u32 %v180, 7
    %v182 = vsub.s32 %v179, %v181
    %v183 = vrot.slane %v161, %v182
    %v185 = vunpack.c.l.s4 1966171168
    %v186 = vunpack.c.0.s8 %v185
    %v187 = vlaneseq
    %v188 = vshrl.u32 %v187, 7
    %v189 = vsub.s32 %v186, %v188
    %v190 = vrot.slane %v162, %v189
    %v191 = vcombine.high %v169, %v169
    %v192 = vcombine.high %v176, %v176
    %v193 = vcombine.high %v183, %v183
    %v194 = vcombine.high %v190, %v190
    %v195 = vlaneseq
    %v196 = vshrl.u32 %v195, 7
    %v197 = vsub.s32 0, %v196
    %v198 = vrot.slane %v169, %v197
    %v199 = vlaneseq
    %v200 = vshrl.u32 %v199, 7
    %v201 = vsub.s32 0, %v200
    %v202 = vrot.slane %v183, %v201
    %v203 = vlaneseq
    %v204 = vshrl.u32 %v203, 7
    %v205 = vsub.s32 0, %v204
    %v206 = vrot.slane %v191, %v205
    %v207 = vlaneseq
    %v208 = vshrl.u32 %v207, 7
    %v209 = vsub.s32 0, %v208
    %v210 = vrot.slane %v193, %v209
    %v211 = vlaneseq
    %v212 = vshrl.u32 %v211, 7
    %v213 = vsub.s32 0, %v212
    %v214 = vrot.slane %v176, %v213
    %v215 = vlaneseq
    %v216 = vshrl.u32 %v215, 7
    %v217 = vsub.s32 0, %v216
    %v218 = vrot.slane %v190, %v217
    %v219 = vlaneseq
    %v220 = vshrl.u32 %v219, 7
    %v221 = vsub.s32 0, %v220
    %v222 = vrot.slane %v192, %v221
    %v223 = vlaneseq
    %v224 = vshrl.u32 %v223, 7
    %v225 = vsub.s32 0, %v224
    %v226 = vrot.slane %v194, %v225
    %v235 = vmul.f32 %v42, %v198
    %v236 = vmul.f32 %v43, %v202
    %v237 = vmul.f32 %v44, %v206
    %v238 = vmul.f32 %v45, %v210
    %v239 = vmul.f32 %v46, %v214
    %v240 = vmul.f32 %v47, %v218
    %v241 = vmul.f32 %v48, %v222
    %v242 = vmul.f32 %v49, %v226
    %v243 = vld [vmem:[#allocation4 + $0x10] sm:$0xff]
    %v244 = vld [vmem:[#allocation4 + $0x18] sm:$0xff]
    %v245 = vld [vmem:[#allocation4 + $0x108] sm:$0x1]
    %v246 = vlaneseq
    %v247 = vshrl.u32 %v246, 7
    %v248 = vsub.s32 0, %v247
    %v249 = vrot.slane %v245, %v248
    %v251 = vsel %vm132, %v235, 0
    %v254 = vsel %vm132, %v236, 0
    %v257 = vsel %vm132, %v237, 0
    %v260 = vsel %vm132, %v238, 0
    %v263 = vsel %vm132, %v239, 0
    %v266 = vsel %vm132, %v240, 0
    %v269 = vsel %vm132, %v241, 0
    %v272 = vsel %vm132, %v242, 0
    %274 = vmatprep.subr.mxu0 0.0
    %275 = vmatpush1.msra.mxu0 0.0
    %276 = vmatprep.subr.mxu0 0.0
    %277 = vmatpush1.msra.mxu0 0.0
    %278 = vmatprep.subr.mxu0 0.0
    %279 = vmatpush1.msra.mxu0 0.0
    %280 = vmatprep.subr.mxu0 0.0
    %281 = vmatpush1.msra.mxu0 0.0
    %282 = vmatprep.subr.mxu0 0.0
    %283 = vmatpush1.msra.mxu0 0.0
    %284 = vmatprep.subr.mxu0 0.0
    %285 = vmatpush1.msra.mxu0 0.0
    %286 = vmatprep.subr.mxu0 0.0
    %287 = vmatpush1.msra.mxu0 0.0
    %288 = vmatprep.subr.mxu0 0.0
    %289 = vmatpush1.msra.mxu0 0.0
    %290 = vmatprep.subr.mxu0 0.0
    %291 = vmatpush1.msra.mxu0 0.0
    %292 = vmatprep.subr.mxu0 0.0
    %293 = vmatpush1.msra.mxu0 0.0
    %294 = vmatprep.subr.mxu0 0.0
    %295 = vmatpush1.msra.mxu0 0.0
    %296 = vmatprep.subr.mxu0 0.0
    %297 = vmatpush1.msra.mxu0 0.0
    %298 = vmatprep.subr.mxu0 0.0
    %299 = vmatpush1.msra.mxu0 0.0
    %300 = vmatprep.subr.mxu0 0.0
    %301 = vmatpush1.msra.mxu0 0.0
    %302 = vmatprep.subr.mxu0 0.0
    %303 = vmatpush1.msra.mxu0 %v244
    %304 = vmatprep.subr.mxu0 0.0
    %305 = vmatpush1.msra.mxu0 %v243
    %306 = vmatprep.subr.mxu0 0.0
    %307 = vmatpush2.msra.mxu0 0.0
    %308 = vmatprep.subr.mxu0 0.0
    %309 = vmatpush2.msra.mxu0 0.0
    %310 = vmatprep.subr.mxu0 0.0
    %311 = vmatpush2.msra.mxu0 0.0
    %312 = vmatprep.subr.mxu0 0.0
    %313 = vmatpush2.msra.mxu0 0.0
    %314 = vmatprep.subr.mxu0 0.0
    %315 = vmatpush2.msra.mxu0 0.0
    %316 = vmatprep.subr.mxu0 0.0
    %317 = vmatpush2.msra.mxu0 0.0
    %318 = vmatprep.subr.mxu0 0.0
    %319 = vmatpush2.msra.mxu0 0.0
    %320 = vmatprep.subr.mxu0 0.0
    %321 = vmatpush2.msra.mxu0 0.0
    %322 = vmatprep.subr.mxu0 0.0
    %323 = vmatpush2.msra.mxu0 0.0
    %324 = vmatprep.subr.mxu0 0.0
    %325 = vmatpush2.msra.mxu0 0.0
    %326 = vmatprep.subr.mxu0 0.0
    %327 = vmatpush2.msra.mxu0 0.0
    %328 = vmatprep.subr.mxu0 0.0
    %329 = vmatpush2.msra.mxu0 0.0
    %330 = vmatprep.subr.mxu0 0.0
    %331 = vmatpush2.msra.mxu0 0.0
    %332 = vmatprep.subr.mxu0 0.0
    %333 = vmatpush2.msra.mxu0 0.0
    %334 = vmatprep.subr.mxu0 0.0
    %335 = vmatpush2.msra.mxu0 0.0
    %336 = vmatprep.subr.mxu0 0.0
    %337 = vmatpush2.msra.mxu0 0.0
    %338 = vmatprep.mubr.f32.mxu0 0.0
    %339 = vmatmul.mubr.f32.gmra.mxu0 %v251
    %v340 = vpop.f32.mrf.mxu0
    %v341 = vadd.f32 %v249, %v340
    %v342 = vpop.f32.mrf.mxu0
    %343 = vmatprep.mubr.f32.mxu0 0.0
    %344 = vmatmul.mubr.f32.gmra.mxu0 %v254
    %v345 = vpop.f32.mrf.mxu0
    %v346 = vadd.f32 %v249, %v345
    %v347 = vpop.f32.mrf.mxu0
    %348 = vmatprep.mubr.f32.mxu0 0.0
    %349 = vmatmul.mubr.f32.gmra.mxu0 %v257
    %v350 = vpop.f32.mrf.mxu0
    %v351 = vadd.f32 %v249, %v350
    %v352 = vpop.f32.mrf.mxu0
    %353 = vmatprep.mubr.f32.mxu0 0.0
    %354 = vmatmul.mubr.f32.gmra.mxu0 %v260
    %v355 = vpop.f32.mrf.mxu0
    %v356 = vadd.f32 %v249, %v355
    %v357 = vpop.f32.mrf.mxu0
    %358 = vmatprep.mubr.f32.mxu0 0.0
    %359 = vmatmul.mubr.f32.gmra.mxu0 %v263
    %v360 = vpop.f32.mrf.mxu0
    %v361 = vadd.f32 %v249, %v360
    %v362 = vpop.f32.mrf.mxu0
    %363 = vmatprep.mubr.f32.mxu0 0.0
    %364 = vmatmul.mubr.f32.gmra.mxu0 %v266
    %v365 = vpop.f32.mrf.mxu0
    %v366 = vadd.f32 %v249, %v365
    %v367 = vpop.f32.mrf.mxu0
    %368 = vmatprep.mubr.f32.mxu0 0.0
    %369 = vmatmul.mubr.f32.gmra.mxu0 %v269
    %v370 = vpop.f32.mrf.mxu0
    %v371 = vadd.f32 %v249, %v370
    %v372 = vpop.f32.mrf.mxu0
    %373 = vmatprep.mubr.f32.mxu0 0.0
    %374 = vmatmul.mubr.f32.gmra.mxu0 %v272
    %v375 = vpop.f32.mrf.mxu0
    %v376 = vadd.f32 %v249, %v375
    %v377 = vpop.f32.mrf.mxu0
    %378 = vdwg.mxu0
    %v379 = vld [vmem:[#allocation4 + $0x8] sm:$0xff]
    %v380 = vadd.f32 %v341, %v379
    %v381 = vadd.f32 %v346, %v379
    %v382 = vadd.f32 %v351, %v379
    %v383 = vadd.f32 %v356, %v379
    %v384 = vadd.f32 %v361, %v379
    %v385 = vadd.f32 %v366, %v379
    %v386 = vadd.f32 %v371, %v379
    %v387 = vadd.f32 %v376, %v379
    %v388 = vld [vmem:[#allocation4 + $0x20] sm:$0xff]
    %v389 = vld [vmem:[#allocation4 + $0x28] sm:$0xff]
    %v390 = vld [vmem:[#allocation4 + $0x30] sm:$0xff]
    %v391 = vld [vmem:[#allocation4 + $0x38] sm:$0xff]
    %v392 = vld [vmem:[#allocation4 + $0x110] sm:$0x1]
    %v393 = vld [vmem:[#allocation4 + $0x118] sm:$0x1]
    %v394 = vld [vmem:[#allocation4 + $0x120] sm:$0x1]
    %v395 = vld [vmem:[#allocation4 + $0x128] sm:$0x1]
    %v396 = vld [vmem:[#allocation4 + $0x40] sm:$0xff]
    %v397 = vld [vmem:[#allocation4 + $0x48] sm:$0xff]
    %v398 = vld [vmem:[#allocation4 + $0x50] sm:$0xff]
    %v399 = vld [vmem:[#allocation4 + $0x58] sm:$0xff]
    %v400 = vld [vmem:[#allocation4 + $0x130] sm:$0x1]
    %v401 = vld [vmem:[#allocation4 + $0x60] sm:$0xff]
    %v402 = vld [vmem:[#allocation4 + $0x68] sm:$0xff]
    %v403 = vld [vmem:[#allocation4 + $0x70] sm:$0xff]
    %v404 = vld [vmem:[#allocation4 + $0x78] sm:$0xff]
    %v405 = vld [vmem:[#allocation4 + $0x138] sm:$0x1]
    %v406 = vmul.f32 %v380, %v380
    %v407 = vmul.f32 %v381, %v381
    %v408 = vmul.f32 %v382, %v382
    %v409 = vmul.f32 %v383, %v383
    %v410 = vmul.f32 %v384, %v384
    %v411 = vmul.f32 %v385, %v385
    %v412 = vmul.f32 %v386, %v386
    %v413 = vmul.f32 %v387, %v387
    %vm414 = vcmask 261120
    %v415 = vsel %vm414, %v406, 0.0
    %416 = vadd.xlane.f32.xlu0 %v415
    %v417 = vpop.xlane.xlu0 %416
    %v418 = vsel %vm414, %v407, 0.0
    %419 = vadd.xlane.f32.xlu0 %v418
    %v420 = vpop.xlane.xlu0 %419
    %v421 = vsel %vm414, %v408, 0.0
    %422 = vadd.xlane.f32.xlu0 %v421
    %v423 = vpop.xlane.xlu0 %422
    %v424 = vsel %vm414, %v409, 0.0
    %425 = vadd.xlane.f32.xlu0 %v424
    %v426 = vpop.xlane.xlu0 %425
    %v427 = vsel %vm414, %v410, 0.0
    %428 = vadd.xlane.f32.xlu0 %v427
    %v429 = vpop.xlane.xlu0 %428
    %v430 = vsel %vm414, %v411, 0.0
    %431 = vadd.xlane.f32.xlu0 %v430
    %v432 = vpop.xlane.xlu0 %431
    %v433 = vsel %vm414, %v412, 0.0
    %434 = vadd.xlane.f32.xlu0 %v433
    %v435 = vpop.xlane.xlu0 %434
    %v436 = vsel %vm414, %v413, 0.0
    %437 = vadd.xlane.f32.xlu0 %v436
    %v438 = vpop.xlane.xlu0 %437
    %v439 = vrcp.pop 32.0
    %v440 = vmul.f32 %v417, %v439
    %v441 = vmul.f32 %v420, %v439
    %v442 = vmul.f32 %v423, %v439
    %v443 = vmul.f32 %v426, %v439
    %v444 = vmul.f32 %v429, %v439
    %v445 = vmul.f32 %v432, %v439
    %v446 = vmul.f32 %v435, %v439
    %v447 = vmul.f32 %v438, %v439
    %v448 = vadd.f32 %v440, 1e-05
    %v449 = vadd.f32 %v441, 1e-05
    %v450 = vadd.f32 %v442, 1e-05
    %v451 = vadd.f32 %v443, 1e-05
    %v452 = vadd.f32 %v444, 1e-05
    %v453 = vadd.f32 %v445, 1e-05
    %v454 = vadd.f32 %v446, 1e-05
    %v455 = vadd.f32 %v447, 1e-05
    %v456 = vrsqrt.pop %v448
    %v457 = vrsqrt.pop %v449
    %v458 = vrsqrt.pop %v450
    %v459 = vrsqrt.pop %v451
    %v460 = vrsqrt.pop %v452
    %v461 = vrsqrt.pop %v453
    %v462 = vrsqrt.pop %v454
    %v463 = vrsqrt.pop %v455
    %v464 = vmul.f32 %v380, %v456
    %v465 = vmul.f32 %v381, %v457
    %v466 = vmul.f32 %v382, %v458
    %v467 = vmul.f32 %v383, %v459
    %v468 = vmul.f32 %v384, %v460
    %v469 = vmul.f32 %v385, %v461
    %v470 = vmul.f32 %v386, %v462
    %v471 = vmul.f32 %v387, %v463
    %v472 = vlaneseq
    %v473 = vshrl.u32 %v472, 7
    %v474 = vsub.s32 0, %v473
    %v475 = vrot.slane %v392, %v474
    %v476 = vmul.f32 %v464, %v475
    %v477 = vmul.f32 %v465, %v475
    %v478 = vmul.f32 %v466, %v475
    %v479 = vmul.f32 %v467, %v475
    %v480 = vmul.f32 %v468, %v475
    %v481 = vmul.f32 %v469, %v475
    %v482 = vmul.f32 %v470, %v475
    %v483 = vmul.f32 %v471, %v475
    %v485 = vsel %vm414, %v476, 0
    %v488 = vsel %vm414, %v477, 0
    %v491 = vsel %vm414, %v478, 0
    %v494 = vsel %vm414, %v479, 0
    %v497 = vsel %vm414, %v480, 0
    %v500 = vsel %vm414, %v481, 0
    %v503 = vsel %vm414, %v482, 0
    %v506 = vsel %vm414, %v483, 0
    %508 = vmatprep.subr.mxu0 0.0
    %509 = vmatpush1.msra.mxu0 0.0
    %510 = vmatprep.subr.mxu0 0.0
    %511 = vmatpush1.msra.mxu0 0.0
    %512 = vmatprep.subr.mxu0 0.0
    %513 = vmatpush1.msra.mxu0 0.0
    %514 = vmatprep.subr.mxu0 0.0
    %515 = vmatpush1.msra.mxu0 0.0
    %516 = vmatprep.subr.mxu0 0.0
    %517 = vmatpush1.msra.mxu0 0.0
    %518 = vmatprep.subr.mxu0 0.0
    %519 = vmatpush1.msra.mxu0 0.0
    %520 = vmatprep.subr.mxu0 0.0
    %521 = vmatpush1.msra.mxu0 0.0
    %522 = vmatprep.subr.mxu0 0.0
    %523 = vmatpush1.msra.mxu0 0.0
    %524 = vmatprep.subr.mxu0 0.0
    %525 = vmatpush1.msra.mxu0 0.0
    %526 = vmatprep.subr.mxu0 0.0
    %527 = vmatpush1.msra.mxu0 0.0
    %528 = vmatprep.subr.mxu0 0.0
    %529 = vmatpush1.msra.mxu0 0.0
    %530 = vmatprep.subr.mxu0 0.0
    %531 = vmatpush1.msra.mxu0 0.0
    %532 = vmatprep.subr.mxu0 0.0
    %533 = vmatpush1.msra.mxu0 %v391
    %534 = vmatprep.subr.mxu0 0.0
    %535 = vmatpush1.msra.mxu0 %v390
    %536 = vmatprep.subr.mxu0 0.0
    %537 = vmatpush1.msra.mxu0 %v389
    %538 = vmatprep.subr.mxu0 0.0
    %539 = vmatpush1.msra.mxu0 %v388
    %540 = vmatprep.subr.mxu0 0.0
    %541 = vmatpush2.msra.mxu0 0.0
    %542 = vmatprep.subr.mxu0 0.0
    %543 = vmatpush2.msra.mxu0 0.0
    %544 = vmatprep.subr.mxu0 0.0
    %545 = vmatpush2.msra.mxu0 0.0
    %546 = vmatprep.subr.mxu0 0.0
    %547 = vmatpush2.msra.mxu0 0.0
    %548 = vmatprep.subr.mxu0 0.0
    %549 = vmatpush2.msra.mxu0 0.0
    %550 = vmatprep.subr.mxu0 0.0
    %551 = vmatpush2.msra.mxu0 0.0
    %552 = vmatprep.subr.mxu0 0.0
    %553 = vmatpush2.msra.mxu0 0.0
    %554 = vmatprep.subr.mxu0 0.0
    %555 = vmatpush2.msra.mxu0 0.0
    %556 = vmatprep.subr.mxu0 0.0
    %557 = vmatpush2.msra.mxu0 0.0
    %558 = vmatprep.subr.mxu0 0.0
    %559 = vmatpush2.msra.mxu0 0.0
    %560 = vmatprep.subr.mxu0 0.0
    %561 = vmatpush2.msra.mxu0 0.0
    %562 = vmatprep.subr.mxu0 0.0
    %563 = vmatpush2.msra.mxu0 0.0
    %564 = vmatprep.subr.mxu0 0.0
    %565 = vmatpush2.msra.mxu0 0.0
    %566 = vmatprep.subr.mxu0 0.0
    %567 = vmatpush2.msra.mxu0 0.0
    %568 = vmatprep.subr.mxu0 0.0
    %569 = vmatpush2.msra.mxu0 0.0
    %570 = vmatprep.subr.mxu0 0.0
    %571 = vmatpush2.msra.mxu0 0.0
    %572 = vmatprep.mubr.f32.mxu0 0.0
    %573 = vmatmul.mubr.f32.gmra.mxu0 %v485
    %v574 = vpop.f32.mrf.mxu0
    %v575 = vadd.f32 0.0, %v574
    %v576 = vpop.f32.mrf.mxu0
    %577 = vmatprep.mubr.f32.mxu0 0.0
    %578 = vmatmul.mubr.f32.gmra.mxu0 %v488
    %v579 = vpop.f32.mrf.mxu0
    %v580 = vadd.f32 0.0, %v579
    %v581 = vpop.f32.mrf.mxu0
    %582 = vmatprep.mubr.f32.mxu0 0.0
    %583 = vmatmul.mubr.f32.gmra.mxu0 %v491
    %v584 = vpop.f32.mrf.mxu0
    %v585 = vadd.f32 0.0, %v584
    %v586 = vpop.f32.mrf.mxu0
    %587 = vmatprep.mubr.f32.mxu0 0.0
    %588 = vmatmul.mubr.f32.gmra.mxu0 %v494
    %v589 = vpop.f32.mrf.mxu0
    %v590 = vadd.f32 0.0, %v589
    %v591 = vpop.f32.mrf.mxu0
    %592 = vmatprep.mubr.f32.mxu0 0.0
    %593 = vmatmul.mubr.f32.gmra.mxu0 %v497
    %v594 = vpop.f32.mrf.mxu0
    %v595 = vadd.f32 0.0, %v594
    %v596 = vpop.f32.mrf.mxu0
    %597 = vmatprep.mubr.f32.mxu0 0.0
    %598 = vmatmul.mubr.f32.gmra.mxu0 %v500
    %v599 = vpop.f32.mrf.mxu0
    %v600 = vadd.f32 0.0, %v599
    %v601 = vpop.f32.mrf.mxu0
    %602 = vmatprep.mubr.f32.mxu0 0.0
    %603 = vmatmul.mubr.f32.gmra.mxu0 %v503
    %v604 = vpop.f32.mrf.mxu0
    %v605 = vadd.f32 0.0, %v604
    %v606 = vpop.f32.mrf.mxu0
    %607 = vmatprep.mubr.f32.mxu0 0.0
    %608 = vmatmul.mubr.f32.gmra.mxu0 %v506
    %v609 = vpop.f32.mrf.mxu0
    %v610 = vadd.f32 0.0, %v609
    %v611 = vpop.f32.mrf.mxu0
    %612 = vdwg.mxu0
    %621 = vrot.lane.b32.xlu0 %v575, 120
    %v622 = vpop.permute.xlu0 %621
    %623 = vrot.lane.b32.xlu0 %v580, 120
    %v624 = vpop.permute.xlu0 %623
    %625 = vrot.lane.b32.xlu0 %v585, 120
    %v626 = vpop.permute.xlu0 %625
    %627 = vrot.lane.b32.xlu0 %v590, 120
    %v628 = vpop.permute.xlu0 %627
    %629 = vrot.lane.b32.xlu0 %v595, 120
    %v630 = vpop.permute.xlu0 %629
    %631 = vrot.lane.b32.xlu0 %v600, 120
    %v632 = vpop.permute.xlu0 %631
    %633 = vrot.lane.b32.xlu0 %v605, 120
    %v634 = vpop.permute.xlu0 %633
    %635 = vrot.lane.b32.xlu0 %v610, 120
    %v636 = vpop.permute.xlu0 %635
    %637 = vrot.lane.b32.xlu0 %v575, 112
    %v638 = vpop.permute.xlu0 %637
    %639 = vrot.lane.b32.xlu0 %v580, 112
    %v640 = vpop.permute.xlu0 %639
    %641 = vrot.lane.b32.xlu0 %v585, 112
    %v642 = vpop.permute.xlu0 %641
    %643 = vrot.lane.b32.xlu0 %v590, 112
    %v644 = vpop.permute.xlu0 %643
    %645 = vrot.lane.b32.xlu0 %v595, 112
    %v646 = vpop.permute.xlu0 %645
    %647 = vrot.lane.b32.xlu0 %v600, 112
    %v648 = vpop.permute.xlu0 %647
    %649 = vrot.lane.b32.xlu0 %v605, 112
    %v650 = vpop.permute.xlu0 %649
    %651 = vrot.lane.b32.xlu0 %v610, 112
    %v652 = vpop.permute.xlu0 %651
    %653 = vrot.lane.b32.xlu0 %v575, 104
    %v654 = vpop.permute.xlu0 %653
    %655 = vrot.lane.b32.xlu0 %v580, 104
    %v656 = vpop.permute.xlu0 %655
    %657 = vrot.lane.b32.xlu0 %v585, 104
    %v658 = vpop.permute.xlu0 %657
    %659 = vrot.lane.b32.xlu0 %v590, 104
    %v660 = vpop.permute.xlu0 %659
    %661 = vrot.lane.b32.xlu0 %v595, 104
    %v662 = vpop.permute.xlu0 %661
    %663 = vrot.lane.b32.xlu0 %v600, 104
    %v664 = vpop.permute.xlu0 %663
    %665 = vrot.lane.b32.xlu0 %v605, 104
    %v666 = vpop.permute.xlu0 %665
    %667 = vrot.lane.b32.xlu0 %v610, 104
    %v668 = vpop.permute.xlu0 %667
    %669 = vrot.lane.b32.xlu0 %v575, 96
    %v670 = vpop.permute.xlu0 %669
    %v671 = vsel %vm57, %v575, 0
    %v673 = vsel %vm57, %v670, 0
    %675 = vmatprep.subr.mxu0 0.0
    %676 = vmatpush1.xpose.msra.mxu0 0.0
    %677 = vmatprep.subr.mxu0 0.0
    %678 = vmatpush1.xpose.msra.mxu0 0.0
    %679 = vmatprep.subr.mxu0 0.0
    %680 = vmatpush1.xpose.msra.mxu0 0.0
    %681 = vmatprep.subr.mxu0 0.0
    %682 = vmatpush1.xpose.msra.mxu0 0.0
    %683 = vmatprep.subr.mxu0 0.0
    %684 = vmatpush1.xpose.msra.mxu0 0.0
    %685 = vmatprep.subr.mxu0 0.0
    %686 = vmatpush1.xpose.msra.mxu0 0.0
    %687 = vmatprep.subr.mxu0 0.0
    %688 = vmatpush1.xpose.msra.mxu0 0.0
    %689 = vmatprep.subr.mxu0 0.0
    %690 = vmatpush1.xpose.msra.mxu0 0.0
    %691 = vmatprep.subr.mxu0 0.0
    %692 = vmatpush1.xpose.msra.mxu0 0.0
    %693 = vmatprep.subr.mxu0 0.0
    %694 = vmatpush1.xpose.msra.mxu0 0.0
    %695 = vmatprep.subr.mxu0 0.0
    %696 = vmatpush1.xpose.msra.mxu0 0.0
    %697 = vmatprep.subr.mxu0 0.0
    %698 = vmatpush1.xpose.msra.mxu0 0.0
    %699 = vmatprep.subr.mxu0 0.0
    %700 = vmatpush1.xpose.msra.mxu0 0.0
    %701 = vmatprep.subr.mxu0 0.0
    %702 = vmatpush1.xpose.msra.mxu0 0.0
    %703 = vmatprep.subr.mxu0 0.0
    %704 = vmatpush1.xpose.msra.mxu0 0.0
    %705 = vmatprep.subr.mxu0 0.0
    %706 = vmatpush1.xpose.msra.mxu0 %v673
    %707 = vmatprep.subr.mxu0 0.0
    %708 = vmatpush2.xpose.msra.mxu0 0.0
    %709 = vmatprep.subr.mxu0 0.0
    %710 = vmatpush2.xpose.msra.mxu0 0.0
    %711 = vmatprep.subr.mxu0 0.0
    %712 = vmatpush2.xpose.msra.mxu0 0.0
    %713 = vmatprep.subr.mxu0 0.0
    %714 = vmatpush2.xpose.msra.mxu0 0.0
    %715 = vmatprep.subr.mxu0 0.0
    %716 = vmatpush2.xpose.msra.mxu0 0.0
    %717 = vmatprep.subr.mxu0 0.0
    %718 = vmatpush2.xpose.msra.mxu0 0.0
    %719 = vmatprep.subr.mxu0 0.0
    %720 = vmatpush2.xpose.msra.mxu0 0.0
    %721 = vmatprep.subr.mxu0 0.0
    %722 = vmatpush2.xpose.msra.mxu0 0.0
    %723 = vmatprep.subr.mxu0 0.0
    %724 = vmatpush2.xpose.msra.mxu0 0.0
    %725 = vmatprep.subr.mxu0 0.0
    %726 = vmatpush2.xpose.msra.mxu0 0.0
    %727 = vmatprep.subr.mxu0 0.0
    %728 = vmatpush2.xpose.msra.mxu0 0.0
    %729 = vmatprep.subr.mxu0 0.0
    %730 = vmatpush2.xpose.msra.mxu0 0.0
    %731 = vmatprep.subr.mxu0 0.0
    %732 = vmatpush2.xpose.msra.mxu0 0.0
    %733 = vmatprep.subr.mxu0 0.0
    %734 = vmatpush2.xpose.msra.mxu0 0.0
    %735 = vmatprep.subr.mxu0 0.0
    %736 = vmatpush2.xpose.msra.mxu0 0.0
    %737 = vmatprep.subr.mxu0 0.0
    %738 = vmatpush2.xpose.msra.mxu0 0.0
    %739 = vmatprep.mubr.f32.mxu0 0.0
    %740 = vmatmul.mubr.f32.gmra.mxu0 %v671
    %v741 = vpop.f32.mrf.mxu0
    %v742 = vadd.f32 0.0, %v741
    %v743 = vpop.f32.mrf.mxu0
    %744 = vdwg.mxu0
    %745 = vrot.lane.b32.xlu0 %v580, 96
    %v746 = vpop.permute.xlu0 %745
    %v747 = vsel %vm57, %v580, 0
    %v749 = vsel %vm57, %v746, 0
    %751 = vmatprep.subr.mxu0 0.0
    %752 = vmatpush1.xpose.msra.mxu0 0.0
    %753 = vmatprep.subr.mxu0 0.0
    %754 = vmatpush1.xpose.msra.mxu0 0.0
    %755 = vmatprep.subr.mxu0 0.0
    %756 = vmatpush1.xpose.msra.mxu0 0.0
    %757 = vmatprep.subr.mxu0 0.0
    %758 = vmatpush1.xpose.msra.mxu0 0.0
    %759 = vmatprep.subr.mxu0 0.0
    %760 = vmatpush1.xpose.msra.mxu0 0.0
    %761 = vmatprep.subr.mxu0 0.0
    %762 = vmatpush1.xpose.msra.mxu0 0.0
    %763 = vmatprep.subr.mxu0 0.0
    %764 = vmatpush1.xpose.msra.mxu0 0.0
    %765 = vmatprep.subr.mxu0 0.0
    %766 = vmatpush1.xpose.msra.mxu0 0.0
    %767 = vmatprep.subr.mxu0 0.0
    %768 = vmatpush1.xpose.msra.mxu0 0.0
    %769 = vmatprep.subr.mxu0 0.0
    %770 = vmatpush1.xpose.msra.mxu0 0.0
    %771 = vmatprep.subr.mxu0 0.0
    %772 = vmatpush1.xpose.msra.mxu0 0.0
    %773 = vmatprep.subr.mxu0 0.0
    %774 = vmatpush1.xpose.msra.mxu0 0.0
    %775 = vmatprep.subr.mxu0 0.0
    %776 = vmatpush1.xpose.msra.mxu0 0.0
    %777 = vmatprep.subr.mxu0 0.0
    %778 = vmatpush1.xpose.msra.mxu0 0.0
    %779 = vmatprep.subr.mxu0 0.0
    %780 = vmatpush1.xpose.msra.mxu0 0.0
    %781 = vmatprep.subr.mxu0 0.0
    %782 = vmatpush1.xpose.msra.mxu0 %v749
    %783 = vmatprep.subr.mxu0 0.0
    %784 = vmatpush2.xpose.msra.mxu0 0.0
    %785 = vmatprep.subr.mxu0 0.0
    %786 = vmatpush2.xpose.msra.mxu0 0.0
    %787 = vmatprep.subr.mxu0 0.0
    %788 = vmatpush2.xpose.msra.mxu0 0.0
    %789 = vmatprep.subr.mxu0 0.0
    %790 = vmatpush2.xpose.msra.mxu0 0.0
    %791 = vmatprep.subr.mxu0 0.0
    %792 = vmatpush2.xpose.msra.mxu0 0.0
    %793 = vmatprep.subr.mxu0 0.0
    %794 = vmatpush2.xpose.msra.mxu0 0.0
    %795 = vmatprep.subr.mxu0 0.0
    %796 = vmatpush2.xpose.msra.mxu0 0.0
    %797 = vmatprep.subr.mxu0 0.0
    %798 = vmatpush2.xpose.msra.mxu0 0.0
    %799 = vmatprep.subr.mxu0 0.0
    %800 = vmatpush2.xpose.msra.mxu0 0.0
    %801 = vmatprep.subr.mxu0 0.0
    %802 = vmatpush2.xpose.msra.mxu0 0.0
    %803 = vmatprep.subr.mxu0 0.0
    %804 = vmatpush2.xpose.msra.mxu0 0.0
    %805 = vmatprep.subr.mxu0 0.0
    %806 = vmatpush2.xpose.msra.mxu0 0.0
    %807 = vmatprep.subr.mxu0 0.0
    %808 = vmatpush2.xpose.msra.mxu0 0.0
    %809 = vmatprep.subr.mxu0 0.0
    %810 = vmatpush2.xpose.msra.mxu0 0.0
    %811 = vmatprep.subr.mxu0 0.0
    %812 = vmatpush2.xpose.msra.mxu0 0.0
    %813 = vmatprep.subr.mxu0 0.0
    %814 = vmatpush2.xpose.msra.mxu0 0.0
    %815 = vmatprep.mubr.f32.mxu0 0.0
    %816 = vmatmul.mubr.f32.gmra.mxu0 %v747
    %v817 = vpop.f32.mrf.mxu0
    %v818 = vadd.f32 0.0, %v817
    %v819 = vpop.f32.mrf.mxu0
    %820 = vdwg.mxu0
    %821 = vrot.lane.b32.xlu0 %v585, 96
    %v822 = vpop.permute.xlu0 %821
    %v823 = vsel %vm57, %v585, 0
    %v825 = vsel %vm57, %v822, 0
    %827 = vmatprep.subr.mxu0 0.0
    %828 = vmatpush1.xpose.msra.mxu0 0.0
    %829 = vmatprep.subr.mxu0 0.0
    %830 = vmatpush1.xpose.msra.mxu0 0.0
    %831 = vmatprep.subr.mxu0 0.0
    %832 = vmatpush1.xpose.msra.mxu0 0.0
    %833 = vmatprep.subr.mxu0 0.0
    %834 = vmatpush1.xpose.msra.mxu0 0.0
    %835 = vmatprep.subr.mxu0 0.0
    %836 = vmatpush1.xpose.msra.mxu0 0.0
    %837 = vmatprep.subr.mxu0 0.0
    %838 = vmatpush1.xpose.msra.mxu0 0.0
    %839 = vmatprep.subr.mxu0 0.0
    %840 = vmatpush1.xpose.msra.mxu0 0.0
    %841 = vmatprep.subr.mxu0 0.0
    %842 = vmatpush1.xpose.msra.mxu0 0.0
    %843 = vmatprep.subr.mxu0 0.0
    %844 = vmatpush1.xpose.msra.mxu0 0.0
    %845 = vmatprep.subr.mxu0 0.0
    %846 = vmatpush1.xpose.msra.mxu0 0.0
    %847 = vmatprep.subr.mxu0 0.0
    %848 = vmatpush1.xpose.msra.mxu0 0.0
    %849 = vmatprep.subr.mxu0 0.0
    %850 = vmatpush1.xpose.msra.mxu0 0.0
    %851 = vmatprep.subr.mxu0 0.0
    %852 = vmatpush1.xpose.msra.mxu0 0.0
    %853 = vmatprep.subr.mxu0 0.0
    %854 = vmatpush1.xpose.msra.mxu0 0.0
    %855 = vmatprep.subr.mxu0 0.0
    %856 = vmatpush1.xpose.msra.mxu0 0.0
    %857 = vmatprep.subr.mxu0 0.0
    %858 = vmatpush1.xpose.msra.mxu0 %v825
    %859 = vmatprep.subr.mxu0 0.0
    %860 = vmatpush2.xpose.msra.mxu0 0.0
    %861 = vmatprep.subr.mxu0 0.0
    %862 = vmatpush2.xpose.msra.mxu0 0.0
    %863 = vmatprep.subr.mxu0 0.0
    %864 = vmatpush2.xpose.msra.mxu0 0.0
    %865 = vmatprep.subr.mxu0 0.0
    %866 = vmatpush2.xpose.msra.mxu0 0.0
    %867 = vmatprep.subr.mxu0 0.0
    %868 = vmatpush2.xpose.msra.mxu0 0.0
    %869 = vmatprep.subr.mxu0 0.0
    %870 = vmatpush2.xpose.msra.mxu0 0.0
    %871 = vmatprep.subr.mxu0 0.0
    %872 = vmatpush2.xpose.msra.mxu0 0.0
    %873 = vmatprep.subr.mxu0 0.0
    %874 = vmatpush2.xpose.msra.mxu0 0.0
    %875 = vmatprep.subr.mxu0 0.0
    %876 = vmatpush2.xpose.msra.mxu0 0.0
    %877 = vmatprep.subr.mxu0 0.0
    %878 = vmatpush2.xpose.msra.mxu0 0.0
    %879 = vmatprep.subr.mxu0 0.0
    %880 = vmatpush2.xpose.msra.mxu0 0.0
    %881 = vmatprep.subr.mxu0 0.0
    %882 = vmatpush2.xpose.msra.mxu0 0.0
    %883 = vmatprep.subr.mxu0 0.0
    %884 = vmatpush2.xpose.msra.mxu0 0.0
    %885 = vmatprep.subr.mxu0 0.0
    %886 = vmatpush2.xpose.msra.mxu0 0.0
    %887 = vmatprep.subr.mxu0 0.0
    %888 = vmatpush2.xpose.msra.mxu0 0.0
    %889 = vmatprep.subr.mxu0 0.0
    %890 = vmatpush2.xpose.msra.mxu0 0.0
    %891 = vmatprep.mubr.f32.mxu0 0.0
    %892 = vmatmul.mubr.f32.gmra.mxu0 %v823
    %v893 = vpop.f32.mrf.mxu0
    %v894 = vadd.f32 0.0, %v893
    %v895 = vpop.f32.mrf.mxu0
    %896 = vdwg.mxu0
    %897 = vrot.lane.b32.xlu0 %v590, 96
    %v898 = vpop.permute.xlu0 %897
    %v899 = vsel %vm57, %v590, 0
    %v901 = vsel %vm57, %v898, 0
    %903 = vmatprep.subr.mxu0 0.0
    %904 = vmatpush1.xpose.msra.mxu0 0.0
    %905 = vmatprep.subr.mxu0 0.0
    %906 = vmatpush1.xpose.msra.mxu0 0.0
    %907 = vmatprep.subr.mxu0 0.0
    %908 = vmatpush1.xpose.msra.mxu0 0.0
    %909 = vmatprep.subr.mxu0 0.0
    %910 = vmatpush1.xpose.msra.mxu0 0.0
    %911 = vmatprep.subr.mxu0 0.0
    %912 = vmatpush1.xpose.msra.mxu0 0.0
    %913 = vmatprep.subr.mxu0 0.0
    %914 = vmatpush1.xpose.msra.mxu0 0.0
    %915 = vmatprep.subr.mxu0 0.0
    %916 = vmatpush1.xpose.msra.mxu0 0.0
    %917 = vmatprep.subr.mxu0 0.0
    %918 = vmatpush1.xpose.msra.mxu0 0.0
    %919 = vmatprep.subr.mxu0 0.0
    %920 = vmatpush1.xpose.msra.mxu0 0.0
    %921 = vmatprep.subr.mxu0 0.0
    %922 = vmatpush1.xpose.msra.mxu0 0.0
    %923 = vmatprep.subr.mxu0 0.0
    %924 = vmatpush1.xpose.msra.mxu0 0.0
    %925 = vmatprep.subr.mxu0 0.0
    %926 = vmatpush1.xpose.msra.mxu0 0.0
    %927 = vmatprep.subr.mxu0 0.0
    %928 = vmatpush1.xpose.msra.mxu0 0.0
    %929 = vmatprep.subr.mxu0 0.0
    %930 = vmatpush1.xpose.msra.mxu0 0.0
    %931 = vmatprep.subr.mxu0 0.0
    %932 = vmatpush1.xpose.msra.mxu0 0.0
    %933 = vmatprep.subr.mxu0 0.0
    %934 = vmatpush1.xpose.msra.mxu0 %v901
    %935 = vmatprep.subr.mxu0 0.0
    %936 = vmatpush2.xpose.msra.mxu0 0.0
    %937 = vmatprep.subr.mxu0 0.0
    %938 = vmatpush2.xpose.msra.mxu0 0.0
    %939 = vmatprep.subr.mxu0 0.0
    %940 = vmatpush2.xpose.msra.mxu0 0.0
    %941 = vmatprep.subr.mxu0 0.0
    %942 = vmatpush2.xpose.msra.mxu0 0.0
    %943 = vmatprep.subr.mxu0 0.0
    %944 = vmatpush2.xpose.msra.mxu0 0.0
    %945 = vmatprep.subr.mxu0 0.0
    %946 = vmatpush2.xpose.msra.mxu0 0.0
    %947 = vmatprep.subr.mxu0 0.0
    %948 = vmatpush2.xpose.msra.mxu0 0.0
    %949 = vmatprep.subr.mxu0 0.0
    %950 = vmatpush2.xpose.msra.mxu0 0.0
    %951 = vmatprep.subr.mxu0 0.0
    %952 = vmatpush2.xpose.msra.mxu0 0.0
    %953 = vmatprep.subr.mxu0 0.0
    %954 = vmatpush2.xpose.msra.mxu0 0.0
    %955 = vmatprep.subr.mxu0 0.0
    %956 = vmatpush2.xpose.msra.mxu0 0.0
    %957 = vmatprep.subr.mxu0 0.0
    %958 = vmatpush2.xpose.msra.mxu0 0.0
    %959 = vmatprep.subr.mxu0 0.0
    %960 = vmatpush2.xpose.msra.mxu0 0.0
    %961 = vmatprep.subr.mxu0 0.0
    %962 = vmatpush2.xpose.msra.mxu0 0.0
    %963 = vmatprep.subr.mxu0 0.0
    %964 = vmatpush2.xpose.msra.mxu0 0.0
    %965 = vmatprep.subr.mxu0 0.0
    %966 = vmatpush2.xpose.msra.mxu0 0.0
    %967 = vmatprep.mubr.f32.mxu0 0.0
    %968 = vmatmul.mubr.f32.gmra.mxu0 %v899
    %v969 = vpop.f32.mrf.mxu0
    %v970 = vadd.f32 0.0, %v969
    %v971 = vpop.f32.mrf.mxu0
    %972 = vdwg.mxu0
    %973 = vrot.lane.b32.xlu0 %v595, 96
    %v974 = vpop.permute.xlu0 %973
    %v975 = vsel %vm57, %v595, 0
    %v977 = vsel %vm57, %v974, 0
    %979 = vmatprep.subr.mxu0 0.0
    %980 = vmatpush1.xpose.msra.mxu0 0.0
    %981 = vmatprep.subr.mxu0 0.0
    %982 = vmatpush1.xpose.msra.mxu0 0.0
    %983 = vmatprep.subr.mxu0 0.0
    %984 = vmatpush1.xpose.msra.mxu0 0.0
    %985 = vmatprep.subr.mxu0 0.0
    %986 = vmatpush1.xpose.msra.mxu0 0.0
    %987 = vmatprep.subr.mxu0 0.0
    %988 = vmatpush1.xpose.msra.mxu0 0.0
    %989 = vmatprep.subr.mxu0 0.0
    %990 = vmatpush1.xpose.msra.mxu0 0.0
    %991 = vmatprep.subr.mxu0 0.0
    %992 = vmatpush1.xpose.msra.mxu0 0.0
    %993 = vmatprep.subr.mxu0 0.0
    %994 = vmatpush1.xpose.msra.mxu0 0.0
    %995 = vmatprep.subr.mxu0 0.0
    %996 = vmatpush1.xpose.msra.mxu0 0.0
    %997 = vmatprep.subr.mxu0 0.0
    %998 = vmatpush1.xpose.msra.mxu0 0.0
    %999 = vmatprep.subr.mxu0 0.0
    %1000 = vmatpush1.xpose.msra.mxu0 0.0
    %1001 = vmatprep.subr.mxu0 0.0
    %1002 = vmatpush1.xpose.msra.mxu0 0.0
    %1003 = vmatprep.subr.mxu0 0.0
    %1004 = vmatpush1.xpose.msra.mxu0 0.0
    %1005 = vmatprep.subr.mxu0 0.0
    %1006 = vmatpush1.xpose.msra.mxu0 0.0
    %1007 = vmatprep.subr.mxu0 0.0
    %1008 = vmatpush1.xpose.msra.mxu0 0.0
    %1009 = vmatprep.subr.mxu0 0.0
    %1010 = vmatpush1.xpose.msra.mxu0 %v977
    %1011 = vmatprep.subr.mxu0 0.0
    %1012 = vmatpush2.xpose.msra.mxu0 0.0
    %1013 = vmatprep.subr.mxu0 0.0
    %1014 = vmatpush2.xpose.msra.mxu0 0.0
    %1015 = vmatprep.subr.mxu0 0.0
    %1016 = vmatpush2.xpose.msra.mxu0 0.0
    %1017 = vmatprep.subr.mxu0 0.0
    %1018 = vmatpush2.xpose.msra.mxu0 0.0
    %1019 = vmatprep.subr.mxu0 0.0
    %1020 = vmatpush2.xpose.msra.mxu0 0.0
    %1021 = vmatprep.subr.mxu0 0.0
    %1022 = vmatpush2.xpose.msra.mxu0 0.0
    %1023 = vmatprep.subr.mxu0 0.0
    %1024 = vmatpush2.xpose.msra.mxu0 0.0
    %1025 = vmatprep.subr.mxu0 0.0
    %1026 = vmatpush2.xpose.msra.mxu0 0.0
    %1027 = vmatprep.subr.mxu0 0.0
    %1028 = vmatpush2.xpose.msra.mxu0 0.0
    %1029 = vmatprep.subr.mxu0 0.0
    %1030 = vmatpush2.xpose.msra.mxu0 0.0
    %1031 = vmatprep.subr.mxu0 0.0
    %1032 = vmatpush2.xpose.msra.mxu0 0.0
    %1033 = vmatprep.subr.mxu0 0.0
    %1034 = vmatpush2.xpose.msra.mxu0 0.0
    %1035 = vmatprep.subr.mxu0 0.0
    %1036 = vmatpush2.xpose.msra.mxu0 0.0
    %1037 = vmatprep.subr.mxu0 0.0
    %1038 = vmatpush2.xpose.msra.mxu0 0.0
    %1039 = vmatprep.subr.mxu0 0.0
    %1040 = vmatpush2.xpose.msra.mxu0 0.0
    %1041 = vmatprep.subr.mxu0 0.0
    %1042 = vmatpush2.xpose.msra.mxu0 0.0
    %1043 = vmatprep.mubr.f32.mxu0 0.0
    %1044 = vmatmul.mubr.f32.gmra.mxu0 %v975
    %v1045 = vpop.f32.mrf.mxu0
    %v1046 = vadd.f32 0.0, %v1045
    %v1047 = vpop.f32.mrf.mxu0
    %1048 = vdwg.mxu0
    %1049 = vrot.lane.b32.xlu0 %v600, 96
    %v1050 = vpop.permute.xlu0 %1049
    %v1051 = vsel %vm57, %v600, 0
    %v1053 = vsel %vm57, %v1050, 0
    %1055 = vmatprep.subr.mxu0 0.0
    %1056 = vmatpush1.xpose.msra.mxu0 0.0
    %1057 = vmatprep.subr.mxu0 0.0
    %1058 = vmatpush1.xpose.msra.mxu0 0.0
    %1059 = vmatprep.subr.mxu0 0.0
    %1060 = vmatpush1.xpose.msra.mxu0 0.0
    %1061 = vmatprep.subr.mxu0 0.0
    %1062 = vmatpush1.xpose.msra.mxu0 0.0
    %1063 = vmatprep.subr.mxu0 0.0
    %1064 = vmatpush1.xpose.msra.mxu0 0.0
    %1065 = vmatprep.subr.mxu0 0.0
    %1066 = vmatpush1.xpose.msra.mxu0 0.0
    %1067 = vmatprep.subr.mxu0 0.0
    %1068 = vmatpush1.xpose.msra.mxu0 0.0
    %1069 = vmatprep.subr.mxu0 0.0
    %1070 = vmatpush1.xpose.msra.mxu0 0.0
    %1071 = vmatprep.subr.mxu0 0.0
    %1072 = vmatpush1.xpose.msra.mxu0 0.0
    %1073 = vmatprep.subr.mxu0 0.0
    %1074 = vmatpush1.xpose.msra.mxu0 0.0
    %1075 = vmatprep.subr.mxu0 0.0
    %1076 = vmatpush1.xpose.msra.mxu0 0.0
    %1077 = vmatprep.subr.mxu0 0.0
    %1078 = vmatpush1.xpose.msra.mxu0 0.0
    %1079 = vmatprep.subr.mxu0 0.0
    %1080 = vmatpush1.xpose.msra.mxu0 0.0
    %1081 = vmatprep.subr.mxu0 0.0
    %1082 = vmatpush1.xpose.msra.mxu0 0.0
    %1083 = vmatprep.subr.mxu0 0.0
    %1084 = vmatpush1.xpose.msra.mxu0 0.0
    %1085 = vmatprep.subr.mxu0 0.0
    %1086 = vmatpush1.xpose.msra.mxu0 %v1053
    %1087 = vmatprep.subr.mxu0 0.0
    %1088 = vmatpush2.xpose.msra.mxu0 0.0
    %1089 = vmatprep.subr.mxu0 0.0
    %1090 = vmatpush2.xpose.msra.mxu0 0.0
    %1091 = vmatprep.subr.mxu0 0.0
    %1092 = vmatpush2.xpose.msra.mxu0 0.0
    %1093 = vmatprep.subr.mxu0 0.0
    %1094 = vmatpush2.xpose.msra.mxu0 0.0
    %1095 = vmatprep.subr.mxu0 0.0
    %1096 = vmatpush2.xpose.msra.mxu0 0.0
    %1097 = vmatprep.subr.mxu0 0.0
    %1098 = vmatpush2.xpose.msra.mxu0 0.0
    %1099 = vmatprep.subr.mxu0 0.0
    %1100 = vmatpush2.xpose.msra.mxu0 0.0
    %1101 = vmatprep.subr.mxu0 0.0
    %1102 = vmatpush2.xpose.msra.mxu0 0.0
    %1103 = vmatprep.subr.mxu0 0.0
    %1104 = vmatpush2.xpose.msra.mxu0 0.0
    %1105 = vmatprep.subr.mxu0 0.0
    %1106 = vmatpush2.xpose.msra.mxu0 0.0
    %1107 = vmatprep.subr.mxu0 0.0
    %1108 = vmatpush2.xpose.msra.mxu0 0.0
    %1109 = vmatprep.subr.mxu0 0.0
    %1110 = vmatpush2.xpose.msra.mxu0 0.0
    %1111 = vmatprep.subr.mxu0 0.0
    %1112 = vmatpush2.xpose.msra.mxu0 0.0
    %1113 = vmatprep.subr.mxu0 0.0
    %1114 = vmatpush2.xpose.msra.mxu0 0.0
    %1115 = vmatprep.subr.mxu0 0.0
    %1116 = vmatpush2.xpose.msra.mxu0 0.0
    %1117 = vmatprep.subr.mxu0 0.0
    %1118 = vmatpush2.xpose.msra.mxu0 0.0
    %1119 = vmatprep.mubr.f32.mxu0 0.0
    %1120 = vmatmul.mubr.f32.gmra.mxu0 %v1051
    %v1121 = vpop.f32.mrf.mxu0
    %v1122 = vadd.f32 0.0, %v1121
    %v1123 = vpop.f32.mrf.mxu0
    %1124 = vdwg.mxu0
    %1125 = vrot.lane.b32.xlu0 %v605, 96
    %v1126 = vpop.permute.xlu0 %1125
    %v1127 = vsel %vm57, %v605, 0
    %v1129 = vsel %vm57, %v1126, 0
    %1131 = vmatprep.subr.mxu0 0.0
    %1132 = vmatpush1.xpose.msra.mxu0 0.0
    %1133 = vmatprep.subr.mxu0 0.0
    %1134 = vmatpush1.xpose.msra.mxu0 0.0
    %1135 = vmatprep.subr.mxu0 0.0
    %1136 = vmatpush1.xpose.msra.mxu0 0.0
    %1137 = vmatprep.subr.mxu0 0.0
    %1138 = vmatpush1.xpose.msra.mxu0 0.0
    %1139 = vmatprep.subr.mxu0 0.0
    %1140 = vmatpush1.xpose.msra.mxu0 0.0
    %1141 = vmatprep.subr.mxu0 0.0
    %1142 = vmatpush1.xpose.msra.mxu0 0.0
    %1143 = vmatprep.subr.mxu0 0.0
    %1144 = vmatpush1.xpose.msra.mxu0 0.0
    %1145 = vmatprep.subr.mxu0 0.0
    %1146 = vmatpush1.xpose.msra.mxu0 0.0
    %1147 = vmatprep.subr.mxu0 0.0
    %1148 = vmatpush1.xpose.msra.mxu0 0.0
    %1149 = vmatprep.subr.mxu0 0.0
    %1150 = vmatpush1.xpose.msra.mxu0 0.0
    %1151 = vmatprep.subr.mxu0 0.0
    %1152 = vmatpush1.xpose.msra.mxu0 0.0
    %1153 = vmatprep.subr.mxu0 0.0
    %1154 = vmatpush1.xpose.msra.mxu0 0.0
    %1155 = vmatprep.subr.mxu0 0.0
    %1156 = vmatpush1.xpose.msra.mxu0 0.0
    %1157 = vmatprep.subr.mxu0 0.0
    %1158 = vmatpush1.xpose.msra.mxu0 0.0
    %1159 = vmatprep.subr.mxu0 0.0
    %1160 = vmatpush1.xpose.msra.mxu0 0.0
    %1161 = vmatprep.subr.mxu0 0.0
    %1162 = vmatpush1.xpose.msra.mxu0 %v1129
    %1163 = vmatprep.subr.mxu0 0.0
    %1164 = vmatpush2.xpose.msra.mxu0 0.0
    %1165 = vmatprep.subr.mxu0 0.0
    %1166 = vmatpush2.xpose.msra.mxu0 0.0
    %1167 = vmatprep.subr.mxu0 0.0
    %1168 = vmatpush2.xpose.msra.mxu0 0.0
    %1169 = vmatprep.subr.mxu0 0.0
    %1170 = vmatpush2.xpose.msra.mxu0 0.0
    %1171 = vmatprep.subr.mxu0 0.0
    %1172 = vmatpush2.xpose.msra.mxu0 0.0
    %1173 = vmatprep.subr.mxu0 0.0
    %1174 = vmatpush2.xpose.msra.mxu0 0.0
    %1175 = vmatprep.subr.mxu0 0.0
    %1176 = vmatpush2.xpose.msra.mxu0 0.0
    %1177 = vmatprep.subr.mxu0 0.0
    %1178 = vmatpush2.xpose.msra.mxu0 0.0
    %1179 = vmatprep.subr.mxu0 0.0
    %1180 = vmatpush2.xpose.msra.mxu0 0.0
    %1181 = vmatprep.subr.mxu0 0.0
    %1182 = vmatpush2.xpose.msra.mxu0 0.0
    %1183 = vmatprep.subr.mxu0 0.0
    %1184 = vmatpush2.xpose.msra.mxu0 0.0
    %1185 = vmatprep.subr.mxu0 0.0
    %1186 = vmatpush2.xpose.msra.mxu0 0.0
    %1187 = vmatprep.subr.mxu0 0.0
    %1188 = vmatpush2.xpose.msra.mxu0 0.0
    %1189 = vmatprep.subr.mxu0 0.0
    %1190 = vmatpush2.xpose.msra.mxu0 0.0
    %1191 = vmatprep.subr.mxu0 0.0
    %1192 = vmatpush2.xpose.msra.mxu0 0.0
    %1193 = vmatprep.subr.mxu0 0.0
    %1194 = vmatpush2.xpose.msra.mxu0 0.0
    %1195 = vmatprep.mubr.f32.mxu0 0.0
    %1196 = vmatmul.mubr.f32.gmra.mxu0 %v1127
    %v1197 = vpop.f32.mrf.mxu0
    %v1198 = vadd.f32 0.0, %v1197
    %v1199 = vpop.f32.mrf.mxu0
    %1200 = vdwg.mxu0
    %1201 = vrot.lane.b32.xlu0 %v610, 96
    %v1202 = vpop.permute.xlu0 %1201
    %v1203 = vsel %vm57, %v610, 0
    %v1205 = vsel %vm57, %v1202, 0
    %1207 = vmatprep.subr.mxu0 0.0
    %1208 = vmatpush1.xpose.msra.mxu0 0.0
    %1209 = vmatprep.subr.mxu0 0.0
    %1210 = vmatpush1.xpose.msra.mxu0 0.0
    %1211 = vmatprep.subr.mxu0 0.0
    %1212 = vmatpush1.xpose.msra.mxu0 0.0
    %1213 = vmatprep.subr.mxu0 0.0
    %1214 = vmatpush1.xpose.msra.mxu0 0.0
    %1215 = vmatprep.subr.mxu0 0.0
    %1216 = vmatpush1.xpose.msra.mxu0 0.0
    %1217 = vmatprep.subr.mxu0 0.0
    %1218 = vmatpush1.xpose.msra.mxu0 0.0
    %1219 = vmatprep.subr.mxu0 0.0
    %1220 = vmatpush1.xpose.msra.mxu0 0.0
    %1221 = vmatprep.subr.mxu0 0.0
    %1222 = vmatpush1.xpose.msra.mxu0 0.0
    %1223 = vmatprep.subr.mxu0 0.0
    %1224 = vmatpush1.xpose.msra.mxu0 0.0
    %1225 = vmatprep.subr.mxu0 0.0
    %1226 = vmatpush1.xpose.msra.mxu0 0.0
    %1227 = vmatprep.subr.mxu0 0.0
    %1228 = vmatpush1.xpose.msra.mxu0 0.0
    %1229 = vmatprep.subr.mxu0 0.0
    %1230 = vmatpush1.xpose.msra.mxu0 0.0
    %1231 = vmatprep.subr.mxu0 0.0
    %1232 = vmatpush1.xpose.msra.mxu0 0.0
    %1233 = vmatprep.subr.mxu0 0.0
    %1234 = vmatpush1.xpose.msra.mxu0 0.0
    %1235 = vmatprep.subr.mxu0 0.0
    %1236 = vmatpush1.xpose.msra.mxu0 0.0
    %1237 = vmatprep.subr.mxu0 0.0
    %1238 = vmatpush1.xpose.msra.mxu0 %v1205
    %1239 = vmatprep.subr.mxu0 0.0
    %1240 = vmatpush2.xpose.msra.mxu0 0.0
    %1241 = vmatprep.subr.mxu0 0.0
    %1242 = vmatpush2.xpose.msra.mxu0 0.0
    %1243 = vmatprep.subr.mxu0 0.0
    %1244 = vmatpush2.xpose.msra.mxu0 0.0
    %1245 = vmatprep.subr.mxu0 0.0
    %1246 = vmatpush2.xpose.msra.mxu0 0.0
    %1247 = vmatprep.subr.mxu0 0.0
    %1248 = vmatpush2.xpose.msra.mxu0 0.0
    %1249 = vmatprep.subr.mxu0 0.0
    %1250 = vmatpush2.xpose.msra.mxu0 0.0
    %1251 = vmatprep.subr.mxu0 0.0
    %1252 = vmatpush2.xpose.msra.mxu0 0.0
    %1253 = vmatprep.subr.mxu0 0.0
    %1254 = vmatpush2.xpose.msra.mxu0 0.0
    %1255 = vmatprep.subr.mxu0 0.0
    %1256 = vmatpush2.xpose.msra.mxu0 0.0
    %1257 = vmatprep.subr.mxu0 0.0
    %1258 = vmatpush2.xpose.msra.mxu0 0.0
    %1259 = vmatprep.subr.mxu0 0.0
    %1260 = vmatpush2.xpose.msra.mxu0 0.0
    %1261 = vmatprep.subr.mxu0 0.0
    %1262 = vmatpush2.xpose.msra.mxu0 0.0
    %1263 = vmatprep.subr.mxu0 0.0
    %1264 = vmatpush2.xpose.msra.mxu0 0.0
    %1265 = vmatprep.subr.mxu0 0.0
    %1266 = vmatpush2.xpose.msra.mxu0 0.0
    %1267 = vmatprep.subr.mxu0 0.0
    %1268 = vmatpush2.xpose.msra.mxu0 0.0
    %1269 = vmatprep.subr.mxu0 0.0
    %1270 = vmatpush2.xpose.msra.mxu0 0.0
    %1271 = vmatprep.mubr.f32.mxu0 0.0
    %1272 = vmatmul.mubr.f32.gmra.mxu0 %v1203
    %v1273 = vpop.f32.mrf.mxu0
    %v1274 = vadd.f32 0.0, %v1273
    %v1275 = vpop.f32.mrf.mxu0
    %1276 = vdwg.mxu0
    %1277 = vrot.lane.b32.xlu0 %v622, 96
    %v1278 = vpop.permute.xlu0 %1277
    %v1279 = vsel %vm57, %v622, 0
    %v1281 = vsel %vm57, %v1278, 0
    %1283 = vmatprep.subr.mxu0 0.0
    %1284 = vmatpush1.xpose.msra.mxu0 0.0
    %1285 = vmatprep.subr.mxu0 0.0
    %1286 = vmatpush1.xpose.msra.mxu0 0.0
    %1287 = vmatprep.subr.mxu0 0.0
    %1288 = vmatpush1.xpose.msra.mxu0 0.0
    %1289 = vmatprep.subr.mxu0 0.0
    %1290 = vmatpush1.xpose.msra.mxu0 0.0
    %1291 = vmatprep.subr.mxu0 0.0
    %1292 = vmatpush1.xpose.msra.mxu0 0.0
    %1293 = vmatprep.subr.mxu0 0.0
    %1294 = vmatpush1.xpose.msra.mxu0 0.0
    %1295 = vmatprep.subr.mxu0 0.0
    %1296 = vmatpush1.xpose.msra.mxu0 0.0
    %1297 = vmatprep.subr.mxu0 0.0
    %1298 = vmatpush1.xpose.msra.mxu0 0.0
    %1299 = vmatprep.subr.mxu0 0.0
    %1300 = vmatpush1.xpose.msra.mxu0 0.0
    %1301 = vmatprep.subr.mxu0 0.0
    %1302 = vmatpush1.xpose.msra.mxu0 0.0
    %1303 = vmatprep.subr.mxu0 0.0
    %1304 = vmatpush1.xpose.msra.mxu0 0.0
    %1305 = vmatprep.subr.mxu0 0.0
    %1306 = vmatpush1.xpose.msra.mxu0 0.0
    %1307 = vmatprep.subr.mxu0 0.0
    %1308 = vmatpush1.xpose.msra.mxu0 0.0
    %1309 = vmatprep.subr.mxu0 0.0
    %1310 = vmatpush1.xpose.msra.mxu0 0.0
    %1311 = vmatprep.subr.mxu0 0.0
    %1312 = vmatpush1.xpose.msra.mxu0 0.0
    %1313 = vmatprep.subr.mxu0 0.0
    %1314 = vmatpush1.xpose.msra.mxu0 %v1281
    %1315 = vmatprep.subr.mxu0 0.0
    %1316 = vmatpush2.xpose.msra.mxu0 0.0
    %1317 = vmatprep.subr.mxu0 0.0
    %1318 = vmatpush2.xpose.msra.mxu0 0.0
    %1319 = vmatprep.subr.mxu0 0.0
    %1320 = vmatpush2.xpose.msra.mxu0 0.0
    %1321 = vmatprep.subr.mxu0 0.0
    %1322 = vmatpush2.xpose.msra.mxu0 0.0
    %1323 = vmatprep.subr.mxu0 0.0
    %1324 = vmatpush2.xpose.msra.mxu0 0.0
    %1325 = vmatprep.subr.mxu0 0.0
    %1326 = vmatpush2.xpose.msra.mxu0 0.0
    %1327 = vmatprep.subr.mxu0 0.0
    %1328 = vmatpush2.xpose.msra.mxu0 0.0
    %1329 = vmatprep.subr.mxu0 0.0
    %1330 = vmatpush2.xpose.msra.mxu0 0.0
    %1331 = vmatprep.subr.mxu0 0.0
    %1332 = vmatpush2.xpose.msra.mxu0 0.0
    %1333 = vmatprep.subr.mxu0 0.0
    %1334 = vmatpush2.xpose.msra.mxu0 0.0
    %1335 = vmatprep.subr.mxu0 0.0
    %1336 = vmatpush2.xpose.msra.mxu0 0.0
    %1337 = vmatprep.subr.mxu0 0.0
    %1338 = vmatpush2.xpose.msra.mxu0 0.0
    %1339 = vmatprep.subr.mxu0 0.0
    %1340 = vmatpush2.xpose.msra.mxu0 0.0
    %1341 = vmatprep.subr.mxu0 0.0
    %1342 = vmatpush2.xpose.msra.mxu0 0.0
    %1343 = vmatprep.subr.mxu0 0.0
    %1344 = vmatpush2.xpose.msra.mxu0 0.0
    %1345 = vmatprep.subr.mxu0 0.0
    %1346 = vmatpush2.xpose.msra.mxu0 0.0
    %1347 = vmatprep.mubr.f32.mxu0 0.0
    %1348 = vmatmul.mubr.f32.gmra.mxu0 %v1279
    %v1349 = vpop.f32.mrf.mxu0
    %v1350 = vadd.f32 0.0, %v1349
    %v1351 = vpop.f32.mrf.mxu0
    %1352 = vdwg.mxu0
    %1353 = vrot.lane.b32.xlu0 %v624, 96
    %v1354 = vpop.permute.xlu0 %1353
    %v1355 = vsel %vm57, %v624, 0
    %v1357 = vsel %vm57, %v1354, 0
    %1359 = vmatprep.subr.mxu0 0.0
    %1360 = vmatpush1.xpose.msra.mxu0 0.0
    %1361 = vmatprep.subr.mxu0 0.0
    %1362 = vmatpush1.xpose.msra.mxu0 0.0
    %1363 = vmatprep.subr.mxu0 0.0
    %1364 = vmatpush1.xpose.msra.mxu0 0.0
    %1365 = vmatprep.subr.mxu0 0.0
    %1366 = vmatpush1.xpose.msra.mxu0 0.0
    %1367 = vmatprep.subr.mxu0 0.0
    %1368 = vmatpush1.xpose.msra.mxu0 0.0
    %1369 = vmatprep.subr.mxu0 0.0
    %1370 = vmatpush1.xpose.msra.mxu0 0.0
    %1371 = vmatprep.subr.mxu0 0.0
    %1372 = vmatpush1.xpose.msra.mxu0 0.0
    %1373 = vmatprep.subr.mxu0 0.0
    %1374 = vmatpush1.xpose.msra.mxu0 0.0
    %1375 = vmatprep.subr.mxu0 0.0
    %1376 = vmatpush1.xpose.msra.mxu0 0.0
    %1377 = vmatprep.subr.mxu0 0.0
    %1378 = vmatpush1.xpose.msra.mxu0 0.0
    %1379 = vmatprep.subr.mxu0 0.0
    %1380 = vmatpush1.xpose.msra.mxu0 0.0
    %1381 = vmatprep.subr.mxu0 0.0
    %1382 = vmatpush1.xpose.msra.mxu0 0.0
    %1383 = vmatprep.subr.mxu0 0.0
    %1384 = vmatpush1.xpose.msra.mxu0 0.0
    %1385 = vmatprep.subr.mxu0 0.0
    %1386 = vmatpush1.xpose.msra.mxu0 0.0
    %1387 = vmatprep.subr.mxu0 0.0
    %1388 = vmatpush1.xpose.msra.mxu0 0.0
    %1389 = vmatprep.subr.mxu0 0.0
    %1390 = vmatpush1.xpose.msra.mxu0 %v1357
    %1391 = vmatprep.subr.mxu0 0.0
    %1392 = vmatpush2.xpose.msra.mxu0 0.0
    %1393 = vmatprep.subr.mxu0 0.0
    %1394 = vmatpush2.xpose.msra.mxu0 0.0
    %1395 = vmatprep.subr.mxu0 0.0
    %1396 = vmatpush2.xpose.msra.mxu0 0.0
    %1397 = vmatprep.subr.mxu0 0.0
    %1398 = vmatpush2.xpose.msra.mxu0 0.0
    %1399 = vmatprep.subr.mxu0 0.0
    %1400 = vmatpush2.xpose.msra.mxu0 0.0
    %1401 = vmatprep.subr.mxu0 0.0
    %1402 = vmatpush2.xpose.msra.mxu0 0.0
    %1403 = vmatprep.subr.mxu0 0.0
    %1404 = vmatpush2.xpose.msra.mxu0 0.0
    %1405 = vmatprep.subr.mxu0 0.0
    %1406 = vmatpush2.xpose.msra.mxu0 0.0
    %1407 = vmatprep.subr.mxu0 0.0
    %1408 = vmatpush2.xpose.msra.mxu0 0.0
    %1409 = vmatprep.subr.mxu0 0.0
    %1410 = vmatpush2.xpose.msra.mxu0 0.0
    %1411 = vmatprep.subr.mxu0 0.0
    %1412 = vmatpush2.xpose.msra.mxu0 0.0
    %1413 = vmatprep.subr.mxu0 0.0
    %1414 = vmatpush2.xpose.msra.mxu0 0.0
    %1415 = vmatprep.subr.mxu0 0.0
    %1416 = vmatpush2.xpose.msra.mxu0 0.0
    %1417 = vmatprep.subr.mxu0 0.0
    %1418 = vmatpush2.xpose.msra.mxu0 0.0
    %1419 = vmatprep.subr.mxu0 0.0
    %1420 = vmatpush2.xpose.msra.mxu0 0.0
    %1421 = vmatprep.subr.mxu0 0.0
    %1422 = vmatpush2.xpose.msra.mxu0 0.0
    %1423 = vmatprep.mubr.f32.mxu0 0.0
    %1424 = vmatmul.mubr.f32.gmra.mxu0 %v1355
    %v1425 = vpop.f32.mrf.mxu0
    %v1426 = vadd.f32 0.0, %v1425
    %v1427 = vpop.f32.mrf.mxu0
    %1428 = vdwg.mxu0
    %1429 = vrot.lane.b32.xlu0 %v626, 96
    %v1430 = vpop.permute.xlu0 %1429
    %v1431 = vsel %vm57, %v626, 0
    %v1433 = vsel %vm57, %v1430, 0
    %1435 = vmatprep.subr.mxu0 0.0
    %1436 = vmatpush1.xpose.msra.mxu0 0.0
    %1437 = vmatprep.subr.mxu0 0.0
    %1438 = vmatpush1.xpose.msra.mxu0 0.0
    %1439 = vmatprep.subr.mxu0 0.0
    %1440 = vmatpush1.xpose.msra.mxu0 0.0
    %1441 = vmatprep.subr.mxu0 0.0
    %1442 = vmatpush1.xpose.msra.mxu0 0.0
    %1443 = vmatprep.subr.mxu0 0.0
    %1444 = vmatpush1.xpose.msra.mxu0 0.0
    %1445 = vmatprep.subr.mxu0 0.0
    %1446 = vmatpush1.xpose.msra.mxu0 0.0
    %1447 = vmatprep.subr.mxu0 0.0
    %1448 = vmatpush1.xpose.msra.mxu0 0.0
    %1449 = vmatprep.subr.mxu0 0.0
    %1450 = vmatpush1.xpose.msra.mxu0 0.0
    %1451 = vmatprep.subr.mxu0 0.0
    %1452 = vmatpush1.xpose.msra.mxu0 0.0
    %1453 = vmatprep.subr.mxu0 0.0
    %1454 = vmatpush1.xpose.msra.mxu0 0.0
    %1455 = vmatprep.subr.mxu0 0.0
    %1456 = vmatpush1.xpose.msra.mxu0 0.0
    %1457 = vmatprep.subr.mxu0 0.0
    %1458 = vmatpush1.xpose.msra.mxu0 0.0
    %1459 = vmatprep.subr.mxu0 0.0
    %1460 = vmatpush1.xpose.msra.mxu0 0.0
    %1461 = vmatprep.subr.mxu0 0.0
    %1462 = vmatpush1.xpose.msra.mxu0 0.0
    %1463 = vmatprep.subr.mxu0 0.0
    %1464 = vmatpush1.xpose.msra.mxu0 0.0
    %1465 = vmatprep.subr.mxu0 0.0
    %1466 = vmatpush1.xpose.msra.mxu0 %v1433
    %1467 = vmatprep.subr.mxu0 0.0
    %1468 = vmatpush2.xpose.msra.mxu0 0.0
    %1469 = vmatprep.subr.mxu0 0.0
    %1470 = vmatpush2.xpose.msra.mxu0 0.0
    %1471 = vmatprep.subr.mxu0 0.0
    %1472 = vmatpush2.xpose.msra.mxu0 0.0
    %1473 = vmatprep.subr.mxu0 0.0
    %1474 = vmatpush2.xpose.msra.mxu0 0.0
    %1475 = vmatprep.subr.mxu0 0.0
    %1476 = vmatpush2.xpose.msra.mxu0 0.0
    %1477 = vmatprep.subr.mxu0 0.0
    %1478 = vmatpush2.xpose.msra.mxu0 0.0
    %1479 = vmatprep.subr.mxu0 0.0
    %1480 = vmatpush2.xpose.msra.mxu0 0.0
    %1481 = vmatprep.subr.mxu0 0.0
    %1482 = vmatpush2.xpose.msra.mxu0 0.0
    %1483 = vmatprep.subr.mxu0 0.0
    %1484 = vmatpush2.xpose.msra.mxu0 0.0
    %1485 = vmatprep.subr.mxu0 0.0
    %1486 = vmatpush2.xpose.msra.mxu0 0.0
    %1487 = vmatprep.subr.mxu0 0.0
    %1488 = vmatpush2.xpose.msra.mxu0 0.0
    %1489 = vmatprep.subr.mxu0 0.0
    %1490 = vmatpush2.xpose.msra.mxu0 0.0
    %1491 = vmatprep.subr.mxu0 0.0
    %1492 = vmatpush2.xpose.msra.mxu0 0.0
    %1493 = vmatprep.subr.mxu0 0.0
    %1494 = vmatpush2.xpose.msra.mxu0 0.0
    %1495 = vmatprep.subr.mxu0 0.0
    %1496 = vmatpush2.xpose.msra.mxu0 0.0
    %1497 = vmatprep.subr.mxu0 0.0
    %1498 = vmatpush2.xpose.msra.mxu0 0.0
    %1499 = vmatprep.mubr.f32.mxu0 0.0
    %1500 = vmatmul.mubr.f32.gmra.mxu0 %v1431
    %v1501 = vpop.f32.mrf.mxu0
    %v1502 = vadd.f32 0.0, %v1501
    %v1503 = vpop.f32.mrf.mxu0
    %1504 = vdwg.mxu0
    %1505 = vrot.lane.b32.xlu0 %v628, 96
    %v1506 = vpop.permute.xlu0 %1505
    %v1507 = vsel %vm57, %v628, 0
    %v1509 = vsel %vm57, %v1506, 0
    %1511 = vmatprep.subr.mxu0 0.0
    %1512 = vmatpush1.xpose.msra.mxu0 0.0
    %1513 = vmatprep.subr.mxu0 0.0
    %1514 = vmatpush1.xpose.msra.mxu0 0.0
    %1515 = vmatprep.subr.mxu0 0.0
    %1516 = vmatpush1.xpose.msra.mxu0 0.0
    %1517 = vmatprep.subr.mxu0 0.0
    %1518 = vmatpush1.xpose.msra.mxu0 0.0
    %1519 = vmatprep.subr.mxu0 0.0
    %1520 = vmatpush1.xpose.msra.mxu0 0.0
    %1521 = vmatprep.subr.mxu0 0.0
    %1522 = vmatpush1.xpose.msra.mxu0 0.0
    %1523 = vmatprep.subr.mxu0 0.0
    %1524 = vmatpush1.xpose.msra.mxu0 0.0
    %1525 = vmatprep.subr.mxu0 0.0
    %1526 = vmatpush1.xpose.msra.mxu0 0.0
    %1527 = vmatprep.subr.mxu0 0.0
    %1528 = vmatpush1.xpose.msra.mxu0 0.0
    %1529 = vmatprep.subr.mxu0 0.0
    %1530 = vmatpush1.xpose.msra.mxu0 0.0
    %1531 = vmatprep.subr.mxu0 0.0
    %1532 = vmatpush1.xpose.msra.mxu0 0.0
    %1533 = vmatprep.subr.mxu0 0.0
    %1534 = vmatpush1.xpose.msra.mxu0 0.0
    %1535 = vmatprep.subr.mxu0 0.0
    %1536 = vmatpush1.xpose.msra.mxu0 0.0
    %1537 = vmatprep.subr.mxu0 0.0
    %1538 = vmatpush1.xpose.msra.mxu0 0.0
    %1539 = vmatprep.subr.mxu0 0.0
    %1540 = vmatpush1.xpose.msra.mxu0 0.0
    %1541 = vmatprep.subr.mxu0 0.0
    %1542 = vmatpush1.xpose.msra.mxu0 %v1509
    %1543 = vmatprep.subr.mxu0 0.0
    %1544 = vmatpush2.xpose.msra.mxu0 0.0
    %1545 = vmatprep.subr.mxu0 0.0
    %1546 = vmatpush2.xpose.msra.mxu0 0.0
    %1547 = vmatprep.subr.mxu0 0.0
    %1548 = vmatpush2.xpose.msra.mxu0 0.0
    %1549 = vmatprep.subr.mxu0 0.0
    %1550 = vmatpush2.xpose.msra.mxu0 0.0
    %1551 = vmatprep.subr.mxu0 0.0
    %1552 = vmatpush2.xpose.msra.mxu0 0.0
    %1553 = vmatprep.subr.mxu0 0.0
    %1554 = vmatpush2.xpose.msra.mxu0 0.0
    %1555 = vmatprep.subr.mxu0 0.0
    %1556 = vmatpush2.xpose.msra.mxu0 0.0
    %1557 = vmatprep.subr.mxu0 0.0
    %1558 = vmatpush2.xpose.msra.mxu0 0.0
    %1559 = vmatprep.subr.mxu0 0.0
    %1560 = vmatpush2.xpose.msra.mxu0 0.0
    %1561 = vmatprep.subr.mxu0 0.0
    %1562 = vmatpush2.xpose.msra.mxu0 0.0
    %1563 = vmatprep.subr.mxu0 0.0
    %1564 = vmatpush2.xpose.msra.mxu0 0.0
    %1565 = vmatprep.subr.mxu0 0.0
    %1566 = vmatpush2.xpose.msra.mxu0 0.0
    %1567 = vmatprep.subr.mxu0 0.0
    %1568 = vmatpush2.xpose.msra.mxu0 0.0
    %1569 = vmatprep.subr.mxu0 0.0
    %1570 = vmatpush2.xpose.msra.mxu0 0.0
    %1571 = vmatprep.subr.mxu0 0.0
    %1572 = vmatpush2.xpose.msra.mxu0 0.0
    %1573 = vmatprep.subr.mxu0 0.0
    %1574 = vmatpush2.xpose.msra.mxu0 0.0
    %1575 = vmatprep.mubr.f32.mxu0 0.0
    %1576 = vmatmul.mubr.f32.gmra.mxu0 %v1507
    %v1577 = vpop.f32.mrf.mxu0
    %v1578 = vadd.f32 0.0, %v1577
    %v1579 = vpop.f32.mrf.mxu0
    %1580 = vdwg.mxu0
    %1581 = vrot.lane.b32.xlu0 %v630, 96
    %v1582 = vpop.permute.xlu0 %1581
    %v1583 = vsel %vm57, %v630, 0
    %v1585 = vsel %vm57, %v1582, 0
    %1587 = vmatprep.subr.mxu0 0.0
    %1588 = vmatpush1.xpose.msra.mxu0 0.0
    %1589 = vmatprep.subr.mxu0 0.0
    %1590 = vmatpush1.xpose.msra.mxu0 0.0
    %1591 = vmatprep.subr.mxu0 0.0
    %1592 = vmatpush1.xpose.msra.mxu0 0.0
    %1593 = vmatprep.subr.mxu0 0.0
    %1594 = vmatpush1.xpose.msra.mxu0 0.0
    %1595 = vmatprep.subr.mxu0 0.0
    %1596 = vmatpush1.xpose.msra.mxu0 0.0
    %1597 = vmatprep.subr.mxu0 0.0
    %1598 = vmatpush1.xpose.msra.mxu0 0.0
    %1599 = vmatprep.subr.mxu0 0.0
    %1600 = vmatpush1.xpose.msra.mxu0 0.0
    %1601 = vmatprep.subr.mxu0 0.0
    %1602 = vmatpush1.xpose.msra.mxu0 0.0
    %1603 = vmatprep.subr.mxu0 0.0
    %1604 = vmatpush1.xpose.msra.mxu0 0.0
    %1605 = vmatprep.subr.mxu0 0.0
    %1606 = vmatpush1.xpose.msra.mxu0 0.0
    %1607 = vmatprep.subr.mxu0 0.0
    %1608 = vmatpush1.xpose.msra.mxu0 0.0
    %1609 = vmatprep.subr.mxu0 0.0
    %1610 = vmatpush1.xpose.msra.mxu0 0.0
    %1611 = vmatprep.subr.mxu0 0.0
    %1612 = vmatpush1.xpose.msra.mxu0 0.0
    %1613 = vmatprep.subr.mxu0 0.0
    %1614 = vmatpush1.xpose.msra.mxu0 0.0
    %1615 = vmatprep.subr.mxu0 0.0
    %1616 = vmatpush1.xpose.msra.mxu0 0.0
    %1617 = vmatprep.subr.mxu0 0.0
    %1618 = vmatpush1.xpose.msra.mxu0 %v1585
    %1619 = vmatprep.subr.mxu0 0.0
    %1620 = vmatpush2.xpose.msra.mxu0 0.0
    %1621 = vmatprep.subr.mxu0 0.0
    %1622 = vmatpush2.xpose.msra.mxu0 0.0
    %1623 = vmatprep.subr.mxu0 0.0
    %1624 = vmatpush2.xpose.msra.mxu0 0.0
    %1625 = vmatprep.subr.mxu0 0.0
    %1626 = vmatpush2.xpose.msra.mxu0 0.0
    %1627 = vmatprep.subr.mxu0 0.0
    %1628 = vmatpush2.xpose.msra.mxu0 0.0
    %1629 = vmatprep.subr.mxu0 0.0
    %1630 = vmatpush2.xpose.msra.mxu0 0.0
    %1631 = vmatprep.subr.mxu0 0.0
    %1632 = vmatpush2.xpose.msra.mxu0 0.0
    %1633 = vmatprep.subr.mxu0 0.0
    %1634 = vmatpush2.xpose.msra.mxu0 0.0
    %1635 = vmatprep.subr.mxu0 0.0
    %1636 = vmatpush2.xpose.msra.mxu0 0.0
    %1637 = vmatprep.subr.mxu0 0.0
    %1638 = vmatpush2.xpose.msra.mxu0 0.0
    %1639 = vmatprep.subr.mxu0 0.0
    %1640 = vmatpush2.xpose.msra.mxu0 0.0
    %1641 = vmatprep.subr.mxu0 0.0
    %1642 = vmatpush2.xpose.msra.mxu0 0.0
    %1643 = vmatprep.subr.mxu0 0.0
    %1644 = vmatpush2.xpose.msra.mxu0 0.0
    %1645 = vmatprep.subr.mxu0 0.0
    %1646 = vmatpush2.xpose.msra.mxu0 0.0
    %1647 = vmatprep.subr.mxu0 0.0
    %1648 = vmatpush2.xpose.msra.mxu0 0.0
    %1649 = vmatprep.subr.mxu0 0.0
    %1650 = vmatpush2.xpose.msra.mxu0 0.0
    %1651 = vmatprep.mubr.f32.mxu0 0.0
    %1652 = vmatmul.mubr.f32.gmra.mxu0 %v1583
    %v1653 = vpop.f32.mrf.mxu0
    %v1654 = vadd.f32 0.0, %v1653
    %v1655 = vpop.f32.mrf.mxu0
    %1656 = vdwg.mxu0
    %1657 = vrot.lane.b32.xlu0 %v632, 96
    %v1658 = vpop.permute.xlu0 %1657
    %v1659 = vsel %vm57, %v632, 0
    %v1661 = vsel %vm57, %v1658, 0
    %1663 = vmatprep.subr.mxu0 0.0
    %1664 = vmatpush1.xpose.msra.mxu0 0.0
    %1665 = vmatprep.subr.mxu0 0.0
    %1666 = vmatpush1.xpose.msra.mxu0 0.0
    %1667 = vmatprep.subr.mxu0 0.0
    %1668 = vmatpush1.xpose.msra.mxu0 0.0
    %1669 = vmatprep.subr.mxu0 0.0
    %1670 = vmatpush1.xpose.msra.mxu0 0.0
    %1671 = vmatprep.subr.mxu0 0.0
    %1672 = vmatpush1.xpose.msra.mxu0 0.0
    %1673 = vmatprep.subr.mxu0 0.0
    %1674 = vmatpush1.xpose.msra.mxu0 0.0
    %1675 = vmatprep.subr.mxu0 0.0
    %1676 = vmatpush1.xpose.msra.mxu0 0.0
    %1677 = vmatprep.subr.mxu0 0.0
    %1678 = vmatpush1.xpose.msra.mxu0 0.0
    %1679 = vmatprep.subr.mxu0 0.0
    %1680 = vmatpush1.xpose.msra.mxu0 0.0
    %1681 = vmatprep.subr.mxu0 0.0
    %1682 = vmatpush1.xpose.msra.mxu0 0.0
    %1683 = vmatprep.subr.mxu0 0.0
    %1684 = vmatpush1.xpose.msra.mxu0 0.0
    %1685 = vmatprep.subr.mxu0 0.0
    %1686 = vmatpush1.xpose.msra.mxu0 0.0
    %1687 = vmatprep.subr.mxu0 0.0
    %1688 = vmatpush1.xpose.msra.mxu0 0.0
    %1689 = vmatprep.subr.mxu0 0.0
    %1690 = vmatpush1.xpose.msra.mxu0 0.0
    %1691 = vmatprep.subr.mxu0 0.0
    %1692 = vmatpush1.xpose.msra.mxu0 0.0
    %1693 = vmatprep.subr.mxu0 0.0
    %1694 = vmatpush1.xpose.msra.mxu0 %v1661
    %1695 = vmatprep.subr.mxu0 0.0
    %1696 = vmatpush2.xpose.msra.mxu0 0.0
    %1697 = vmatprep.subr.mxu0 0.0
    %1698 = vmatpush2.xpose.msra.mxu0 0.0
    %1699 = vmatprep.subr.mxu0 0.0
    %1700 = vmatpush2.xpose.msra.mxu0 0.0
    %1701 = vmatprep.subr.mxu0 0.0
    %1702 = vmatpush2.xpose.msra.mxu0 0.0
    %1703 = vmatprep.subr.mxu0 0.0
    %1704 = vmatpush2.xpose.msra.mxu0 0.0
    %1705 = vmatprep.subr.mxu0 0.0
    %1706 = vmatpush2.xpose.msra.mxu0 0.0
    %1707 = vmatprep.subr.mxu0 0.0
    %1708 = vmatpush2.xpose.msra.mxu0 0.0
    %1709 = vmatprep.subr.mxu0 0.0
    %1710 = vmatpush2.xpose.msra.mxu0 0.0
    %1711 = vmatprep.subr.mxu0 0.0
    %1712 = vmatpush2.xpose.msra.mxu0 0.0
    %1713 = vmatprep.subr.mxu0 0.0
    %1714 = vmatpush2.xpose.msra.mxu0 0.0
    %1715 = vmatprep.subr.mxu0 0.0
    %1716 = vmatpush2.xpose.msra.mxu0 0.0
    %1717 = vmatprep.subr.mxu0 0.0
    %1718 = vmatpush2.xpose.msra.mxu0 0.0
    %1719 = vmatprep.subr.mxu0 0.0
    %1720 = vmatpush2.xpose.msra.mxu0 0.0
    %1721 = vmatprep.subr.mxu0 0.0
    %1722 = vmatpush2.xpose.msra.mxu0 0.0
    %1723 = vmatprep.subr.mxu0 0.0
    %1724 = vmatpush2.xpose.msra.mxu0 0.0
    %1725 = vmatprep.subr.mxu0 0.0
    %1726 = vmatpush2.xpose.msra.mxu0 0.0
    %1727 = vmatprep.mubr.f32.mxu0 0.0
    %1728 = vmatmul.mubr.f32.gmra.mxu0 %v1659
    %v1729 = vpop.f32.mrf.mxu0
    %v1730 = vadd.f32 0.0, %v1729
    %v1731 = vpop.f32.mrf.mxu0
    %1732 = vdwg.mxu0
    %1733 = vrot.lane.b32.xlu0 %v634, 96
    %v1734 = vpop.permute.xlu0 %1733
    %v1735 = vsel %vm57, %v634, 0
    %v1737 = vsel %vm57, %v1734, 0
    %1739 = vmatprep.subr.mxu0 0.0
    %1740 = vmatpush1.xpose.msra.mxu0 0.0
    %1741 = vmatprep.subr.mxu0 0.0
    %1742 = vmatpush1.xpose.msra.mxu0 0.0
    %1743 = vmatprep.subr.mxu0 0.0
    %1744 = vmatpush1.xpose.msra.mxu0 0.0
    %1745 = vmatprep.subr.mxu0 0.0
    %1746 = vmatpush1.xpose.msra.mxu0 0.0
    %1747 = vmatprep.subr.mxu0 0.0
    %1748 = vmatpush1.xpose.msra.mxu0 0.0
    %1749 = vmatprep.subr.mxu0 0.0
    %1750 = vmatpush1.xpose.msra.mxu0 0.0
    %1751 = vmatprep.subr.mxu0 0.0
    %1752 = vmatpush1.xpose.msra.mxu0 0.0
    %1753 = vmatprep.subr.mxu0 0.0
    %1754 = vmatpush1.xpose.msra.mxu0 0.0
    %1755 = vmatprep.subr.mxu0 0.0
    %1756 = vmatpush1.xpose.msra.mxu0 0.0
    %1757 = vmatprep.subr.mxu0 0.0
    %1758 = vmatpush1.xpose.msra.mxu0 0.0
    %1759 = vmatprep.subr.mxu0 0.0
    %1760 = vmatpush1.xpose.msra.mxu0 0.0
    %1761 = vmatprep.subr.mxu0 0.0
    %1762 = vmatpush1.xpose.msra.mxu0 0.0
    %1763 = vmatprep.subr.mxu0 0.0
    %1764 = vmatpush1.xpose.msra.mxu0 0.0
    %1765 = vmatprep.subr.mxu0 0.0
    %1766 = vmatpush1.xpose.msra.mxu0 0.0
    %1767 = vmatprep.subr.mxu0 0.0
    %1768 = vmatpush1.xpose.msra.mxu0 0.0
    %1769 = vmatprep.subr.mxu0 0.0
    %1770 = vmatpush1.xpose.msra.mxu0 %v1737
    %1771 = vmatprep.subr.mxu0 0.0
    %1772 = vmatpush2.xpose.msra.mxu0 0.0
    %1773 = vmatprep.subr.mxu0 0.0
    %1774 = vmatpush2.xpose.msra.mxu0 0.0
    %1775 = vmatprep.subr.mxu0 0.0
    %1776 = vmatpush2.xpose.msra.mxu0 0.0
    %1777 = vmatprep.subr.mxu0 0.0
    %1778 = vmatpush2.xpose.msra.mxu0 0.0
    %1779 = vmatprep.subr.mxu0 0.0
    %1780 = vmatpush2.xpose.msra.mxu0 0.0
    %1781 = vmatprep.subr.mxu0 0.0
    %1782 = vmatpush2.xpose.msra.mxu0 0.0
    %1783 = vmatprep.subr.mxu0 0.0
    %1784 = vmatpush2.xpose.msra.mxu0 0.0
    %1785 = vmatprep.subr.mxu0 0.0
    %1786 = vmatpush2.xpose.msra.mxu0 0.0
    %1787 = vmatprep.subr.mxu0 0.0
    %1788 = vmatpush2.xpose.msra.mxu0 0.0
    %1789 = vmatprep.subr.mxu0 0.0
    %1790 = vmatpush2.xpose.msra.mxu0 0.0
    %1791 = vmatprep.subr.mxu0 0.0
    %1792 = vmatpush2.xpose.msra.mxu0 0.0
    %1793 = vmatprep.subr.mxu0 0.0
    %1794 = vmatpush2.xpose.msra.mxu0 0.0
    %1795 = vmatprep.subr.mxu0 0.0
    %1796 = vmatpush2.xpose.msra.mxu0 0.0
    %1797 = vmatprep.subr.mxu0 0.0
    %1798 = vmatpush2.xpose.msra.mxu0 0.0
    %1799 = vmatprep.subr.mxu0 0.0
    %1800 = vmatpush2.xpose.msra.mxu0 0.0
    %1801 = vmatprep.subr.mxu0 0.0
    %1802 = vmatpush2.xpose.msra.mxu0 0.0
    %1803 = vmatprep.mubr.f32.mxu0 0.0
    %1804 = vmatmul.mubr.f32.gmra.mxu0 %v1735
    %v1805 = vpop.f32.mrf.mxu0
    %v1806 = vadd.f32 0.0, %v1805
    %v1807 = vpop.f32.mrf.mxu0
    %1808 = vdwg.mxu0
    %1809 = vrot.lane.b32.xlu0 %v636, 96
    %v1810 = vpop.permute.xlu0 %1809
    %v1811 = vsel %vm57, %v636, 0
    %v1813 = vsel %vm57, %v1810, 0
    %1815 = vmatprep.subr.mxu0 0.0
    %1816 = vmatpush1.xpose.msra.mxu0 0.0
    %1817 = vmatprep.subr.mxu0 0.0
    %1818 = vmatpush1.xpose.msra.mxu0 0.0
    %1819 = vmatprep.subr.mxu0 0.0
    %1820 = vmatpush1.xpose.msra.mxu0 0.0
    %1821 = vmatprep.subr.mxu0 0.0
    %1822 = vmatpush1.xpose.msra.mxu0 0.0
    %1823 = vmatprep.subr.mxu0 0.0
    %1824 = vmatpush1.xpose.msra.mxu0 0.0
    %1825 = vmatprep.subr.mxu0 0.0
    %1826 = vmatpush1.xpose.msra.mxu0 0.0
    %1827 = vmatprep.subr.mxu0 0.0
    %1828 = vmatpush1.xpose.msra.mxu0 0.0
    %1829 = vmatprep.subr.mxu0 0.0
    %1830 = vmatpush1.xpose.msra.mxu0 0.0
    %1831 = vmatprep.subr.mxu0 0.0
    %1832 = vmatpush1.xpose.msra.mxu0 0.0
    %1833 = vmatprep.subr.mxu0 0.0
    %1834 = vmatpush1.xpose.msra.mxu0 0.0
    %1835 = vmatprep.subr.mxu0 0.0
    %1836 = vmatpush1.xpose.msra.mxu0 0.0
    %1837 = vmatprep.subr.mxu0 0.0
    %1838 = vmatpush1.xpose.msra.mxu0 0.0
    %1839 = vmatprep.subr.mxu0 0.0
    %1840 = vmatpush1.xpose.msra.mxu0 0.0
    %1841 = vmatprep.subr.mxu0 0.0
    %1842 = vmatpush1.xpose.msra.mxu0 0.0
    %1843 = vmatprep.subr.mxu0 0.0
    %1844 = vmatpush1.xpose.msra.mxu0 0.0
    %1845 = vmatprep.subr.mxu0 0.0
    %1846 = vmatpush1.xpose.msra.mxu0 %v1813
    %1847 = vmatprep.subr.mxu0 0.0
    %1848 = vmatpush2.xpose.msra.mxu0 0.0
    %1849 = vmatprep.subr.mxu0 0.0
    %1850 = vmatpush2.xpose.msra.mxu0 0.0
    %1851 = vmatprep.subr.mxu0 0.0
    %1852 = vmatpush2.xpose.msra.mxu0 0.0
    %1853 = vmatprep.subr.mxu0 0.0
    %1854 = vmatpush2.xpose.msra.mxu0 0.0
    %1855 = vmatprep.subr.mxu0 0.0
    %1856 = vmatpush2.xpose.msra.mxu0 0.0
    %1857 = vmatprep.subr.mxu0 0.0
    %1858 = vmatpush2.xpose.msra.mxu0 0.0
    %1859 = vmatprep.subr.mxu0 0.0
    %1860 = vmatpush2.xpose.msra.mxu0 0.0
    %1861 = vmatprep.subr.mxu0 0.0
    %1862 = vmatpush2.xpose.msra.mxu0 0.0
    %1863 = vmatprep.subr.mxu0 0.0
    %1864 = vmatpush2.xpose.msra.mxu0 0.0
    %1865 = vmatprep.subr.mxu0 0.0
    %1866 = vmatpush2.xpose.msra.mxu0 0.0
    %1867 = vmatprep.subr.mxu0 0.0
    %1868 = vmatpush2.xpose.msra.mxu0 0.0
    %1869 = vmatprep.subr.mxu0 0.0
    %1870 = vmatpush2.xpose.msra.mxu0 0.0
    %1871 = vmatprep.subr.mxu0 0.0
    %1872 = vmatpush2.xpose.msra.mxu0 0.0
    %1873 = vmatprep.subr.mxu0 0.0
    %1874 = vmatpush2.xpose.msra.mxu0 0.0
    %1875 = vmatprep.subr.mxu0 0.0
    %1876 = vmatpush2.xpose.msra.mxu0 0.0
    %1877 = vmatprep.subr.mxu0 0.0
    %1878 = vmatpush2.xpose.msra.mxu0 0.0
    %1879 = vmatprep.mubr.f32.mxu0 0.0
    %1880 = vmatmul.mubr.f32.gmra.mxu0 %v1811
    %v1881 = vpop.f32.mrf.mxu0
    %v1882 = vadd.f32 0.0, %v1881
    %v1883 = vpop.f32.mrf.mxu0
    %1884 = vdwg.mxu0
    %1885 = vrot.lane.b32.xlu0 %v638, 96
    %v1886 = vpop.permute.xlu0 %1885
    %v1887 = vsel %vm57, %v638, 0
    %v1889 = vsel %vm57, %v1886, 0
    %1891 = vmatprep.subr.mxu0 0.0
    %1892 = vmatpush1.xpose.msra.mxu0 0.0
    %1893 = vmatprep.subr.mxu0 0.0
    %1894 = vmatpush1.xpose.msra.mxu0 0.0
    %1895 = vmatprep.subr.mxu0 0.0
    %1896 = vmatpush1.xpose.msra.mxu0 0.0
    %1897 = vmatprep.subr.mxu0 0.0
    %1898 = vmatpush1.xpose.msra.mxu0 0.0
    %1899 = vmatprep.subr.mxu0 0.0
    %1900 = vmatpush1.xpose.msra.mxu0 0.0
    %1901 = vmatprep.subr.mxu0 0.0
    %1902 = vmatpush1.xpose.msra.mxu0 0.0
    %1903 = vmatprep.subr.mxu0 0.0
    %1904 = vmatpush1.xpose.msra.mxu0 0.0
    %1905 = vmatprep.subr.mxu0 0.0
    %1906 = vmatpush1.xpose.msra.mxu0 0.0
    %1907 = vmatprep.subr.mxu0 0.0
    %1908 = vmatpush1.xpose.msra.mxu0 0.0
    %1909 = vmatprep.subr.mxu0 0.0
    %1910 = vmatpush1.xpose.msra.mxu0 0.0
    %1911 = vmatprep.subr.mxu0 0.0
    %1912 = vmatpush1.xpose.msra.mxu0 0.0
    %1913 = vmatprep.subr.mxu0 0.0
    %1914 = vmatpush1.xpose.msra.mxu0 0.0
    %1915 = vmatprep.subr.mxu0 0.0
    %1916 = vmatpush1.xpose.msra.mxu0 0.0
    %1917 = vmatprep.subr.mxu0 0.0
    %1918 = vmatpush1.xpose.msra.mxu0 0.0
    %1919 = vmatprep.subr.mxu0 0.0
    %1920 = vmatpush1.xpose.msra.mxu0 0.0
    %1921 = vmatprep.subr.mxu0 0.0
    %1922 = vmatpush1.xpose.msra.mxu0 %v1889
    %1923 = vmatprep.subr.mxu0 0.0
    %1924 = vmatpush2.xpose.msra.mxu0 0.0
    %1925 = vmatprep.subr.mxu0 0.0
    %1926 = vmatpush2.xpose.msra.mxu0 0.0
    %1927 = vmatprep.subr.mxu0 0.0
    %1928 = vmatpush2.xpose.msra.mxu0 0.0
    %1929 = vmatprep.subr.mxu0 0.0
    %1930 = vmatpush2.xpose.msra.mxu0 0.0
    %1931 = vmatprep.subr.mxu0 0.0
    %1932 = vmatpush2.xpose.msra.mxu0 0.0
    %1933 = vmatprep.subr.mxu0 0.0
    %1934 = vmatpush2.xpose.msra.mxu0 0.0
    %1935 = vmatprep.subr.mxu0 0.0
    %1936 = vmatpush2.xpose.msra.mxu0 0.0
    %1937 = vmatprep.subr.mxu0 0.0
    %1938 = vmatpush2.xpose.msra.mxu0 0.0
    %1939 = vmatprep.subr.mxu0 0.0
    %1940 = vmatpush2.xpose.msra.mxu0 0.0
    %1941 = vmatprep.subr.mxu0 0.0
    %1942 = vmatpush2.xpose.msra.mxu0 0.0
    %1943 = vmatprep.subr.mxu0 0.0
    %1944 = vmatpush2.xpose.msra.mxu0 0.0
    %1945 = vmatprep.subr.mxu0 0.0
    %1946 = vmatpush2.xpose.msra.mxu0 0.0
    %1947 = vmatprep.subr.mxu0 0.0
    %1948 = vmatpush2.xpose.msra.mxu0 0.0
    %1949 = vmatprep.subr.mxu0 0.0
    %1950 = vmatpush2.xpose.msra.mxu0 0.0
    %1951 = vmatprep.subr.mxu0 0.0
    %1952 = vmatpush2.xpose.msra.mxu0 0.0
    %1953 = vmatprep.subr.mxu0 0.0
    %1954 = vmatpush2.xpose.msra.mxu0 0.0
    %1955 = vmatprep.mubr.f32.mxu0 0.0
    %1956 = vmatmul.mubr.f32.gmra.mxu0 %v1887
    %v1957 = vpop.f32.mrf.mxu0
    %v1958 = vadd.f32 0.0, %v1957
    %v1959 = vpop.f32.mrf.mxu0
    %1960 = vdwg.mxu0
    %1961 = vrot.lane.b32.xlu0 %v640, 96
    %v1962 = vpop.permute.xlu0 %1961
    %v1963 = vsel %vm57, %v640, 0
    %v1965 = vsel %vm57, %v1962, 0
    %1967 = vmatprep.subr.mxu0 0.0
    %1968 = vmatpush1.xpose.msra.mxu0 0.0
    %1969 = vmatprep.subr.mxu0 0.0
    %1970 = vmatpush1.xpose.msra.mxu0 0.0
    %1971 = vmatprep.subr.mxu0 0.0
    %1972 = vmatpush1.xpose.msra.mxu0 0.0
    %1973 = vmatprep.subr.mxu0 0.0
    %1974 = vmatpush1.xpose.msra.mxu0 0.0
    %1975 = vmatprep.subr.mxu0 0.0
    %1976 = vmatpush1.xpose.msra.mxu0 0.0
    %1977 = vmatprep.subr.mxu0 0.0
    %1978 = vmatpush1.xpose.msra.mxu0 0.0
    %1979 = vmatprep.subr.mxu0 0.0
    %1980 = vmatpush1.xpose.msra.mxu0 0.0
    %1981 = vmatprep.subr.mxu0 0.0
    %1982 = vmatpush1.xpose.msra.mxu0 0.0
    %1983 = vmatprep.subr.mxu0 0.0
    %1984 = vmatpush1.xpose.msra.mxu0 0.0
    %1985 = vmatprep.subr.mxu0 0.0
    %1986 = vmatpush1.xpose.msra.mxu0 0.0
    %1987 = vmatprep.subr.mxu0 0.0
    %1988 = vmatpush1.xpose.msra.mxu0 0.0
    %1989 = vmatprep.subr.mxu0 0.0
    %1990 = vmatpush1.xpose.msra.mxu0 0.0
    %1991 = vmatprep.subr.mxu0 0.0
    %1992 = vmatpush1.xpose.msra.mxu0 0.0
    %1993 = vmatprep.subr.mxu0 0.0
    %1994 = vmatpush1.xpose.msra.mxu0 0.0
    %1995 = vmatprep.subr.mxu0 0.0
    %1996 = vmatpush1.xpose.msra.mxu0 0.0
    %1997 = vmatprep.subr.mxu0 0.0
    %1998 = vmatpush1.xpose.msra.mxu0 %v1965
    %1999 = vmatprep.subr.mxu0 0.0
    %2000 = vmatpush2.xpose.msra.mxu0 0.0
    %2001 = vmatprep.subr.mxu0 0.0
    %2002 = vmatpush2.xpose.msra.mxu0 0.0
    %2003 = vmatprep.subr.mxu0 0.0
    %2004 = vmatpush2.xpose.msra.mxu0 0.0
    %2005 = vmatprep.subr.mxu0 0.0
    %2006 = vmatpush2.xpose.msra.mxu0 0.0
    %2007 = vmatprep.subr.mxu0 0.0
    %2008 = vmatpush2.xpose.msra.mxu0 0.0
    %2009 = vmatprep.subr.mxu0 0.0
    %2010 = vmatpush2.xpose.msra.mxu0 0.0
    %2011 = vmatprep.subr.mxu0 0.0
    %2012 = vmatpush2.xpose.msra.mxu0 0.0
    %2013 = vmatprep.subr.mxu0 0.0
    %2014 = vmatpush2.xpose.msra.mxu0 0.0
    %2015 = vmatprep.subr.mxu0 0.0
    %2016 = vmatpush2.xpose.msra.mxu0 0.0
    %2017 = vmatprep.subr.mxu0 0.0
    %2018 = vmatpush2.xpose.msra.mxu0 0.0
    %2019 = vmatprep.subr.mxu0 0.0
    %2020 = vmatpush2.xpose.msra.mxu0 0.0
    %2021 = vmatprep.subr.mxu0 0.0
    %2022 = vmatpush2.xpose.msra.mxu0 0.0
    %2023 = vmatprep.subr.mxu0 0.0
    %2024 = vmatpush2.xpose.msra.mxu0 0.0
    %2025 = vmatprep.subr.mxu0 0.0
    %2026 = vmatpush2.xpose.msra.mxu0 0.0
    %2027 = vmatprep.subr.mxu0 0.0
    %2028 = vmatpush2.xpose.msra.mxu0 0.0
    %2029 = vmatprep.subr.mxu0 0.0
    %2030 = vmatpush2.xpose.msra.mxu0 0.0
    %2031 = vmatprep.mubr.f32.mxu0 0.0
    %2032 = vmatmul.mubr.f32.gmra.mxu0 %v1963
    %v2033 = vpop.f32.mrf.mxu0
    %v2034 = vadd.f32 0.0, %v2033
    %v2035 = vpop.f32.mrf.mxu0
    %2036 = vdwg.mxu0
    %2037 = vrot.lane.b32.xlu0 %v642, 96
    %v2038 = vpop.permute.xlu0 %2037
    %v2039 = vsel %vm57, %v642, 0
    %v2041 = vsel %vm57, %v2038, 0
    %2043 = vmatprep.subr.mxu0 0.0
    %2044 = vmatpush1.xpose.msra.mxu0 0.0
    %2045 = vmatprep.subr.mxu0 0.0
    %2046 = vmatpush1.xpose.msra.mxu0 0.0
    %2047 = vmatprep.subr.mxu0 0.0
    %2048 = vmatpush1.xpose.msra.mxu0 0.0
    %2049 = vmatprep.subr.mxu0 0.0
    %2050 = vmatpush1.xpose.msra.mxu0 0.0
    %2051 = vmatprep.subr.mxu0 0.0
    %2052 = vmatpush1.xpose.msra.mxu0 0.0
    %2053 = vmatprep.subr.mxu0 0.0
    %2054 = vmatpush1.xpose.msra.mxu0 0.0
    %2055 = vmatprep.subr.mxu0 0.0
    %2056 = vmatpush1.xpose.msra.mxu0 0.0
    %2057 = vmatprep.subr.mxu0 0.0
    %2058 = vmatpush1.xpose.msra.mxu0 0.0
    %2059 = vmatprep.subr.mxu0 0.0
    %2060 = vmatpush1.xpose.msra.mxu0 0.0
    %2061 = vmatprep.subr.mxu0 0.0
    %2062 = vmatpush1.xpose.msra.mxu0 0.0
    %2063 = vmatprep.subr.mxu0 0.0
    %2064 = vmatpush1.xpose.msra.mxu0 0.0
    %2065 = vmatprep.subr.mxu0 0.0
    %2066 = vmatpush1.xpose.msra.mxu0 0.0
    %2067 = vmatprep.subr.mxu0 0.0
    %2068 = vmatpush1.xpose.msra.mxu0 0.0
    %2069 = vmatprep.subr.mxu0 0.0
    %2070 = vmatpush1.xpose.msra.mxu0 0.0
    %2071 = vmatprep.subr.mxu0 0.0
    %2072 = vmatpush1.xpose.msra.mxu0 0.0
    %2073 = vmatprep.subr.mxu0 0.0
    %2074 = vmatpush1.xpose.msra.mxu0 %v2041
    %2075 = vmatprep.subr.mxu0 0.0
    %2076 = vmatpush2.xpose.msra.mxu0 0.0
    %2077 = vmatprep.subr.mxu0 0.0
    %2078 = vmatpush2.xpose.msra.mxu0 0.0
    %2079 = vmatprep.subr.mxu0 0.0
    %2080 = vmatpush2.xpose.msra.mxu0 0.0
    %2081 = vmatprep.subr.mxu0 0.0
    %2082 = vmatpush2.xpose.msra.mxu0 0.0
    %2083 = vmatprep.subr.mxu0 0.0
    %2084 = vmatpush2.xpose.msra.mxu0 0.0
    %2085 = vmatprep.subr.mxu0 0.0
    %2086 = vmatpush2.xpose.msra.mxu0 0.0
    %2087 = vmatprep.subr.mxu0 0.0
    %2088 = vmatpush2.xpose.msra.mxu0 0.0
    %2089 = vmatprep.subr.mxu0 0.0
    %2090 = vmatpush2.xpose.msra.mxu0 0.0
    %2091 = vmatprep.subr.mxu0 0.0
    %2092 = vmatpush2.xpose.msra.mxu0 0.0
    %2093 = vmatprep.subr.mxu0 0.0
    %2094 = vmatpush2.xpose.msra.mxu0 0.0
    %2095 = vmatprep.subr.mxu0 0.0
    %2096 = vmatpush2.xpose.msra.mxu0 0.0
    %2097 = vmatprep.subr.mxu0 0.0
    %2098 = vmatpush2.xpose.msra.mxu0 0.0
    %2099 = vmatprep.subr.mxu0 0.0
    %2100 = vmatpush2.xpose.msra.mxu0 0.0
    %2101 = vmatprep.subr.mxu0 0.0
    %2102 = vmatpush2.xpose.msra.mxu0 0.0
    %2103 = vmatprep.subr.mxu0 0.0
    %2104 = vmatpush2.xpose.msra.mxu0 0.0
    %2105 = vmatprep.subr.mxu0 0.0
    %2106 = vmatpush2.xpose.msra.mxu0 0.0
    %2107 = vmatprep.mubr.f32.mxu0 0.0
    %2108 = vmatmul.mubr.f32.gmra.mxu0 %v2039
    %v2109 = vpop.f32.mrf.mxu0
    %v2110 = vadd.f32 0.0, %v2109
    %v2111 = vpop.f32.mrf.mxu0
    %2112 = vdwg.mxu0
    %2113 = vrot.lane.b32.xlu0 %v644, 96
    %v2114 = vpop.permute.xlu0 %2113
    %v2115 = vsel %vm57, %v644, 0
    %v2117 = vsel %vm57, %v2114, 0
    %2119 = vmatprep.subr.mxu0 0.0
    %2120 = vmatpush1.xpose.msra.mxu0 0.0
    %2121 = vmatprep.subr.mxu0 0.0
    %2122 = vmatpush1.xpose.msra.mxu0 0.0
    %2123 = vmatprep.subr.mxu0 0.0
    %2124 = vmatpush1.xpose.msra.mxu0 0.0
    %2125 = vmatprep.subr.mxu0 0.0
    %2126 = vmatpush1.xpose.msra.mxu0 0.0
    %2127 = vmatprep.subr.mxu0 0.0
    %2128 = vmatpush1.xpose.msra.mxu0 0.0
    %2129 = vmatprep.subr.mxu0 0.0
    %2130 = vmatpush1.xpose.msra.mxu0 0.0
    %2131 = vmatprep.subr.mxu0 0.0
    %2132 = vmatpush1.xpose.msra.mxu0 0.0
    %2133 = vmatprep.subr.mxu0 0.0
    %2134 = vmatpush1.xpose.msra.mxu0 0.0
    %2135 = vmatprep.subr.mxu0 0.0
    %2136 = vmatpush1.xpose.msra.mxu0 0.0
    %2137 = vmatprep.subr.mxu0 0.0
    %2138 = vmatpush1.xpose.msra.mxu0 0.0
    %2139 = vmatprep.subr.mxu0 0.0
    %2140 = vmatpush1.xpose.msra.mxu0 0.0
    %2141 = vmatprep.subr.mxu0 0.0
    %2142 = vmatpush1.xpose.msra.mxu0 0.0
    %2143 = vmatprep.subr.mxu0 0.0
    %2144 = vmatpush1.xpose.msra.mxu0 0.0
    %2145 = vmatprep.subr.mxu0 0.0
    %2146 = vmatpush1.xpose.msra.mxu0 0.0
    %2147 = vmatprep.subr.mxu0 0.0
    %2148 = vmatpush1.xpose.msra.mxu0 0.0
    %2149 = vmatprep.subr.mxu0 0.0
    %2150 = vmatpush1.xpose.msra.mxu0 %v2117
    %2151 = vmatprep.subr.mxu0 0.0
    %2152 = vmatpush2.xpose.msra.mxu0 0.0
    %2153 = vmatprep.subr.mxu0 0.0
    %2154 = vmatpush2.xpose.msra.mxu0 0.0
    %2155 = vmatprep.subr.mxu0 0.0
    %2156 = vmatpush2.xpose.msra.mxu0 0.0
    %2157 = vmatprep.subr.mxu0 0.0
    %2158 = vmatpush2.xpose.msra.mxu0 0.0
    %2159 = vmatprep.subr.mxu0 0.0
    %2160 = vmatpush2.xpose.msra.mxu0 0.0
    %2161 = vmatprep.subr.mxu0 0.0
    %2162 = vmatpush2.xpose.msra.mxu0 0.0
    %2163 = vmatprep.subr.mxu0 0.0
    %2164 = vmatpush2.xpose.msra.mxu0 0.0
    %2165 = vmatprep.subr.mxu0 0.0
    %2166 = vmatpush2.xpose.msra.mxu0 0.0
    %2167 = vmatprep.subr.mxu0 0.0
    %2168 = vmatpush2.xpose.msra.mxu0 0.0
    %2169 = vmatprep.subr.mxu0 0.0
    %2170 = vmatpush2.xpose.msra.mxu0 0.0
    %2171 = vmatprep.subr.mxu0 0.0
    %2172 = vmatpush2.xpose.msra.mxu0 0.0
    %2173 = vmatprep.subr.mxu0 0.0
    %2174 = vmatpush2.xpose.msra.mxu0 0.0
    %2175 = vmatprep.subr.mxu0 0.0
    %2176 = vmatpush2.xpose.msra.mxu0 0.0
    %2177 = vmatprep.subr.mxu0 0.0
    %2178 = vmatpush2.xpose.msra.mxu0 0.0
    %2179 = vmatprep.subr.mxu0 0.0
    %2180 = vmatpush2.xpose.msra.mxu0 0.0
    %2181 = vmatprep.subr.mxu0 0.0
    %2182 = vmatpush2.xpose.msra.mxu0 0.0
    %2183 = vmatprep.mubr.f32.mxu0 0.0
    %2184 = vmatmul.mubr.f32.gmra.mxu0 %v2115
    %v2185 = vpop.f32.mrf.mxu0
    %v2186 = vadd.f32 0.0, %v2185
    %v2187 = vpop.f32.mrf.mxu0
    %2188 = vdwg.mxu0
    %2189 = vrot.lane.b32.xlu0 %v646, 96
    %v2190 = vpop.permute.xlu0 %2189
    %v2191 = vsel %vm57, %v646, 0
    %v2193 = vsel %vm57, %v2190, 0
    %2195 = vmatprep.subr.mxu0 0.0
    %2196 = vmatpush1.xpose.msra.mxu0 0.0
    %2197 = vmatprep.subr.mxu0 0.0
    %2198 = vmatpush1.xpose.msra.mxu0 0.0
    %2199 = vmatprep.subr.mxu0 0.0
    %2200 = vmatpush1.xpose.msra.mxu0 0.0
    %2201 = vmatprep.subr.mxu0 0.0
    %2202 = vmatpush1.xpose.msra.mxu0 0.0
    %2203 = vmatprep.subr.mxu0 0.0
    %2204 = vmatpush1.xpose.msra.mxu0 0.0
    %2205 = vmatprep.subr.mxu0 0.0
    %2206 = vmatpush1.xpose.msra.mxu0 0.0
    %2207 = vmatprep.subr.mxu0 0.0
    %2208 = vmatpush1.xpose.msra.mxu0 0.0
    %2209 = vmatprep.subr.mxu0 0.0
    %2210 = vmatpush1.xpose.msra.mxu0 0.0
    %2211 = vmatprep.subr.mxu0 0.0
    %2212 = vmatpush1.xpose.msra.mxu0 0.0
    %2213 = vmatprep.subr.mxu0 0.0
    %2214 = vmatpush1.xpose.msra.mxu0 0.0
    %2215 = vmatprep.subr.mxu0 0.0
    %2216 = vmatpush1.xpose.msra.mxu0 0.0
    %2217 = vmatprep.subr.mxu0 0.0
    %2218 = vmatpush1.xpose.msra.mxu0 0.0
    %2219 = vmatprep.subr.mxu0 0.0
    %2220 = vmatpush1.xpose.msra.mxu0 0.0
    %2221 = vmatprep.subr.mxu0 0.0
    %2222 = vmatpush1.xpose.msra.mxu0 0.0
    %2223 = vmatprep.subr.mxu0 0.0
    %2224 = vmatpush1.xpose.msra.mxu0 0.0
    %2225 = vmatprep.subr.mxu0 0.0
    %2226 = vmatpush1.xpose.msra.mxu0 %v2193
    %2227 = vmatprep.subr.mxu0 0.0
    %2228 = vmatpush2.xpose.msra.mxu0 0.0
    %2229 = vmatprep.subr.mxu0 0.0
    %2230 = vmatpush2.xpose.msra.mxu0 0.0
    %2231 = vmatprep.subr.mxu0 0.0
    %2232 = vmatpush2.xpose.msra.mxu0 0.0
    %2233 = vmatprep.subr.mxu0 0.0
    %2234 = vmatpush2.xpose.msra.mxu0 0.0
    %2235 = vmatprep.subr.mxu0 0.0
    %2236 = vmatpush2.xpose.msra.mxu0 0.0
    %2237 = vmatprep.subr.mxu0 0.0
    %2238 = vmatpush2.xpose.msra.mxu0 0.0
    %2239 = vmatprep.subr.mxu0 0.0
    %2240 = vmatpush2.xpose.msra.mxu0 0.0
    %2241 = vmatprep.subr.mxu0 0.0
    %2242 = vmatpush2.xpose.msra.mxu0 0.0
    %2243 = vmatprep.subr.mxu0 0.0
    %2244 = vmatpush2.xpose.msra.mxu0 0.0
    %2245 = vmatprep.subr.mxu0 0.0
    %2246 = vmatpush2.xpose.msra.mxu0 0.0
    %2247 = vmatprep.subr.mxu0 0.0
    %2248 = vmatpush2.xpose.msra.mxu0 0.0
    %2249 = vmatprep.subr.mxu0 0.0
    %2250 = vmatpush2.xpose.msra.mxu0 0.0
    %2251 = vmatprep.subr.mxu0 0.0
    %2252 = vmatpush2.xpose.msra.mxu0 0.0
    %2253 = vmatprep.subr.mxu0 0.0
    %2254 = vmatpush2.xpose.msra.mxu0 0.0
    %2255 = vmatprep.subr.mxu0 0.0
    %2256 = vmatpush2.xpose.msra.mxu0 0.0
    %2257 = vmatprep.subr.mxu0 0.0
    %2258 = vmatpush2.xpose.msra.mxu0 0.0
    %2259 = vmatprep.mubr.f32.mxu0 0.0
    %2260 = vmatmul.mubr.f32.gmra.mxu0 %v2191
    %v2261 = vpop.f32.mrf.mxu0
    %v2262 = vadd.f32 0.0, %v2261
    %v2263 = vpop.f32.mrf.mxu0
    %2264 = vdwg.mxu0
    %2265 = vrot.lane.b32.xlu0 %v648, 96
    %v2266 = vpop.permute.xlu0 %2265
    %v2267 = vsel %vm57, %v648, 0
    %v2269 = vsel %vm57, %v2266, 0
    %2271 = vmatprep.subr.mxu0 0.0
    %2272 = vmatpush1.xpose.msra.mxu0 0.0
    %2273 = vmatprep.subr.mxu0 0.0
    %2274 = vmatpush1.xpose.msra.mxu0 0.0
    %2275 = vmatprep.subr.mxu0 0.0
    %2276 = vmatpush1.xpose.msra.mxu0 0.0
    %2277 = vmatprep.subr.mxu0 0.0
    %2278 = vmatpush1.xpose.msra.mxu0 0.0
    %2279 = vmatprep.subr.mxu0 0.0
    %2280 = vmatpush1.xpose.msra.mxu0 0.0
    %2281 = vmatprep.subr.mxu0 0.0
    %2282 = vmatpush1.xpose.msra.mxu0 0.0
    %2283 = vmatprep.subr.mxu0 0.0
    %2284 = vmatpush1.xpose.msra.mxu0 0.0
    %2285 = vmatprep.subr.mxu0 0.0
    %2286 = vmatpush1.xpose.msra.mxu0 0.0
    %2287 = vmatprep.subr.mxu0 0.0
    %2288 = vmatpush1.xpose.msra.mxu0 0.0
    %2289 = vmatprep.subr.mxu0 0.0
    %2290 = vmatpush1.xpose.msra.mxu0 0.0
    %2291 = vmatprep.subr.mxu0 0.0
    %2292 = vmatpush1.xpose.msra.mxu0 0.0
    %2293 = vmatprep.subr.mxu0 0.0
    %2294 = vmatpush1.xpose.msra.mxu0 0.0
    %2295 = vmatprep.subr.mxu0 0.0
    %2296 = vmatpush1.xpose.msra.mxu0 0.0
    %2297 = vmatprep.subr.mxu0 0.0
    %2298 = vmatpush1.xpose.msra.mxu0 0.0
    %2299 = vmatprep.subr.mxu0 0.0
    %2300 = vmatpush1.xpose.msra.mxu0 0.0
    %2301 = vmatprep.subr.mxu0 0.0
    %2302 = vmatpush1.xpose.msra.mxu0 %v2269
    %2303 = vmatprep.subr.mxu0 0.0
    %2304 = vmatpush2.xpose.msra.mxu0 0.0
    %2305 = vmatprep.subr.mxu0 0.0
    %2306 = vmatpush2.xpose.msra.mxu0 0.0
    %2307 = vmatprep.subr.mxu0 0.0
    %2308 = vmatpush2.xpose.msra.mxu0 0.0
    %2309 = vmatprep.subr.mxu0 0.0
    %2310 = vmatpush2.xpose.msra.mxu0 0.0
    %2311 = vmatprep.subr.mxu0 0.0
    %2312 = vmatpush2.xpose.msra.mxu0 0.0
    %2313 = vmatprep.subr.mxu0 0.0
    %2314 = vmatpush2.xpose.msra.mxu0 0.0
    %2315 = vmatprep.subr.mxu0 0.0
    %2316 = vmatpush2.xpose.msra.mxu0 0.0
    %2317 = vmatprep.subr.mxu0 0.0
    %2318 = vmatpush2.xpose.msra.mxu0 0.0
    %2319 = vmatprep.subr.mxu0 0.0
    %2320 = vmatpush2.xpose.msra.mxu0 0.0
    %2321 = vmatprep.subr.mxu0 0.0
    %2322 = vmatpush2.xpose.msra.mxu0 0.0
    %2323 = vmatprep.subr.mxu0 0.0
    %2324 = vmatpush2.xpose.msra.mxu0 0.0
    %2325 = vmatprep.subr.mxu0 0.0
    %2326 = vmatpush2.xpose.msra.mxu0 0.0
    %2327 = vmatprep.subr.mxu0 0.0
    %2328 = vmatpush2.xpose.msra.mxu0 0.0
    %2329 = vmatprep.subr.mxu0 0.0
    %2330 = vmatpush2.xpose.msra.mxu0 0.0
    %2331 = vmatprep.subr.mxu0 0.0
    %2332 = vmatpush2.xpose.msra.mxu0 0.0
    %2333 = vmatprep.subr.mxu0 0.0
    %2334 = vmatpush2.xpose.msra.mxu0 0.0
    %2335 = vmatprep.mubr.f32.mxu0 0.0
    %2336 = vmatmul.mubr.f32.gmra.mxu0 %v2267
    %v2337 = vpop.f32.mrf.mxu0
    %v2338 = vadd.f32 0.0, %v2337
    %v2339 = vpop.f32.mrf.mxu0
    %2340 = vdwg.mxu0
    %2341 = vrot.lane.b32.xlu0 %v650, 96
    %v2342 = vpop.permute.xlu0 %2341
    %v2343 = vsel %vm57, %v650, 0
    %v2345 = vsel %vm57, %v2342, 0
    %2347 = vmatprep.subr.mxu0 0.0
    %2348 = vmatpush1.xpose.msra.mxu0 0.0
    %2349 = vmatprep.subr.mxu0 0.0
    %2350 = vmatpush1.xpose.msra.mxu0 0.0
    %2351 = vmatprep.subr.mxu0 0.0
    %2352 = vmatpush1.xpose.msra.mxu0 0.0
    %2353 = vmatprep.subr.mxu0 0.0
    %2354 = vmatpush1.xpose.msra.mxu0 0.0
    %2355 = vmatprep.subr.mxu0 0.0
    %2356 = vmatpush1.xpose.msra.mxu0 0.0
    %2357 = vmatprep.subr.mxu0 0.0
    %2358 = vmatpush1.xpose.msra.mxu0 0.0
    %2359 = vmatprep.subr.mxu0 0.0
    %2360 = vmatpush1.xpose.msra.mxu0 0.0
    %2361 = vmatprep.subr.mxu0 0.0
    %2362 = vmatpush1.xpose.msra.mxu0 0.0
    %2363 = vmatprep.subr.mxu0 0.0
    %2364 = vmatpush1.xpose.msra.mxu0 0.0
    %2365 = vmatprep.subr.mxu0 0.0
    %2366 = vmatpush1.xpose.msra.mxu0 0.0
    %2367 = vmatprep.subr.mxu0 0.0
    %2368 = vmatpush1.xpose.msra.mxu0 0.0
    %2369 = vmatprep.subr.mxu0 0.0
    %2370 = vmatpush1.xpose.msra.mxu0 0.0
    %2371 = vmatprep.subr.mxu0 0.0
    %2372 = vmatpush1.xpose.msra.mxu0 0.0
    %2373 = vmatprep.subr.mxu0 0.0
    %2374 = vmatpush1.xpose.msra.mxu0 0.0
    %2375 = vmatprep.subr.mxu0 0.0
    %2376 = vmatpush1.xpose.msra.mxu0 0.0
    %2377 = vmatprep.subr.mxu0 0.0
    %2378 = vmatpush1.xpose.msra.mxu0 %v2345
    %2379 = vmatprep.subr.mxu0 0.0
    %2380 = vmatpush2.xpose.msra.mxu0 0.0
    %2381 = vmatprep.subr.mxu0 0.0
    %2382 = vmatpush2.xpose.msra.mxu0 0.0
    %2383 = vmatprep.subr.mxu0 0.0
    %2384 = vmatpush2.xpose.msra.mxu0 0.0
    %2385 = vmatprep.subr.mxu0 0.0
    %2386 = vmatpush2.xpose.msra.mxu0 0.0
    %2387 = vmatprep.subr.mxu0 0.0
    %2388 = vmatpush2.xpose.msra.mxu0 0.0
    %2389 = vmatprep.subr.mxu0 0.0
    %2390 = vmatpush2.xpose.msra.mxu0 0.0
    %2391 = vmatprep.subr.mxu0 0.0
    %2392 = vmatpush2.xpose.msra.mxu0 0.0
    %2393 = vmatprep.subr.mxu0 0.0
    %2394 = vmatpush2.xpose.msra.mxu0 0.0
    %2395 = vmatprep.subr.mxu0 0.0
    %2396 = vmatpush2.xpose.msra.mxu0 0.0
    %2397 = vmatprep.subr.mxu0 0.0
    %2398 = vmatpush2.xpose.msra.mxu0 0.0
    %2399 = vmatprep.subr.mxu0 0.0
    %2400 = vmatpush2.xpose.msra.mxu0 0.0
    %2401 = vmatprep.subr.mxu0 0.0
    %2402 = vmatpush2.xpose.msra.mxu0 0.0
    %2403 = vmatprep.subr.mxu0 0.0
    %2404 = vmatpush2.xpose.msra.mxu0 0.0
    %2405 = vmatprep.subr.mxu0 0.0
    %2406 = vmatpush2.xpose.msra.mxu0 0.0
    %2407 = vmatprep.subr.mxu0 0.0
    %2408 = vmatpush2.xpose.msra.mxu0 0.0
    %2409 = vmatprep.subr.mxu0 0.0
    %2410 = vmatpush2.xpose.msra.mxu0 0.0
    %2411 = vmatprep.mubr.f32.mxu0 0.0
    %2412 = vmatmul.mubr.f32.gmra.mxu0 %v2343
    %v2413 = vpop.f32.mrf.mxu0
    %v2414 = vadd.f32 0.0, %v2413
    %v2415 = vpop.f32.mrf.mxu0
    %2416 = vdwg.mxu0
    %2417 = vrot.lane.b32.xlu0 %v652, 96
    %v2418 = vpop.permute.xlu0 %2417
    %v2419 = vsel %vm57, %v652, 0
    %v2421 = vsel %vm57, %v2418, 0
    %2423 = vmatprep.subr.mxu0 0.0
    %2424 = vmatpush1.xpose.msra.mxu0 0.0
    %2425 = vmatprep.subr.mxu0 0.0
    %2426 = vmatpush1.xpose.msra.mxu0 0.0
    %2427 = vmatprep.subr.mxu0 0.0
    %2428 = vmatpush1.xpose.msra.mxu0 0.0
    %2429 = vmatprep.subr.mxu0 0.0
    %2430 = vmatpush1.xpose.msra.mxu0 0.0
    %2431 = vmatprep.subr.mxu0 0.0
    %2432 = vmatpush1.xpose.msra.mxu0 0.0
    %2433 = vmatprep.subr.mxu0 0.0
    %2434 = vmatpush1.xpose.msra.mxu0 0.0
    %2435 = vmatprep.subr.mxu0 0.0
    %2436 = vmatpush1.xpose.msra.mxu0 0.0
    %2437 = vmatprep.subr.mxu0 0.0
    %2438 = vmatpush1.xpose.msra.mxu0 0.0
    %2439 = vmatprep.subr.mxu0 0.0
    %2440 = vmatpush1.xpose.msra.mxu0 0.0
    %2441 = vmatprep.subr.mxu0 0.0
    %2442 = vmatpush1.xpose.msra.mxu0 0.0
    %2443 = vmatprep.subr.mxu0 0.0
    %2444 = vmatpush1.xpose.msra.mxu0 0.0
    %2445 = vmatprep.subr.mxu0 0.0
    %2446 = vmatpush1.xpose.msra.mxu0 0.0
    %2447 = vmatprep.subr.mxu0 0.0
    %2448 = vmatpush1.xpose.msra.mxu0 0.0
    %2449 = vmatprep.subr.mxu0 0.0
    %2450 = vmatpush1.xpose.msra.mxu0 0.0
    %2451 = vmatprep.subr.mxu0 0.0
    %2452 = vmatpush1.xpose.msra.mxu0 0.0
    %2453 = vmatprep.subr.mxu0 0.0
    %2454 = vmatpush1.xpose.msra.mxu0 %v2421
    %2455 = vmatprep.subr.mxu0 0.0
    %2456 = vmatpush2.xpose.msra.mxu0 0.0
    %2457 = vmatprep.subr.mxu0 0.0
    %2458 = vmatpush2.xpose.msra.mxu0 0.0
    %2459 = vmatprep.subr.mxu0 0.0
    %2460 = vmatpush2.xpose.msra.mxu0 0.0
    %2461 = vmatprep.subr.mxu0 0.0
    %2462 = vmatpush2.xpose.msra.mxu0 0.0
    %2463 = vmatprep.subr.mxu0 0.0
    %2464 = vmatpush2.xpose.msra.mxu0 0.0
    %2465 = vmatprep.subr.mxu0 0.0
    %2466 = vmatpush2.xpose.msra.mxu0 0.0
    %2467 = vmatprep.subr.mxu0 0.0
    %2468 = vmatpush2.xpose.msra.mxu0 0.0
    %2469 = vmatprep.subr.mxu0 0.0
    %2470 = vmatpush2.xpose.msra.mxu0 0.0
    %2471 = vmatprep.subr.mxu0 0.0
    %2472 = vmatpush2.xpose.msra.mxu0 0.0
    %2473 = vmatprep.subr.mxu0 0.0
    %2474 = vmatpush2.xpose.msra.mxu0 0.0
    %2475 = vmatprep.subr.mxu0 0.0
    %2476 = vmatpush2.xpose.msra.mxu0 0.0
    %2477 = vmatprep.subr.mxu0 0.0
    %2478 = vmatpush2.xpose.msra.mxu0 0.0
    %2479 = vmatprep.subr.mxu0 0.0
    %2480 = vmatpush2.xpose.msra.mxu0 0.0
    %2481 = vmatprep.subr.mxu0 0.0
    %2482 = vmatpush2.xpose.msra.mxu0 0.0
    %2483 = vmatprep.subr.mxu0 0.0
    %2484 = vmatpush2.xpose.msra.mxu0 0.0
    %2485 = vmatprep.subr.mxu0 0.0
    %2486 = vmatpush2.xpose.msra.mxu0 0.0
    %2487 = vmatprep.mubr.f32.mxu0 0.0
    %2488 = vmatmul.mubr.f32.gmra.mxu0 %v2419
    %v2489 = vpop.f32.mrf.mxu0
    %v2490 = vadd.f32 0.0, %v2489
    %v2491 = vpop.f32.mrf.mxu0
    %2492 = vdwg.mxu0
    %2493 = vrot.lane.b32.xlu0 %v654, 96
    %v2494 = vpop.permute.xlu0 %2493
    %v2495 = vsel %vm57, %v654, 0
    %v2497 = vsel %vm57, %v2494, 0
    %2499 = vmatprep.subr.mxu0 0.0
    %2500 = vmatpush1.xpose.msra.mxu0 0.0
    %2501 = vmatprep.subr.mxu0 0.0
    %2502 = vmatpush1.xpose.msra.mxu0 0.0
    %2503 = vmatprep.subr.mxu0 0.0
    %2504 = vmatpush1.xpose.msra.mxu0 0.0
    %2505 = vmatprep.subr.mxu0 0.0
    %2506 = vmatpush1.xpose.msra.mxu0 0.0
    %2507 = vmatprep.subr.mxu0 0.0
    %2508 = vmatpush1.xpose.msra.mxu0 0.0
    %2509 = vmatprep.subr.mxu0 0.0
    %2510 = vmatpush1.xpose.msra.mxu0 0.0
    %2511 = vmatprep.subr.mxu0 0.0
    %2512 = vmatpush1.xpose.msra.mxu0 0.0
    %2513 = vmatprep.subr.mxu0 0.0
    %2514 = vmatpush1.xpose.msra.mxu0 0.0
    %2515 = vmatprep.subr.mxu0 0.0
    %2516 = vmatpush1.xpose.msra.mxu0 0.0
    %2517 = vmatprep.subr.mxu0 0.0
    %2518 = vmatpush1.xpose.msra.mxu0 0.0
    %2519 = vmatprep.subr.mxu0 0.0
    %2520 = vmatpush1.xpose.msra.mxu0 0.0
    %2521 = vmatprep.subr.mxu0 0.0
    %2522 = vmatpush1.xpose.msra.mxu0 0.0
    %2523 = vmatprep.subr.mxu0 0.0
    %2524 = vmatpush1.xpose.msra.mxu0 0.0
    %2525 = vmatprep.subr.mxu0 0.0
    %2526 = vmatpush1.xpose.msra.mxu0 0.0
    %2527 = vmatprep.subr.mxu0 0.0
    %2528 = vmatpush1.xpose.msra.mxu0 0.0
    %2529 = vmatprep.subr.mxu0 0.0
    %2530 = vmatpush1.xpose.msra.mxu0 %v2497
    %2531 = vmatprep.subr.mxu0 0.0
    %2532 = vmatpush2.xpose.msra.mxu0 0.0
    %2533 = vmatprep.subr.mxu0 0.0
    %2534 = vmatpush2.xpose.msra.mxu0 0.0
    %2535 = vmatprep.subr.mxu0 0.0
    %2536 = vmatpush2.xpose.msra.mxu0 0.0
    %2537 = vmatprep.subr.mxu0 0.0
    %2538 = vmatpush2.xpose.msra.mxu0 0.0
    %2539 = vmatprep.subr.mxu0 0.0
    %2540 = vmatpush2.xpose.msra.mxu0 0.0
    %2541 = vmatprep.subr.mxu0 0.0
    %2542 = vmatpush2.xpose.msra.mxu0 0.0
    %2543 = vmatprep.subr.mxu0 0.0
    %2544 = vmatpush2.xpose.msra.mxu0 0.0
    %2545 = vmatprep.subr.mxu0 0.0
    %2546 = vmatpush2.xpose.msra.mxu0 0.0
    %2547 = vmatprep.subr.mxu0 0.0
    %2548 = vmatpush2.xpose.msra.mxu0 0.0
    %2549 = vmatprep.subr.mxu0 0.0
    %2550 = vmatpush2.xpose.msra.mxu0 0.0
    %2551 = vmatprep.subr.mxu0 0.0
    %2552 = vmatpush2.xpose.msra.mxu0 0.0
    %2553 = vmatprep.subr.mxu0 0.0
    %2554 = vmatpush2.xpose.msra.mxu0 0.0
    %2555 = vmatprep.subr.mxu0 0.0
    %2556 = vmatpush2.xpose.msra.mxu0 0.0
    %2557 = vmatprep.subr.mxu0 0.0
    %2558 = vmatpush2.xpose.msra.mxu0 0.0
    %2559 = vmatprep.subr.mxu0 0.0
    %2560 = vmatpush2.xpose.msra.mxu0 0.0
    %2561 = vmatprep.subr.mxu0 0.0
    %2562 = vmatpush2.xpose.msra.mxu0 0.0
    %2563 = vmatprep.mubr.f32.mxu0 0.0
    %2564 = vmatmul.mubr.f32.gmra.mxu0 %v2495
    %v2565 = vpop.f32.mrf.mxu0
    %v2566 = vadd.f32 0.0, %v2565
    %v2567 = vpop.f32.mrf.mxu0
    %2568 = vdwg.mxu0
    %2569 = vrot.lane.b32.xlu0 %v656, 96
    %v2570 = vpop.permute.xlu0 %2569
    %v2571 = vsel %vm57, %v656, 0
    %v2573 = vsel %vm57, %v2570, 0
    %2575 = vmatprep.subr.mxu0 0.0
    %2576 = vmatpush1.xpose.msra.mxu0 0.0
    %2577 = vmatprep.subr.mxu0 0.0
    %2578 = vmatpush1.xpose.msra.mxu0 0.0
    %2579 = vmatprep.subr.mxu0 0.0
    %2580 = vmatpush1.xpose.msra.mxu0 0.0
    %2581 = vmatprep.subr.mxu0 0.0
    %2582 = vmatpush1.xpose.msra.mxu0 0.0
    %2583 = vmatprep.subr.mxu0 0.0
    %2584 = vmatpush1.xpose.msra.mxu0 0.0
    %2585 = vmatprep.subr.mxu0 0.0
    %2586 = vmatpush1.xpose.msra.mxu0 0.0
    %2587 = vmatprep.subr.mxu0 0.0
    %2588 = vmatpush1.xpose.msra.mxu0 0.0
    %2589 = vmatprep.subr.mxu0 0.0
    %2590 = vmatpush1.xpose.msra.mxu0 0.0
    %2591 = vmatprep.subr.mxu0 0.0
    %2592 = vmatpush1.xpose.msra.mxu0 0.0
    %2593 = vmatprep.subr.mxu0 0.0
    %2594 = vmatpush1.xpose.msra.mxu0 0.0
    %2595 = vmatprep.subr.mxu0 0.0
    %2596 = vmatpush1.xpose.msra.mxu0 0.0
    %2597 = vmatprep.subr.mxu0 0.0
    %2598 = vmatpush1.xpose.msra.mxu0 0.0
    %2599 = vmatprep.subr.mxu0 0.0
    %2600 = vmatpush1.xpose.msra.mxu0 0.0
    %2601 = vmatprep.subr.mxu0 0.0
    %2602 = vmatpush1.xpose.msra.mxu0 0.0
    %2603 = vmatprep.subr.mxu0 0.0
    %2604 = vmatpush1.xpose.msra.mxu0 0.0
    %2605 = vmatprep.subr.mxu0 0.0
    %2606 = vmatpush1.xpose.msra.mxu0 %v2573
    %2607 = vmatprep.subr.mxu0 0.0
    %2608 = vmatpush2.xpose.msra.mxu0 0.0
    %2609 = vmatprep.subr.mxu0 0.0
    %2610 = vmatpush2.xpose.msra.mxu0 0.0
    %2611 = vmatprep.subr.mxu0 0.0
    %2612 = vmatpush2.xpose.msra.mxu0 0.0
    %2613 = vmatprep.subr.mxu0 0.0
    %2614 = vmatpush2.xpose.msra.mxu0 0.0
    %2615 = vmatprep.subr.mxu0 0.0
    %2616 = vmatpush2.xpose.msra.mxu0 0.0
    %2617 = vmatprep.subr.mxu0 0.0
    %2618 = vmatpush2.xpose.msra.mxu0 0.0
    %2619 = vmatprep.subr.mxu0 0.0
    %2620 = vmatpush2.xpose.msra.mxu0 0.0
    %2621 = vmatprep.subr.mxu0 0.0
    %2622 = vmatpush2.xpose.msra.mxu0 0.0
    %2623 = vmatprep.subr.mxu0 0.0
    %2624 = vmatpush2.xpose.msra.mxu0 0.0
    %2625 = vmatprep.subr.mxu0 0.0
    %2626 = vmatpush2.xpose.msra.mxu0 0.0
    %2627 = vmatprep.subr.mxu0 0.0
    %2628 = vmatpush2.xpose.msra.mxu0 0.0
    %2629 = vmatprep.subr.mxu0 0.0
    %2630 = vmatpush2.xpose.msra.mxu0 0.0
    %2631 = vmatprep.subr.mxu0 0.0
    %2632 = vmatpush2.xpose.msra.mxu0 0.0
    %2633 = vmatprep.subr.mxu0 0.0
    %2634 = vmatpush2.xpose.msra.mxu0 0.0
    %2635 = vmatprep.subr.mxu0 0.0
    %2636 = vmatpush2.xpose.msra.mxu0 0.0
    %2637 = vmatprep.subr.mxu0 0.0
    %2638 = vmatpush2.xpose.msra.mxu0 0.0
    %2639 = vmatprep.mubr.f32.mxu0 0.0
    %2640 = vmatmul.mubr.f32.gmra.mxu0 %v2571
    %v2641 = vpop.f32.mrf.mxu0
    %v2642 = vadd.f32 0.0, %v2641
    %v2643 = vpop.f32.mrf.mxu0
    %2644 = vdwg.mxu0
    %2645 = vrot.lane.b32.xlu0 %v658, 96
    %v2646 = vpop.permute.xlu0 %2645
    %v2647 = vsel %vm57, %v658, 0
    %v2649 = vsel %vm57, %v2646, 0
    %2651 = vmatprep.subr.mxu0 0.0
    %2652 = vmatpush1.xpose.msra.mxu0 0.0
    %2653 = vmatprep.subr.mxu0 0.0
    %2654 = vmatpush1.xpose.msra.mxu0 0.0
    %2655 = vmatprep.subr.mxu0 0.0
    %2656 = vmatpush1.xpose.msra.mxu0 0.0
    %2657 = vmatprep.subr.mxu0 0.0
    %2658 = vmatpush1.xpose.msra.mxu0 0.0
    %2659 = vmatprep.subr.mxu0 0.0
    %2660 = vmatpush1.xpose.msra.mxu0 0.0
    %2661 = vmatprep.subr.mxu0 0.0
    %2662 = vmatpush1.xpose.msra.mxu0 0.0
    %2663 = vmatprep.subr.mxu0 0.0
    %2664 = vmatpush1.xpose.msra.mxu0 0.0
    %2665 = vmatprep.subr.mxu0 0.0
    %2666 = vmatpush1.xpose.msra.mxu0 0.0
    %2667 = vmatprep.subr.mxu0 0.0
    %2668 = vmatpush1.xpose.msra.mxu0 0.0
    %2669 = vmatprep.subr.mxu0 0.0
    %2670 = vmatpush1.xpose.msra.mxu0 0.0
    %2671 = vmatprep.subr.mxu0 0.0
    %2672 = vmatpush1.xpose.msra.mxu0 0.0
    %2673 = vmatprep.subr.mxu0 0.0
    %2674 = vmatpush1.xpose.msra.mxu0 0.0
    %2675 = vmatprep.subr.mxu0 0.0
    %2676 = vmatpush1.xpose.msra.mxu0 0.0
    %2677 = vmatprep.subr.mxu0 0.0
    %2678 = vmatpush1.xpose.msra.mxu0 0.0
    %2679 = vmatprep.subr.mxu0 0.0
    %2680 = vmatpush1.xpose.msra.mxu0 0.0
    %2681 = vmatprep.subr.mxu0 0.0
    %2682 = vmatpush1.xpose.msra.mxu0 %v2649
    %2683 = vmatprep.subr.mxu0 0.0
    %2684 = vmatpush2.xpose.msra.mxu0 0.0
    %2685 = vmatprep.subr.mxu0 0.0
    %2686 = vmatpush2.xpose.msra.mxu0 0.0
    %2687 = vmatprep.subr.mxu0 0.0
    %2688 = vmatpush2.xpose.msra.mxu0 0.0
    %2689 = vmatprep.subr.mxu0 0.0
    %2690 = vmatpush2.xpose.msra.mxu0 0.0
    %2691 = vmatprep.subr.mxu0 0.0
    %2692 = vmatpush2.xpose.msra.mxu0 0.0
    %2693 = vmatprep.subr.mxu0 0.0
    %2694 = vmatpush2.xpose.msra.mxu0 0.0
    %2695 = vmatprep.subr.mxu0 0.0
    %2696 = vmatpush2.xpose.msra.mxu0 0.0
    %2697 = vmatprep.subr.mxu0 0.0
    %2698 = vmatpush2.xpose.msra.mxu0 0.0
    %2699 = vmatprep.subr.mxu0 0.0
    %2700 = vmatpush2.xpose.msra.mxu0 0.0
    %2701 = vmatprep.subr.mxu0 0.0
    %2702 = vmatpush2.xpose.msra.mxu0 0.0
    %2703 = vmatprep.subr.mxu0 0.0
    %2704 = vmatpush2.xpose.msra.mxu0 0.0
    %2705 = vmatprep.subr.mxu0 0.0
    %2706 = vmatpush2.xpose.msra.mxu0 0.0
    %2707 = vmatprep.subr.mxu0 0.0
    %2708 = vmatpush2.xpose.msra.mxu0 0.0
    %2709 = vmatprep.subr.mxu0 0.0
    %2710 = vmatpush2.xpose.msra.mxu0 0.0
    %2711 = vmatprep.subr.mxu0 0.0
    %2712 = vmatpush2.xpose.msra.mxu0 0.0
    %2713 = vmatprep.subr.mxu0 0.0
    %2714 = vmatpush2.xpose.msra.mxu0 0.0
    %2715 = vmatprep.mubr.f32.mxu0 0.0
    %2716 = vmatmul.mubr.f32.gmra.mxu0 %v2647
    %v2717 = vpop.f32.mrf.mxu0
    %v2718 = vadd.f32 0.0, %v2717
    %v2719 = vpop.f32.mrf.mxu0
    %2720 = vdwg.mxu0
    %2721 = vrot.lane.b32.xlu0 %v660, 96
    %v2722 = vpop.permute.xlu0 %2721
    %v2723 = vsel %vm57, %v660, 0
    %v2725 = vsel %vm57, %v2722, 0
    %2727 = vmatprep.subr.mxu0 0.0
    %2728 = vmatpush1.xpose.msra.mxu0 0.0
    %2729 = vmatprep.subr.mxu0 0.0
    %2730 = vmatpush1.xpose.msra.mxu0 0.0
    %2731 = vmatprep.subr.mxu0 0.0
    %2732 = vmatpush1.xpose.msra.mxu0 0.0
    %2733 = vmatprep.subr.mxu0 0.0
    %2734 = vmatpush1.xpose.msra.mxu0 0.0
    %2735 = vmatprep.subr.mxu0 0.0
    %2736 = vmatpush1.xpose.msra.mxu0 0.0
    %2737 = vmatprep.subr.mxu0 0.0
    %2738 = vmatpush1.xpose.msra.mxu0 0.0
    %2739 = vmatprep.subr.mxu0 0.0
    %2740 = vmatpush1.xpose.msra.mxu0 0.0
    %2741 = vmatprep.subr.mxu0 0.0
    %2742 = vmatpush1.xpose.msra.mxu0 0.0
    %2743 = vmatprep.subr.mxu0 0.0
    %2744 = vmatpush1.xpose.msra.mxu0 0.0
    %2745 = vmatprep.subr.mxu0 0.0
    %2746 = vmatpush1.xpose.msra.mxu0 0.0
    %2747 = vmatprep.subr.mxu0 0.0
    %2748 = vmatpush1.xpose.msra.mxu0 0.0
    %2749 = vmatprep.subr.mxu0 0.0
    %2750 = vmatpush1.xpose.msra.mxu0 0.0
    %2751 = vmatprep.subr.mxu0 0.0
    %2752 = vmatpush1.xpose.msra.mxu0 0.0
    %2753 = vmatprep.subr.mxu0 0.0
    %2754 = vmatpush1.xpose.msra.mxu0 0.0
    %2755 = vmatprep.subr.mxu0 0.0
    %2756 = vmatpush1.xpose.msra.mxu0 0.0
    %2757 = vmatprep.subr.mxu0 0.0
    %2758 = vmatpush1.xpose.msra.mxu0 %v2725
    %2759 = vmatprep.subr.mxu0 0.0
    %2760 = vmatpush2.xpose.msra.mxu0 0.0
    %2761 = vmatprep.subr.mxu0 0.0
    %2762 = vmatpush2.xpose.msra.mxu0 0.0
    %2763 = vmatprep.subr.mxu0 0.0
    %2764 = vmatpush2.xpose.msra.mxu0 0.0
    %2765 = vmatprep.subr.mxu0 0.0
    %2766 = vmatpush2.xpose.msra.mxu0 0.0
    %2767 = vmatprep.subr.mxu0 0.0
    %2768 = vmatpush2.xpose.msra.mxu0 0.0
    %2769 = vmatprep.subr.mxu0 0.0
    %2770 = vmatpush2.xpose.msra.mxu0 0.0
    %2771 = vmatprep.subr.mxu0 0.0
    %2772 = vmatpush2.xpose.msra.mxu0 0.0
    %2773 = vmatprep.subr.mxu0 0.0
    %2774 = vmatpush2.xpose.msra.mxu0 0.0
    %2775 = vmatprep.subr.mxu0 0.0
    %2776 = vmatpush2.xpose.msra.mxu0 0.0
    %2777 = vmatprep.subr.mxu0 0.0
    %2778 = vmatpush2.xpose.msra.mxu0 0.0
    %2779 = vmatprep.subr.mxu0 0.0
    %2780 = vmatpush2.xpose.msra.mxu0 0.0
    %2781 = vmatprep.subr.mxu0 0.0
    %2782 = vmatpush2.xpose.msra.mxu0 0.0
    %2783 = vmatprep.subr.mxu0 0.0
    %2784 = vmatpush2.xpose.msra.mxu0 0.0
    %2785 = vmatprep.subr.mxu0 0.0
    %2786 = vmatpush2.xpose.msra.mxu0 0.0
    %2787 = vmatprep.subr.mxu0 0.0
    %2788 = vmatpush2.xpose.msra.mxu0 0.0
    %2789 = vmatprep.subr.mxu0 0.0
    %2790 = vmatpush2.xpose.msra.mxu0 0.0
    %2791 = vmatprep.mubr.f32.mxu0 0.0
    %2792 = vmatmul.mubr.f32.gmra.mxu0 %v2723
    %v2793 = vpop.f32.mrf.mxu0
    %v2794 = vadd.f32 0.0, %v2793
    %v2795 = vpop.f32.mrf.mxu0
    %2796 = vdwg.mxu0
    %2797 = vrot.lane.b32.xlu0 %v662, 96
    %v2798 = vpop.permute.xlu0 %2797
    %v2799 = vsel %vm57, %v662, 0
    %v2801 = vsel %vm57, %v2798, 0
    %2803 = vmatprep.subr.mxu0 0.0
    %2804 = vmatpush1.xpose.msra.mxu0 0.0
    %2805 = vmatprep.subr.mxu0 0.0
    %2806 = vmatpush1.xpose.msra.mxu0 0.0
    %2807 = vmatprep.subr.mxu0 0.0
    %2808 = vmatpush1.xpose.msra.mxu0 0.0
    %2809 = vmatprep.subr.mxu0 0.0
    %2810 = vmatpush1.xpose.msra.mxu0 0.0
    %2811 = vmatprep.subr.mxu0 0.0
    %2812 = vmatpush1.xpose.msra.mxu0 0.0
    %2813 = vmatprep.subr.mxu0 0.0
    %2814 = vmatpush1.xpose.msra.mxu0 0.0
    %2815 = vmatprep.subr.mxu0 0.0
    %2816 = vmatpush1.xpose.msra.mxu0 0.0
    %2817 = vmatprep.subr.mxu0 0.0
    %2818 = vmatpush1.xpose.msra.mxu0 0.0
    %2819 = vmatprep.subr.mxu0 0.0
    %2820 = vmatpush1.xpose.msra.mxu0 0.0
    %2821 = vmatprep.subr.mxu0 0.0
    %2822 = vmatpush1.xpose.msra.mxu0 0.0
    %2823 = vmatprep.subr.mxu0 0.0
    %2824 = vmatpush1.xpose.msra.mxu0 0.0
    %2825 = vmatprep.subr.mxu0 0.0
    %2826 = vmatpush1.xpose.msra.mxu0 0.0
    %2827 = vmatprep.subr.mxu0 0.0
    %2828 = vmatpush1.xpose.msra.mxu0 0.0
    %2829 = vmatprep.subr.mxu0 0.0
    %2830 = vmatpush1.xpose.msra.mxu0 0.0
    %2831 = vmatprep.subr.mxu0 0.0
    %2832 = vmatpush1.xpose.msra.mxu0 0.0
    %2833 = vmatprep.subr.mxu0 0.0
    %2834 = vmatpush1.xpose.msra.mxu0 %v2801
    %2835 = vmatprep.subr.mxu0 0.0
    %2836 = vmatpush2.xpose.msra.mxu0 0.0
    %2837 = vmatprep.subr.mxu0 0.0
    %2838 = vmatpush2.xpose.msra.mxu0 0.0
    %2839 = vmatprep.subr.mxu0 0.0
    %2840 = vmatpush2.xpose.msra.mxu0 0.0
    %2841 = vmatprep.subr.mxu0 0.0
    %2842 = vmatpush2.xpose.msra.mxu0 0.0
    %2843 = vmatprep.subr.mxu0 0.0
    %2844 = vmatpush2.xpose.msra.mxu0 0.0
    %2845 = vmatprep.subr.mxu0 0.0
    %2846 = vmatpush2.xpose.msra.mxu0 0.0
    %2847 = vmatprep.subr.mxu0 0.0
    %2848 = vmatpush2.xpose.msra.mxu0 0.0
    %2849 = vmatprep.subr.mxu0 0.0
    %2850 = vmatpush2.xpose.msra.mxu0 0.0
    %2851 = vmatprep.subr.mxu0 0.0
    %2852 = vmatpush2.xpose.msra.mxu0 0.0
    %2853 = vmatprep.subr.mxu0 0.0
    %2854 = vmatpush2.xpose.msra.mxu0 0.0
    %2855 = vmatprep.subr.mxu0 0.0
    %2856 = vmatpush2.xpose.msra.mxu0 0.0
    %2857 = vmatprep.subr.mxu0 0.0
    %2858 = vmatpush2.xpose.msra.mxu0 0.0
    %2859 = vmatprep.subr.mxu0 0.0
    %2860 = vmatpush2.xpose.msra.mxu0 0.0
    %2861 = vmatprep.subr.mxu0 0.0
    %2862 = vmatpush2.xpose.msra.mxu0 0.0
    %2863 = vmatprep.subr.mxu0 0.0
    %2864 = vmatpush2.xpose.msra.mxu0 0.0
    %2865 = vmatprep.subr.mxu0 0.0
    %2866 = vmatpush2.xpose.msra.mxu0 0.0
    %2867 = vmatprep.mubr.f32.mxu0 0.0
    %2868 = vmatmul.mubr.f32.gmra.mxu0 %v2799
    %v2869 = vpop.f32.mrf.mxu0
    %v2870 = vadd.f32 0.0, %v2869
    %v2871 = vpop.f32.mrf.mxu0
    %2872 = vdwg.mxu0
    %2873 = vrot.lane.b32.xlu0 %v664, 96
    %v2874 = vpop.permute.xlu0 %2873
    %v2875 = vsel %vm57, %v664, 0
    %v2877 = vsel %vm57, %v2874, 0
    %2879 = vmatprep.subr.mxu0 0.0
    %2880 = vmatpush1.xpose.msra.mxu0 0.0
    %2881 = vmatprep.subr.mxu0 0.0
    %2882 = vmatpush1.xpose.msra.mxu0 0.0
    %2883 = vmatprep.subr.mxu0 0.0
    %2884 = vmatpush1.xpose.msra.mxu0 0.0
    %2885 = vmatprep.subr.mxu0 0.0
    %2886 = vmatpush1.xpose.msra.mxu0 0.0
    %2887 = vmatprep.subr.mxu0 0.0
    %2888 = vmatpush1.xpose.msra.mxu0 0.0
    %2889 = vmatprep.subr.mxu0 0.0
    %2890 = vmatpush1.xpose.msra.mxu0 0.0
    %2891 = vmatprep.subr.mxu0 0.0
    %2892 = vmatpush1.xpose.msra.mxu0 0.0
    %2893 = vmatprep.subr.mxu0 0.0
    %2894 = vmatpush1.xpose.msra.mxu0 0.0
    %2895 = vmatprep.subr.mxu0 0.0
    %2896 = vmatpush1.xpose.msra.mxu0 0.0
    %2897 = vmatprep.subr.mxu0 0.0
    %2898 = vmatpush1.xpose.msra.mxu0 0.0
    %2899 = vmatprep.subr.mxu0 0.0
    %2900 = vmatpush1.xpose.msra.mxu0 0.0
    %2901 = vmatprep.subr.mxu0 0.0
    %2902 = vmatpush1.xpose.msra.mxu0 0.0
    %2903 = vmatprep.subr.mxu0 0.0
    %2904 = vmatpush1.xpose.msra.mxu0 0.0
    %2905 = vmatprep.subr.mxu0 0.0
    %2906 = vmatpush1.xpose.msra.mxu0 0.0
    %2907 = vmatprep.subr.mxu0 0.0
    %2908 = vmatpush1.xpose.msra.mxu0 0.0
    %2909 = vmatprep.subr.mxu0 0.0
    %2910 = vmatpush1.xpose.msra.mxu0 %v2877
    %2911 = vmatprep.subr.mxu0 0.0
    %2912 = vmatpush2.xpose.msra.mxu0 0.0
    %2913 = vmatprep.subr.mxu0 0.0
    %2914 = vmatpush2.xpose.msra.mxu0 0.0
    %2915 = vmatprep.subr.mxu0 0.0
    %2916 = vmatpush2.xpose.msra.mxu0 0.0
    %2917 = vmatprep.subr.mxu0 0.0
    %2918 = vmatpush2.xpose.msra.mxu0 0.0
    %2919 = vmatprep.subr.mxu0 0.0
    %2920 = vmatpush2.xpose.msra.mxu0 0.0
    %2921 = vmatprep.subr.mxu0 0.0
    %2922 = vmatpush2.xpose.msra.mxu0 0.0
    %2923 = vmatprep.subr.mxu0 0.0
    %2924 = vmatpush2.xpose.msra.mxu0 0.0
    %2925 = vmatprep.subr.mxu0 0.0
    %2926 = vmatpush2.xpose.msra.mxu0 0.0
    %2927 = vmatprep.subr.mxu0 0.0
    %2928 = vmatpush2.xpose.msra.mxu0 0.0
    %2929 = vmatprep.subr.mxu0 0.0
    %2930 = vmatpush2.xpose.msra.mxu0 0.0
    %2931 = vmatprep.subr.mxu0 0.0
    %2932 = vmatpush2.xpose.msra.mxu0 0.0
    %2933 = vmatprep.subr.mxu0 0.0
    %2934 = vmatpush2.xpose.msra.mxu0 0.0
    %2935 = vmatprep.subr.mxu0 0.0
    %2936 = vmatpush2.xpose.msra.mxu0 0.0
    %2937 = vmatprep.subr.mxu0 0.0
    %2938 = vmatpush2.xpose.msra.mxu0 0.0
    %2939 = vmatprep.subr.mxu0 0.0
    %2940 = vmatpush2.xpose.msra.mxu0 0.0
    %2941 = vmatprep.subr.mxu0 0.0
    %2942 = vmatpush2.xpose.msra.mxu0 0.0
    %2943 = vmatprep.mubr.f32.mxu0 0.0
    %2944 = vmatmul.mubr.f32.gmra.mxu0 %v2875
    %v2945 = vpop.f32.mrf.mxu0
    %v2946 = vadd.f32 0.0, %v2945
    %v2947 = vpop.f32.mrf.mxu0
    %2948 = vdwg.mxu0
    %2949 = vrot.lane.b32.xlu0 %v666, 96
    %v2950 = vpop.permute.xlu0 %2949
    %v2951 = vsel %vm57, %v666, 0
    %v2953 = vsel %vm57, %v2950, 0
    %2955 = vmatprep.subr.mxu0 0.0
    %2956 = vmatpush1.xpose.msra.mxu0 0.0
    %2957 = vmatprep.subr.mxu0 0.0
    %2958 = vmatpush1.xpose.msra.mxu0 0.0
    %2959 = vmatprep.subr.mxu0 0.0
    %2960 = vmatpush1.xpose.msra.mxu0 0.0
    %2961 = vmatprep.subr.mxu0 0.0
    %2962 = vmatpush1.xpose.msra.mxu0 0.0
    %2963 = vmatprep.subr.mxu0 0.0
    %2964 = vmatpush1.xpose.msra.mxu0 0.0
    %2965 = vmatprep.subr.mxu0 0.0
    %2966 = vmatpush1.xpose.msra.mxu0 0.0
    %2967 = vmatprep.subr.mxu0 0.0
    %2968 = vmatpush1.xpose.msra.mxu0 0.0
    %2969 = vmatprep.subr.mxu0 0.0
    %2970 = vmatpush1.xpose.msra.mxu0 0.0
    %2971 = vmatprep.subr.mxu0 0.0
    %2972 = vmatpush1.xpose.msra.mxu0 0.0
    %2973 = vmatprep.subr.mxu0 0.0
    %2974 = vmatpush1.xpose.msra.mxu0 0.0
    %2975 = vmatprep.subr.mxu0 0.0
    %2976 = vmatpush1.xpose.msra.mxu0 0.0
    %2977 = vmatprep.subr.mxu0 0.0
    %2978 = vmatpush1.xpose.msra.mxu0 0.0
    %2979 = vmatprep.subr.mxu0 0.0
    %2980 = vmatpush1.xpose.msra.mxu0 0.0
    %2981 = vmatprep.subr.mxu0 0.0
    %2982 = vmatpush1.xpose.msra.mxu0 0.0
    %2983 = vmatprep.subr.mxu0 0.0
    %2984 = vmatpush1.xpose.msra.mxu0 0.0
    %2985 = vmatprep.subr.mxu0 0.0
    %2986 = vmatpush1.xpose.msra.mxu0 %v2953
    %2987 = vmatprep.subr.mxu0 0.0
    %2988 = vmatpush2.xpose.msra.mxu0 0.0
    %2989 = vmatprep.subr.mxu0 0.0
    %2990 = vmatpush2.xpose.msra.mxu0 0.0
    %2991 = vmatprep.subr.mxu0 0.0
    %2992 = vmatpush2.xpose.msra.mxu0 0.0
    %2993 = vmatprep.subr.mxu0 0.0
    %2994 = vmatpush2.xpose.msra.mxu0 0.0
    %2995 = vmatprep.subr.mxu0 0.0
    %2996 = vmatpush2.xpose.msra.mxu0 0.0
    %2997 = vmatprep.subr.mxu0 0.0
    %2998 = vmatpush2.xpose.msra.mxu0 0.0
    %2999 = vmatprep.subr.mxu0 0.0
    %3000 = vmatpush2.xpose.msra.mxu0 0.0
    %3001 = vmatprep.subr.mxu0 0.0
    %3002 = vmatpush2.xpose.msra.mxu0 0.0
    %3003 = vmatprep.subr.mxu0 0.0
    %3004 = vmatpush2.xpose.msra.mxu0 0.0
    %3005 = vmatprep.subr.mxu0 0.0
    %3006 = vmatpush2.xpose.msra.mxu0 0.0
    %3007 = vmatprep.subr.mxu0 0.0
    %3008 = vmatpush2.xpose.msra.mxu0 0.0
    %3009 = vmatprep.subr.mxu0 0.0
    %3010 = vmatpush2.xpose.msra.mxu0 0.0
    %3011 = vmatprep.subr.mxu0 0.0
    %3012 = vmatpush2.xpose.msra.mxu0 0.0
    %3013 = vmatprep.subr.mxu0 0.0
    %3014 = vmatpush2.xpose.msra.mxu0 0.0
    %3015 = vmatprep.subr.mxu0 0.0
    %3016 = vmatpush2.xpose.msra.mxu0 0.0
    %3017 = vmatprep.subr.mxu0 0.0
    %3018 = vmatpush2.xpose.msra.mxu0 0.0
    %3019 = vmatprep.mubr.f32.mxu0 0.0
    %3020 = vmatmul.mubr.f32.gmra.mxu0 %v2951
    %v3021 = vpop.f32.mrf.mxu0
    %v3022 = vadd.f32 0.0, %v3021
    %v3023 = vpop.f32.mrf.mxu0
    %3024 = vdwg.mxu0
    %3025 = vrot.lane.b32.xlu0 %v668, 96
    %v3026 = vpop.permute.xlu0 %3025
    %v3027 = vsel %vm57, %v668, 0
    %v3029 = vsel %vm57, %v3026, 0
    %3031 = vmatprep.subr.mxu0 0.0
    %3032 = vmatpush1.xpose.msra.mxu0 0.0
    %3033 = vmatprep.subr.mxu0 0.0
    %3034 = vmatpush1.xpose.msra.mxu0 0.0
    %3035 = vmatprep.subr.mxu0 0.0
    %3036 = vmatpush1.xpose.msra.mxu0 0.0
    %3037 = vmatprep.subr.mxu0 0.0
    %3038 = vmatpush1.xpose.msra.mxu0 0.0
    %3039 = vmatprep.subr.mxu0 0.0
    %3040 = vmatpush1.xpose.msra.mxu0 0.0
    %3041 = vmatprep.subr.mxu0 0.0
    %3042 = vmatpush1.xpose.msra.mxu0 0.0
    %3043 = vmatprep.subr.mxu0 0.0
    %3044 = vmatpush1.xpose.msra.mxu0 0.0
    %3045 = vmatprep.subr.mxu0 0.0
    %3046 = vmatpush1.xpose.msra.mxu0 0.0
    %3047 = vmatprep.subr.mxu0 0.0
    %3048 = vmatpush1.xpose.msra.mxu0 0.0
    %3049 = vmatprep.subr.mxu0 0.0
    %3050 = vmatpush1.xpose.msra.mxu0 0.0
    %3051 = vmatprep.subr.mxu0 0.0
    %3052 = vmatpush1.xpose.msra.mxu0 0.0
    %3053 = vmatprep.subr.mxu0 0.0
    %3054 = vmatpush1.xpose.msra.mxu0 0.0
    %3055 = vmatprep.subr.mxu0 0.0
    %3056 = vmatpush1.xpose.msra.mxu0 0.0
    %3057 = vmatprep.subr.mxu0 0.0
    %3058 = vmatpush1.xpose.msra.mxu0 0.0
    %3059 = vmatprep.subr.mxu0 0.0
    %3060 = vmatpush1.xpose.msra.mxu0 0.0
    %3061 = vmatprep.subr.mxu0 0.0
    %3062 = vmatpush1.xpose.msra.mxu0 %v3029
    %3063 = vmatprep.subr.mxu0 0.0
    %3064 = vmatpush2.xpose.msra.mxu0 0.0
    %3065 = vmatprep.subr.mxu0 0.0
    %3066 = vmatpush2.xpose.msra.mxu0 0.0
    %3067 = vmatprep.subr.mxu0 0.0
    %3068 = vmatpush2.xpose.msra.mxu0 0.0
    %3069 = vmatprep.subr.mxu0 0.0
    %3070 = vmatpush2.xpose.msra.mxu0 0.0
    %3071 = vmatprep.subr.mxu0 0.0
    %3072 = vmatpush2.xpose.msra.mxu0 0.0
    %3073 = vmatprep.subr.mxu0 0.0
    %3074 = vmatpush2.xpose.msra.mxu0 0.0
    %3075 = vmatprep.subr.mxu0 0.0
    %3076 = vmatpush2.xpose.msra.mxu0 0.0
    %3077 = vmatprep.subr.mxu0 0.0
    %3078 = vmatpush2.xpose.msra.mxu0 0.0
    %3079 = vmatprep.subr.mxu0 0.0
    %3080 = vmatpush2.xpose.msra.mxu0 0.0
    %3081 = vmatprep.subr.mxu0 0.0
    %3082 = vmatpush2.xpose.msra.mxu0 0.0
    %3083 = vmatprep.subr.mxu0 0.0
    %3084 = vmatpush2.xpose.msra.mxu0 0.0
    %3085 = vmatprep.subr.mxu0 0.0
    %3086 = vmatpush2.xpose.msra.mxu0 0.0
    %3087 = vmatprep.subr.mxu0 0.0
    %3088 = vmatpush2.xpose.msra.mxu0 0.0
    %3089 = vmatprep.subr.mxu0 0.0
    %3090 = vmatpush2.xpose.msra.mxu0 0.0
    %3091 = vmatprep.subr.mxu0 0.0
    %3092 = vmatpush2.xpose.msra.mxu0 0.0
    %3093 = vmatprep.subr.mxu0 0.0
    %3094 = vmatpush2.xpose.msra.mxu0 0.0
    %3095 = vmatprep.mubr.f32.mxu0 0.0
    %3096 = vmatmul.mubr.f32.gmra.mxu0 %v3027
    %v3097 = vpop.f32.mrf.mxu0
    %v3098 = vadd.f32 0.0, %v3097
    %v3099 = vpop.f32.mrf.mxu0
    %3100 = vdwg.mxu0
    %v3101 = vsel %vm57, %v742, -inf
    %3102 = vmax.xlane.f32.xlu0 %v3101
    %v3103 = vpop.xlane.xlu0 %3102
    %v3104 = vsel %vm57, %v818, -inf
    %3105 = vmax.xlane.f32.xlu0 %v3104
    %v3106 = vpop.xlane.xlu0 %3105
    %v3107 = vsel %vm57, %v894, -inf
    %3108 = vmax.xlane.f32.xlu0 %v3107
    %v3109 = vpop.xlane.xlu0 %3108
    %v3110 = vsel %vm57, %v970, -inf
    %3111 = vmax.xlane.f32.xlu0 %v3110
    %v3112 = vpop.xlane.xlu0 %3111
    %v3113 = vsel %vm57, %v1046, -inf
    %3114 = vmax.xlane.f32.xlu0 %v3113
    %v3115 = vpop.xlane.xlu0 %3114
    %v3116 = vsel %vm57, %v1122, -inf
    %3117 = vmax.xlane.f32.xlu0 %v3116
    %v3118 = vpop.xlane.xlu0 %3117
    %v3119 = vsel %vm57, %v1198, -inf
    %3120 = vmax.xlane.f32.xlu0 %v3119
    %v3121 = vpop.xlane.xlu0 %3120
    %v3122 = vsel %vm57, %v1274, -inf
    %3123 = vmax.xlane.f32.xlu0 %v3122
    %v3124 = vpop.xlane.xlu0 %3123
    %v3125 = vsel %vm57, %v1350, -inf
    %3126 = vmax.xlane.f32.xlu0 %v3125
    %v3127 = vpop.xlane.xlu0 %3126
    %v3128 = vsel %vm57, %v1426, -inf
    %3129 = vmax.xlane.f32.xlu0 %v3128
    %v3130 = vpop.xlane.xlu0 %3129
    %v3131 = vsel %vm57, %v1502, -inf
    %3132 = vmax.xlane.f32.xlu0 %v3131
    %v3133 = vpop.xlane.xlu0 %3132
    %v3134 = vsel %vm57, %v1578, -inf
    %3135 = vmax.xlane.f32.xlu0 %v3134
    %v3136 = vpop.xlane.xlu0 %3135
    %v3137 = vsel %vm57, %v1654, -inf
    %3138 = vmax.xlane.f32.xlu0 %v3137
    %v3139 = vpop.xlane.xlu0 %3138
    %v3140 = vsel %vm57, %v1730, -inf
    %3141 = vmax.xlane.f32.xlu0 %v3140
    %v3142 = vpop.xlane.xlu0 %3141
    %v3143 = vsel %vm57, %v1806, -inf
    %3144 = vmax.xlane.f32.xlu0 %v3143
    %v3145 = vpop.xlane.xlu0 %3144
    %v3146 = vsel %vm57, %v1882, -inf
    %3147 = vmax.xlane.f32.xlu0 %v3146
    %v3148 = vpop.xlane.xlu0 %3147
    %v3149 = vsel %vm57, %v1958, -inf
    %3150 = vmax.xlane.f32.xlu0 %v3149
    %v3151 = vpop.xlane.xlu0 %3150
    %v3152 = vsel %vm57, %v2034, -inf
    %3153 = vmax.xlane.f32.xlu0 %v3152
    %v3154 = vpop.xlane.xlu0 %3153
    %v3155 = vsel %vm57, %v2110, -inf
    %3156 = vmax.xlane.f32.xlu0 %v3155
    %v3157 = vpop.xlane.xlu0 %3156
    %v3158 = vsel %vm57, %v2186, -inf
    %3159 = vmax.xlane.f32.xlu0 %v3158
    %v3160 = vpop.xlane.xlu0 %3159
    %v3161 = vsel %vm57, %v2262, -inf
    %3162 = vmax.xlane.f32.xlu0 %v3161
    %v3163 = vpop.xlane.xlu0 %3162
    %v3164 = vsel %vm57, %v2338, -inf
    %3165 = vmax.xlane.f32.xlu0 %v3164
    %v3166 = vpop.xlane.xlu0 %3165
    %v3167 = vsel %vm57, %v2414, -inf
    %3168 = vmax.xlane.f32.xlu0 %v3167
    %v3169 = vpop.xlane.xlu0 %3168
    %v3170 = vsel %vm57, %v2490, -inf
    %3171 = vmax.xlane.f32.xlu0 %v3170
    %v3172 = vpop.xlane.xlu0 %3171
    %v3173 = vsel %vm57, %v2566, -inf
    %3174 = vmax.xlane.f32.xlu0 %v3173
    %v3175 = vpop.xlane.xlu0 %3174
    %v3176 = vsel %vm57, %v2642, -inf
    %3177 = vmax.xlane.f32.xlu0 %v3176
    %v3178 = vpop.xlane.xlu0 %3177
    %v3179 = vsel %vm57, %v2718, -inf
    %3180 = vmax.xlane.f32.xlu0 %v3179
    %v3181 = vpop.xlane.xlu0 %3180
    %v3182 = vsel %vm57, %v2794, -inf
    %3183 = vmax.xlane.f32.xlu0 %v3182
    %v3184 = vpop.xlane.xlu0 %3183
    %v3185 = vsel %vm57, %v2870, -inf
    %3186 = vmax.xlane.f32.xlu0 %v3185
    %v3187 = vpop.xlane.xlu0 %3186
    %v3188 = vsel %vm57, %v2946, -inf
    %3189 = vmax.xlane.f32.xlu0 %v3188
    %v3190 = vpop.xlane.xlu0 %3189
    %v3191 = vsel %vm57, %v3022, -inf
    %3192 = vmax.xlane.f32.xlu0 %v3191
    %v3193 = vpop.xlane.xlu0 %3192
    %v3194 = vsel %vm57, %v3098, -inf
    %3195 = vmax.xlane.f32.xlu0 %v3194
    %v3196 = vpop.xlane.xlu0 %3195
    %v3197 = vsub.f32 %v742, %v3103
    %v3198 = vsub.f32 %v818, %v3106
    %v3199 = vsub.f32 %v894, %v3109
    %v3200 = vsub.f32 %v970, %v3112
    %v3201 = vsub.f32 %v1046, %v3115
    %v3202 = vsub.f32 %v1122, %v3118
    %v3203 = vsub.f32 %v1198, %v3121
    %v3204 = vsub.f32 %v1274, %v3124
    %v3205 = vsub.f32 %v1350, %v3127
    %v3206 = vsub.f32 %v1426, %v3130
    %v3207 = vsub.f32 %v1502, %v3133
    %v3208 = vsub.f32 %v1578, %v3136
    %v3209 = vsub.f32 %v1654, %v3139
    %v3210 = vsub.f32 %v1730, %v3142
    %v3211 = vsub.f32 %v1806, %v3145
    %v3212 = vsub.f32 %v1882, %v3148
    %v3213 = vsub.f32 %v1958, %v3151
    %v3214 = vsub.f32 %v2034, %v3154
    %v3215 = vsub.f32 %v2110, %v3157
    %v3216 = vsub.f32 %v2186, %v3160
    %v3217 = vsub.f32 %v2262, %v3163
    %v3218 = vsub.f32 %v2338, %v3166
    %v3219 = vsub.f32 %v2414, %v3169
    %v3220 = vsub.f32 %v2490, %v3172
    %v3221 = vsub.f32 %v2566, %v3175
    %v3222 = vsub.f32 %v2642, %v3178
    %v3223 = vsub.f32 %v2718, %v3181
    %v3224 = vsub.f32 %v2794, %v3184
    %v3225 = vsub.f32 %v2870, %v3187
    %v3226 = vsub.f32 %v2946, %v3190
    %v3227 = vsub.f32 %v3022, %v3193
    %v3228 = vsub.f32 %v3098, %v3196
    %v3229 = vmul.f32 %v3197, 1.442695
    %v3230 = vpow.pop %v3229
    %v3231 = vmul.f32 %v3198, 1.442695
    %v3232 = vpow.pop %v3231
    %v3233 = vmul.f32 %v3199, 1.442695
    %v3234 = vpow.pop %v3233
    %v3235 = vmul.f32 %v3200, 1.442695
    %v3236 = vpow.pop %v3235
    %v3237 = vmul.f32 %v3201, 1.442695
    %v3238 = vpow.pop %v3237
    %v3239 = vmul.f32 %v3202, 1.442695
    %v3240 = vpow.pop %v3239
    %v3241 = vmul.f32 %v3203, 1.442695
    %v3242 = vpow.pop %v3241
    %v3243 = vmul.f32 %v3204, 1.442695
    %v3244 = vpow.pop %v3243
    %v3245 = vmul.f32 %v3205, 1.442695
    %v3246 = vpow.pop %v3245
    %v3247 = vmul.f32 %v3206, 1.442695
    %v3248 = vpow.pop %v3247
    %v3249 = vmul.f32 %v3207, 1.442695
    %v3250 = vpow.pop %v3249
    %v3251 = vmul.f32 %v3208, 1.442695
    %v3252 = vpow.pop %v3251
    %v3253 = vmul.f32 %v3209, 1.442695
    %v3254 = vpow.pop %v3253
    %v3255 = vmul.f32 %v3210, 1.442695
    %v3256 = vpow.pop %v3255
    %v3257 = vmul.f32 %v3211, 1.442695
    %v3258 = vpow.pop %v3257
    %v3259 = vmul.f32 %v3212, 1.442695
    %v3260 = vpow.pop %v3259
    %v3261 = vmul.f32 %v3213, 1.442695
    %v3262 = vpow.pop %v3261
    %v3263 = vmul.f32 %v3214, 1.442695
    %v3264 = vpow.pop %v3263
    %v3265 = vmul.f32 %v3215, 1.442695
    %v3266 = vpow.pop %v3265
    %v3267 = vmul.f32 %v3216, 1.442695
    %v3268 = vpow.pop %v3267
    %v3269 = vmul.f32 %v3217, 1.442695
    %v3270 = vpow.pop %v3269
    %v3271 = vmul.f32 %v3218, 1.442695
    %v3272 = vpow.pop %v3271
    %v3273 = vmul.f32 %v3219, 1.442695
    %v3274 = vpow.pop %v3273
    %v3275 = vmul.f32 %v3220, 1.442695
    %v3276 = vpow.pop %v3275
    %v3277 = vmul.f32 %v3221, 1.442695
    %v3278 = vpow.pop %v3277
    %v3279 = vmul.f32 %v3222, 1.442695
    %v3280 = vpow.pop %v3279
    %v3281 = vmul.f32 %v3223, 1.442695
    %v3282 = vpow.pop %v3281
    %v3283 = vmul.f32 %v3224, 1.442695
    %v3284 = vpow.pop %v3283
    %v3285 = vmul.f32 %v3225, 1.442695
    %v3286 = vpow.pop %v3285
    %v3287 = vmul.f32 %v3226, 1.442695
    %v3288 = vpow.pop %v3287
    %v3289 = vmul.f32 %v3227, 1.442695
    %v3290 = vpow.pop %v3289
    %v3291 = vmul.f32 %v3228, 1.442695
    %v3292 = vpow.pop %v3291
    %v3293 = vsel %vm57, %v3230, 0.0
    %3294 = vadd.xlane.f32.xlu0 %v3293
    %v3295 = vpop.xlane.xlu0 %3294
    %v3296 = vsel %vm57, %v3232, 0.0
    %3297 = vadd.xlane.f32.xlu0 %v3296
    %v3298 = vpop.xlane.xlu0 %3297
    %v3299 = vsel %vm57, %v3234, 0.0
    %3300 = vadd.xlane.f32.xlu0 %v3299
    %v3301 = vpop.xlane.xlu0 %3300
    %v3302 = vsel %vm57, %v3236, 0.0
    %3303 = vadd.xlane.f32.xlu0 %v3302
    %v3304 = vpop.xlane.xlu0 %3303
    %v3305 = vsel %vm57, %v3238, 0.0
    %3306 = vadd.xlane.f32.xlu0 %v3305
    %v3307 = vpop.xlane.xlu0 %3306
    %v3308 = vsel %vm57, %v3240, 0.0
    %3309 = vadd.xlane.f32.xlu0 %v3308
    %v3310 = vpop.xlane.xlu0 %3309
    %v3311 = vsel %vm57, %v3242, 0.0
    %3312 = vadd.xlane.f32.xlu0 %v3311
    %v3313 = vpop.xlane.xlu0 %3312
    %v3314 = vsel %vm57, %v3244, 0.0
    %3315 = vadd.xlane.f32.xlu0 %v3314
    %v3316 = vpop.xlane.xlu0 %3315
    %v3317 = vsel %vm57, %v3246, 0.0
    %3318 = vadd.xlane.f32.xlu0 %v3317
    %v3319 = vpop.xlane.xlu0 %3318
    %v3320 = vsel %vm57, %v3248, 0.0
    %3321 = vadd.xlane.f32.xlu0 %v3320
    %v3322 = vpop.xlane.xlu0 %3321
    %v3323 = vsel %vm57, %v3250, 0.0
    %3324 = vadd.xlane.f32.xlu0 %v3323
    %v3325 = vpop.xlane.xlu0 %3324
    %v3326 = vsel %vm57, %v3252, 0.0
    %3327 = vadd.xlane.f32.xlu0 %v3326
    %v3328 = vpop.xlane.xlu0 %3327
    %v3329 = vsel %vm57, %v3254, 0.0
    %3330 = vadd.xlane.f32.xlu0 %v3329
    %v3331 = vpop.xlane.xlu0 %3330
    %v3332 = vsel %vm57, %v3256, 0.0
    %3333 = vadd.xlane.f32.xlu0 %v3332
    %v3334 = vpop.xlane.xlu0 %3333
    %v3335 = vsel %vm57, %v3258, 0.0
    %3336 = vadd.xlane.f32.xlu0 %v3335
    %v3337 = vpop.xlane.xlu0 %3336
    %v3338 = vsel %vm57, %v3260, 0.0
    %3339 = vadd.xlane.f32.xlu0 %v3338
    %v3340 = vpop.xlane.xlu0 %3339
    %v3341 = vsel %vm57, %v3262, 0.0
    %3342 = vadd.xlane.f32.xlu0 %v3341
    %v3343 = vpop.xlane.xlu0 %3342
    %v3344 = vsel %vm57, %v3264, 0.0
    %3345 = vadd.xlane.f32.xlu0 %v3344
    %v3346 = vpop.xlane.xlu0 %3345
    %v3347 = vsel %vm57, %v3266, 0.0
    %3348 = vadd.xlane.f32.xlu0 %v3347
    %v3349 = vpop.xlane.xlu0 %3348
    %v3350 = vsel %vm57, %v3268, 0.0
    %3351 = vadd.xlane.f32.xlu0 %v3350
    %v3352 = vpop.xlane.xlu0 %3351
    %v3353 = vsel %vm57, %v3270, 0.0
    %3354 = vadd.xlane.f32.xlu0 %v3353
    %v3355 = vpop.xlane.xlu0 %3354
    %v3356 = vsel %vm57, %v3272, 0.0
    %3357 = vadd.xlane.f32.xlu0 %v3356
    %v3358 = vpop.xlane.xlu0 %3357
    %v3359 = vsel %vm57, %v3274, 0.0
    %3360 = vadd.xlane.f32.xlu0 %v3359
    %v3361 = vpop.xlane.xlu0 %3360
    %v3362 = vsel %vm57, %v3276, 0.0
    %3363 = vadd.xlane.f32.xlu0 %v3362
    %v3364 = vpop.xlane.xlu0 %3363
    %v3365 = vsel %vm57, %v3278, 0.0
    %3366 = vadd.xlane.f32.xlu0 %v3365
    %v3367 = vpop.xlane.xlu0 %3366
    %v3368 = vsel %vm57, %v3280, 0.0
    %3369 = vadd.xlane.f32.xlu0 %v3368
    %v3370 = vpop.xlane.xlu0 %3369
    %v3371 = vsel %vm57, %v3282, 0.0
    %3372 = vadd.xlane.f32.xlu0 %v3371
    %v3373 = vpop.xlane.xlu0 %3372
    %v3374 = vsel %vm57, %v3284, 0.0
    %3375 = vadd.xlane.f32.xlu0 %v3374
    %v3376 = vpop.xlane.xlu0 %3375
    %v3377 = vsel %vm57, %v3286, 0.0
    %3378 = vadd.xlane.f32.xlu0 %v3377
    %v3379 = vpop.xlane.xlu0 %3378
    %v3380 = vsel %vm57, %v3288, 0.0
    %3381 = vadd.xlane.f32.xlu0 %v3380
    %v3382 = vpop.xlane.xlu0 %3381
    %v3383 = vsel %vm57, %v3290, 0.0
    %3384 = vadd.xlane.f32.xlu0 %v3383
    %v3385 = vpop.xlane.xlu0 %3384
    %v3386 = vsel %vm57, %v3292, 0.0
    %3387 = vadd.xlane.f32.xlu0 %v3386
    %v3388 = vpop.xlane.xlu0 %3387
    %v3389 = vrcp.pop %v3295
    %v3390 = vrcp.pop %v3298
    %v3391 = vrcp.pop %v3301
    %v3392 = vrcp.pop %v3304
    %v3393 = vrcp.pop %v3307
    %v3394 = vrcp.pop %v3310
    %v3395 = vrcp.pop %v3313
    %v3396 = vrcp.pop %v3316
    %v3397 = vrcp.pop %v3319
    %v3398 = vrcp.pop %v3322
    %v3399 = vrcp.pop %v3325
    %v3400 = vrcp.pop %v3328
    %v3401 = vrcp.pop %v3331
    %v3402 = vrcp.pop %v3334
    %v3403 = vrcp.pop %v3337
    %v3404 = vrcp.pop %v3340
    %v3405 = vrcp.pop %v3343
    %v3406 = vrcp.pop %v3346
    %v3407 = vrcp.pop %v3349
    %v3408 = vrcp.pop %v3352
    %v3409 = vrcp.pop %v3355
    %v3410 = vrcp.pop %v3358
    %v3411 = vrcp.pop %v3361
    %v3412 = vrcp.pop %v3364
    %v3413 = vrcp.pop %v3367
    %v3414 = vrcp.pop %v3370
    %v3415 = vrcp.pop %v3373
    %v3416 = vrcp.pop %v3376
    %v3417 = vrcp.pop %v3379
    %v3418 = vrcp.pop %v3382
    %v3419 = vrcp.pop %v3385
    %v3420 = vrcp.pop %v3388
    %v3421 = vmul.f32 %v3230, %v3389
    %v3422 = vmul.f32 %v3232, %v3390
    %v3423 = vmul.f32 %v3234, %v3391
    %v3424 = vmul.f32 %v3236, %v3392
    %v3425 = vmul.f32 %v3238, %v3393
    %v3426 = vmul.f32 %v3240, %v3394
    %v3427 = vmul.f32 %v3242, %v3395
    %v3428 = vmul.f32 %v3244, %v3396
    %v3429 = vmul.f32 %v3246, %v3397
    %v3430 = vmul.f32 %v3248, %v3398
    %v3431 = vmul.f32 %v3250, %v3399
    %v3432 = vmul.f32 %v3252, %v3400
    %v3433 = vmul.f32 %v3254, %v3401
    %v3434 = vmul.f32 %v3256, %v3402
    %v3435 = vmul.f32 %v3258, %v3403
    %v3436 = vmul.f32 %v3260, %v3404
    %v3437 = vmul.f32 %v3262, %v3405
    %v3438 = vmul.f32 %v3264, %v3406
    %v3439 = vmul.f32 %v3266, %v3407
    %v3440 = vmul.f32 %v3268, %v3408
    %v3441 = vmul.f32 %v3270, %v3409
    %v3442 = vmul.f32 %v3272, %v3410
    %v3443 = vmul.f32 %v3274, %v3411
    %v3444 = vmul.f32 %v3276, %v3412
    %v3445 = vmul.f32 %v3278, %v3413
    %v3446 = vmul.f32 %v3280, %v3414
    %v3447 = vmul.f32 %v3282, %v3415
    %v3448 = vmul.f32 %v3284, %v3416
    %v3449 = vmul.f32 %v3286, %v3417
    %v3450 = vmul.f32 %v3288, %v3418
    %v3451 = vmul.f32 %v3290, %v3419
    %v3452 = vmul.f32 %v3292, %v3420
    %3453 = vrot.lane.b32.xlu0 %v575, 64
    %v3454 = vpop.permute.xlu0 %3453
    %v3457 = vsel %vm57, %v3421, 0
    %3459 = vmatprep.subr.mxu0 0.0
    %3460 = vmatpush1.msra.mxu0 0.0
    %3461 = vmatprep.subr.mxu0 0.0
    %3462 = vmatpush1.msra.mxu0 0.0
    %3463 = vmatprep.subr.mxu0 0.0
    %3464 = vmatpush1.msra.mxu0 0.0
    %3465 = vmatprep.subr.mxu0 0.0
    %3466 = vmatpush1.msra.mxu0 0.0
    %3467 = vmatprep.subr.mxu0 0.0
    %3468 = vmatpush1.msra.mxu0 0.0
    %3469 = vmatprep.subr.mxu0 0.0
    %3470 = vmatpush1.msra.mxu0 0.0
    %3471 = vmatprep.subr.mxu0 0.0
    %3472 = vmatpush1.msra.mxu0 0.0
    %3473 = vmatprep.subr.mxu0 0.0
    %3474 = vmatpush1.msra.mxu0 0.0
    %3475 = vmatprep.subr.mxu0 0.0
    %3476 = vmatpush1.msra.mxu0 0.0
    %3477 = vmatprep.subr.mxu0 0.0
    %3478 = vmatpush1.msra.mxu0 0.0
    %3479 = vmatprep.subr.mxu0 0.0
    %3480 = vmatpush1.msra.mxu0 0.0
    %3481 = vmatprep.subr.mxu0 0.0
    %3482 = vmatpush1.msra.mxu0 0.0
    %3483 = vmatprep.subr.mxu0 0.0
    %3484 = vmatpush1.msra.mxu0 0.0
    %3485 = vmatprep.subr.mxu0 0.0
    %3486 = vmatpush1.msra.mxu0 0.0
    %3487 = vmatprep.subr.mxu0 0.0
    %3488 = vmatpush1.msra.mxu0 0.0
    %3489 = vmatprep.subr.mxu0 0.0
    %3490 = vmatpush1.msra.mxu0 %v3454
    %3491 = vmatprep.subr.mxu0 0.0
    %3492 = vmatpush2.msra.mxu0 0.0
    %3493 = vmatprep.subr.mxu0 0.0
    %3494 = vmatpush2.msra.mxu0 0.0
    %3495 = vmatprep.subr.mxu0 0.0
    %3496 = vmatpush2.msra.mxu0 0.0
    %3497 = vmatprep.subr.mxu0 0.0
    %3498 = vmatpush2.msra.mxu0 0.0
    %3499 = vmatprep.subr.mxu0 0.0
    %3500 = vmatpush2.msra.mxu0 0.0
    %3501 = vmatprep.subr.mxu0 0.0
    %3502 = vmatpush2.msra.mxu0 0.0
    %3503 = vmatprep.subr.mxu0 0.0
    %3504 = vmatpush2.msra.mxu0 0.0
    %3505 = vmatprep.subr.mxu0 0.0
    %3506 = vmatpush2.msra.mxu0 0.0
    %3507 = vmatprep.subr.mxu0 0.0
    %3508 = vmatpush2.msra.mxu0 0.0
    %3509 = vmatprep.subr.mxu0 0.0
    %3510 = vmatpush2.msra.mxu0 0.0
    %3511 = vmatprep.subr.mxu0 0.0
    %3512 = vmatpush2.msra.mxu0 0.0
    %3513 = vmatprep.subr.mxu0 0.0
    %3514 = vmatpush2.msra.mxu0 0.0
    %3515 = vmatprep.subr.mxu0 0.0
    %3516 = vmatpush2.msra.mxu0 0.0
    %3517 = vmatprep.subr.mxu0 0.0
    %3518 = vmatpush2.msra.mxu0 0.0
    %3519 = vmatprep.subr.mxu0 0.0
    %3520 = vmatpush2.msra.mxu0 0.0
    %3521 = vmatprep.subr.mxu0 0.0
    %3522 = vmatpush2.msra.mxu0 0.0
    %3523 = vmatprep.mubr.f32.mxu0 0.0
    %3524 = vmatmul.mubr.f32.gmra.mxu0 %v3457
    %v3525 = vpop.f32.mrf.mxu0
    %v3526 = vadd.f32 0.0, %v3525
    %v3527 = vpop.f32.mrf.mxu0
    %3528 = vdwg.mxu0
    %3529 = vrot.lane.b32.xlu0 %v580, 64
    %v3530 = vpop.permute.xlu0 %3529
    %v3533 = vsel %vm57, %v3422, 0
    %3535 = vmatprep.subr.mxu0 0.0
    %3536 = vmatpush1.msra.mxu0 0.0
    %3537 = vmatprep.subr.mxu0 0.0
    %3538 = vmatpush1.msra.mxu0 0.0
    %3539 = vmatprep.subr.mxu0 0.0
    %3540 = vmatpush1.msra.mxu0 0.0
    %3541 = vmatprep.subr.mxu0 0.0
    %3542 = vmatpush1.msra.mxu0 0.0
    %3543 = vmatprep.subr.mxu0 0.0
    %3544 = vmatpush1.msra.mxu0 0.0
    %3545 = vmatprep.subr.mxu0 0.0
    %3546 = vmatpush1.msra.mxu0 0.0
    %3547 = vmatprep.subr.mxu0 0.0
    %3548 = vmatpush1.msra.mxu0 0.0
    %3549 = vmatprep.subr.mxu0 0.0
    %3550 = vmatpush1.msra.mxu0 0.0
    %3551 = vmatprep.subr.mxu0 0.0
    %3552 = vmatpush1.msra.mxu0 0.0
    %3553 = vmatprep.subr.mxu0 0.0
    %3554 = vmatpush1.msra.mxu0 0.0
    %3555 = vmatprep.subr.mxu0 0.0
    %3556 = vmatpush1.msra.mxu0 0.0
    %3557 = vmatprep.subr.mxu0 0.0
    %3558 = vmatpush1.msra.mxu0 0.0
    %3559 = vmatprep.subr.mxu0 0.0
    %3560 = vmatpush1.msra.mxu0 0.0
    %3561 = vmatprep.subr.mxu0 0.0
    %3562 = vmatpush1.msra.mxu0 0.0
    %3563 = vmatprep.subr.mxu0 0.0
    %3564 = vmatpush1.msra.mxu0 0.0
    %3565 = vmatprep.subr.mxu0 0.0
    %3566 = vmatpush1.msra.mxu0 %v3530
    %3567 = vmatprep.subr.mxu0 0.0
    %3568 = vmatpush2.msra.mxu0 0.0
    %3569 = vmatprep.subr.mxu0 0.0
    %3570 = vmatpush2.msra.mxu0 0.0
    %3571 = vmatprep.subr.mxu0 0.0
    %3572 = vmatpush2.msra.mxu0 0.0
    %3573 = vmatprep.subr.mxu0 0.0
    %3574 = vmatpush2.msra.mxu0 0.0
    %3575 = vmatprep.subr.mxu0 0.0
    %3576 = vmatpush2.msra.mxu0 0.0
    %3577 = vmatprep.subr.mxu0 0.0
    %3578 = vmatpush2.msra.mxu0 0.0
    %3579 = vmatprep.subr.mxu0 0.0
    %3580 = vmatpush2.msra.mxu0 0.0
    %3581 = vmatprep.subr.mxu0 0.0
    %3582 = vmatpush2.msra.mxu0 0.0
    %3583 = vmatprep.subr.mxu0 0.0
    %3584 = vmatpush2.msra.mxu0 0.0
    %3585 = vmatprep.subr.mxu0 0.0
    %3586 = vmatpush2.msra.mxu0 0.0
    %3587 = vmatprep.subr.mxu0 0.0
    %3588 = vmatpush2.msra.mxu0 0.0
    %3589 = vmatprep.subr.mxu0 0.0
    %3590 = vmatpush2.msra.mxu0 0.0
    %3591 = vmatprep.subr.mxu0 0.0
    %3592 = vmatpush2.msra.mxu0 0.0
    %3593 = vmatprep.subr.mxu0 0.0
    %3594 = vmatpush2.msra.mxu0 0.0
    %3595 = vmatprep.subr.mxu0 0.0
    %3596 = vmatpush2.msra.mxu0 0.0
    %3597 = vmatprep.subr.mxu0 0.0
    %3598 = vmatpush2.msra.mxu0 0.0
    %3599 = vmatprep.mubr.f32.mxu0 0.0
    %3600 = vmatmul.mubr.f32.gmra.mxu0 %v3533
    %v3601 = vpop.f32.mrf.mxu0
    %v3602 = vadd.f32 0.0, %v3601
    %v3603 = vpop.f32.mrf.mxu0
    %3604 = vdwg.mxu0
    %3605 = vrot.lane.b32.xlu0 %v585, 64
    %v3606 = vpop.permute.xlu0 %3605
    %v3609 = vsel %vm57, %v3423, 0
    %3611 = vmatprep.subr.mxu0 0.0
    %3612 = vmatpush1.msra.mxu0 0.0
    %3613 = vmatprep.subr.mxu0 0.0
    %3614 = vmatpush1.msra.mxu0 0.0
    %3615 = vmatprep.subr.mxu0 0.0
    %3616 = vmatpush1.msra.mxu0 0.0
    %3617 = vmatprep.subr.mxu0 0.0
    %3618 = vmatpush1.msra.mxu0 0.0
    %3619 = vmatprep.subr.mxu0 0.0
    %3620 = vmatpush1.msra.mxu0 0.0
    %3621 = vmatprep.subr.mxu0 0.0
    %3622 = vmatpush1.msra.mxu0 0.0
    %3623 = vmatprep.subr.mxu0 0.0
    %3624 = vmatpush1.msra.mxu0 0.0
    %3625 = vmatprep.subr.mxu0 0.0
    %3626 = vmatpush1.msra.mxu0 0.0
    %3627 = vmatprep.subr.mxu0 0.0
    %3628 = vmatpush1.msra.mxu0 0.0
    %3629 = vmatprep.subr.mxu0 0.0
    %3630 = vmatpush1.msra.mxu0 0.0
    %3631 = vmatprep.subr.mxu0 0.0
    %3632 = vmatpush1.msra.mxu0 0.0
    %3633 = vmatprep.subr.mxu0 0.0
    %3634 = vmatpush1.msra.mxu0 0.0
    %3635 = vmatprep.subr.mxu0 0.0
    %3636 = vmatpush1.msra.mxu0 0.0
    %3637 = vmatprep.subr.mxu0 0.0
    %3638 = vmatpush1.msra.mxu0 0.0
    %3639 = vmatprep.subr.mxu0 0.0
    %3640 = vmatpush1.msra.mxu0 0.0
    %3641 = vmatprep.subr.mxu0 0.0
    %3642 = vmatpush1.msra.mxu0 %v3606
    %3643 = vmatprep.subr.mxu0 0.0
    %3644 = vmatpush2.msra.mxu0 0.0
    %3645 = vmatprep.subr.mxu0 0.0
    %3646 = vmatpush2.msra.mxu0 0.0
    %3647 = vmatprep.subr.mxu0 0.0
    %3648 = vmatpush2.msra.mxu0 0.0
    %3649 = vmatprep.subr.mxu0 0.0
    %3650 = vmatpush2.msra.mxu0 0.0
    %3651 = vmatprep.subr.mxu0 0.0
    %3652 = vmatpush2.msra.mxu0 0.0
    %3653 = vmatprep.subr.mxu0 0.0
    %3654 = vmatpush2.msra.mxu0 0.0
    %3655 = vmatprep.subr.mxu0 0.0
    %3656 = vmatpush2.msra.mxu0 0.0
    %3657 = vmatprep.subr.mxu0 0.0
    %3658 = vmatpush2.msra.mxu0 0.0
    %3659 = vmatprep.subr.mxu0 0.0
    %3660 = vmatpush2.msra.mxu0 0.0
    %3661 = vmatprep.subr.mxu0 0.0
    %3662 = vmatpush2.msra.mxu0 0.0
    %3663 = vmatprep.subr.mxu0 0.0
    %3664 = vmatpush2.msra.mxu0 0.0
    %3665 = vmatprep.subr.mxu0 0.0
    %3666 = vmatpush2.msra.mxu0 0.0
    %3667 = vmatprep.subr.mxu0 0.0
    %3668 = vmatpush2.msra.mxu0 0.0
    %3669 = vmatprep.subr.mxu0 0.0
    %3670 = vmatpush2.msra.mxu0 0.0
    %3671 = vmatprep.subr.mxu0 0.0
    %3672 = vmatpush2.msra.mxu0 0.0
    %3673 = vmatprep.subr.mxu0 0.0
    %3674 = vmatpush2.msra.mxu0 0.0
    %3675 = vmatprep.mubr.f32.mxu0 0.0
    %3676 = vmatmul.mubr.f32.gmra.mxu0 %v3609
    %v3677 = vpop.f32.mrf.mxu0
    %v3678 = vadd.f32 0.0, %v3677
    %v3679 = vpop.f32.mrf.mxu0
    %3680 = vdwg.mxu0
    %3681 = vrot.lane.b32.xlu0 %v590, 64
    %v3682 = vpop.permute.xlu0 %3681
    %v3685 = vsel %vm57, %v3424, 0
    %3687 = vmatprep.subr.mxu0 0.0
    %3688 = vmatpush1.msra.mxu0 0.0
    %3689 = vmatprep.subr.mxu0 0.0
    %3690 = vmatpush1.msra.mxu0 0.0
    %3691 = vmatprep.subr.mxu0 0.0
    %3692 = vmatpush1.msra.mxu0 0.0
    %3693 = vmatprep.subr.mxu0 0.0
    %3694 = vmatpush1.msra.mxu0 0.0
    %3695 = vmatprep.subr.mxu0 0.0
    %3696 = vmatpush1.msra.mxu0 0.0
    %3697 = vmatprep.subr.mxu0 0.0
    %3698 = vmatpush1.msra.mxu0 0.0
    %3699 = vmatprep.subr.mxu0 0.0
    %3700 = vmatpush1.msra.mxu0 0.0
    %3701 = vmatprep.subr.mxu0 0.0
    %3702 = vmatpush1.msra.mxu0 0.0
    %3703 = vmatprep.subr.mxu0 0.0
    %3704 = vmatpush1.msra.mxu0 0.0
    %3705 = vmatprep.subr.mxu0 0.0
    %3706 = vmatpush1.msra.mxu0 0.0
    %3707 = vmatprep.subr.mxu0 0.0
    %3708 = vmatpush1.msra.mxu0 0.0
    %3709 = vmatprep.subr.mxu0 0.0
    %3710 = vmatpush1.msra.mxu0 0.0
    %3711 = vmatprep.subr.mxu0 0.0
    %3712 = vmatpush1.msra.mxu0 0.0
    %3713 = vmatprep.subr.mxu0 0.0
    %3714 = vmatpush1.msra.mxu0 0.0
    %3715 = vmatprep.subr.mxu0 0.0
    %3716 = vmatpush1.msra.mxu0 0.0
    %3717 = vmatprep.subr.mxu0 0.0
    %3718 = vmatpush1.msra.mxu0 %v3682
    %3719 = vmatprep.subr.mxu0 0.0
    %3720 = vmatpush2.msra.mxu0 0.0
    %3721 = vmatprep.subr.mxu0 0.0
    %3722 = vmatpush2.msra.mxu0 0.0
    %3723 = vmatprep.subr.mxu0 0.0
    %3724 = vmatpush2.msra.mxu0 0.0
    %3725 = vmatprep.subr.mxu0 0.0
    %3726 = vmatpush2.msra.mxu0 0.0
    %3727 = vmatprep.subr.mxu0 0.0
    %3728 = vmatpush2.msra.mxu0 0.0
    %3729 = vmatprep.subr.mxu0 0.0
    %3730 = vmatpush2.msra.mxu0 0.0
    %3731 = vmatprep.subr.mxu0 0.0
    %3732 = vmatpush2.msra.mxu0 0.0
    %3733 = vmatprep.subr.mxu0 0.0
    %3734 = vmatpush2.msra.mxu0 0.0
    %3735 = vmatprep.subr.mxu0 0.0
    %3736 = vmatpush2.msra.mxu0 0.0
    %3737 = vmatprep.subr.mxu0 0.0
    %3738 = vmatpush2.msra.mxu0 0.0
    %3739 = vmatprep.subr.mxu0 0.0
    %3740 = vmatpush2.msra.mxu0 0.0
    %3741 = vmatprep.subr.mxu0 0.0
    %3742 = vmatpush2.msra.mxu0 0.0
    %3743 = vmatprep.subr.mxu0 0.0
    %3744 = vmatpush2.msra.mxu0 0.0
    %3745 = vmatprep.subr.mxu0 0.0
    %3746 = vmatpush2.msra.mxu0 0.0
    %3747 = vmatprep.subr.mxu0 0.0
    %3748 = vmatpush2.msra.mxu0 0.0
    %3749 = vmatprep.subr.mxu0 0.0
    %3750 = vmatpush2.msra.mxu0 0.0
    %3751 = vmatprep.mubr.f32.mxu0 0.0
    %3752 = vmatmul.mubr.f32.gmra.mxu0 %v3685
    %v3753 = vpop.f32.mrf.mxu0
    %v3754 = vadd.f32 0.0, %v3753
    %v3755 = vpop.f32.mrf.mxu0
    %3756 = vdwg.mxu0
    %3757 = vrot.lane.b32.xlu0 %v595, 64
    %v3758 = vpop.permute.xlu0 %3757
    %v3761 = vsel %vm57, %v3425, 0
    %3763 = vmatprep.subr.mxu0 0.0
    %3764 = vmatpush1.msra.mxu0 0.0
    %3765 = vmatprep.subr.mxu0 0.0
    %3766 = vmatpush1.msra.mxu0 0.0
    %3767 = vmatprep.subr.mxu0 0.0
    %3768 = vmatpush1.msra.mxu0 0.0
    %3769 = vmatprep.subr.mxu0 0.0
    %3770 = vmatpush1.msra.mxu0 0.0
    %3771 = vmatprep.subr.mxu0 0.0
    %3772 = vmatpush1.msra.mxu0 0.0
    %3773 = vmatprep.subr.mxu0 0.0
    %3774 = vmatpush1.msra.mxu0 0.0
    %3775 = vmatprep.subr.mxu0 0.0
    %3776 = vmatpush1.msra.mxu0 0.0
    %3777 = vmatprep.subr.mxu0 0.0
    %3778 = vmatpush1.msra.mxu0 0.0
    %3779 = vmatprep.subr.mxu0 0.0
    %3780 = vmatpush1.msra.mxu0 0.0
    %3781 = vmatprep.subr.mxu0 0.0
    %3782 = vmatpush1.msra.mxu0 0.0
    %3783 = vmatprep.subr.mxu0 0.0
    %3784 = vmatpush1.msra.mxu0 0.0
    %3785 = vmatprep.subr.mxu0 0.0
    %3786 = vmatpush1.msra.mxu0 0.0
    %3787 = vmatprep.subr.mxu0 0.0
    %3788 = vmatpush1.msra.mxu0 0.0
    %3789 = vmatprep.subr.mxu0 0.0
    %3790 = vmatpush1.msra.mxu0 0.0
    %3791 = vmatprep.subr.mxu0 0.0
    %3792 = vmatpush1.msra.mxu0 0.0
    %3793 = vmatprep.subr.mxu0 0.0
    %3794 = vmatpush1.msra.mxu0 %v3758
    %3795 = vmatprep.subr.mxu0 0.0
    %3796 = vmatpush2.msra.mxu0 0.0
    %3797 = vmatprep.subr.mxu0 0.0
    %3798 = vmatpush2.msra.mxu0 0.0
    %3799 = vmatprep.subr.mxu0 0.0
    %3800 = vmatpush2.msra.mxu0 0.0
    %3801 = vmatprep.subr.mxu0 0.0
    %3802 = vmatpush2.msra.mxu0 0.0
    %3803 = vmatprep.subr.mxu0 0.0
    %3804 = vmatpush2.msra.mxu0 0.0
    %3805 = vmatprep.subr.mxu0 0.0
    %3806 = vmatpush2.msra.mxu0 0.0
    %3807 = vmatprep.subr.mxu0 0.0
    %3808 = vmatpush2.msra.mxu0 0.0
    %3809 = vmatprep.subr.mxu0 0.0
    %3810 = vmatpush2.msra.mxu0 0.0
    %3811 = vmatprep.subr.mxu0 0.0
    %3812 = vmatpush2.msra.mxu0 0.0
    %3813 = vmatprep.subr.mxu0 0.0
    %3814 = vmatpush2.msra.mxu0 0.0
    %3815 = vmatprep.subr.mxu0 0.0
    %3816 = vmatpush2.msra.mxu0 0.0
    %3817 = vmatprep.subr.mxu0 0.0
    %3818 = vmatpush2.msra.mxu0 0.0
    %3819 = vmatprep.subr.mxu0 0.0
    %3820 = vmatpush2.msra.mxu0 0.0
    %3821 = vmatprep.subr.mxu0 0.0
    %3822 = vmatpush2.msra.mxu0 0.0
    %3823 = vmatprep.subr.mxu0 0.0
    %3824 = vmatpush2.msra.mxu0 0.0
    %3825 = vmatprep.subr.mxu0 0.0
    %3826 = vmatpush2.msra.mxu0 0.0
    %3827 = vmatprep.mubr.f32.mxu0 0.0
    %3828 = vmatmul.mubr.f32.gmra.mxu0 %v3761
    %v3829 = vpop.f32.mrf.mxu0
    %v3830 = vadd.f32 0.0, %v3829
    %v3831 = vpop.f32.mrf.mxu0
    %3832 = vdwg.mxu0
    %3833 = vrot.lane.b32.xlu0 %v600, 64
    %v3834 = vpop.permute.xlu0 %3833
    %v3837 = vsel %vm57, %v3426, 0
    %3839 = vmatprep.subr.mxu0 0.0
    %3840 = vmatpush1.msra.mxu0 0.0
    %3841 = vmatprep.subr.mxu0 0.0
    %3842 = vmatpush1.msra.mxu0 0.0
    %3843 = vmatprep.subr.mxu0 0.0
    %3844 = vmatpush1.msra.mxu0 0.0
    %3845 = vmatprep.subr.mxu0 0.0
    %3846 = vmatpush1.msra.mxu0 0.0
    %3847 = vmatprep.subr.mxu0 0.0
    %3848 = vmatpush1.msra.mxu0 0.0
    %3849 = vmatprep.subr.mxu0 0.0
    %3850 = vmatpush1.msra.mxu0 0.0
    %3851 = vmatprep.subr.mxu0 0.0
    %3852 = vmatpush1.msra.mxu0 0.0
    %3853 = vmatprep.subr.mxu0 0.0
    %3854 = vmatpush1.msra.mxu0 0.0
    %3855 = vmatprep.subr.mxu0 0.0
    %3856 = vmatpush1.msra.mxu0 0.0
    %3857 = vmatprep.subr.mxu0 0.0
    %3858 = vmatpush1.msra.mxu0 0.0
    %3859 = vmatprep.subr.mxu0 0.0
    %3860 = vmatpush1.msra.mxu0 0.0
    %3861 = vmatprep.subr.mxu0 0.0
    %3862 = vmatpush1.msra.mxu0 0.0
    %3863 = vmatprep.subr.mxu0 0.0
    %3864 = vmatpush1.msra.mxu0 0.0
    %3865 = vmatprep.subr.mxu0 0.0
    %3866 = vmatpush1.msra.mxu0 0.0
    %3867 = vmatprep.subr.mxu0 0.0
    %3868 = vmatpush1.msra.mxu0 0.0
    %3869 = vmatprep.subr.mxu0 0.0
    %3870 = vmatpush1.msra.mxu0 %v3834
    %3871 = vmatprep.subr.mxu0 0.0
    %3872 = vmatpush2.msra.mxu0 0.0
    %3873 = vmatprep.subr.mxu0 0.0
    %3874 = vmatpush2.msra.mxu0 0.0
    %3875 = vmatprep.subr.mxu0 0.0
    %3876 = vmatpush2.msra.mxu0 0.0
    %3877 = vmatprep.subr.mxu0 0.0
    %3878 = vmatpush2.msra.mxu0 0.0
    %3879 = vmatprep.subr.mxu0 0.0
    %3880 = vmatpush2.msra.mxu0 0.0
    %3881 = vmatprep.subr.mxu0 0.0
    %3882 = vmatpush2.msra.mxu0 0.0
    %3883 = vmatprep.subr.mxu0 0.0
    %3884 = vmatpush2.msra.mxu0 0.0
    %3885 = vmatprep.subr.mxu0 0.0
    %3886 = vmatpush2.msra.mxu0 0.0
    %3887 = vmatprep.subr.mxu0 0.0
    %3888 = vmatpush2.msra.mxu0 0.0
    %3889 = vmatprep.subr.mxu0 0.0
    %3890 = vmatpush2.msra.mxu0 0.0
    %3891 = vmatprep.subr.mxu0 0.0
    %3892 = vmatpush2.msra.mxu0 0.0
    %3893 = vmatprep.subr.mxu0 0.0
    %3894 = vmatpush2.msra.mxu0 0.0
    %3895 = vmatprep.subr.mxu0 0.0
    %3896 = vmatpush2.msra.mxu0 0.0
    %3897 = vmatprep.subr.mxu0 0.0
    %3898 = vmatpush2.msra.mxu0 0.0
    %3899 = vmatprep.subr.mxu0 0.0
    %3900 = vmatpush2.msra.mxu0 0.0
    %3901 = vmatprep.subr.mxu0 0.0
    %3902 = vmatpush2.msra.mxu0 0.0
    %3903 = vmatprep.mubr.f32.mxu0 0.0
    %3904 = vmatmul.mubr.f32.gmra.mxu0 %v3837
    %v3905 = vpop.f32.mrf.mxu0
    %v3906 = vadd.f32 0.0, %v3905
    %v3907 = vpop.f32.mrf.mxu0
    %3908 = vdwg.mxu0
    %3909 = vrot.lane.b32.xlu0 %v605, 64
    %v3910 = vpop.permute.xlu0 %3909
    %v3913 = vsel %vm57, %v3427, 0
    %3915 = vmatprep.subr.mxu0 0.0
    %3916 = vmatpush1.msra.mxu0 0.0
    %3917 = vmatprep.subr.mxu0 0.0
    %3918 = vmatpush1.msra.mxu0 0.0
    %3919 = vmatprep.subr.mxu0 0.0
    %3920 = vmatpush1.msra.mxu0 0.0
    %3921 = vmatprep.subr.mxu0 0.0
    %3922 = vmatpush1.msra.mxu0 0.0
    %3923 = vmatprep.subr.mxu0 0.0
    %3924 = vmatpush1.msra.mxu0 0.0
    %3925 = vmatprep.subr.mxu0 0.0
    %3926 = vmatpush1.msra.mxu0 0.0
    %3927 = vmatprep.subr.mxu0 0.0
    %3928 = vmatpush1.msra.mxu0 0.0
    %3929 = vmatprep.subr.mxu0 0.0
    %3930 = vmatpush1.msra.mxu0 0.0
    %3931 = vmatprep.subr.mxu0 0.0
    %3932 = vmatpush1.msra.mxu0 0.0
    %3933 = vmatprep.subr.mxu0 0.0
    %3934 = vmatpush1.msra.mxu0 0.0
    %3935 = vmatprep.subr.mxu0 0.0
    %3936 = vmatpush1.msra.mxu0 0.0
    %3937 = vmatprep.subr.mxu0 0.0
    %3938 = vmatpush1.msra.mxu0 0.0
    %3939 = vmatprep.subr.mxu0 0.0
    %3940 = vmatpush1.msra.mxu0 0.0
    %3941 = vmatprep.subr.mxu0 0.0
    %3942 = vmatpush1.msra.mxu0 0.0
    %3943 = vmatprep.subr.mxu0 0.0
    %3944 = vmatpush1.msra.mxu0 0.0
    %3945 = vmatprep.subr.mxu0 0.0
    %3946 = vmatpush1.msra.mxu0 %v3910
    %3947 = vmatprep.subr.mxu0 0.0
    %3948 = vmatpush2.msra.mxu0 0.0
    %3949 = vmatprep.subr.mxu0 0.0
    %3950 = vmatpush2.msra.mxu0 0.0
    %3951 = vmatprep.subr.mxu0 0.0
    %3952 = vmatpush2.msra.mxu0 0.0
    %3953 = vmatprep.subr.mxu0 0.0
    %3954 = vmatpush2.msra.mxu0 0.0
    %3955 = vmatprep.subr.mxu0 0.0
    %3956 = vmatpush2.msra.mxu0 0.0
    %3957 = vmatprep.subr.mxu0 0.0
    %3958 = vmatpush2.msra.mxu0 0.0
    %3959 = vmatprep.subr.mxu0 0.0
    %3960 = vmatpush2.msra.mxu0 0.0
    %3961 = vmatprep.subr.mxu0 0.0
    %3962 = vmatpush2.msra.mxu0 0.0
    %3963 = vmatprep.subr.mxu0 0.0
    %3964 = vmatpush2.msra.mxu0 0.0
    %3965 = vmatprep.subr.mxu0 0.0
    %3966 = vmatpush2.msra.mxu0 0.0
    %3967 = vmatprep.subr.mxu0 0.0
    %3968 = vmatpush2.msra.mxu0 0.0
    %3969 = vmatprep.subr.mxu0 0.0
    %3970 = vmatpush2.msra.mxu0 0.0
    %3971 = vmatprep.subr.mxu0 0.0
    %3972 = vmatpush2.msra.mxu0 0.0
    %3973 = vmatprep.subr.mxu0 0.0
    %3974 = vmatpush2.msra.mxu0 0.0
    %3975 = vmatprep.subr.mxu0 0.0
    %3976 = vmatpush2.msra.mxu0 0.0
    %3977 = vmatprep.subr.mxu0 0.0
    %3978 = vmatpush2.msra.mxu0 0.0
    %3979 = vmatprep.mubr.f32.mxu0 0.0
    %3980 = vmatmul.mubr.f32.gmra.mxu0 %v3913
    %v3981 = vpop.f32.mrf.mxu0
    %v3982 = vadd.f32 0.0, %v3981
    %v3983 = vpop.f32.mrf.mxu0
    %3984 = vdwg.mxu0
    %3985 = vrot.lane.b32.xlu0 %v610, 64
    %v3986 = vpop.permute.xlu0 %3985
    %v3989 = vsel %vm57, %v3428, 0
    %3991 = vmatprep.subr.mxu0 0.0
    %3992 = vmatpush1.msra.mxu0 0.0
    %3993 = vmatprep.subr.mxu0 0.0
    %3994 = vmatpush1.msra.mxu0 0.0
    %3995 = vmatprep.subr.mxu0 0.0
    %3996 = vmatpush1.msra.mxu0 0.0
    %3997 = vmatprep.subr.mxu0 0.0
    %3998 = vmatpush1.msra.mxu0 0.0
    %3999 = vmatprep.subr.mxu0 0.0
    %4000 = vmatpush1.msra.mxu0 0.0
    %4001 = vmatprep.subr.mxu0 0.0
    %4002 = vmatpush1.msra.mxu0 0.0
    %4003 = vmatprep.subr.mxu0 0.0
    %4004 = vmatpush1.msra.mxu0 0.0
    %4005 = vmatprep.subr.mxu0 0.0
    %4006 = vmatpush1.msra.mxu0 0.0
    %4007 = vmatprep.subr.mxu0 0.0
    %4008 = vmatpush1.msra.mxu0 0.0
    %4009 = vmatprep.subr.mxu0 0.0
    %4010 = vmatpush1.msra.mxu0 0.0
    %4011 = vmatprep.subr.mxu0 0.0
    %4012 = vmatpush1.msra.mxu0 0.0
    %4013 = vmatprep.subr.mxu0 0.0
    %4014 = vmatpush1.msra.mxu0 0.0
    %4015 = vmatprep.subr.mxu0 0.0
    %4016 = vmatpush1.msra.mxu0 0.0
    %4017 = vmatprep.subr.mxu0 0.0
    %4018 = vmatpush1.msra.mxu0 0.0
    %4019 = vmatprep.subr.mxu0 0.0
    %4020 = vmatpush1.msra.mxu0 0.0
    %4021 = vmatprep.subr.mxu0 0.0
    %4022 = vmatpush1.msra.mxu0 %v3986
    %4023 = vmatprep.subr.mxu0 0.0
    %4024 = vmatpush2.msra.mxu0 0.0
    %4025 = vmatprep.subr.mxu0 0.0
    %4026 = vmatpush2.msra.mxu0 0.0
    %4027 = vmatprep.subr.mxu0 0.0
    %4028 = vmatpush2.msra.mxu0 0.0
    %4029 = vmatprep.subr.mxu0 0.0
    %4030 = vmatpush2.msra.mxu0 0.0
    %4031 = vmatprep.subr.mxu0 0.0
    %4032 = vmatpush2.msra.mxu0 0.0
    %4033 = vmatprep.subr.mxu0 0.0
    %4034 = vmatpush2.msra.mxu0 0.0
    %4035 = vmatprep.subr.mxu0 0.0
    %4036 = vmatpush2.msra.mxu0 0.0
    %4037 = vmatprep.subr.mxu0 0.0
    %4038 = vmatpush2.msra.mxu0 0.0
    %4039 = vmatprep.subr.mxu0 0.0
    %4040 = vmatpush2.msra.mxu0 0.0
    %4041 = vmatprep.subr.mxu0 0.0
    %4042 = vmatpush2.msra.mxu0 0.0
    %4043 = vmatprep.subr.mxu0 0.0
    %4044 = vmatpush2.msra.mxu0 0.0
    %4045 = vmatprep.subr.mxu0 0.0
    %4046 = vmatpush2.msra.mxu0 0.0
    %4047 = vmatprep.subr.mxu0 0.0
    %4048 = vmatpush2.msra.mxu0 0.0
    %4049 = vmatprep.subr.mxu0 0.0
    %4050 = vmatpush2.msra.mxu0 0.0
    %4051 = vmatprep.subr.mxu0 0.0
    %4052 = vmatpush2.msra.mxu0 0.0
    %4053 = vmatprep.subr.mxu0 0.0
    %4054 = vmatpush2.msra.mxu0 0.0
    %4055 = vmatprep.mubr.f32.mxu0 0.0
    %4056 = vmatmul.mubr.f32.gmra.mxu0 %v3989
    %v4057 = vpop.f32.mrf.mxu0
    %v4058 = vadd.f32 0.0, %v4057
    %v4059 = vpop.f32.mrf.mxu0
    %4060 = vdwg.mxu0
    %4061 = vrot.lane.b32.xlu0 %v622, 64
    %v4062 = vpop.permute.xlu0 %4061
    %v4065 = vsel %vm57, %v3429, 0
    %4067 = vmatprep.subr.mxu0 0.0
    %4068 = vmatpush1.msra.mxu0 0.0
    %4069 = vmatprep.subr.mxu0 0.0
    %4070 = vmatpush1.msra.mxu0 0.0
    %4071 = vmatprep.subr.mxu0 0.0
    %4072 = vmatpush1.msra.mxu0 0.0
    %4073 = vmatprep.subr.mxu0 0.0
    %4074 = vmatpush1.msra.mxu0 0.0
    %4075 = vmatprep.subr.mxu0 0.0
    %4076 = vmatpush1.msra.mxu0 0.0
    %4077 = vmatprep.subr.mxu0 0.0
    %4078 = vmatpush1.msra.mxu0 0.0
    %4079 = vmatprep.subr.mxu0 0.0
    %4080 = vmatpush1.msra.mxu0 0.0
    %4081 = vmatprep.subr.mxu0 0.0
    %4082 = vmatpush1.msra.mxu0 0.0
    %4083 = vmatprep.subr.mxu0 0.0
    %4084 = vmatpush1.msra.mxu0 0.0
    %4085 = vmatprep.subr.mxu0 0.0
    %4086 = vmatpush1.msra.mxu0 0.0
    %4087 = vmatprep.subr.mxu0 0.0
    %4088 = vmatpush1.msra.mxu0 0.0
    %4089 = vmatprep.subr.mxu0 0.0
    %4090 = vmatpush1.msra.mxu0 0.0
    %4091 = vmatprep.subr.mxu0 0.0
    %4092 = vmatpush1.msra.mxu0 0.0
    %4093 = vmatprep.subr.mxu0 0.0
    %4094 = vmatpush1.msra.mxu0 0.0
    %4095 = vmatprep.subr.mxu0 0.0
    %4096 = vmatpush1.msra.mxu0 0.0
    %4097 = vmatprep.subr.mxu0 0.0
    %4098 = vmatpush1.msra.mxu0 %v4062
    %4099 = vmatprep.subr.mxu0 0.0
    %4100 = vmatpush2.msra.mxu0 0.0
    %4101 = vmatprep.subr.mxu0 0.0
    %4102 = vmatpush2.msra.mxu0 0.0
    %4103 = vmatprep.subr.mxu0 0.0
    %4104 = vmatpush2.msra.mxu0 0.0
    %4105 = vmatprep.subr.mxu0 0.0
    %4106 = vmatpush2.msra.mxu0 0.0
    %4107 = vmatprep.subr.mxu0 0.0
    %4108 = vmatpush2.msra.mxu0 0.0
    %4109 = vmatprep.subr.mxu0 0.0
    %4110 = vmatpush2.msra.mxu0 0.0
    %4111 = vmatprep.subr.mxu0 0.0
    %4112 = vmatpush2.msra.mxu0 0.0
    %4113 = vmatprep.subr.mxu0 0.0
    %4114 = vmatpush2.msra.mxu0 0.0
    %4115 = vmatprep.subr.mxu0 0.0
    %4116 = vmatpush2.msra.mxu0 0.0
    %4117 = vmatprep.subr.mxu0 0.0
    %4118 = vmatpush2.msra.mxu0 0.0
    %4119 = vmatprep.subr.mxu0 0.0
    %4120 = vmatpush2.msra.mxu0 0.0
    %4121 = vmatprep.subr.mxu0 0.0
    %4122 = vmatpush2.msra.mxu0 0.0
    %4123 = vmatprep.subr.mxu0 0.0
    %4124 = vmatpush2.msra.mxu0 0.0
    %4125 = vmatprep.subr.mxu0 0.0
    %4126 = vmatpush2.msra.mxu0 0.0
    %4127 = vmatprep.subr.mxu0 0.0
    %4128 = vmatpush2.msra.mxu0 0.0
    %4129 = vmatprep.subr.mxu0 0.0
    %4130 = vmatpush2.msra.mxu0 0.0
    %4131 = vmatprep.mubr.f32.mxu0 0.0
    %4132 = vmatmul.mubr.f32.gmra.mxu0 %v4065
    %v4133 = vpop.f32.mrf.mxu0
    %v4134 = vadd.f32 0.0, %v4133
    %v4135 = vpop.f32.mrf.mxu0
    %4136 = vdwg.mxu0
    %4137 = vrot.lane.b32.xlu0 %v624, 64
    %v4138 = vpop.permute.xlu0 %4137
    %v4141 = vsel %vm57, %v3430, 0
    %4143 = vmatprep.subr.mxu0 0.0
    %4144 = vmatpush1.msra.mxu0 0.0
    %4145 = vmatprep.subr.mxu0 0.0
    %4146 = vmatpush1.msra.mxu0 0.0
    %4147 = vmatprep.subr.mxu0 0.0
    %4148 = vmatpush1.msra.mxu0 0.0
    %4149 = vmatprep.subr.mxu0 0.0
    %4150 = vmatpush1.msra.mxu0 0.0
    %4151 = vmatprep.subr.mxu0 0.0
    %4152 = vmatpush1.msra.mxu0 0.0
    %4153 = vmatprep.subr.mxu0 0.0
    %4154 = vmatpush1.msra.mxu0 0.0
    %4155 = vmatprep.subr.mxu0 0.0
    %4156 = vmatpush1.msra.mxu0 0.0
    %4157 = vmatprep.subr.mxu0 0.0
    %4158 = vmatpush1.msra.mxu0 0.0
    %4159 = vmatprep.subr.mxu0 0.0
    %4160 = vmatpush1.msra.mxu0 0.0
    %4161 = vmatprep.subr.mxu0 0.0
    %4162 = vmatpush1.msra.mxu0 0.0
    %4163 = vmatprep.subr.mxu0 0.0
    %4164 = vmatpush1.msra.mxu0 0.0
    %4165 = vmatprep.subr.mxu0 0.0
    %4166 = vmatpush1.msra.mxu0 0.0
    %4167 = vmatprep.subr.mxu0 0.0
    %4168 = vmatpush1.msra.mxu0 0.0
    %4169 = vmatprep.subr.mxu0 0.0
    %4170 = vmatpush1.msra.mxu0 0.0
    %4171 = vmatprep.subr.mxu0 0.0
    %4172 = vmatpush1.msra.mxu0 0.0
    %4173 = vmatprep.subr.mxu0 0.0
    %4174 = vmatpush1.msra.mxu0 %v4138
    %4175 = vmatprep.subr.mxu0 0.0
    %4176 = vmatpush2.msra.mxu0 0.0
    %4177 = vmatprep.subr.mxu0 0.0
    %4178 = vmatpush2.msra.mxu0 0.0
    %4179 = vmatprep.subr.mxu0 0.0
    %4180 = vmatpush2.msra.mxu0 0.0
    %4181 = vmatprep.subr.mxu0 0.0
    %4182 = vmatpush2.msra.mxu0 0.0
    %4183 = vmatprep.subr.mxu0 0.0
    %4184 = vmatpush2.msra.mxu0 0.0
    %4185 = vmatprep.subr.mxu0 0.0
    %4186 = vmatpush2.msra.mxu0 0.0
    %4187 = vmatprep.subr.mxu0 0.0
    %4188 = vmatpush2.msra.mxu0 0.0
    %4189 = vmatprep.subr.mxu0 0.0
    %4190 = vmatpush2.msra.mxu0 0.0
    %4191 = vmatprep.subr.mxu0 0.0
    %4192 = vmatpush2.msra.mxu0 0.0
    %4193 = vmatprep.subr.mxu0 0.0
    %4194 = vmatpush2.msra.mxu0 0.0
    %4195 = vmatprep.subr.mxu0 0.0
    %4196 = vmatpush2.msra.mxu0 0.0
    %4197 = vmatprep.subr.mxu0 0.0
    %4198 = vmatpush2.msra.mxu0 0.0
    %4199 = vmatprep.subr.mxu0 0.0
    %4200 = vmatpush2.msra.mxu0 0.0
    %4201 = vmatprep.subr.mxu0 0.0
    %4202 = vmatpush2.msra.mxu0 0.0
    %4203 = vmatprep.subr.mxu0 0.0
    %4204 = vmatpush2.msra.mxu0 0.0
    %4205 = vmatprep.subr.mxu0 0.0
    %4206 = vmatpush2.msra.mxu0 0.0
    %4207 = vmatprep.mubr.f32.mxu0 0.0
    %4208 = vmatmul.mubr.f32.gmra.mxu0 %v4141
    %v4209 = vpop.f32.mrf.mxu0
    %v4210 = vadd.f32 0.0, %v4209
    %v4211 = vpop.f32.mrf.mxu0
    %4212 = vdwg.mxu0
    %4213 = vrot.lane.b32.xlu0 %v626, 64
    %v4214 = vpop.permute.xlu0 %4213
    %v4217 = vsel %vm57, %v3431, 0
    %4219 = vmatprep.subr.mxu0 0.0
    %4220 = vmatpush1.msra.mxu0 0.0
    %4221 = vmatprep.subr.mxu0 0.0
    %4222 = vmatpush1.msra.mxu0 0.0
    %4223 = vmatprep.subr.mxu0 0.0
    %4224 = vmatpush1.msra.mxu0 0.0
    %4225 = vmatprep.subr.mxu0 0.0
    %4226 = vmatpush1.msra.mxu0 0.0
    %4227 = vmatprep.subr.mxu0 0.0
    %4228 = vmatpush1.msra.mxu0 0.0
    %4229 = vmatprep.subr.mxu0 0.0
    %4230 = vmatpush1.msra.mxu0 0.0
    %4231 = vmatprep.subr.mxu0 0.0
    %4232 = vmatpush1.msra.mxu0 0.0
    %4233 = vmatprep.subr.mxu0 0.0
    %4234 = vmatpush1.msra.mxu0 0.0
    %4235 = vmatprep.subr.mxu0 0.0
    %4236 = vmatpush1.msra.mxu0 0.0
    %4237 = vmatprep.subr.mxu0 0.0
    %4238 = vmatpush1.msra.mxu0 0.0
    %4239 = vmatprep.subr.mxu0 0.0
    %4240 = vmatpush1.msra.mxu0 0.0
    %4241 = vmatprep.subr.mxu0 0.0
    %4242 = vmatpush1.msra.mxu0 0.0
    %4243 = vmatprep.subr.mxu0 0.0
    %4244 = vmatpush1.msra.mxu0 0.0
    %4245 = vmatprep.subr.mxu0 0.0
    %4246 = vmatpush1.msra.mxu0 0.0
    %4247 = vmatprep.subr.mxu0 0.0
    %4248 = vmatpush1.msra.mxu0 0.0
    %4249 = vmatprep.subr.mxu0 0.0
    %4250 = vmatpush1.msra.mxu0 %v4214
    %4251 = vmatprep.subr.mxu0 0.0
    %4252 = vmatpush2.msra.mxu0 0.0
    %4253 = vmatprep.subr.mxu0 0.0
    %4254 = vmatpush2.msra.mxu0 0.0
    %4255 = vmatprep.subr.mxu0 0.0
    %4256 = vmatpush2.msra.mxu0 0.0
    %4257 = vmatprep.subr.mxu0 0.0
    %4258 = vmatpush2.msra.mxu0 0.0
    %4259 = vmatprep.subr.mxu0 0.0
    %4260 = vmatpush2.msra.mxu0 0.0
    %4261 = vmatprep.subr.mxu0 0.0
    %4262 = vmatpush2.msra.mxu0 0.0
    %4263 = vmatprep.subr.mxu0 0.0
    %4264 = vmatpush2.msra.mxu0 0.0
    %4265 = vmatprep.subr.mxu0 0.0
    %4266 = vmatpush2.msra.mxu0 0.0
    %4267 = vmatprep.subr.mxu0 0.0
    %4268 = vmatpush2.msra.mxu0 0.0
    %4269 = vmatprep.subr.mxu0 0.0
    %4270 = vmatpush2.msra.mxu0 0.0
    %4271 = vmatprep.subr.mxu0 0.0
    %4272 = vmatpush2.msra.mxu0 0.0
    %4273 = vmatprep.subr.mxu0 0.0
    %4274 = vmatpush2.msra.mxu0 0.0
    %4275 = vmatprep.subr.mxu0 0.0
    %4276 = vmatpush2.msra.mxu0 0.0
    %4277 = vmatprep.subr.mxu0 0.0
    %4278 = vmatpush2.msra.mxu0 0.0
    %4279 = vmatprep.subr.mxu0 0.0
    %4280 = vmatpush2.msra.mxu0 0.0
    %4281 = vmatprep.subr.mxu0 0.0
    %4282 = vmatpush2.msra.mxu0 0.0
    %4283 = vmatprep.mubr.f32.mxu0 0.0
    %4284 = vmatmul.mubr.f32.gmra.mxu0 %v4217
    %v4285 = vpop.f32.mrf.mxu0
    %v4286 = vadd.f32 0.0, %v4285
    %v4287 = vpop.f32.mrf.mxu0
    %4288 = vdwg.mxu0
    %4289 = vrot.lane.b32.xlu0 %v628, 64
    %v4290 = vpop.permute.xlu0 %4289
    %v4293 = vsel %vm57, %v3432, 0
    %4295 = vmatprep.subr.mxu0 0.0
    %4296 = vmatpush1.msra.mxu0 0.0
    %4297 = vmatprep.subr.mxu0 0.0
    %4298 = vmatpush1.msra.mxu0 0.0
    %4299 = vmatprep.subr.mxu0 0.0
    %4300 = vmatpush1.msra.mxu0 0.0
    %4301 = vmatprep.subr.mxu0 0.0
    %4302 = vmatpush1.msra.mxu0 0.0
    %4303 = vmatprep.subr.mxu0 0.0
    %4304 = vmatpush1.msra.mxu0 0.0
    %4305 = vmatprep.subr.mxu0 0.0
    %4306 = vmatpush1.msra.mxu0 0.0
    %4307 = vmatprep.subr.mxu0 0.0
    %4308 = vmatpush1.msra.mxu0 0.0
    %4309 = vmatprep.subr.mxu0 0.0
    %4310 = vmatpush1.msra.mxu0 0.0
    %4311 = vmatprep.subr.mxu0 0.0
    %4312 = vmatpush1.msra.mxu0 0.0
    %4313 = vmatprep.subr.mxu0 0.0
    %4314 = vmatpush1.msra.mxu0 0.0
    %4315 = vmatprep.subr.mxu0 0.0
    %4316 = vmatpush1.msra.mxu0 0.0
    %4317 = vmatprep.subr.mxu0 0.0
    %4318 = vmatpush1.msra.mxu0 0.0
    %4319 = vmatprep.subr.mxu0 0.0
    %4320 = vmatpush1.msra.mxu0 0.0
    %4321 = vmatprep.subr.mxu0 0.0
    %4322 = vmatpush1.msra.mxu0 0.0
    %4323 = vmatprep.subr.mxu0 0.0
    %4324 = vmatpush1.msra.mxu0 0.0
    %4325 = vmatprep.subr.mxu0 0.0
    %4326 = vmatpush1.msra.mxu0 %v4290
    %4327 = vmatprep.subr.mxu0 0.0
    %4328 = vmatpush2.msra.mxu0 0.0
    %4329 = vmatprep.subr.mxu0 0.0
    %4330 = vmatpush2.msra.mxu0 0.0
    %4331 = vmatprep.subr.mxu0 0.0
    %4332 = vmatpush2.msra.mxu0 0.0
    %4333 = vmatprep.subr.mxu0 0.0
    %4334 = vmatpush2.msra.mxu0 0.0
    %4335 = vmatprep.subr.mxu0 0.0
    %4336 = vmatpush2.msra.mxu0 0.0
    %4337 = vmatprep.subr.mxu0 0.0
    %4338 = vmatpush2.msra.mxu0 0.0
    %4339 = vmatprep.subr.mxu0 0.0
    %4340 = vmatpush2.msra.mxu0 0.0
    %4341 = vmatprep.subr.mxu0 0.0
    %4342 = vmatpush2.msra.mxu0 0.0
    %4343 = vmatprep.subr.mxu0 0.0
    %4344 = vmatpush2.msra.mxu0 0.0
    %4345 = vmatprep.subr.mxu0 0.0
    %4346 = vmatpush2.msra.mxu0 0.0
    %4347 = vmatprep.subr.mxu0 0.0
    %4348 = vmatpush2.msra.mxu0 0.0
    %4349 = vmatprep.subr.mxu0 0.0
    %4350 = vmatpush2.msra.mxu0 0.0
    %4351 = vmatprep.subr.mxu0 0.0
    %4352 = vmatpush2.msra.mxu0 0.0
    %4353 = vmatprep.subr.mxu0 0.0
    %4354 = vmatpush2.msra.mxu0 0.0
    %4355 = vmatprep.subr.mxu0 0.0
    %4356 = vmatpush2.msra.mxu0 0.0
    %4357 = vmatprep.subr.mxu0 0.0
    %4358 = vmatpush2.msra.mxu0 0.0
    %4359 = vmatprep.mubr.f32.mxu0 0.0
    %4360 = vmatmul.mubr.f32.gmra.mxu0 %v4293
    %v4361 = vpop.f32.mrf.mxu0
    %v4362 = vadd.f32 0.0, %v4361
    %v4363 = vpop.f32.mrf.mxu0
    %4364 = vdwg.mxu0
    %4365 = vrot.lane.b32.xlu0 %v630, 64
    %v4366 = vpop.permute.xlu0 %4365
    %v4369 = vsel %vm57, %v3433, 0
    %4371 = vmatprep.subr.mxu0 0.0
    %4372 = vmatpush1.msra.mxu0 0.0
    %4373 = vmatprep.subr.mxu0 0.0
    %4374 = vmatpush1.msra.mxu0 0.0
    %4375 = vmatprep.subr.mxu0 0.0
    %4376 = vmatpush1.msra.mxu0 0.0
    %4377 = vmatprep.subr.mxu0 0.0
    %4378 = vmatpush1.msra.mxu0 0.0
    %4379 = vmatprep.subr.mxu0 0.0
    %4380 = vmatpush1.msra.mxu0 0.0
    %4381 = vmatprep.subr.mxu0 0.0
    %4382 = vmatpush1.msra.mxu0 0.0
    %4383 = vmatprep.subr.mxu0 0.0
    %4384 = vmatpush1.msra.mxu0 0.0
    %4385 = vmatprep.subr.mxu0 0.0
    %4386 = vmatpush1.msra.mxu0 0.0
    %4387 = vmatprep.subr.mxu0 0.0
    %4388 = vmatpush1.msra.mxu0 0.0
    %4389 = vmatprep.subr.mxu0 0.0
    %4390 = vmatpush1.msra.mxu0 0.0
    %4391 = vmatprep.subr.mxu0 0.0
    %4392 = vmatpush1.msra.mxu0 0.0
    %4393 = vmatprep.subr.mxu0 0.0
    %4394 = vmatpush1.msra.mxu0 0.0
    %4395 = vmatprep.subr.mxu0 0.0
    %4396 = vmatpush1.msra.mxu0 0.0
    %4397 = vmatprep.subr.mxu0 0.0
    %4398 = vmatpush1.msra.mxu0 0.0
    %4399 = vmatprep.subr.mxu0 0.0
    %4400 = vmatpush1.msra.mxu0 0.0
    %4401 = vmatprep.subr.mxu0 0.0
    %4402 = vmatpush1.msra.mxu0 %v4366
    %4403 = vmatprep.subr.mxu0 0.0
    %4404 = vmatpush2.msra.mxu0 0.0
    %4405 = vmatprep.subr.mxu0 0.0
    %4406 = vmatpush2.msra.mxu0 0.0
    %4407 = vmatprep.subr.mxu0 0.0
    %4408 = vmatpush2.msra.mxu0 0.0
    %4409 = vmatprep.subr.mxu0 0.0
    %4410 = vmatpush2.msra.mxu0 0.0
    %4411 = vmatprep.subr.mxu0 0.0
    %4412 = vmatpush2.msra.mxu0 0.0
    %4413 = vmatprep.subr.mxu0 0.0
    %4414 = vmatpush2.msra.mxu0 0.0
    %4415 = vmatprep.subr.mxu0 0.0
    %4416 = vmatpush2.msra.mxu0 0.0
    %4417 = vmatprep.subr.mxu0 0.0
    %4418 = vmatpush2.msra.mxu0 0.0
    %4419 = vmatprep.subr.mxu0 0.0
    %4420 = vmatpush2.msra.mxu0 0.0
    %4421 = vmatprep.subr.mxu0 0.0
    %4422 = vmatpush2.msra.mxu0 0.0
    %4423 = vmatprep.subr.mxu0 0.0
    %4424 = vmatpush2.msra.mxu0 0.0
    %4425 = vmatprep.subr.mxu0 0.0
    %4426 = vmatpush2.msra.mxu0 0.0
    %4427 = vmatprep.subr.mxu0 0.0
    %4428 = vmatpush2.msra.mxu0 0.0
    %4429 = vmatprep.subr.mxu0 0.0
    %4430 = vmatpush2.msra.mxu0 0.0
    %4431 = vmatprep.subr.mxu0 0.0
    %4432 = vmatpush2.msra.mxu0 0.0
    %4433 = vmatprep.subr.mxu0 0.0
    %4434 = vmatpush2.msra.mxu0 0.0
    %4435 = vmatprep.mubr.f32.mxu0 0.0
    %4436 = vmatmul.mubr.f32.gmra.mxu0 %v4369
    %v4437 = vpop.f32.mrf.mxu0
    %v4438 = vadd.f32 0.0, %v4437
    %v4439 = vpop.f32.mrf.mxu0
    %4440 = vdwg.mxu0
    %4441 = vrot.lane.b32.xlu0 %v632, 64
    %v4442 = vpop.permute.xlu0 %4441
    %v4445 = vsel %vm57, %v3434, 0
    %4447 = vmatprep.subr.mxu0 0.0
    %4448 = vmatpush1.msra.mxu0 0.0
    %4449 = vmatprep.subr.mxu0 0.0
    %4450 = vmatpush1.msra.mxu0 0.0
    %4451 = vmatprep.subr.mxu0 0.0
    %4452 = vmatpush1.msra.mxu0 0.0
    %4453 = vmatprep.subr.mxu0 0.0
    %4454 = vmatpush1.msra.mxu0 0.0
    %4455 = vmatprep.subr.mxu0 0.0
    %4456 = vmatpush1.msra.mxu0 0.0
    %4457 = vmatprep.subr.mxu0 0.0
    %4458 = vmatpush1.msra.mxu0 0.0
    %4459 = vmatprep.subr.mxu0 0.0
    %4460 = vmatpush1.msra.mxu0 0.0
    %4461 = vmatprep.subr.mxu0 0.0
    %4462 = vmatpush1.msra.mxu0 0.0
    %4463 = vmatprep.subr.mxu0 0.0
    %4464 = vmatpush1.msra.mxu0 0.0
    %4465 = vmatprep.subr.mxu0 0.0
    %4466 = vmatpush1.msra.mxu0 0.0
    %4467 = vmatprep.subr.mxu0 0.0
    %4468 = vmatpush1.msra.mxu0 0.0
    %4469 = vmatprep.subr.mxu0 0.0
    %4470 = vmatpush1.msra.mxu0 0.0
    %4471 = vmatprep.subr.mxu0 0.0
    %4472 = vmatpush1.msra.mxu0 0.0
    %4473 = vmatprep.subr.mxu0 0.0
    %4474 = vmatpush1.msra.mxu0 0.0
    %4475 = vmatprep.subr.mxu0 0.0
    %4476 = vmatpush1.msra.mxu0 0.0
    %4477 = vmatprep.subr.mxu0 0.0
    %4478 = vmatpush1.msra.mxu0 %v4442
    %4479 = vmatprep.subr.mxu0 0.0
    %4480 = vmatpush2.msra.mxu0 0.0
    %4481 = vmatprep.subr.mxu0 0.0
    %4482 = vmatpush2.msra.mxu0 0.0
    %4483 = vmatprep.subr.mxu0 0.0
    %4484 = vmatpush2.msra.mxu0 0.0
    %4485 = vmatprep.subr.mxu0 0.0
    %4486 = vmatpush2.msra.mxu0 0.0
    %4487 = vmatprep.subr.mxu0 0.0
    %4488 = vmatpush2.msra.mxu0 0.0
    %4489 = vmatprep.subr.mxu0 0.0
    %4490 = vmatpush2.msra.mxu0 0.0
    %4491 = vmatprep.subr.mxu0 0.0
    %4492 = vmatpush2.msra.mxu0 0.0
    %4493 = vmatprep.subr.mxu0 0.0
    %4494 = vmatpush2.msra.mxu0 0.0
    %4495 = vmatprep.subr.mxu0 0.0
    %4496 = vmatpush2.msra.mxu0 0.0
    %4497 = vmatprep.subr.mxu0 0.0
    %4498 = vmatpush2.msra.mxu0 0.0
    %4499 = vmatprep.subr.mxu0 0.0
    %4500 = vmatpush2.msra.mxu0 0.0
    %4501 = vmatprep.subr.mxu0 0.0
    %4502 = vmatpush2.msra.mxu0 0.0
    %4503 = vmatprep.subr.mxu0 0.0
    %4504 = vmatpush2.msra.mxu0 0.0
    %4505 = vmatprep.subr.mxu0 0.0
    %4506 = vmatpush2.msra.mxu0 0.0
    %4507 = vmatprep.subr.mxu0 0.0
    %4508 = vmatpush2.msra.mxu0 0.0
    %4509 = vmatprep.subr.mxu0 0.0
    %4510 = vmatpush2.msra.mxu0 0.0
    %4511 = vmatprep.mubr.f32.mxu0 0.0
    %4512 = vmatmul.mubr.f32.gmra.mxu0 %v4445
    %v4513 = vpop.f32.mrf.mxu0
    %v4514 = vadd.f32 0.0, %v4513
    %v4515 = vpop.f32.mrf.mxu0
    %4516 = vdwg.mxu0
    %4517 = vrot.lane.b32.xlu0 %v634, 64
    %v4518 = vpop.permute.xlu0 %4517
    %v4521 = vsel %vm57, %v3435, 0
    %4523 = vmatprep.subr.mxu0 0.0
    %4524 = vmatpush1.msra.mxu0 0.0
    %4525 = vmatprep.subr.mxu0 0.0
    %4526 = vmatpush1.msra.mxu0 0.0
    %4527 = vmatprep.subr.mxu0 0.0
    %4528 = vmatpush1.msra.mxu0 0.0
    %4529 = vmatprep.subr.mxu0 0.0
    %4530 = vmatpush1.msra.mxu0 0.0
    %4531 = vmatprep.subr.mxu0 0.0
    %4532 = vmatpush1.msra.mxu0 0.0
    %4533 = vmatprep.subr.mxu0 0.0
    %4534 = vmatpush1.msra.mxu0 0.0
    %4535 = vmatprep.subr.mxu0 0.0
    %4536 = vmatpush1.msra.mxu0 0.0
    %4537 = vmatprep.subr.mxu0 0.0
    %4538 = vmatpush1.msra.mxu0 0.0
    %4539 = vmatprep.subr.mxu0 0.0
    %4540 = vmatpush1.msra.mxu0 0.0
    %4541 = vmatprep.subr.mxu0 0.0
    %4542 = vmatpush1.msra.mxu0 0.0
    %4543 = vmatprep.subr.mxu0 0.0
    %4544 = vmatpush1.msra.mxu0 0.0
    %4545 = vmatprep.subr.mxu0 0.0
    %4546 = vmatpush1.msra.mxu0 0.0
    %4547 = vmatprep.subr.mxu0 0.0
    %4548 = vmatpush1.msra.mxu0 0.0
    %4549 = vmatprep.subr.mxu0 0.0
    %4550 = vmatpush1.msra.mxu0 0.0
    %4551 = vmatprep.subr.mxu0 0.0
    %4552 = vmatpush1.msra.mxu0 0.0
    %4553 = vmatprep.subr.mxu0 0.0
    %4554 = vmatpush1.msra.mxu0 %v4518
    %4555 = vmatprep.subr.mxu0 0.0
    %4556 = vmatpush2.msra.mxu0 0.0
    %4557 = vmatprep.subr.mxu0 0.0
    %4558 = vmatpush2.msra.mxu0 0.0
    %4559 = vmatprep.subr.mxu0 0.0
    %4560 = vmatpush2.msra.mxu0 0.0
    %4561 = vmatprep.subr.mxu0 0.0
    %4562 = vmatpush2.msra.mxu0 0.0
    %4563 = vmatprep.subr.mxu0 0.0
    %4564 = vmatpush2.msra.mxu0 0.0
    %4565 = vmatprep.subr.mxu0 0.0
    %4566 = vmatpush2.msra.mxu0 0.0
    %4567 = vmatprep.subr.mxu0 0.0
    %4568 = vmatpush2.msra.mxu0 0.0
    %4569 = vmatprep.subr.mxu0 0.0
    %4570 = vmatpush2.msra.mxu0 0.0
    %4571 = vmatprep.subr.mxu0 0.0
    %4572 = vmatpush2.msra.mxu0 0.0
    %4573 = vmatprep.subr.mxu0 0.0
    %4574 = vmatpush2.msra.mxu0 0.0
    %4575 = vmatprep.subr.mxu0 0.0
    %4576 = vmatpush2.msra.mxu0 0.0
    %4577 = vmatprep.subr.mxu0 0.0
    %4578 = vmatpush2.msra.mxu0 0.0
    %4579 = vmatprep.subr.mxu0 0.0
    %4580 = vmatpush2.msra.mxu0 0.0
    %4581 = vmatprep.subr.mxu0 0.0
    %4582 = vmatpush2.msra.mxu0 0.0
    %4583 = vmatprep.subr.mxu0 0.0
    %4584 = vmatpush2.msra.mxu0 0.0
    %4585 = vmatprep.subr.mxu0 0.0
    %4586 = vmatpush2.msra.mxu0 0.0
    %4587 = vmatprep.mubr.f32.mxu0 0.0
    %4588 = vmatmul.mubr.f32.gmra.mxu0 %v4521
    %v4589 = vpop.f32.mrf.mxu0
    %v4590 = vadd.f32 0.0, %v4589
    %v4591 = vpop.f32.mrf.mxu0
    %4592 = vdwg.mxu0
    %4593 = vrot.lane.b32.xlu0 %v636, 64
    %v4594 = vpop.permute.xlu0 %4593
    %v4597 = vsel %vm57, %v3436, 0
    %4599 = vmatprep.subr.mxu0 0.0
    %4600 = vmatpush1.msra.mxu0 0.0
    %4601 = vmatprep.subr.mxu0 0.0
    %4602 = vmatpush1.msra.mxu0 0.0
    %4603 = vmatprep.subr.mxu0 0.0
    %4604 = vmatpush1.msra.mxu0 0.0
    %4605 = vmatprep.subr.mxu0 0.0
    %4606 = vmatpush1.msra.mxu0 0.0
    %4607 = vmatprep.subr.mxu0 0.0
    %4608 = vmatpush1.msra.mxu0 0.0
    %4609 = vmatprep.subr.mxu0 0.0
    %4610 = vmatpush1.msra.mxu0 0.0
    %4611 = vmatprep.subr.mxu0 0.0
    %4612 = vmatpush1.msra.mxu0 0.0
    %4613 = vmatprep.subr.mxu0 0.0
    %4614 = vmatpush1.msra.mxu0 0.0
    %4615 = vmatprep.subr.mxu0 0.0
    %4616 = vmatpush1.msra.mxu0 0.0
    %4617 = vmatprep.subr.mxu0 0.0
    %4618 = vmatpush1.msra.mxu0 0.0
    %4619 = vmatprep.subr.mxu0 0.0
    %4620 = vmatpush1.msra.mxu0 0.0
    %4621 = vmatprep.subr.mxu0 0.0
    %4622 = vmatpush1.msra.mxu0 0.0
    %4623 = vmatprep.subr.mxu0 0.0
    %4624 = vmatpush1.msra.mxu0 0.0
    %4625 = vmatprep.subr.mxu0 0.0
    %4626 = vmatpush1.msra.mxu0 0.0
    %4627 = vmatprep.subr.mxu0 0.0
    %4628 = vmatpush1.msra.mxu0 0.0
    %4629 = vmatprep.subr.mxu0 0.0
    %4630 = vmatpush1.msra.mxu0 %v4594
    %4631 = vmatprep.subr.mxu0 0.0
    %4632 = vmatpush2.msra.mxu0 0.0
    %4633 = vmatprep.subr.mxu0 0.0
    %4634 = vmatpush2.msra.mxu0 0.0
    %4635 = vmatprep.subr.mxu0 0.0
    %4636 = vmatpush2.msra.mxu0 0.0
    %4637 = vmatprep.subr.mxu0 0.0
    %4638 = vmatpush2.msra.mxu0 0.0
    %4639 = vmatprep.subr.mxu0 0.0
    %4640 = vmatpush2.msra.mxu0 0.0
    %4641 = vmatprep.subr.mxu0 0.0
    %4642 = vmatpush2.msra.mxu0 0.0
    %4643 = vmatprep.subr.mxu0 0.0
    %4644 = vmatpush2.msra.mxu0 0.0
    %4645 = vmatprep.subr.mxu0 0.0
    %4646 = vmatpush2.msra.mxu0 0.0
    %4647 = vmatprep.subr.mxu0 0.0
    %4648 = vmatpush2.msra.mxu0 0.0
    %4649 = vmatprep.subr.mxu0 0.0
    %4650 = vmatpush2.msra.mxu0 0.0
    %4651 = vmatprep.subr.mxu0 0.0
    %4652 = vmatpush2.msra.mxu0 0.0
    %4653 = vmatprep.subr.mxu0 0.0
    %4654 = vmatpush2.msra.mxu0 0.0
    %4655 = vmatprep.subr.mxu0 0.0
    %4656 = vmatpush2.msra.mxu0 0.0
    %4657 = vmatprep.subr.mxu0 0.0
    %4658 = vmatpush2.msra.mxu0 0.0
    %4659 = vmatprep.subr.mxu0 0.0
    %4660 = vmatpush2.msra.mxu0 0.0
    %4661 = vmatprep.subr.mxu0 0.0
    %4662 = vmatpush2.msra.mxu0 0.0
    %4663 = vmatprep.mubr.f32.mxu0 0.0
    %4664 = vmatmul.mubr.f32.gmra.mxu0 %v4597
    %v4665 = vpop.f32.mrf.mxu0
    %v4666 = vadd.f32 0.0, %v4665
    %v4667 = vpop.f32.mrf.mxu0
    %4668 = vdwg.mxu0
    %4669 = vrot.lane.b32.xlu0 %v638, 64
    %v4670 = vpop.permute.xlu0 %4669
    %v4673 = vsel %vm57, %v3437, 0
    %4675 = vmatprep.subr.mxu0 0.0
    %4676 = vmatpush1.msra.mxu0 0.0
    %4677 = vmatprep.subr.mxu0 0.0
    %4678 = vmatpush1.msra.mxu0 0.0
    %4679 = vmatprep.subr.mxu0 0.0
    %4680 = vmatpush1.msra.mxu0 0.0
    %4681 = vmatprep.subr.mxu0 0.0
    %4682 = vmatpush1.msra.mxu0 0.0
    %4683 = vmatprep.subr.mxu0 0.0
    %4684 = vmatpush1.msra.mxu0 0.0
    %4685 = vmatprep.subr.mxu0 0.0
    %4686 = vmatpush1.msra.mxu0 0.0
    %4687 = vmatprep.subr.mxu0 0.0
    %4688 = vmatpush1.msra.mxu0 0.0
    %4689 = vmatprep.subr.mxu0 0.0
    %4690 = vmatpush1.msra.mxu0 0.0
    %4691 = vmatprep.subr.mxu0 0.0
    %4692 = vmatpush1.msra.mxu0 0.0
    %4693 = vmatprep.subr.mxu0 0.0
    %4694 = vmatpush1.msra.mxu0 0.0
    %4695 = vmatprep.subr.mxu0 0.0
    %4696 = vmatpush1.msra.mxu0 0.0
    %4697 = vmatprep.subr.mxu0 0.0
    %4698 = vmatpush1.msra.mxu0 0.0
    %4699 = vmatprep.subr.mxu0 0.0
    %4700 = vmatpush1.msra.mxu0 0.0
    %4701 = vmatprep.subr.mxu0 0.0
    %4702 = vmatpush1.msra.mxu0 0.0
    %4703 = vmatprep.subr.mxu0 0.0
    %4704 = vmatpush1.msra.mxu0 0.0
    %4705 = vmatprep.subr.mxu0 0.0
    %4706 = vmatpush1.msra.mxu0 %v4670
    %4707 = vmatprep.subr.mxu0 0.0
    %4708 = vmatpush2.msra.mxu0 0.0
    %4709 = vmatprep.subr.mxu0 0.0
    %4710 = vmatpush2.msra.mxu0 0.0
    %4711 = vmatprep.subr.mxu0 0.0
    %4712 = vmatpush2.msra.mxu0 0.0
    %4713 = vmatprep.subr.mxu0 0.0
    %4714 = vmatpush2.msra.mxu0 0.0
    %4715 = vmatprep.subr.mxu0 0.0
    %4716 = vmatpush2.msra.mxu0 0.0
    %4717 = vmatprep.subr.mxu0 0.0
    %4718 = vmatpush2.msra.mxu0 0.0
    %4719 = vmatprep.subr.mxu0 0.0
    %4720 = vmatpush2.msra.mxu0 0.0
    %4721 = vmatprep.subr.mxu0 0.0
    %4722 = vmatpush2.msra.mxu0 0.0
    %4723 = vmatprep.subr.mxu0 0.0
    %4724 = vmatpush2.msra.mxu0 0.0
    %4725 = vmatprep.subr.mxu0 0.0
    %4726 = vmatpush2.msra.mxu0 0.0
    %4727 = vmatprep.subr.mxu0 0.0
    %4728 = vmatpush2.msra.mxu0 0.0
    %4729 = vmatprep.subr.mxu0 0.0
    %4730 = vmatpush2.msra.mxu0 0.0
    %4731 = vmatprep.subr.mxu0 0.0
    %4732 = vmatpush2.msra.mxu0 0.0
    %4733 = vmatprep.subr.mxu0 0.0
    %4734 = vmatpush2.msra.mxu0 0.0
    %4735 = vmatprep.subr.mxu0 0.0
    %4736 = vmatpush2.msra.mxu0 0.0
    %4737 = vmatprep.subr.mxu0 0.0
    %4738 = vmatpush2.msra.mxu0 0.0
    %4739 = vmatprep.mubr.f32.mxu0 0.0
    %4740 = vmatmul.mubr.f32.gmra.mxu0 %v4673
    %v4741 = vpop.f32.mrf.mxu0
    %v4742 = vadd.f32 0.0, %v4741
    %v4743 = vpop.f32.mrf.mxu0
    %4744 = vdwg.mxu0
    %4745 = vrot.lane.b32.xlu0 %v640, 64
    %v4746 = vpop.permute.xlu0 %4745
    %v4749 = vsel %vm57, %v3438, 0
    %4751 = vmatprep.subr.mxu0 0.0
    %4752 = vmatpush1.msra.mxu0 0.0
    %4753 = vmatprep.subr.mxu0 0.0
    %4754 = vmatpush1.msra.mxu0 0.0
    %4755 = vmatprep.subr.mxu0 0.0
    %4756 = vmatpush1.msra.mxu0 0.0
    %4757 = vmatprep.subr.mxu0 0.0
    %4758 = vmatpush1.msra.mxu0 0.0
    %4759 = vmatprep.subr.mxu0 0.0
    %4760 = vmatpush1.msra.mxu0 0.0
    %4761 = vmatprep.subr.mxu0 0.0
    %4762 = vmatpush1.msra.mxu0 0.0
    %4763 = vmatprep.subr.mxu0 0.0
    %4764 = vmatpush1.msra.mxu0 0.0
    %4765 = vmatprep.subr.mxu0 0.0
    %4766 = vmatpush1.msra.mxu0 0.0
    %4767 = vmatprep.subr.mxu0 0.0
    %4768 = vmatpush1.msra.mxu0 0.0
    %4769 = vmatprep.subr.mxu0 0.0
    %4770 = vmatpush1.msra.mxu0 0.0
    %4771 = vmatprep.subr.mxu0 0.0
    %4772 = vmatpush1.msra.mxu0 0.0
    %4773 = vmatprep.subr.mxu0 0.0
    %4774 = vmatpush1.msra.mxu0 0.0
    %4775 = vmatprep.subr.mxu0 0.0
    %4776 = vmatpush1.msra.mxu0 0.0
    %4777 = vmatprep.subr.mxu0 0.0
    %4778 = vmatpush1.msra.mxu0 0.0
    %4779 = vmatprep.subr.mxu0 0.0
    %4780 = vmatpush1.msra.mxu0 0.0
    %4781 = vmatprep.subr.mxu0 0.0
    %4782 = vmatpush1.msra.mxu0 %v4746
    %4783 = vmatprep.subr.mxu0 0.0
    %4784 = vmatpush2.msra.mxu0 0.0
    %4785 = vmatprep.subr.mxu0 0.0
    %4786 = vmatpush2.msra.mxu0 0.0
    %4787 = vmatprep.subr.mxu0 0.0
    %4788 = vmatpush2.msra.mxu0 0.0
    %4789 = vmatprep.subr.mxu0 0.0
    %4790 = vmatpush2.msra.mxu0 0.0
    %4791 = vmatprep.subr.mxu0 0.0
    %4792 = vmatpush2.msra.mxu0 0.0
    %4793 = vmatprep.subr.mxu0 0.0
    %4794 = vmatpush2.msra.mxu0 0.0
    %4795 = vmatprep.subr.mxu0 0.0
    %4796 = vmatpush2.msra.mxu0 0.0
    %4797 = vmatprep.subr.mxu0 0.0
    %4798 = vmatpush2.msra.mxu0 0.0
    %4799 = vmatprep.subr.mxu0 0.0
    %4800 = vmatpush2.msra.mxu0 0.0
    %4801 = vmatprep.subr.mxu0 0.0
    %4802 = vmatpush2.msra.mxu0 0.0
    %4803 = vmatprep.subr.mxu0 0.0
    %4804 = vmatpush2.msra.mxu0 0.0
    %4805 = vmatprep.subr.mxu0 0.0
    %4806 = vmatpush2.msra.mxu0 0.0
    %4807 = vmatprep.subr.mxu0 0.0
    %4808 = vmatpush2.msra.mxu0 0.0
    %4809 = vmatprep.subr.mxu0 0.0
    %4810 = vmatpush2.msra.mxu0 0.0
    %4811 = vmatprep.subr.mxu0 0.0
    %4812 = vmatpush2.msra.mxu0 0.0
    %4813 = vmatprep.subr.mxu0 0.0
    %4814 = vmatpush2.msra.mxu0 0.0
    %4815 = vmatprep.mubr.f32.mxu0 0.0
    %4816 = vmatmul.mubr.f32.gmra.mxu0 %v4749
    %v4817 = vpop.f32.mrf.mxu0
    %v4818 = vadd.f32 0.0, %v4817
    %v4819 = vpop.f32.mrf.mxu0
    %4820 = vdwg.mxu0
    %4821 = vrot.lane.b32.xlu0 %v642, 64
    %v4822 = vpop.permute.xlu0 %4821
    %v4825 = vsel %vm57, %v3439, 0
    %4827 = vmatprep.subr.mxu0 0.0
    %4828 = vmatpush1.msra.mxu0 0.0
    %4829 = vmatprep.subr.mxu0 0.0
    %4830 = vmatpush1.msra.mxu0 0.0
    %4831 = vmatprep.subr.mxu0 0.0
    %4832 = vmatpush1.msra.mxu0 0.0
    %4833 = vmatprep.subr.mxu0 0.0
    %4834 = vmatpush1.msra.mxu0 0.0
    %4835 = vmatprep.subr.mxu0 0.0
    %4836 = vmatpush1.msra.mxu0 0.0
    %4837 = vmatprep.subr.mxu0 0.0
    %4838 = vmatpush1.msra.mxu0 0.0
    %4839 = vmatprep.subr.mxu0 0.0
    %4840 = vmatpush1.msra.mxu0 0.0
    %4841 = vmatprep.subr.mxu0 0.0
    %4842 = vmatpush1.msra.mxu0 0.0
    %4843 = vmatprep.subr.mxu0 0.0
    %4844 = vmatpush1.msra.mxu0 0.0
    %4845 = vmatprep.subr.mxu0 0.0
    %4846 = vmatpush1.msra.mxu0 0.0
    %4847 = vmatprep.subr.mxu0 0.0
    %4848 = vmatpush1.msra.mxu0 0.0
    %4849 = vmatprep.subr.mxu0 0.0
    %4850 = vmatpush1.msra.mxu0 0.0
    %4851 = vmatprep.subr.mxu0 0.0
    %4852 = vmatpush1.msra.mxu0 0.0
    %4853 = vmatprep.subr.mxu0 0.0
    %4854 = vmatpush1.msra.mxu0 0.0
    %4855 = vmatprep.subr.mxu0 0.0
    %4856 = vmatpush1.msra.mxu0 0.0
    %4857 = vmatprep.subr.mxu0 0.0
    %4858 = vmatpush1.msra.mxu0 %v4822
    %4859 = vmatprep.subr.mxu0 0.0
    %4860 = vmatpush2.msra.mxu0 0.0
    %4861 = vmatprep.subr.mxu0 0.0
    %4862 = vmatpush2.msra.mxu0 0.0
    %4863 = vmatprep.subr.mxu0 0.0
    %4864 = vmatpush2.msra.mxu0 0.0
    %4865 = vmatprep.subr.mxu0 0.0
    %4866 = vmatpush2.msra.mxu0 0.0
    %4867 = vmatprep.subr.mxu0 0.0
    %4868 = vmatpush2.msra.mxu0 0.0
    %4869 = vmatprep.subr.mxu0 0.0
    %4870 = vmatpush2.msra.mxu0 0.0
    %4871 = vmatprep.subr.mxu0 0.0
    %4872 = vmatpush2.msra.mxu0 0.0
    %4873 = vmatprep.subr.mxu0 0.0
    %4874 = vmatpush2.msra.mxu0 0.0
    %4875 = vmatprep.subr.mxu0 0.0
    %4876 = vmatpush2.msra.mxu0 0.0
    %4877 = vmatprep.subr.mxu0 0.0
    %4878 = vmatpush2.msra.mxu0 0.0
    %4879 = vmatprep.subr.mxu0 0.0
    %4880 = vmatpush2.msra.mxu0 0.0
    %4881 = vmatprep.subr.mxu0 0.0
    %4882 = vmatpush2.msra.mxu0 0.0
    %4883 = vmatprep.subr.mxu0 0.0
    %4884 = vmatpush2.msra.mxu0 0.0
    %4885 = vmatprep.subr.mxu0 0.0
    %4886 = vmatpush2.msra.mxu0 0.0
    %4887 = vmatprep.subr.mxu0 0.0
    %4888 = vmatpush2.msra.mxu0 0.0
    %4889 = vmatprep.subr.mxu0 0.0
    %4890 = vmatpush2.msra.mxu0 0.0
    %4891 = vmatprep.mubr.f32.mxu0 0.0
    %4892 = vmatmul.mubr.f32.gmra.mxu0 %v4825
    %v4893 = vpop.f32.mrf.mxu0
    %v4894 = vadd.f32 0.0, %v4893
    %v4895 = vpop.f32.mrf.mxu0
    %4896 = vdwg.mxu0
    %4897 = vrot.lane.b32.xlu0 %v644, 64
    %v4898 = vpop.permute.xlu0 %4897
    %v4901 = vsel %vm57, %v3440, 0
    %4903 = vmatprep.subr.mxu0 0.0
    %4904 = vmatpush1.msra.mxu0 0.0
    %4905 = vmatprep.subr.mxu0 0.0
    %4906 = vmatpush1.msra.mxu0 0.0
    %4907 = vmatprep.subr.mxu0 0.0
    %4908 = vmatpush1.msra.mxu0 0.0
    %4909 = vmatprep.subr.mxu0 0.0
    %4910 = vmatpush1.msra.mxu0 0.0
    %4911 = vmatprep.subr.mxu0 0.0
    %4912 = vmatpush1.msra.mxu0 0.0
    %4913 = vmatprep.subr.mxu0 0.0
    %4914 = vmatpush1.msra.mxu0 0.0
    %4915 = vmatprep.subr.mxu0 0.0
    %4916 = vmatpush1.msra.mxu0 0.0
    %4917 = vmatprep.subr.mxu0 0.0
    %4918 = vmatpush1.msra.mxu0 0.0
    %4919 = vmatprep.subr.mxu0 0.0
    %4920 = vmatpush1.msra.mxu0 0.0
    %4921 = vmatprep.subr.mxu0 0.0
    %4922 = vmatpush1.msra.mxu0 0.0
    %4923 = vmatprep.subr.mxu0 0.0
    %4924 = vmatpush1.msra.mxu0 0.0
    %4925 = vmatprep.subr.mxu0 0.0
    %4926 = vmatpush1.msra.mxu0 0.0
    %4927 = vmatprep.subr.mxu0 0.0
    %4928 = vmatpush1.msra.mxu0 0.0
    %4929 = vmatprep.subr.mxu0 0.0
    %4930 = vmatpush1.msra.mxu0 0.0
    %4931 = vmatprep.subr.mxu0 0.0
    %4932 = vmatpush1.msra.mxu0 0.0
    %4933 = vmatprep.subr.mxu0 0.0
    %4934 = vmatpush1.msra.mxu0 %v4898
    %4935 = vmatprep.subr.mxu0 0.0
    %4936 = vmatpush2.msra.mxu0 0.0
    %4937 = vmatprep.subr.mxu0 0.0
    %4938 = vmatpush2.msra.mxu0 0.0
    %4939 = vmatprep.subr.mxu0 0.0
    %4940 = vmatpush2.msra.mxu0 0.0
    %4941 = vmatprep.subr.mxu0 0.0
    %4942 = vmatpush2.msra.mxu0 0.0
    %4943 = vmatprep.subr.mxu0 0.0
    %4944 = vmatpush2.msra.mxu0 0.0
    %4945 = vmatprep.subr.mxu0 0.0
    %4946 = vmatpush2.msra.mxu0 0.0
    %4947 = vmatprep.subr.mxu0 0.0
    %4948 = vmatpush2.msra.mxu0 0.0
    %4949 = vmatprep.subr.mxu0 0.0
    %4950 = vmatpush2.msra.mxu0 0.0
    %4951 = vmatprep.subr.mxu0 0.0
    %4952 = vmatpush2.msra.mxu0 0.0
    %4953 = vmatprep.subr.mxu0 0.0
    %4954 = vmatpush2.msra.mxu0 0.0
    %4955 = vmatprep.subr.mxu0 0.0
    %4956 = vmatpush2.msra.mxu0 0.0
    %4957 = vmatprep.subr.mxu0 0.0
    %4958 = vmatpush2.msra.mxu0 0.0
    %4959 = vmatprep.subr.mxu0 0.0
    %4960 = vmatpush2.msra.mxu0 0.0
    %4961 = vmatprep.subr.mxu0 0.0
    %4962 = vmatpush2.msra.mxu0 0.0
    %4963 = vmatprep.subr.mxu0 0.0
    %4964 = vmatpush2.msra.mxu0 0.0
    %4965 = vmatprep.subr.mxu0 0.0
    %4966 = vmatpush2.msra.mxu0 0.0
    %4967 = vmatprep.mubr.f32.mxu0 0.0
    %4968 = vmatmul.mubr.f32.gmra.mxu0 %v4901
    %v4969 = vpop.f32.mrf.mxu0
    %v4970 = vadd.f32 0.0, %v4969
    %v4971 = vpop.f32.mrf.mxu0
    %4972 = vdwg.mxu0
    %4973 = vrot.lane.b32.xlu0 %v646, 64
    %v4974 = vpop.permute.xlu0 %4973
    %v4977 = vsel %vm57, %v3441, 0
    %4979 = vmatprep.subr.mxu0 0.0
    %4980 = vmatpush1.msra.mxu0 0.0
    %4981 = vmatprep.subr.mxu0 0.0
    %4982 = vmatpush1.msra.mxu0 0.0
    %4983 = vmatprep.subr.mxu0 0.0
    %4984 = vmatpush1.msra.mxu0 0.0
    %4985 = vmatprep.subr.mxu0 0.0
    %4986 = vmatpush1.msra.mxu0 0.0
    %4987 = vmatprep.subr.mxu0 0.0
    %4988 = vmatpush1.msra.mxu0 0.0
    %4989 = vmatprep.subr.mxu0 0.0
    %4990 = vmatpush1.msra.mxu0 0.0
    %4991 = vmatprep.subr.mxu0 0.0
    %4992 = vmatpush1.msra.mxu0 0.0
    %4993 = vmatprep.subr.mxu0 0.0
    %4994 = vmatpush1.msra.mxu0 0.0
    %4995 = vmatprep.subr.mxu0 0.0
    %4996 = vmatpush1.msra.mxu0 0.0
    %4997 = vmatprep.subr.mxu0 0.0
    %4998 = vmatpush1.msra.mxu0 0.0
    %4999 = vmatprep.subr.mxu0 0.0
    %5000 = vmatpush1.msra.mxu0 0.0
    %5001 = vmatprep.subr.mxu0 0.0
    %5002 = vmatpush1.msra.mxu0 0.0
    %5003 = vmatprep.subr.mxu0 0.0
    %5004 = vmatpush1.msra.mxu0 0.0
    %5005 = vmatprep.subr.mxu0 0.0
    %5006 = vmatpush1.msra.mxu0 0.0
    %5007 = vmatprep.subr.mxu0 0.0
    %5008 = vmatpush1.msra.mxu0 0.0
    %5009 = vmatprep.subr.mxu0 0.0
    %5010 = vmatpush1.msra.mxu0 %v4974
    %5011 = vmatprep.subr.mxu0 0.0
    %5012 = vmatpush2.msra.mxu0 0.0
    %5013 = vmatprep.subr.mxu0 0.0
    %5014 = vmatpush2.msra.mxu0 0.0
    %5015 = vmatprep.subr.mxu0 0.0
    %5016 = vmatpush2.msra.mxu0 0.0
    %5017 = vmatprep.subr.mxu0 0.0
    %5018 = vmatpush2.msra.mxu0 0.0
    %5019 = vmatprep.subr.mxu0 0.0
    %5020 = vmatpush2.msra.mxu0 0.0
    %5021 = vmatprep.subr.mxu0 0.0
    %5022 = vmatpush2.msra.mxu0 0.0
    %5023 = vmatprep.subr.mxu0 0.0
    %5024 = vmatpush2.msra.mxu0 0.0
    %5025 = vmatprep.subr.mxu0 0.0
    %5026 = vmatpush2.msra.mxu0 0.0
    %5027 = vmatprep.subr.mxu0 0.0
    %5028 = vmatpush2.msra.mxu0 0.0
    %5029 = vmatprep.subr.mxu0 0.0
    %5030 = vmatpush2.msra.mxu0 0.0
    %5031 = vmatprep.subr.mxu0 0.0
    %5032 = vmatpush2.msra.mxu0 0.0
    %5033 = vmatprep.subr.mxu0 0.0
    %5034 = vmatpush2.msra.mxu0 0.0
    %5035 = vmatprep.subr.mxu0 0.0
    %5036 = vmatpush2.msra.mxu0 0.0
    %5037 = vmatprep.subr.mxu0 0.0
    %5038 = vmatpush2.msra.mxu0 0.0
    %5039 = vmatprep.subr.mxu0 0.0
    %5040 = vmatpush2.msra.mxu0 0.0
    %5041 = vmatprep.subr.mxu0 0.0
    %5042 = vmatpush2.msra.mxu0 0.0
    %5043 = vmatprep.mubr.f32.mxu0 0.0
    %5044 = vmatmul.mubr.f32.gmra.mxu0 %v4977
    %v5045 = vpop.f32.mrf.mxu0
    %v5046 = vadd.f32 0.0, %v5045
    %v5047 = vpop.f32.mrf.mxu0
    %5048 = vdwg.mxu0
    %5049 = vrot.lane.b32.xlu0 %v648, 64
    %v5050 = vpop.permute.xlu0 %5049
    %v5053 = vsel %vm57, %v3442, 0
    %5055 = vmatprep.subr.mxu0 0.0
    %5056 = vmatpush1.msra.mxu0 0.0
    %5057 = vmatprep.subr.mxu0 0.0
    %5058 = vmatpush1.msra.mxu0 0.0
    %5059 = vmatprep.subr.mxu0 0.0
    %5060 = vmatpush1.msra.mxu0 0.0
    %5061 = vmatprep.subr.mxu0 0.0
    %5062 = vmatpush1.msra.mxu0 0.0
    %5063 = vmatprep.subr.mxu0 0.0
    %5064 = vmatpush1.msra.mxu0 0.0
    %5065 = vmatprep.subr.mxu0 0.0
    %5066 = vmatpush1.msra.mxu0 0.0
    %5067 = vmatprep.subr.mxu0 0.0
    %5068 = vmatpush1.msra.mxu0 0.0
    %5069 = vmatprep.subr.mxu0 0.0
    %5070 = vmatpush1.msra.mxu0 0.0
    %5071 = vmatprep.subr.mxu0 0.0
    %5072 = vmatpush1.msra.mxu0 0.0
    %5073 = vmatprep.subr.mxu0 0.0
    %5074 = vmatpush1.msra.mxu0 0.0
    %5075 = vmatprep.subr.mxu0 0.0
    %5076 = vmatpush1.msra.mxu0 0.0
    %5077 = vmatprep.subr.mxu0 0.0
    %5078 = vmatpush1.msra.mxu0 0.0
    %5079 = vmatprep.subr.mxu0 0.0
    %5080 = vmatpush1.msra.mxu0 0.0
    %5081 = vmatprep.subr.mxu0 0.0
    %5082 = vmatpush1.msra.mxu0 0.0
    %5083 = vmatprep.subr.mxu0 0.0
    %5084 = vmatpush1.msra.mxu0 0.0
    %5085 = vmatprep.subr.mxu0 0.0
    %5086 = vmatpush1.msra.mxu0 %v5050
    %5087 = vmatprep.subr.mxu0 0.0
    %5088 = vmatpush2.msra.mxu0 0.0
    %5089 = vmatprep.subr.mxu0 0.0
    %5090 = vmatpush2.msra.mxu0 0.0
    %5091 = vmatprep.subr.mxu0 0.0
    %5092 = vmatpush2.msra.mxu0 0.0
    %5093 = vmatprep.subr.mxu0 0.0
    %5094 = vmatpush2.msra.mxu0 0.0
    %5095 = vmatprep.subr.mxu0 0.0
    %5096 = vmatpush2.msra.mxu0 0.0
    %5097 = vmatprep.subr.mxu0 0.0
    %5098 = vmatpush2.msra.mxu0 0.0
    %5099 = vmatprep.subr.mxu0 0.0
    %5100 = vmatpush2.msra.mxu0 0.0
    %5101 = vmatprep.subr.mxu0 0.0
    %5102 = vmatpush2.msra.mxu0 0.0
    %5103 = vmatprep.subr.mxu0 0.0
    %5104 = vmatpush2.msra.mxu0 0.0
    %5105 = vmatprep.subr.mxu0 0.0
    %5106 = vmatpush2.msra.mxu0 0.0
    %5107 = vmatprep.subr.mxu0 0.0
    %5108 = vmatpush2.msra.mxu0 0.0
    %5109 = vmatprep.subr.mxu0 0.0
    %5110 = vmatpush2.msra.mxu0 0.0
    %5111 = vmatprep.subr.mxu0 0.0
    %5112 = vmatpush2.msra.mxu0 0.0
    %5113 = vmatprep.subr.mxu0 0.0
    %5114 = vmatpush2.msra.mxu0 0.0
    %5115 = vmatprep.subr.mxu0 0.0
    %5116 = vmatpush2.msra.mxu0 0.0
    %5117 = vmatprep.subr.mxu0 0.0
    %5118 = vmatpush2.msra.mxu0 0.0
    %5119 = vmatprep.mubr.f32.mxu0 0.0
    %5120 = vmatmul.mubr.f32.gmra.mxu0 %v5053
    %v5121 = vpop.f32.mrf.mxu0
    %v5122 = vadd.f32 0.0, %v5121
    %v5123 = vpop.f32.mrf.mxu0
    %5124 = vdwg.mxu0
    %5125 = vrot.lane.b32.xlu0 %v650, 64
    %v5126 = vpop.permute.xlu0 %5125
    %v5129 = vsel %vm57, %v3443, 0
    %5131 = vmatprep.subr.mxu0 0.0
    %5132 = vmatpush1.msra.mxu0 0.0
    %5133 = vmatprep.subr.mxu0 0.0
    %5134 = vmatpush1.msra.mxu0 0.0
    %5135 = vmatprep.subr.mxu0 0.0
    %5136 = vmatpush1.msra.mxu0 0.0
    %5137 = vmatprep.subr.mxu0 0.0
    %5138 = vmatpush1.msra.mxu0 0.0
    %5139 = vmatprep.subr.mxu0 0.0
    %5140 = vmatpush1.msra.mxu0 0.0
    %5141 = vmatprep.subr.mxu0 0.0
    %5142 = vmatpush1.msra.mxu0 0.0
    %5143 = vmatprep.subr.mxu0 0.0
    %5144 = vmatpush1.msra.mxu0 0.0
    %5145 = vmatprep.subr.mxu0 0.0
    %5146 = vmatpush1.msra.mxu0 0.0
    %5147 = vmatprep.subr.mxu0 0.0
    %5148 = vmatpush1.msra.mxu0 0.0
    %5149 = vmatprep.subr.mxu0 0.0
    %5150 = vmatpush1.msra.mxu0 0.0
    %5151 = vmatprep.subr.mxu0 0.0
    %5152 = vmatpush1.msra.mxu0 0.0
    %5153 = vmatprep.subr.mxu0 0.0
    %5154 = vmatpush1.msra.mxu0 0.0
    %5155 = vmatprep.subr.mxu0 0.0
    %5156 = vmatpush1.msra.mxu0 0.0
    %5157 = vmatprep.subr.mxu0 0.0
    %5158 = vmatpush1.msra.mxu0 0.0
    %5159 = vmatprep.subr.mxu0 0.0
    %5160 = vmatpush1.msra.mxu0 0.0
    %5161 = vmatprep.subr.mxu0 0.0
    %5162 = vmatpush1.msra.mxu0 %v5126
    %5163 = vmatprep.subr.mxu0 0.0
    %5164 = vmatpush2.msra.mxu0 0.0
    %5165 = vmatprep.subr.mxu0 0.0
    %5166 = vmatpush2.msra.mxu0 0.0
    %5167 = vmatprep.subr.mxu0 0.0
    %5168 = vmatpush2.msra.mxu0 0.0
    %5169 = vmatprep.subr.mxu0 0.0
    %5170 = vmatpush2.msra.mxu0 0.0
    %5171 = vmatprep.subr.mxu0 0.0
    %5172 = vmatpush2.msra.mxu0 0.0
    %5173 = vmatprep.subr.mxu0 0.0
    %5174 = vmatpush2.msra.mxu0 0.0
    %5175 = vmatprep.subr.mxu0 0.0
    %5176 = vmatpush2.msra.mxu0 0.0
    %5177 = vmatprep.subr.mxu0 0.0
    %5178 = vmatpush2.msra.mxu0 0.0
    %5179 = vmatprep.subr.mxu0 0.0
    %5180 = vmatpush2.msra.mxu0 0.0
    %5181 = vmatprep.subr.mxu0 0.0
    %5182 = vmatpush2.msra.mxu0 0.0
    %5183 = vmatprep.subr.mxu0 0.0
    %5184 = vmatpush2.msra.mxu0 0.0
    %5185 = vmatprep.subr.mxu0 0.0
    %5186 = vmatpush2.msra.mxu0 0.0
    %5187 = vmatprep.subr.mxu0 0.0
    %5188 = vmatpush2.msra.mxu0 0.0
    %5189 = vmatprep.subr.mxu0 0.0
    %5190 = vmatpush2.msra.mxu0 0.0
    %5191 = vmatprep.subr.mxu0 0.0
    %5192 = vmatpush2.msra.mxu0 0.0
    %5193 = vmatprep.subr.mxu0 0.0
    %5194 = vmatpush2.msra.mxu0 0.0
    %5195 = vmatprep.mubr.f32.mxu0 0.0
    %5196 = vmatmul.mubr.f32.gmra.mxu0 %v5129
    %v5197 = vpop.f32.mrf.mxu0
    %v5198 = vadd.f32 0.0, %v5197
    %v5199 = vpop.f32.mrf.mxu0
    %5200 = vdwg.mxu0
    %5201 = vrot.lane.b32.xlu0 %v652, 64
    %v5202 = vpop.permute.xlu0 %5201
    %v5205 = vsel %vm57, %v3444, 0
    %5207 = vmatprep.subr.mxu0 0.0
    %5208 = vmatpush1.msra.mxu0 0.0
    %5209 = vmatprep.subr.mxu0 0.0
    %5210 = vmatpush1.msra.mxu0 0.0
    %5211 = vmatprep.subr.mxu0 0.0
    %5212 = vmatpush1.msra.mxu0 0.0
    %5213 = vmatprep.subr.mxu0 0.0
    %5214 = vmatpush1.msra.mxu0 0.0
    %5215 = vmatprep.subr.mxu0 0.0
    %5216 = vmatpush1.msra.mxu0 0.0
    %5217 = vmatprep.subr.mxu0 0.0
    %5218 = vmatpush1.msra.mxu0 0.0
    %5219 = vmatprep.subr.mxu0 0.0
    %5220 = vmatpush1.msra.mxu0 0.0
    %5221 = vmatprep.subr.mxu0 0.0
    %5222 = vmatpush1.msra.mxu0 0.0
    %5223 = vmatprep.subr.mxu0 0.0
    %5224 = vmatpush1.msra.mxu0 0.0
    %5225 = vmatprep.subr.mxu0 0.0
    %5226 = vmatpush1.msra.mxu0 0.0
    %5227 = vmatprep.subr.mxu0 0.0
    %5228 = vmatpush1.msra.mxu0 0.0
    %5229 = vmatprep.subr.mxu0 0.0
    %5230 = vmatpush1.msra.mxu0 0.0
    %5231 = vmatprep.subr.mxu0 0.0
    %5232 = vmatpush1.msra.mxu0 0.0
    %5233 = vmatprep.subr.mxu0 0.0
    %5234 = vmatpush1.msra.mxu0 0.0
    %5235 = vmatprep.subr.mxu0 0.0
    %5236 = vmatpush1.msra.mxu0 0.0
    %5237 = vmatprep.subr.mxu0 0.0
    %5238 = vmatpush1.msra.mxu0 %v5202
    %5239 = vmatprep.subr.mxu0 0.0
    %5240 = vmatpush2.msra.mxu0 0.0
    %5241 = vmatprep.subr.mxu0 0.0
    %5242 = vmatpush2.msra.mxu0 0.0
    %5243 = vmatprep.subr.mxu0 0.0
    %5244 = vmatpush2.msra.mxu0 0.0
    %5245 = vmatprep.subr.mxu0 0.0
    %5246 = vmatpush2.msra.mxu0 0.0
    %5247 = vmatprep.subr.mxu0 0.0
    %5248 = vmatpush2.msra.mxu0 0.0
    %5249 = vmatprep.subr.mxu0 0.0
    %5250 = vmatpush2.msra.mxu0 0.0
    %5251 = vmatprep.subr.mxu0 0.0
    %5252 = vmatpush2.msra.mxu0 0.0
    %5253 = vmatprep.subr.mxu0 0.0
    %5254 = vmatpush2.msra.mxu0 0.0
    %5255 = vmatprep.subr.mxu0 0.0
    %5256 = vmatpush2.msra.mxu0 0.0
    %5257 = vmatprep.subr.mxu0 0.0
    %5258 = vmatpush2.msra.mxu0 0.0
    %5259 = vmatprep.subr.mxu0 0.0
    %5260 = vmatpush2.msra.mxu0 0.0
    %5261 = vmatprep.subr.mxu0 0.0
    %5262 = vmatpush2.msra.mxu0 0.0
    %5263 = vmatprep.subr.mxu0 0.0
    %5264 = vmatpush2.msra.mxu0 0.0
    %5265 = vmatprep.subr.mxu0 0.0
    %5266 = vmatpush2.msra.mxu0 0.0
    %5267 = vmatprep.subr.mxu0 0.0
    %5268 = vmatpush2.msra.mxu0 0.0
    %5269 = vmatprep.subr.mxu0 0.0
    %5270 = vmatpush2.msra.mxu0 0.0
    %5271 = vmatprep.mubr.f32.mxu0 0.0
    %5272 = vmatmul.mubr.f32.gmra.mxu0 %v5205
    %v5273 = vpop.f32.mrf.mxu0
    %v5274 = vadd.f32 0.0, %v5273
    %v5275 = vpop.f32.mrf.mxu0
    %5276 = vdwg.mxu0
    %5277 = vrot.lane.b32.xlu0 %v654, 64
    %v5278 = vpop.permute.xlu0 %5277
    %v5281 = vsel %vm57, %v3445, 0
    %5283 = vmatprep.subr.mxu0 0.0
    %5284 = vmatpush1.msra.mxu0 0.0
    %5285 = vmatprep.subr.mxu0 0.0
    %5286 = vmatpush1.msra.mxu0 0.0
    %5287 = vmatprep.subr.mxu0 0.0
    %5288 = vmatpush1.msra.mxu0 0.0
    %5289 = vmatprep.subr.mxu0 0.0
    %5290 = vmatpush1.msra.mxu0 0.0
    %5291 = vmatprep.subr.mxu0 0.0
    %5292 = vmatpush1.msra.mxu0 0.0
    %5293 = vmatprep.subr.mxu0 0.0
    %5294 = vmatpush1.msra.mxu0 0.0
    %5295 = vmatprep.subr.mxu0 0.0
    %5296 = vmatpush1.msra.mxu0 0.0
    %5297 = vmatprep.subr.mxu0 0.0
    %5298 = vmatpush1.msra.mxu0 0.0
    %5299 = vmatprep.subr.mxu0 0.0
    %5300 = vmatpush1.msra.mxu0 0.0
    %5301 = vmatprep.subr.mxu0 0.0
    %5302 = vmatpush1.msra.mxu0 0.0
    %5303 = vmatprep.subr.mxu0 0.0
    %5304 = vmatpush1.msra.mxu0 0.0
    %5305 = vmatprep.subr.mxu0 0.0
    %5306 = vmatpush1.msra.mxu0 0.0
    %5307 = vmatprep.subr.mxu0 0.0
    %5308 = vmatpush1.msra.mxu0 0.0
    %5309 = vmatprep.subr.mxu0 0.0
    %5310 = vmatpush1.msra.mxu0 0.0
    %5311 = vmatprep.subr.mxu0 0.0
    %5312 = vmatpush1.msra.mxu0 0.0
    %5313 = vmatprep.subr.mxu0 0.0
    %5314 = vmatpush1.msra.mxu0 %v5278
    %5315 = vmatprep.subr.mxu0 0.0
    %5316 = vmatpush2.msra.mxu0 0.0
    %5317 = vmatprep.subr.mxu0 0.0
    %5318 = vmatpush2.msra.mxu0 0.0
    %5319 = vmatprep.subr.mxu0 0.0
    %5320 = vmatpush2.msra.mxu0 0.0
    %5321 = vmatprep.subr.mxu0 0.0
    %5322 = vmatpush2.msra.mxu0 0.0
    %5323 = vmatprep.subr.mxu0 0.0
    %5324 = vmatpush2.msra.mxu0 0.0
    %5325 = vmatprep.subr.mxu0 0.0
    %5326 = vmatpush2.msra.mxu0 0.0
    %5327 = vmatprep.subr.mxu0 0.0
    %5328 = vmatpush2.msra.mxu0 0.0
    %5329 = vmatprep.subr.mxu0 0.0
    %5330 = vmatpush2.msra.mxu0 0.0
    %5331 = vmatprep.subr.mxu0 0.0
    %5332 = vmatpush2.msra.mxu0 0.0
    %5333 = vmatprep.subr.mxu0 0.0
    %5334 = vmatpush2.msra.mxu0 0.0
    %5335 = vmatprep.subr.mxu0 0.0
    %5336 = vmatpush2.msra.mxu0 0.0
    %5337 = vmatprep.subr.mxu0 0.0
    %5338 = vmatpush2.msra.mxu0 0.0
    %5339 = vmatprep.subr.mxu0 0.0
    %5340 = vmatpush2.msra.mxu0 0.0
    %5341 = vmatprep.subr.mxu0 0.0
    %5342 = vmatpush2.msra.mxu0 0.0
    %5343 = vmatprep.subr.mxu0 0.0
    %5344 = vmatpush2.msra.mxu0 0.0
    %5345 = vmatprep.subr.mxu0 0.0
    %5346 = vmatpush2.msra.mxu0 0.0
    %5347 = vmatprep.mubr.f32.mxu0 0.0
    %5348 = vmatmul.mubr.f32.gmra.mxu0 %v5281
    %v5349 = vpop.f32.mrf.mxu0
    %v5350 = vadd.f32 0.0, %v5349
    %v5351 = vpop.f32.mrf.mxu0
    %5352 = vdwg.mxu0
    %5353 = vrot.lane.b32.xlu0 %v656, 64
    %v5354 = vpop.permute.xlu0 %5353
    %v5357 = vsel %vm57, %v3446, 0
    %5359 = vmatprep.subr.mxu0 0.0
    %5360 = vmatpush1.msra.mxu0 0.0
    %5361 = vmatprep.subr.mxu0 0.0
    %5362 = vmatpush1.msra.mxu0 0.0
    %5363 = vmatprep.subr.mxu0 0.0
    %5364 = vmatpush1.msra.mxu0 0.0
    %5365 = vmatprep.subr.mxu0 0.0
    %5366 = vmatpush1.msra.mxu0 0.0
    %5367 = vmatprep.subr.mxu0 0.0
    %5368 = vmatpush1.msra.mxu0 0.0
    %5369 = vmatprep.subr.mxu0 0.0
    %5370 = vmatpush1.msra.mxu0 0.0
    %5371 = vmatprep.subr.mxu0 0.0
    %5372 = vmatpush1.msra.mxu0 0.0
    %5373 = vmatprep.subr.mxu0 0.0
    %5374 = vmatpush1.msra.mxu0 0.0
    %5375 = vmatprep.subr.mxu0 0.0
    %5376 = vmatpush1.msra.mxu0 0.0
    %5377 = vmatprep.subr.mxu0 0.0
    %5378 = vmatpush1.msra.mxu0 0.0
    %5379 = vmatprep.subr.mxu0 0.0
    %5380 = vmatpush1.msra.mxu0 0.0
    %5381 = vmatprep.subr.mxu0 0.0
    %5382 = vmatpush1.msra.mxu0 0.0
    %5383 = vmatprep.subr.mxu0 0.0
    %5384 = vmatpush1.msra.mxu0 0.0
    %5385 = vmatprep.subr.mxu0 0.0
    %5386 = vmatpush1.msra.mxu0 0.0
    %5387 = vmatprep.subr.mxu0 0.0
    %5388 = vmatpush1.msra.mxu0 0.0
    %5389 = vmatprep.subr.mxu0 0.0
    %5390 = vmatpush1.msra.mxu0 %v5354
    %5391 = vmatprep.subr.mxu0 0.0
    %5392 = vmatpush2.msra.mxu0 0.0
    %5393 = vmatprep.subr.mxu0 0.0
    %5394 = vmatpush2.msra.mxu0 0.0
    %5395 = vmatprep.subr.mxu0 0.0
    %5396 = vmatpush2.msra.mxu0 0.0
    %5397 = vmatprep.subr.mxu0 0.0
    %5398 = vmatpush2.msra.mxu0 0.0
    %5399 = vmatprep.subr.mxu0 0.0
    %5400 = vmatpush2.msra.mxu0 0.0
    %5401 = vmatprep.subr.mxu0 0.0
    %5402 = vmatpush2.msra.mxu0 0.0
    %5403 = vmatprep.subr.mxu0 0.0
    %5404 = vmatpush2.msra.mxu0 0.0
    %5405 = vmatprep.subr.mxu0 0.0
    %5406 = vmatpush2.msra.mxu0 0.0
    %5407 = vmatprep.subr.mxu0 0.0
    %5408 = vmatpush2.msra.mxu0 0.0
    %5409 = vmatprep.subr.mxu0 0.0
    %5410 = vmatpush2.msra.mxu0 0.0
    %5411 = vmatprep.subr.mxu0 0.0
    %5412 = vmatpush2.msra.mxu0 0.0
    %5413 = vmatprep.subr.mxu0 0.0
    %5414 = vmatpush2.msra.mxu0 0.0
    %5415 = vmatprep.subr.mxu0 0.0
    %5416 = vmatpush2.msra.mxu0 0.0
    %5417 = vmatprep.subr.mxu0 0.0
    %5418 = vmatpush2.msra.mxu0 0.0
    %5419 = vmatprep.subr.mxu0 0.0
    %5420 = vmatpush2.msra.mxu0 0.0
    %5421 = vmatprep.subr.mxu0 0.0
    %5422 = vmatpush2.msra.mxu0 0.0
    %5423 = vmatprep.mubr.f32.mxu0 0.0
    %5424 = vmatmul.mubr.f32.gmra.mxu0 %v5357
    %v5425 = vpop.f32.mrf.mxu0
    %v5426 = vadd.f32 0.0, %v5425
    %v5427 = vpop.f32.mrf.mxu0
    %5428 = vdwg.mxu0
    %5429 = vrot.lane.b32.xlu0 %v658, 64
    %v5430 = vpop.permute.xlu0 %5429
    %v5433 = vsel %vm57, %v3447, 0
    %5435 = vmatprep.subr.mxu0 0.0
    %5436 = vmatpush1.msra.mxu0 0.0
    %5437 = vmatprep.subr.mxu0 0.0
    %5438 = vmatpush1.msra.mxu0 0.0
    %5439 = vmatprep.subr.mxu0 0.0
    %5440 = vmatpush1.msra.mxu0 0.0
    %5441 = vmatprep.subr.mxu0 0.0
    %5442 = vmatpush1.msra.mxu0 0.0
    %5443 = vmatprep.subr.mxu0 0.0
    %5444 = vmatpush1.msra.mxu0 0.0
    %5445 = vmatprep.subr.mxu0 0.0
    %5446 = vmatpush1.msra.mxu0 0.0
    %5447 = vmatprep.subr.mxu0 0.0
    %5448 = vmatpush1.msra.mxu0 0.0
    %5449 = vmatprep.subr.mxu0 0.0
    %5450 = vmatpush1.msra.mxu0 0.0
    %5451 = vmatprep.subr.mxu0 0.0
    %5452 = vmatpush1.msra.mxu0 0.0
    %5453 = vmatprep.subr.mxu0 0.0
    %5454 = vmatpush1.msra.mxu0 0.0
    %5455 = vmatprep.subr.mxu0 0.0
    %5456 = vmatpush1.msra.mxu0 0.0
    %5457 = vmatprep.subr.mxu0 0.0
    %5458 = vmatpush1.msra.mxu0 0.0
    %5459 = vmatprep.subr.mxu0 0.0
    %5460 = vmatpush1.msra.mxu0 0.0
    %5461 = vmatprep.subr.mxu0 0.0
    %5462 = vmatpush1.msra.mxu0 0.0
    %5463 = vmatprep.subr.mxu0 0.0
    %5464 = vmatpush1.msra.mxu0 0.0
    %5465 = vmatprep.subr.mxu0 0.0
    %5466 = vmatpush1.msra.mxu0 %v5430
    %5467 = vmatprep.subr.mxu0 0.0
    %5468 = vmatpush2.msra.mxu0 0.0
    %5469 = vmatprep.subr.mxu0 0.0
    %5470 = vmatpush2.msra.mxu0 0.0
    %5471 = vmatprep.subr.mxu0 0.0
    %5472 = vmatpush2.msra.mxu0 0.0
    %5473 = vmatprep.subr.mxu0 0.0
    %5474 = vmatpush2.msra.mxu0 0.0
    %5475 = vmatprep.subr.mxu0 0.0
    %5476 = vmatpush2.msra.mxu0 0.0
    %5477 = vmatprep.subr.mxu0 0.0
    %5478 = vmatpush2.msra.mxu0 0.0
    %5479 = vmatprep.subr.mxu0 0.0
    %5480 = vmatpush2.msra.mxu0 0.0
    %5481 = vmatprep.subr.mxu0 0.0
    %5482 = vmatpush2.msra.mxu0 0.0
    %5483 = vmatprep.subr.mxu0 0.0
    %5484 = vmatpush2.msra.mxu0 0.0
    %5485 = vmatprep.subr.mxu0 0.0
    %5486 = vmatpush2.msra.mxu0 0.0
    %5487 = vmatprep.subr.mxu0 0.0
    %5488 = vmatpush2.msra.mxu0 0.0
    %5489 = vmatprep.subr.mxu0 0.0
    %5490 = vmatpush2.msra.mxu0 0.0
    %5491 = vmatprep.subr.mxu0 0.0
    %5492 = vmatpush2.msra.mxu0 0.0
    %5493 = vmatprep.subr.mxu0 0.0
    %5494 = vmatpush2.msra.mxu0 0.0
    %5495 = vmatprep.subr.mxu0 0.0
    %5496 = vmatpush2.msra.mxu0 0.0
    %5497 = vmatprep.subr.mxu0 0.0
    %5498 = vmatpush2.msra.mxu0 0.0
    %5499 = vmatprep.mubr.f32.mxu0 0.0
    %5500 = vmatmul.mubr.f32.gmra.mxu0 %v5433
    %v5501 = vpop.f32.mrf.mxu0
    %v5502 = vadd.f32 0.0, %v5501
    %v5503 = vpop.f32.mrf.mxu0
    %5504 = vdwg.mxu0
    %5505 = vrot.lane.b32.xlu0 %v660, 64
    %v5506 = vpop.permute.xlu0 %5505
    %v5509 = vsel %vm57, %v3448, 0
    %5511 = vmatprep.subr.mxu0 0.0
    %5512 = vmatpush1.msra.mxu0 0.0
    %5513 = vmatprep.subr.mxu0 0.0
    %5514 = vmatpush1.msra.mxu0 0.0
    %5515 = vmatprep.subr.mxu0 0.0
    %5516 = vmatpush1.msra.mxu0 0.0
    %5517 = vmatprep.subr.mxu0 0.0
    %5518 = vmatpush1.msra.mxu0 0.0
    %5519 = vmatprep.subr.mxu0 0.0
    %5520 = vmatpush1.msra.mxu0 0.0
    %5521 = vmatprep.subr.mxu0 0.0
    %5522 = vmatpush1.msra.mxu0 0.0
    %5523 = vmatprep.subr.mxu0 0.0
    %5524 = vmatpush1.msra.mxu0 0.0
    %5525 = vmatprep.subr.mxu0 0.0
    %5526 = vmatpush1.msra.mxu0 0.0
    %5527 = vmatprep.subr.mxu0 0.0
    %5528 = vmatpush1.msra.mxu0 0.0
    %5529 = vmatprep.subr.mxu0 0.0
    %5530 = vmatpush1.msra.mxu0 0.0
    %5531 = vmatprep.subr.mxu0 0.0
    %5532 = vmatpush1.msra.mxu0 0.0
    %5533 = vmatprep.subr.mxu0 0.0
    %5534 = vmatpush1.msra.mxu0 0.0
    %5535 = vmatprep.subr.mxu0 0.0
    %5536 = vmatpush1.msra.mxu0 0.0
    %5537 = vmatprep.subr.mxu0 0.0
    %5538 = vmatpush1.msra.mxu0 0.0
    %5539 = vmatprep.subr.mxu0 0.0
    %5540 = vmatpush1.msra.mxu0 0.0
    %5541 = vmatprep.subr.mxu0 0.0
    %5542 = vmatpush1.msra.mxu0 %v5506
    %5543 = vmatprep.subr.mxu0 0.0
    %5544 = vmatpush2.msra.mxu0 0.0
    %5545 = vmatprep.subr.mxu0 0.0
    %5546 = vmatpush2.msra.mxu0 0.0
    %5547 = vmatprep.subr.mxu0 0.0
    %5548 = vmatpush2.msra.mxu0 0.0
    %5549 = vmatprep.subr.mxu0 0.0
    %5550 = vmatpush2.msra.mxu0 0.0
    %5551 = vmatprep.subr.mxu0 0.0
    %5552 = vmatpush2.msra.mxu0 0.0
    %5553 = vmatprep.subr.mxu0 0.0
    %5554 = vmatpush2.msra.mxu0 0.0
    %5555 = vmatprep.subr.mxu0 0.0
    %5556 = vmatpush2.msra.mxu0 0.0
    %5557 = vmatprep.subr.mxu0 0.0
    %5558 = vmatpush2.msra.mxu0 0.0
    %5559 = vmatprep.subr.mxu0 0.0
    %5560 = vmatpush2.msra.mxu0 0.0
    %5561 = vmatprep.subr.mxu0 0.0
    %5562 = vmatpush2.msra.mxu0 0.0
    %5563 = vmatprep.subr.mxu0 0.0
    %5564 = vmatpush2.msra.mxu0 0.0
    %5565 = vmatprep.subr.mxu0 0.0
    %5566 = vmatpush2.msra.mxu0 0.0
    %5567 = vmatprep.subr.mxu0 0.0
    %5568 = vmatpush2.msra.mxu0 0.0
    %5569 = vmatprep.subr.mxu0 0.0
    %5570 = vmatpush2.msra.mxu0 0.0
    %5571 = vmatprep.subr.mxu0 0.0
    %5572 = vmatpush2.msra.mxu0 0.0
    %5573 = vmatprep.subr.mxu0 0.0
    %5574 = vmatpush2.msra.mxu0 0.0
    %5575 = vmatprep.mubr.f32.mxu0 0.0
    %5576 = vmatmul.mubr.f32.gmra.mxu0 %v5509
    %v5577 = vpop.f32.mrf.mxu0
    %v5578 = vadd.f32 0.0, %v5577
    %v5579 = vpop.f32.mrf.mxu0
    %5580 = vdwg.mxu0
    %5581 = vrot.lane.b32.xlu0 %v662, 64
    %v5582 = vpop.permute.xlu0 %5581
    %v5585 = vsel %vm57, %v3449, 0
    %5587 = vmatprep.subr.mxu0 0.0
    %5588 = vmatpush1.msra.mxu0 0.0
    %5589 = vmatprep.subr.mxu0 0.0
    %5590 = vmatpush1.msra.mxu0 0.0
    %5591 = vmatprep.subr.mxu0 0.0
    %5592 = vmatpush1.msra.mxu0 0.0
    %5593 = vmatprep.subr.mxu0 0.0
    %5594 = vmatpush1.msra.mxu0 0.0
    %5595 = vmatprep.subr.mxu0 0.0
    %5596 = vmatpush1.msra.mxu0 0.0
    %5597 = vmatprep.subr.mxu0 0.0
    %5598 = vmatpush1.msra.mxu0 0.0
    %5599 = vmatprep.subr.mxu0 0.0
    %5600 = vmatpush1.msra.mxu0 0.0
    %5601 = vmatprep.subr.mxu0 0.0
    %5602 = vmatpush1.msra.mxu0 0.0
    %5603 = vmatprep.subr.mxu0 0.0
    %5604 = vmatpush1.msra.mxu0 0.0
    %5605 = vmatprep.subr.mxu0 0.0
    %5606 = vmatpush1.msra.mxu0 0.0
    %5607 = vmatprep.subr.mxu0 0.0
    %5608 = vmatpush1.msra.mxu0 0.0
    %5609 = vmatprep.subr.mxu0 0.0
    %5610 = vmatpush1.msra.mxu0 0.0
    %5611 = vmatprep.subr.mxu0 0.0
    %5612 = vmatpush1.msra.mxu0 0.0
    %5613 = vmatprep.subr.mxu0 0.0
    %5614 = vmatpush1.msra.mxu0 0.0
    %5615 = vmatprep.subr.mxu0 0.0
    %5616 = vmatpush1.msra.mxu0 0.0
    %5617 = vmatprep.subr.mxu0 0.0
    %5618 = vmatpush1.msra.mxu0 %v5582
    %5619 = vmatprep.subr.mxu0 0.0
    %5620 = vmatpush2.msra.mxu0 0.0
    %5621 = vmatprep.subr.mxu0 0.0
    %5622 = vmatpush2.msra.mxu0 0.0
    %5623 = vmatprep.subr.mxu0 0.0
    %5624 = vmatpush2.msra.mxu0 0.0
    %5625 = vmatprep.subr.mxu0 0.0
    %5626 = vmatpush2.msra.mxu0 0.0
    %5627 = vmatprep.subr.mxu0 0.0
    %5628 = vmatpush2.msra.mxu0 0.0
    %5629 = vmatprep.subr.mxu0 0.0
    %5630 = vmatpush2.msra.mxu0 0.0
    %5631 = vmatprep.subr.mxu0 0.0
    %5632 = vmatpush2.msra.mxu0 0.0
    %5633 = vmatprep.subr.mxu0 0.0
    %5634 = vmatpush2.msra.mxu0 0.0
    %5635 = vmatprep.subr.mxu0 0.0
    %5636 = vmatpush2.msra.mxu0 0.0
    %5637 = vmatprep.subr.mxu0 0.0
    %5638 = vmatpush2.msra.mxu0 0.0
    %5639 = vmatprep.subr.mxu0 0.0
    %5640 = vmatpush2.msra.mxu0 0.0
    %5641 = vmatprep.subr.mxu0 0.0
    %5642 = vmatpush2.msra.mxu0 0.0
    %5643 = vmatprep.subr.mxu0 0.0
    %5644 = vmatpush2.msra.mxu0 0.0
    %5645 = vmatprep.subr.mxu0 0.0
    %5646 = vmatpush2.msra.mxu0 0.0
    %5647 = vmatprep.subr.mxu0 0.0
    %5648 = vmatpush2.msra.mxu0 0.0
    %5649 = vmatprep.subr.mxu0 0.0
    %5650 = vmatpush2.msra.mxu0 0.0
    %5651 = vmatprep.mubr.f32.mxu0 0.0
    %5652 = vmatmul.mubr.f32.gmra.mxu0 %v5585
    %v5653 = vpop.f32.mrf.mxu0
    %v5654 = vadd.f32 0.0, %v5653
    %v5655 = vpop.f32.mrf.mxu0
    %5656 = vdwg.mxu0
    %5657 = vrot.lane.b32.xlu0 %v664, 64
    %v5658 = vpop.permute.xlu0 %5657
    %v5661 = vsel %vm57, %v3450, 0
    %5663 = vmatprep.subr.mxu0 0.0
    %5664 = vmatpush1.msra.mxu0 0.0
    %5665 = vmatprep.subr.mxu0 0.0
    %5666 = vmatpush1.msra.mxu0 0.0
    %5667 = vmatprep.subr.mxu0 0.0
    %5668 = vmatpush1.msra.mxu0 0.0
    %5669 = vmatprep.subr.mxu0 0.0
    %5670 = vmatpush1.msra.mxu0 0.0
    %5671 = vmatprep.subr.mxu0 0.0
    %5672 = vmatpush1.msra.mxu0 0.0
    %5673 = vmatprep.subr.mxu0 0.0
    %5674 = vmatpush1.msra.mxu0 0.0
    %5675 = vmatprep.subr.mxu0 0.0
    %5676 = vmatpush1.msra.mxu0 0.0
    %5677 = vmatprep.subr.mxu0 0.0
    %5678 = vmatpush1.msra.mxu0 0.0
    %5679 = vmatprep.subr.mxu0 0.0
    %5680 = vmatpush1.msra.mxu0 0.0
    %5681 = vmatprep.subr.mxu0 0.0
    %5682 = vmatpush1.msra.mxu0 0.0
    %5683 = vmatprep.subr.mxu0 0.0
    %5684 = vmatpush1.msra.mxu0 0.0
    %5685 = vmatprep.subr.mxu0 0.0
    %5686 = vmatpush1.msra.mxu0 0.0
    %5687 = vmatprep.subr.mxu0 0.0
    %5688 = vmatpush1.msra.mxu0 0.0
    %5689 = vmatprep.subr.mxu0 0.0
    %5690 = vmatpush1.msra.mxu0 0.0
    %5691 = vmatprep.subr.mxu0 0.0
    %5692 = vmatpush1.msra.mxu0 0.0
    %5693 = vmatprep.subr.mxu0 0.0
    %5694 = vmatpush1.msra.mxu0 %v5658
    %5695 = vmatprep.subr.mxu0 0.0
    %5696 = vmatpush2.msra.mxu0 0.0
    %5697 = vmatprep.subr.mxu0 0.0
    %5698 = vmatpush2.msra.mxu0 0.0
    %5699 = vmatprep.subr.mxu0 0.0
    %5700 = vmatpush2.msra.mxu0 0.0
    %5701 = vmatprep.subr.mxu0 0.0
    %5702 = vmatpush2.msra.mxu0 0.0
    %5703 = vmatprep.subr.mxu0 0.0
    %5704 = vmatpush2.msra.mxu0 0.0
    %5705 = vmatprep.subr.mxu0 0.0
    %5706 = vmatpush2.msra.mxu0 0.0
    %5707 = vmatprep.subr.mxu0 0.0
    %5708 = vmatpush2.msra.mxu0 0.0
    %5709 = vmatprep.subr.mxu0 0.0
    %5710 = vmatpush2.msra.mxu0 0.0
    %5711 = vmatprep.subr.mxu0 0.0
    %5712 = vmatpush2.msra.mxu0 0.0
    %5713 = vmatprep.subr.mxu0 0.0
    %5714 = vmatpush2.msra.mxu0 0.0
    %5715 = vmatprep.subr.mxu0 0.0
    %5716 = vmatpush2.msra.mxu0 0.0
    %5717 = vmatprep.subr.mxu0 0.0
    %5718 = vmatpush2.msra.mxu0 0.0
    %5719 = vmatprep.subr.mxu0 0.0
    %5720 = vmatpush2.msra.mxu0 0.0
    %5721 = vmatprep.subr.mxu0 0.0
    %5722 = vmatpush2.msra.mxu0 0.0
    %5723 = vmatprep.subr.mxu0 0.0
    %5724 = vmatpush2.msra.mxu0 0.0
    %5725 = vmatprep.subr.mxu0 0.0
    %5726 = vmatpush2.msra.mxu0 0.0
    %5727 = vmatprep.mubr.f32.mxu0 0.0
    %5728 = vmatmul.mubr.f32.gmra.mxu0 %v5661
    %v5729 = vpop.f32.mrf.mxu0
    %v5730 = vadd.f32 0.0, %v5729
    %v5731 = vpop.f32.mrf.mxu0
    %5732 = vdwg.mxu0
    %5733 = vrot.lane.b32.xlu0 %v666, 64
    %v5734 = vpop.permute.xlu0 %5733
    %v5737 = vsel %vm57, %v3451, 0
    %5739 = vmatprep.subr.mxu0 0.0
    %5740 = vmatpush1.msra.mxu0 0.0
    %5741 = vmatprep.subr.mxu0 0.0
    %5742 = vmatpush1.msra.mxu0 0.0
    %5743 = vmatprep.subr.mxu0 0.0
    %5744 = vmatpush1.msra.mxu0 0.0
    %5745 = vmatprep.subr.mxu0 0.0
    %5746 = vmatpush1.msra.mxu0 0.0
    %5747 = vmatprep.subr.mxu0 0.0
    %5748 = vmatpush1.msra.mxu0 0.0
    %5749 = vmatprep.subr.mxu0 0.0
    %5750 = vmatpush1.msra.mxu0 0.0
    %5751 = vmatprep.subr.mxu0 0.0
    %5752 = vmatpush1.msra.mxu0 0.0
    %5753 = vmatprep.subr.mxu0 0.0
    %5754 = vmatpush1.msra.mxu0 0.0
    %5755 = vmatprep.subr.mxu0 0.0
    %5756 = vmatpush1.msra.mxu0 0.0
    %5757 = vmatprep.subr.mxu0 0.0
    %5758 = vmatpush1.msra.mxu0 0.0
    %5759 = vmatprep.subr.mxu0 0.0
    %5760 = vmatpush1.msra.mxu0 0.0
    %5761 = vmatprep.subr.mxu0 0.0
    %5762 = vmatpush1.msra.mxu0 0.0
    %5763 = vmatprep.subr.mxu0 0.0
    %5764 = vmatpush1.msra.mxu0 0.0
    %5765 = vmatprep.subr.mxu0 0.0
    %5766 = vmatpush1.msra.mxu0 0.0
    %5767 = vmatprep.subr.mxu0 0.0
    %5768 = vmatpush1.msra.mxu0 0.0
    %5769 = vmatprep.subr.mxu0 0.0
    %5770 = vmatpush1.msra.mxu0 %v5734
    %5771 = vmatprep.subr.mxu0 0.0
    %5772 = vmatpush2.msra.mxu0 0.0
    %5773 = vmatprep.subr.mxu0 0.0
    %5774 = vmatpush2.msra.mxu0 0.0
    %5775 = vmatprep.subr.mxu0 0.0
    %5776 = vmatpush2.msra.mxu0 0.0
    %5777 = vmatprep.subr.mxu0 0.0
    %5778 = vmatpush2.msra.mxu0 0.0
    %5779 = vmatprep.subr.mxu0 0.0
    %5780 = vmatpush2.msra.mxu0 0.0
    %5781 = vmatprep.subr.mxu0 0.0
    %5782 = vmatpush2.msra.mxu0 0.0
    %5783 = vmatprep.subr.mxu0 0.0
    %5784 = vmatpush2.msra.mxu0 0.0
    %5785 = vmatprep.subr.mxu0 0.0
    %5786 = vmatpush2.msra.mxu0 0.0
    %5787 = vmatprep.subr.mxu0 0.0
    %5788 = vmatpush2.msra.mxu0 0.0
    %5789 = vmatprep.subr.mxu0 0.0
    %5790 = vmatpush2.msra.mxu0 0.0
    %5791 = vmatprep.subr.mxu0 0.0
    %5792 = vmatpush2.msra.mxu0 0.0
    %5793 = vmatprep.subr.mxu0 0.0
    %5794 = vmatpush2.msra.mxu0 0.0
    %5795 = vmatprep.subr.mxu0 0.0
    %5796 = vmatpush2.msra.mxu0 0.0
    %5797 = vmatprep.subr.mxu0 0.0
    %5798 = vmatpush2.msra.mxu0 0.0
    %5799 = vmatprep.subr.mxu0 0.0
    %5800 = vmatpush2.msra.mxu0 0.0
    %5801 = vmatprep.subr.mxu0 0.0
    %5802 = vmatpush2.msra.mxu0 0.0
    %5803 = vmatprep.mubr.f32.mxu0 0.0
    %5804 = vmatmul.mubr.f32.gmra.mxu0 %v5737
    %v5805 = vpop.f32.mrf.mxu0
    %v5806 = vadd.f32 0.0, %v5805
    %v5807 = vpop.f32.mrf.mxu0
    %5808 = vdwg.mxu0
    %5809 = vrot.lane.b32.xlu0 %v668, 64
    %v5810 = vpop.permute.xlu0 %5809
    %v5813 = vsel %vm57, %v3452, 0
    %5815 = vmatprep.subr.mxu0 0.0
    %5816 = vmatpush1.msra.mxu0 0.0
    %5817 = vmatprep.subr.mxu0 0.0
    %5818 = vmatpush1.msra.mxu0 0.0
    %5819 = vmatprep.subr.mxu0 0.0
    %5820 = vmatpush1.msra.mxu0 0.0
    %5821 = vmatprep.subr.mxu0 0.0
    %5822 = vmatpush1.msra.mxu0 0.0
    %5823 = vmatprep.subr.mxu0 0.0
    %5824 = vmatpush1.msra.mxu0 0.0
    %5825 = vmatprep.subr.mxu0 0.0
    %5826 = vmatpush1.msra.mxu0 0.0
    %5827 = vmatprep.subr.mxu0 0.0
    %5828 = vmatpush1.msra.mxu0 0.0
    %5829 = vmatprep.subr.mxu0 0.0
    %5830 = vmatpush1.msra.mxu0 0.0
    %5831 = vmatprep.subr.mxu0 0.0
    %5832 = vmatpush1.msra.mxu0 0.0
    %5833 = vmatprep.subr.mxu0 0.0
    %5834 = vmatpush1.msra.mxu0 0.0
    %5835 = vmatprep.subr.mxu0 0.0
    %5836 = vmatpush1.msra.mxu0 0.0
    %5837 = vmatprep.subr.mxu0 0.0
    %5838 = vmatpush1.msra.mxu0 0.0
    %5839 = vmatprep.subr.mxu0 0.0
    %5840 = vmatpush1.msra.mxu0 0.0
    %5841 = vmatprep.subr.mxu0 0.0
    %5842 = vmatpush1.msra.mxu0 0.0
    %5843 = vmatprep.subr.mxu0 0.0
    %5844 = vmatpush1.msra.mxu0 0.0
    %5845 = vmatprep.subr.mxu0 0.0
    %5846 = vmatpush1.msra.mxu0 %v5810
    %5847 = vmatprep.subr.mxu0 0.0
    %5848 = vmatpush2.msra.mxu0 0.0
    %5849 = vmatprep.subr.mxu0 0.0
    %5850 = vmatpush2.msra.mxu0 0.0
    %5851 = vmatprep.subr.mxu0 0.0
    %5852 = vmatpush2.msra.mxu0 0.0
    %5853 = vmatprep.subr.mxu0 0.0
    %5854 = vmatpush2.msra.mxu0 0.0
    %5855 = vmatprep.subr.mxu0 0.0
    %5856 = vmatpush2.msra.mxu0 0.0
    %5857 = vmatprep.subr.mxu0 0.0
    %5858 = vmatpush2.msra.mxu0 0.0
    %5859 = vmatprep.subr.mxu0 0.0
    %5860 = vmatpush2.msra.mxu0 0.0
    %5861 = vmatprep.subr.mxu0 0.0
    %5862 = vmatpush2.msra.mxu0 0.0
    %5863 = vmatprep.subr.mxu0 0.0
    %5864 = vmatpush2.msra.mxu0 0.0
    %5865 = vmatprep.subr.mxu0 0.0
    %5866 = vmatpush2.msra.mxu0 0.0
    %5867 = vmatprep.subr.mxu0 0.0
    %5868 = vmatpush2.msra.mxu0 0.0
    %5869 = vmatprep.subr.mxu0 0.0
    %5870 = vmatpush2.msra.mxu0 0.0
    %5871 = vmatprep.subr.mxu0 0.0
    %5872 = vmatpush2.msra.mxu0 0.0
    %5873 = vmatprep.subr.mxu0 0.0
    %5874 = vmatpush2.msra.mxu0 0.0
    %5875 = vmatprep.subr.mxu0 0.0
    %5876 = vmatpush2.msra.mxu0 0.0
    %5877 = vmatprep.subr.mxu0 0.0
    %5878 = vmatpush2.msra.mxu0 0.0
    %5879 = vmatprep.mubr.f32.mxu0 0.0
    %5880 = vmatmul.mubr.f32.gmra.mxu0 %v5813
    %v5881 = vpop.f32.mrf.mxu0
    %v5882 = vadd.f32 0.0, %v5881
    %v5883 = vpop.f32.mrf.mxu0
    %5884 = vdwg.mxu0
    %5893 = vrot.lane.b32.xlu0 %v4134, 8
    %v5894 = vpop.permute.xlu0 %5893
    %5895 = vrot.lane.b32.xlu0 %v4210, 8
    %v5896 = vpop.permute.xlu0 %5895
    %5897 = vrot.lane.b32.xlu0 %v4286, 8
    %v5898 = vpop.permute.xlu0 %5897
    %5899 = vrot.lane.b32.xlu0 %v4362, 8
    %v5900 = vpop.permute.xlu0 %5899
    %5901 = vrot.lane.b32.xlu0 %v4438, 8
    %v5902 = vpop.permute.xlu0 %5901
    %5903 = vrot.lane.b32.xlu0 %v4514, 8
    %v5904 = vpop.permute.xlu0 %5903
    %5905 = vrot.lane.b32.xlu0 %v4590, 8
    %v5906 = vpop.permute.xlu0 %5905
    %5907 = vrot.lane.b32.xlu0 %v4666, 8
    %v5908 = vpop.permute.xlu0 %5907
    %5925 = vrot.lane.b32.xlu0 %v4742, 16
    %v5926 = vpop.permute.xlu0 %5925
    %5927 = vrot.lane.b32.xlu0 %v4818, 16
    %v5928 = vpop.permute.xlu0 %5927
    %5929 = vrot.lane.b32.xlu0 %v4894, 16
    %v5930 = vpop.permute.xlu0 %5929
    %5931 = vrot.lane.b32.xlu0 %v4970, 16
    %v5932 = vpop.permute.xlu0 %5931
    %5933 = vrot.lane.b32.xlu0 %v5046, 16
    %v5934 = vpop.permute.xlu0 %5933
    %5935 = vrot.lane.b32.xlu0 %v5122, 16
    %v5936 = vpop.permute.xlu0 %5935
    %5937 = vrot.lane.b32.xlu0 %v5198, 16
    %v5938 = vpop.permute.xlu0 %5937
    %5939 = vrot.lane.b32.xlu0 %v5274, 16
    %v5940 = vpop.permute.xlu0 %5939
    %5957 = vrot.lane.b32.xlu0 %v5350, 24
    %v5958 = vpop.permute.xlu0 %5957
    %5959 = vrot.lane.b32.xlu0 %v5426, 24
    %v5960 = vpop.permute.xlu0 %5959
    %5961 = vrot.lane.b32.xlu0 %v5502, 24
    %v5962 = vpop.permute.xlu0 %5961
    %5963 = vrot.lane.b32.xlu0 %v5578, 24
    %v5964 = vpop.permute.xlu0 %5963
    %5965 = vrot.lane.b32.xlu0 %v5654, 24
    %v5966 = vpop.permute.xlu0 %5965
    %5967 = vrot.lane.b32.xlu0 %v5730, 24
    %v5968 = vpop.permute.xlu0 %5967
    %5969 = vrot.lane.b32.xlu0 %v5806, 24
    %v5970 = vpop.permute.xlu0 %5969
    %5971 = vrot.lane.b32.xlu0 %v5882, 24
    %v5972 = vpop.permute.xlu0 %5971
    %v5981 = vsel %vm57, %v3526, %v5894
    %v5982 = vsel %vm57, %v3602, %v5896
    %v5983 = vsel %vm57, %v3678, %v5898
    %v5984 = vsel %vm57, %v3754, %v5900
    %v5985 = vsel %vm57, %v3830, %v5902
    %v5986 = vsel %vm57, %v3906, %v5904
    %v5987 = vsel %vm57, %v3982, %v5906
    %v5988 = vsel %vm57, %v4058, %v5908
    %v5989 = vsel %vm132, %v5981, %v5926
    %v5990 = vsel %vm132, %v5982, %v5928
    %v5991 = vsel %vm132, %v5983, %v5930
    %v5992 = vsel %vm132, %v5984, %v5932
    %v5993 = vsel %vm132, %v5985, %v5934
    %v5994 = vsel %vm132, %v5986, %v5936
    %v5995 = vsel %vm132, %v5987, %v5938
    %v5996 = vsel %vm132, %v5988, %v5940
    %vm5997 = vcmask 195584
    %v5998 = vsel %vm5997, %v5989, %v5958
    %v5999 = vsel %vm5997, %v5990, %v5960
    %v6000 = vsel %vm5997, %v5991, %v5962
    %v6001 = vsel %vm5997, %v5992, %v5964
    %v6002 = vsel %vm5997, %v5993, %v5966
    %v6003 = vsel %vm5997, %v5994, %v5968
    %v6004 = vsel %vm5997, %v5995, %v5970
    %v6005 = vsel %vm5997, %v5996, %v5972
    %v6006 = vmul.f32 %v5998, %v5998
    %v6007 = vmul.f32 %v5999, %v5999
    %v6008 = vmul.f32 %v6000, %v6000
    %v6009 = vmul.f32 %v6001, %v6001
    %v6010 = vmul.f32 %v6002, %v6002
    %v6011 = vmul.f32 %v6003, %v6003
    %v6012 = vmul.f32 %v6004, %v6004
    %v6013 = vmul.f32 %v6005, %v6005
    %v6014 = vsel %vm414, %v6006, 0.0
    %6015 = vadd.xlane.f32.xlu0 %v6014
    %v6016 = vpop.xlane.xlu0 %6015
    %v6017 = vsel %vm414, %v6007, 0.0
    %6018 = vadd.xlane.f32.xlu0 %v6017
    %v6019 = vpop.xlane.xlu0 %6018
    %v6020 = vsel %vm414, %v6008, 0.0
    %6021 = vadd.xlane.f32.xlu0 %v6020
    %v6022 = vpop.xlane.xlu0 %6021
    %v6023 = vsel %vm414, %v6009, 0.0
    %6024 = vadd.xlane.f32.xlu0 %v6023
    %v6025 = vpop.xlane.xlu0 %6024
    %v6026 = vsel %vm414, %v6010, 0.0
    %6027 = vadd.xlane.f32.xlu0 %v6026
    %v6028 = vpop.xlane.xlu0 %6027
    %v6029 = vsel %vm414, %v6011, 0.0
    %6030 = vadd.xlane.f32.xlu0 %v6029
    %v6031 = vpop.xlane.xlu0 %6030
    %v6032 = vsel %vm414, %v6012, 0.0
    %6033 = vadd.xlane.f32.xlu0 %v6032
    %v6034 = vpop.xlane.xlu0 %6033
    %v6035 = vsel %vm414, %v6013, 0.0
    %6036 = vadd.xlane.f32.xlu0 %v6035
    %v6037 = vpop.xlane.xlu0 %6036
    %v6038 = vmul.f32 %v6016, %v439
    %v6039 = vmul.f32 %v6019, %v439
    %v6040 = vmul.f32 %v6022, %v439
    %v6041 = vmul.f32 %v6025, %v439
    %v6042 = vmul.f32 %v6028, %v439
    %v6043 = vmul.f32 %v6031, %v439
    %v6044 = vmul.f32 %v6034, %v439
    %v6045 = vmul.f32 %v6037, %v439
    %v6046 = vadd.f32 %v6038, 1e-05
    %v6047 = vadd.f32 %v6039, 1e-05
    %v6048 = vadd.f32 %v6040, 1e-05
    %v6049 = vadd.f32 %v6041, 1e-05
    %v6050 = vadd.f32 %v6042, 1e-05
    %v6051 = vadd.f32 %v6043, 1e-05
    %v6052 = vadd.f32 %v6044, 1e-05
    %v6053 = vadd.f32 %v6045, 1e-05
    %v6054 = vrsqrt.pop %v6046
    %v6055 = vrsqrt.pop %v6047
    %v6056 = vrsqrt.pop %v6048
    %v6057 = vrsqrt.pop %v6049
    %v6058 = vrsqrt.pop %v6050
    %v6059 = vrsqrt.pop %v6051
    %v6060 = vrsqrt.pop %v6052
    %v6061 = vrsqrt.pop %v6053
    %v6062 = vmul.f32 %v5998, %v6054
    %v6063 = vmul.f32 %v5999, %v6055
    %v6064 = vmul.f32 %v6000, %v6056
    %v6065 = vmul.f32 %v6001, %v6057
    %v6066 = vmul.f32 %v6002, %v6058
    %v6067 = vmul.f32 %v6003, %v6059
    %v6068 = vmul.f32 %v6004, %v6060
    %v6069 = vmul.f32 %v6005, %v6061
    %v6070 = vlaneseq
    %v6071 = vshrl.u32 %v6070, 7
    %v6072 = vsub.s32 0, %v6071
    %v6073 = vrot.slane %v393, %v6072
    %v6074 = vmul.f32 %v6062, %v6073
    %v6075 = vmul.f32 %v6063, %v6073
    %v6076 = vmul.f32 %v6064, %v6073
    %v6077 = vmul.f32 %v6065, %v6073
    %v6078 = vmul.f32 %v6066, %v6073
    %v6079 = vmul.f32 %v6067, %v6073
    %v6080 = vmul.f32 %v6068, %v6073
    %v6081 = vmul.f32 %v6069, %v6073
    %v6082 = vadd.f32 %v476, %v6074
    %v6083 = vadd.f32 %v477, %v6075
    %v6084 = vadd.f32 %v478, %v6076
    %v6085 = vadd.f32 %v479, %v6077
    %v6086 = vadd.f32 %v480, %v6078
    %v6087 = vadd.f32 %v481, %v6079
    %v6088 = vadd.f32 %v482, %v6080
    %v6089 = vadd.f32 %v483, %v6081
    %v6090 = vmul.f32 %v6082, %v6082
    %v6091 = vmul.f32 %v6083, %v6083
    %v6092 = vmul.f32 %v6084, %v6084
    %v6093 = vmul.f32 %v6085, %v6085
    %v6094 = vmul.f32 %v6086, %v6086
    %v6095 = vmul.f32 %v6087, %v6087
    %v6096 = vmul.f32 %v6088, %v6088
    %v6097 = vmul.f32 %v6089, %v6089
    %v6098 = vsel %vm414, %v6090, 0.0
    %6099 = vadd.xlane.f32.xlu0 %v6098
    %v6100 = vpop.xlane.xlu0 %6099
    %v6101 = vsel %vm414, %v6091, 0.0
    %6102 = vadd.xlane.f32.xlu0 %v6101
    %v6103 = vpop.xlane.xlu0 %6102
    %v6104 = vsel %vm414, %v6092, 0.0
    %6105 = vadd.xlane.f32.xlu0 %v6104
    %v6106 = vpop.xlane.xlu0 %6105
    %v6107 = vsel %vm414, %v6093, 0.0
    %6108 = vadd.xlane.f32.xlu0 %v6107
    %v6109 = vpop.xlane.xlu0 %6108
    %v6110 = vsel %vm414, %v6094, 0.0
    %6111 = vadd.xlane.f32.xlu0 %v6110
    %v6112 = vpop.xlane.xlu0 %6111
    %v6113 = vsel %vm414, %v6095, 0.0
    %6114 = vadd.xlane.f32.xlu0 %v6113
    %v6115 = vpop.xlane.xlu0 %6114
    %v6116 = vsel %vm414, %v6096, 0.0
    %6117 = vadd.xlane.f32.xlu0 %v6116
    %v6118 = vpop.xlane.xlu0 %6117
    %v6119 = vsel %vm414, %v6097, 0.0
    %6120 = vadd.xlane.f32.xlu0 %v6119
    %v6121 = vpop.xlane.xlu0 %6120
    %v6122 = vmul.f32 %v6100, %v439
    %v6123 = vmul.f32 %v6103, %v439
    %v6124 = vmul.f32 %v6106, %v439
    %v6125 = vmul.f32 %v6109, %v439
    %v6126 = vmul.f32 %v6112, %v439
    %v6127 = vmul.f32 %v6115, %v439
    %v6128 = vmul.f32 %v6118, %v439
    %v6129 = vmul.f32 %v6121, %v439
    %v6130 = vadd.f32 %v6122, 1e-05
    %v6131 = vadd.f32 %v6123, 1e-05
    %v6132 = vadd.f32 %v6124, 1e-05
    %v6133 = vadd.f32 %v6125, 1e-05
    %v6134 = vadd.f32 %v6126, 1e-05
    %v6135 = vadd.f32 %v6127, 1e-05
    %v6136 = vadd.f32 %v6128, 1e-05
    %v6137 = vadd.f32 %v6129, 1e-05
    %v6138 = vrsqrt.pop %v6130
    %v6139 = vrsqrt.pop %v6131
    %v6140 = vrsqrt.pop %v6132
    %v6141 = vrsqrt.pop %v6133
    %v6142 = vrsqrt.pop %v6134
    %v6143 = vrsqrt.pop %v6135
    %v6144 = vrsqrt.pop %v6136
    %v6145 = vrsqrt.pop %v6137
    %v6146 = vmul.f32 %v6082, %v6138
    %v6147 = vmul.f32 %v6083, %v6139
    %v6148 = vmul.f32 %v6084, %v6140
    %v6149 = vmul.f32 %v6085, %v6141
    %v6150 = vmul.f32 %v6086, %v6142
    %v6151 = vmul.f32 %v6087, %v6143
    %v6152 = vmul.f32 %v6088, %v6144
    %v6153 = vmul.f32 %v6089, %v6145
    %v6154 = vlaneseq
    %v6155 = vshrl.u32 %v6154, 7
    %v6156 = vsub.s32 0, %v6155
    %v6157 = vrot.slane %v394, %v6156
    %v6158 = vmul.f32 %v6146, %v6157
    %v6159 = vmul.f32 %v6147, %v6157
    %v6160 = vmul.f32 %v6148, %v6157
    %v6161 = vmul.f32 %v6149, %v6157
    %v6162 = vmul.f32 %v6150, %v6157
    %v6163 = vmul.f32 %v6151, %v6157
    %v6164 = vmul.f32 %v6152, %v6157
    %v6165 = vmul.f32 %v6153, %v6157
    %v6166 = vlaneseq
    %v6167 = vshrl.u32 %v6166, 7
    %v6168 = vsub.s32 0, %v6167
    %v6169 = vrot.slane %v400, %v6168
    %v6171 = vsel %vm414, %v6158, 0
    %v6174 = vsel %vm414, %v6159, 0
    %v6177 = vsel %vm414, %v6160, 0
    %v6180 = vsel %vm414, %v6161, 0
    %v6183 = vsel %vm414, %v6162, 0
    %v6186 = vsel %vm414, %v6163, 0
    %v6189 = vsel %vm414, %v6164, 0
    %v6192 = vsel %vm414, %v6165, 0
    %6194 = vmatprep.subr.mxu0 0.0
    %6195 = vmatpush1.msra.mxu0 0.0
    %6196 = vmatprep.subr.mxu0 0.0
    %6197 = vmatpush1.msra.mxu0 0.0
    %6198 = vmatprep.subr.mxu0 0.0
    %6199 = vmatpush1.msra.mxu0 0.0
    %6200 = vmatprep.subr.mxu0 0.0
    %6201 = vmatpush1.msra.mxu0 0.0
    %6202 = vmatprep.subr.mxu0 0.0
    %6203 = vmatpush1.msra.mxu0 0.0
    %6204 = vmatprep.subr.mxu0 0.0
    %6205 = vmatpush1.msra.mxu0 0.0
    %6206 = vmatprep.subr.mxu0 0.0
    %6207 = vmatpush1.msra.mxu0 0.0
    %6208 = vmatprep.subr.mxu0 0.0
    %6209 = vmatpush1.msra.mxu0 0.0
    %6210 = vmatprep.subr.mxu0 0.0
    %6211 = vmatpush1.msra.mxu0 0.0
    %6212 = vmatprep.subr.mxu0 0.0
    %6213 = vmatpush1.msra.mxu0 0.0
    %6214 = vmatprep.subr.mxu0 0.0
    %6215 = vmatpush1.msra.mxu0 0.0
    %6216 = vmatprep.subr.mxu0 0.0
    %6217 = vmatpush1.msra.mxu0 0.0
    %6218 = vmatprep.subr.mxu0 0.0
    %6219 = vmatpush1.msra.mxu0 %v399
    %6220 = vmatprep.subr.mxu0 0.0
    %6221 = vmatpush1.msra.mxu0 %v398
    %6222 = vmatprep.subr.mxu0 0.0
    %6223 = vmatpush1.msra.mxu0 %v397
    %6224 = vmatprep.subr.mxu0 0.0
    %6225 = vmatpush1.msra.mxu0 %v396
    %6226 = vmatprep.subr.mxu0 0.0
    %6227 = vmatpush2.msra.mxu0 0.0
    %6228 = vmatprep.subr.mxu0 0.0
    %6229 = vmatpush2.msra.mxu0 0.0
    %6230 = vmatprep.subr.mxu0 0.0
    %6231 = vmatpush2.msra.mxu0 0.0
    %6232 = vmatprep.subr.mxu0 0.0
    %6233 = vmatpush2.msra.mxu0 0.0
    %6234 = vmatprep.subr.mxu0 0.0
    %6235 = vmatpush2.msra.mxu0 0.0
    %6236 = vmatprep.subr.mxu0 0.0
    %6237 = vmatpush2.msra.mxu0 0.0
    %6238 = vmatprep.subr.mxu0 0.0
    %6239 = vmatpush2.msra.mxu0 0.0
    %6240 = vmatprep.subr.mxu0 0.0
    %6241 = vmatpush2.msra.mxu0 0.0
    %6242 = vmatprep.subr.mxu0 0.0
    %6243 = vmatpush2.msra.mxu0 0.0
    %6244 = vmatprep.subr.mxu0 0.0
    %6245 = vmatpush2.msra.mxu0 0.0
    %6246 = vmatprep.subr.mxu0 0.0
    %6247 = vmatpush2.msra.mxu0 0.0
    %6248 = vmatprep.subr.mxu0 0.0
    %6249 = vmatpush2.msra.mxu0 0.0
    %6250 = vmatprep.subr.mxu0 0.0
    %6251 = vmatpush2.msra.mxu0 0.0
    %6252 = vmatprep.subr.mxu0 0.0
    %6253 = vmatpush2.msra.mxu0 0.0
    %6254 = vmatprep.subr.mxu0 0.0
    %6255 = vmatpush2.msra.mxu0 0.0
    %6256 = vmatprep.subr.mxu0 0.0
    %6257 = vmatpush2.msra.mxu0 0.0
    %6258 = vmatprep.mubr.f32.mxu0 0.0
    %6259 = vmatmul.mubr.f32.gmra.mxu0 %v6171
    %v6260 = vpop.f32.mrf.mxu0
    %v6261 = vadd.f32 %v6169, %v6260
    %v6262 = vpop.f32.mrf.mxu0
    %6263 = vmatprep.mubr.f32.mxu0 0.0
    %6264 = vmatmul.mubr.f32.gmra.mxu0 %v6174
    %v6265 = vpop.f32.mrf.mxu0
    %v6266 = vadd.f32 %v6169, %v6265
    %v6267 = vpop.f32.mrf.mxu0
    %6268 = vmatprep.mubr.f32.mxu0 0.0
    %6269 = vmatmul.mubr.f32.gmra.mxu0 %v6177
    %v6270 = vpop.f32.mrf.mxu0
    %v6271 = vadd.f32 %v6169, %v6270
    %v6272 = vpop.f32.mrf.mxu0
    %6273 = vmatprep.mubr.f32.mxu0 0.0
    %6274 = vmatmul.mubr.f32.gmra.mxu0 %v6180
    %v6275 = vpop.f32.mrf.mxu0
    %v6276 = vadd.f32 %v6169, %v6275
    %v6277 = vpop.f32.mrf.mxu0
    %6278 = vmatprep.mubr.f32.mxu0 0.0
    %6279 = vmatmul.mubr.f32.gmra.mxu0 %v6183
    %v6280 = vpop.f32.mrf.mxu0
    %v6281 = vadd.f32 %v6169, %v6280
    %v6282 = vpop.f32.mrf.mxu0
    %6283 = vmatprep.mubr.f32.mxu0 0.0
    %6284 = vmatmul.mubr.f32.gmra.mxu0 %v6186
    %v6285 = vpop.f32.mrf.mxu0
    %v6286 = vadd.f32 %v6169, %v6285
    %v6287 = vpop.f32.mrf.mxu0
    %6288 = vmatprep.mubr.f32.mxu0 0.0
    %6289 = vmatmul.mubr.f32.gmra.mxu0 %v6189
    %v6290 = vpop.f32.mrf.mxu0
    %v6291 = vadd.f32 %v6169, %v6290
    %v6292 = vpop.f32.mrf.mxu0
    %6293 = vmatprep.mubr.f32.mxu0 0.0
    %6294 = vmatmul.mubr.f32.gmra.mxu0 %v6192
    %v6295 = vpop.f32.mrf.mxu0
    %v6296 = vadd.f32 %v6169, %v6295
    %v6297 = vpop.f32.mrf.mxu0
    %6298 = vdwg.mxu0
    %v6299 = vmax.f32 %v6261, 0.0
    %v6300 = vmax.f32 %v6266, 0.0
    %v6301 = vmax.f32 %v6271, 0.0
    %v6302 = vmax.f32 %v6276, 0.0
    %v6303 = vmax.f32 %v6281, 0.0
    %v6304 = vmax.f32 %v6286, 0.0
    %v6305 = vmax.f32 %v6291, 0.0
    %v6306 = vmax.f32 %v6296, 0.0
    %v6307 = vlaneseq
    %v6308 = vshrl.u32 %v6307, 7
    %v6309 = vsub.s32 0, %v6308
    %v6310 = vrot.slane %v405, %v6309
    %v6312 = vsel %vm414, %v6299, 0
    %v6315 = vsel %vm414, %v6300, 0
    %v6318 = vsel %vm414, %v6301, 0
    %v6321 = vsel %vm414, %v6302, 0
    %v6324 = vsel %vm414, %v6303, 0
    %v6327 = vsel %vm414, %v6304, 0
    %v6330 = vsel %vm414, %v6305, 0
    %v6333 = vsel %vm414, %v6306, 0
    %6335 = vmatprep.subr.mxu0 0.0
    %6336 = vmatpush1.msra.mxu0 0.0
    %6337 = vmatprep.subr.mxu0 0.0
    %6338 = vmatpush1.msra.mxu0 0.0
    %6339 = vmatprep.subr.mxu0 0.0
    %6340 = vmatpush1.msra.mxu0 0.0
    %6341 = vmatprep.subr.mxu0 0.0
    %6342 = vmatpush1.msra.mxu0 0.0
    %6343 = vmatprep.subr.mxu0 0.0
    %6344 = vmatpush1.msra.mxu0 0.0
    %6345 = vmatprep.subr.mxu0 0.0
    %6346 = vmatpush1.msra.mxu0 0.0
    %6347 = vmatprep.subr.mxu0 0.0
    %6348 = vmatpush1.msra.mxu0 0.0
    %6349 = vmatprep.subr.mxu0 0.0
    %6350 = vmatpush1.msra.mxu0 0.0
    %6351 = vmatprep.subr.mxu0 0.0
    %6352 = vmatpush1.msra.mxu0 0.0
    %6353 = vmatprep.subr.mxu0 0.0
    %6354 = vmatpush1.msra.mxu0 0.0
    %6355 = vmatprep.subr.mxu0 0.0
    %6356 = vmatpush1.msra.mxu0 0.0
    %6357 = vmatprep.subr.mxu0 0.0
    %6358 = vmatpush1.msra.mxu0 0.0
    %6359 = vmatprep.subr.mxu0 0.0
    %6360 = vmatpush1.msra.mxu0 %v404
    %6361 = vmatprep.subr.mxu0 0.0
    %6362 = vmatpush1.msra.mxu0 %v403
    %6363 = vmatprep.subr.mxu0 0.0
    %6364 = vmatpush1.msra.mxu0 %v402
    %6365 = vmatprep.subr.mxu0 0.0
    %6366 = vmatpush1.msra.mxu0 %v401
    %6367 = vmatprep.subr.mxu0 0.0
    %6368 = vmatpush2.msra.mxu0 0.0
    %6369 = vmatprep.subr.mxu0 0.0
    %6370 = vmatpush2.msra.mxu0 0.0
    %6371 = vmatprep.subr.mxu0 0.0
    %6372 = vmatpush2.msra.mxu0 0.0
    %6373 = vmatprep.subr.mxu0 0.0
    %6374 = vmatpush2.msra.mxu0 0.0
    %6375 = vmatprep.subr.mxu0 0.0
    %6376 = vmatpush2.msra.mxu0 0.0
    %6377 = vmatprep.subr.mxu0 0.0
    %6378 = vmatpush2.msra.mxu0 0.0
    %6379 = vmatprep.subr.mxu0 0.0
    %6380 = vmatpush2.msra.mxu0 0.0
    %6381 = vmatprep.subr.mxu0 0.0
    %6382 = vmatpush2.msra.mxu0 0.0
    %6383 = vmatprep.subr.mxu0 0.0
    %6384 = vmatpush2.msra.mxu0 0.0
    %6385 = vmatprep.subr.mxu0 0.0
    %6386 = vmatpush2.msra.mxu0 0.0
    %6387 = vmatprep.subr.mxu0 0.0
    %6388 = vmatpush2.msra.mxu0 0.0
    %6389 = vmatprep.subr.mxu0 0.0
    %6390 = vmatpush2.msra.mxu0 0.0
    %6391 = vmatprep.subr.mxu0 0.0
    %6392 = vmatpush2.msra.mxu0 0.0
    %6393 = vmatprep.subr.mxu0 0.0
    %6394 = vmatpush2.msra.mxu0 0.0
    %6395 = vmatprep.subr.mxu0 0.0
    %6396 = vmatpush2.msra.mxu0 0.0
    %6397 = vmatprep.subr.mxu0 0.0
    %6398 = vmatpush2.msra.mxu0 0.0
    %6399 = vmatprep.mubr.f32.mxu0 0.0
    %6400 = vmatmul.mubr.f32.gmra.mxu0 %v6312
    %v6401 = vpop.f32.mrf.mxu0
    %v6402 = vadd.f32 %v6310, %v6401
    %v6403 = vpop.f32.mrf.mxu0
    %6404 = vmatprep.mubr.f32.mxu0 0.0
    %6405 = vmatmul.mubr.f32.gmra.mxu0 %v6315
    %v6406 = vpop.f32.mrf.mxu0
    %v6407 = vadd.f32 %v6310, %v6406
    %v6408 = vpop.f32.mrf.mxu0
    %6409 = vmatprep.mubr.f32.mxu0 0.0
    %6410 = vmatmul.mubr.f32.gmra.mxu0 %v6318
    %v6411 = vpop.f32.mrf.mxu0
    %v6412 = vadd.f32 %v6310, %v6411
    %v6413 = vpop.f32.mrf.mxu0
    %6414 = vmatprep.mubr.f32.mxu0 0.0
    %6415 = vmatmul.mubr.f32.gmra.mxu0 %v6321
    %v6416 = vpop.f32.mrf.mxu0
    %v6417 = vadd.f32 %v6310, %v6416
    %v6418 = vpop.f32.mrf.mxu0
    %6419 = vmatprep.mubr.f32.mxu0 0.0
    %6420 = vmatmul.mubr.f32.gmra.mxu0 %v6324
    %v6421 = vpop.f32.mrf.mxu0
    %v6422 = vadd.f32 %v6310, %v6421
    %v6423 = vpop.f32.mrf.mxu0
    %6424 = vmatprep.mubr.f32.mxu0 0.0
    %6425 = vmatmul.mubr.f32.gmra.mxu0 %v6327
    %v6426 = vpop.f32.mrf.mxu0
    %v6427 = vadd.f32 %v6310, %v6426
    %v6428 = vpop.f32.mrf.mxu0
    %6429 = vmatprep.mubr.f32.mxu0 0.0
    %6430 = vmatmul.mubr.f32.gmra.mxu0 %v6330
    %v6431 = vpop.f32.mrf.mxu0
    %v6432 = vadd.f32 %v6310, %v6431
    %v6433 = vpop.f32.mrf.mxu0
    %6434 = vmatprep.mubr.f32.mxu0 0.0
    %6435 = vmatmul.mubr.f32.gmra.mxu0 %v6333
    %v6436 = vpop.f32.mrf.mxu0
    %v6437 = vadd.f32 %v6310, %v6436
    %v6438 = vpop.f32.mrf.mxu0
    %6439 = vdwg.mxu0
    %v6440 = vadd.f32 %v6158, %v6402
    %v6441 = vadd.f32 %v6159, %v6407
    %v6442 = vadd.f32 %v6160, %v6412
    %v6443 = vadd.f32 %v6161, %v6417
    %v6444 = vadd.f32 %v6162, %v6422
    %v6445 = vadd.f32 %v6163, %v6427
    %v6446 = vadd.f32 %v6164, %v6432
    %v6447 = vadd.f32 %v6165, %v6437
    %v6448 = vmul.f32 %v6440, %v6440
    %v6449 = vmul.f32 %v6441, %v6441
    %v6450 = vmul.f32 %v6442, %v6442
    %v6451 = vmul.f32 %v6443, %v6443
    %v6452 = vmul.f32 %v6444, %v6444
    %v6453 = vmul.f32 %v6445, %v6445
    %v6454 = vmul.f32 %v6446, %v6446
    %v6455 = vmul.f32 %v6447, %v6447
    %v6456 = vsel %vm414, %v6448, 0.0
    %6457 = vadd.xlane.f32.xlu0 %v6456
    %v6458 = vpop.xlane.xlu0 %6457
    %v6459 = vsel %vm414, %v6449, 0.0
    %6460 = vadd.xlane.f32.xlu0 %v6459
    %v6461 = vpop.xlane.xlu0 %6460
    %v6462 = vsel %vm414, %v6450, 0.0
    %6463 = vadd.xlane.f32.xlu0 %v6462
    %v6464 = vpop.xlane.xlu0 %6463
    %v6465 = vsel %vm414, %v6451, 0.0
    %6466 = vadd.xlane.f32.xlu0 %v6465
    %v6467 = vpop.xlane.xlu0 %6466
    %v6468 = vsel %vm414, %v6452, 0.0
    %6469 = vadd.xlane.f32.xlu0 %v6468
    %v6470 = vpop.xlane.xlu0 %6469
    %v6471 = vsel %vm414, %v6453, 0.0
    %6472 = vadd.xlane.f32.xlu0 %v6471
    %v6473 = vpop.xlane.xlu0 %6472
    %v6474 = vsel %vm414, %v6454, 0.0
    %6475 = vadd.xlane.f32.xlu0 %v6474
    %v6476 = vpop.xlane.xlu0 %6475
    %v6477 = vsel %vm414, %v6455, 0.0
    %6478 = vadd.xlane.f32.xlu0 %v6477
    %v6479 = vpop.xlane.xlu0 %6478
    %v6480 = vmul.f32 %v6458, %v439
    %v6481 = vmul.f32 %v6461, %v439
    %v6482 = vmul.f32 %v6464, %v439
    %v6483 = vmul.f32 %v6467, %v439
    %v6484 = vmul.f32 %v6470, %v439
    %v6485 = vmul.f32 %v6473, %v439
    %v6486 = vmul.f32 %v6476, %v439
    %v6487 = vmul.f32 %v6479, %v439
    %v6488 = vadd.f32 %v6480, 1e-05
    %v6489 = vadd.f32 %v6481, 1e-05
    %v6490 = vadd.f32 %v6482, 1e-05
    %v6491 = vadd.f32 %v6483, 1e-05
    %v6492 = vadd.f32 %v6484, 1e-05
    %v6493 = vadd.f32 %v6485, 1e-05
    %v6494 = vadd.f32 %v6486, 1e-05
    %v6495 = vadd.f32 %v6487, 1e-05
    %v6496 = vrsqrt.pop %v6488
    %v6497 = vrsqrt.pop %v6489
    %v6498 = vrsqrt.pop %v6490
    %v6499 = vrsqrt.pop %v6491
    %v6500 = vrsqrt.pop %v6492
    %v6501 = vrsqrt.pop %v6493
    %v6502 = vrsqrt.pop %v6494
    %v6503 = vrsqrt.pop %v6495
    %v6504 = vmul.f32 %v6440, %v6496
    %v6505 = vmul.f32 %v6441, %v6497
    %v6506 = vmul.f32 %v6442, %v6498
    %v6507 = vmul.f32 %v6443, %v6499
    %v6508 = vmul.f32 %v6444, %v6500
    %v6509 = vmul.f32 %v6445, %v6501
    %v6510 = vmul.f32 %v6446, %v6502
    %v6511 = vmul.f32 %v6447, %v6503
    %v6512 = vlaneseq
    %v6513 = vshrl.u32 %v6512, 7
    %v6514 = vsub.s32 0, %v6513
    %v6515 = vrot.slane %v395, %v6514
    %v6516 = vmul.f32 %v6504, %v6515
    %v6517 = vmul.f32 %v6505, %v6515
    %v6518 = vmul.f32 %v6506, %v6515
    %v6519 = vmul.f32 %v6507, %v6515
    %v6520 = vmul.f32 %v6508, %v6515
    %v6521 = vmul.f32 %v6509, %v6515
    %v6522 = vmul.f32 %v6510, %v6515
    %v6523 = vmul.f32 %v6511, %v6515
    %6524 = vst.msk [vmem:[%s3] sm:$0xff] %vm414, %v6516
    %6525 = vst.msk [vmem:[%s3 + $0x8] sm:$0xff] %vm414, %v6517
    %6526 = vst.msk [vmem:[%s3 + $0x10] sm:$0xff] %vm414, %v6518
    %6527 = vst.msk [vmem:[%s3 + $0x18] sm:$0xff] %vm414, %v6519
    %6528 = vst.msk [vmem:[%s3 + $0x20] sm:$0xff] %vm414, %v6520
    %6529 = vst.msk [vmem:[%s3 + $0x28] sm:$0xff] %vm414, %v6521
    %6530 = vst.msk [vmem:[%s3 + $0x30] sm:$0xff] %vm414, %v6522
    %6531 = vst.msk [vmem:[%s3 + $0x38] sm:$0xff] %vm414, %v6523
    // Predicated region
    $region22: #{_lambda_.2} parent=1 // pred_check
      _
    $region23: #{_lambda_.2} parent=1 // pred_check_branch
      %6533 = sbr.rel (0) target = $region25
    $region24: #{_lambda_.2} parent=1 // pred_region
      _
    $region25: #{_lambda_.2} parent=1 // pred_fallthru
      _
    // Predicated region
    $region26: #{_lambda_.2} parent=1 // pred_check
      _
    $region27: #{_lambda_.2} parent=1 // pred_check_branch
      %6535 = sbr.rel (0) target = $region29
    $region28: #{_lambda_.2} parent=1 // pred_region
      _
    $region29: #{_lambda_.2} parent=1 // pred_fallthru
      _
    %6536 = vsyncpa [#allocation3], 1
    %6537 = vsyncpa [#allocation5], 1

</llo_original>
